<compile_context>
chip_gen: v7x
topology: tpu7x:2x2x1
jax: 0.10.0
libtpu: 0.0.40
codegen_flags: <defaults>
</compile_context>

<pallas_src>
import functools

import jax
import jax.numpy as jnp
import numpy as np
from jax.experimental import pallas as pl
from jax.experimental.pallas import tpu as pltpu

EPS = 1e-5
LANE = 128                       # pad channels to a multiple of the lane width
VMEM_LIMIT = 48 * 1024 * 1024    # fits v5e/v6e (128 MiB) and v7x (64 MiB)


def _round_up(x, m):
    return (x + m - 1) // m * m


# ---------------------------------------------------------------------------
# Pass 1: 3x3x3 conv (stride 1, pad 1) + partial BatchNorm statistics.
# Grid = (N, D): three padded depth slices in, one (H*W, Co) slab + stats out.
# ---------------------------------------------------------------------------
def _conv3d_stats_kernel(x0_ref, x1_ref, x2_ref, w_ref, y_ref, ps_ref, pq_ref,
                         *, H, W, Ci, Co):
    # xk_ref: (H+2, W+2, Ci) bf16  padded input depth slice d + k
    # w_ref : (27*Ci, Co)    bf16  weights, (kd, kh, kw, ci) major -> co
    # y_ref : (H*W, Co)      f32   conv output rows for this (n, d)
    # ps/pq : (8, Co)        f32   per-channel partial sum / sumsq (replicated)
    acc = jnp.zeros((H * W, Co), jnp.float32)
    for kd, xr in enumerate((x0_ref, x1_ref, x2_ref)):
        for kh in range(3):
            for kw in range(3):
                xs = xr[kh:kh + H, kw:kw + W, :].reshape(H * W, Ci)
                off = (kd * 9 + kh * 3 + kw) * Ci
                acc += jnp.dot(xs, w_ref[off:off + Ci, :],
                               preferred_element_type=jnp.float32)
    y_ref[...] = acc
    ps_ref[...] = jnp.broadcast_to(jnp.sum(acc, axis=0, keepdims=True), (8, Co))
    pq_ref[...] = jnp.broadcast_to(jnp.sum(acc * acc, axis=0, keepdims=True),
                                   (8, Co))


def _conv3d_stats(xpad, w, *, N, D, H, W, Ci, Co):
    Hp, Wp = H + 2, W + 2
    M = N * D * H * W

    def x_spec(k):
        return pl.BlockSpec((None, None, Hp, Wp, Ci),
                            lambda n, d, k=k: (n, d + k, 0, 0, 0))

    kern = functools.partial(_conv3d_stats_kernel, H=H, W=W, Ci=Ci, Co=Co)
    return pl.pallas_call(
        kern,
        out_shape=(
            jax.ShapeDtypeStruct((M, Co), jnp.float32),
            jax.ShapeDtypeStruct((N * D * 8, Co), jnp.float32),
            jax.ShapeDtypeStruct((N * D * 8, Co), jnp.float32),
        ),
        grid=(N, D),
        in_specs=[
            x_spec(0), x_spec(1), x_spec(2),
            pl.BlockSpec((27 * Ci, Co), lambda n, d: (0, 0)),  # resident weights
        ],
        out_specs=(
            pl.BlockSpec((H * W, Co), lambda n, d: (n * D + d, 0)),
            pl.BlockSpec((8, Co), lambda n, d: (n * D + d, 0)),
            pl.BlockSpec((8, Co), lambda n, d: (n * D + d, 0)),
        ),
        compiler_params=pltpu.CompilerParams(
            dimension_semantics=("parallel", "parallel"),
            vmem_limit_bytes=VMEM_LIMIT),
    )(xpad, xpad, xpad, w)


# ---------------------------------------------------------------------------
# Pass 2: out = ReLU(y * scale + bias [+ residual]), tiled over rows.
# ---------------------------------------------------------------------------
def _bn_act_kernel(y_ref, s_ref, b_ref, o_ref):
    o_ref[...] = jnp.maximum(y_ref[...] * s_ref[...] + b_ref[...],
                             0.0).astype(o_ref.dtype)


def _bn_act_res_kernel(y_ref, s_ref, b_ref, r_ref, o_ref):
    o_ref[...] = jnp.maximum(y_ref[...] * s_ref[...] + b_ref[...] + r_ref[...],
                             0.0).astype(o_ref.dtype)


def _pick_rows_block(m, hw, co):
    # ~1 MiB of f32 per block stream; block rows must divide M and be 8-aligned
    target = max(hw, (1 << 20) // (co * 4))
    if hw % 8 != 0:
        return m                    # TODO(synk): generic sublane-ragged tiling
    nd = m // hw
    best = hw
    for g in range(1, nd + 1):
        if nd % g == 0 and g * hw <= target:
            best = g * hw
    return best


def _bn_act(y, scale, bias, residual, out_dtype, *, rows_block):
    M, Co = y.shape
    row_spec = pl.BlockSpec((rows_block, Co), lambda i: (i, 0))
    vec_spec = pl.BlockSpec((1, Co), lambda i: (0, 0))
    if residual is None:
        kern, in_specs, args = _bn_act_kernel, [row_spec, vec_spec, vec_spec], \
            (y, scale, bias)
    else:
        kern, in_specs, args = _bn_act_res_kernel, \
            [row_spec, vec_spec, vec_spec, row_spec], (y, scale, bias, residual)
    return pl.pallas_call(
        kern,
        out_shape=jax.ShapeDtypeStruct((M, Co), out_dtype),
        grid=(M // rows_block,),
        in_specs=in_specs,
        out_specs=row_spec,
        compiler_params=pltpu.CompilerParams(
            dimension_semantics=("parallel",),
            vmem_limit_bytes=VMEM_LIMIT),
    )(*args)


def _bn_scale_bias(psum, psumsq, gamma, beta, count, nd, co):
    s = psum.reshape(nd, 8, co)[:, 0, :].sum(axis=0)
    q = psumsq.reshape(nd, 8, co)[:, 0, :].sum(axis=0)
    mean = s / count
    # TODO(synk): E[y^2]-E[y]^2 can cancel when |mean| >> std; a Welford-style
    # cross-tile combine would be safer. The clamp keeps rsqrt finite.
    var = jnp.maximum(q / count - mean * mean, 0.0)
    inv = jax.lax.rsqrt(var + EPS)
    scale = gamma * inv
    bias = beta - mean * scale
    return scale.reshape(1, co), bias.reshape(1, co)


def _conv_bn_stage(xpad_bf16, w_packed, gamma, beta, residual, out_dtype,
                   *, N, D, H, W, C):
    M = N * D * H * W
    y, ps, pq = _conv3d_stats(xpad_bf16, w_packed,
                              N=N, D=D, H=H, W=W, Ci=C, Co=C)
    scale, bias = _bn_scale_bias(ps, pq, gamma, beta, float(M), N * D, C)
    rows = _pick_rows_block(M, H * W, C)
    return _bn_act(y, scale, bias, residual, out_dtype, rows_block=rows)


@jax.jit
def basic_block_forward(x_ncdhw, w1, g1, b1, w2, g2, b2):
    """x_ncdhw: [N, C, D, H, W] f32 (PyTorch layout).
    w1, w2: [3,3,3,C,C] conv weights in (kd, kh, kw, cin, cout) layout
            (== torch Conv3d weight.permute(2, 3, 4, 1, 0)).
    g*, b*: [C] BatchNorm affine parameters.  Returns [N, C, D, H, W]."""
    N, Cin, D, H, W = x_ncdhw.shape
    Cp = w1.shape[-1]
    assert Cin == Cp, "downsample=None requires inplanes == planes"
    assert (H * W) % 8 == 0, "H*W must be a multiple of 8 (sublane tiling)"
    Cpad = _round_up(Cp, LANE)
    M = N * D * H * W

    # Boundary transposes only (PyTorch NCDHW API); everything internal is
    # channels-last so the lane dim is the (padded) channel dim.
    x = jnp.transpose(x_ncdhw, (0, 2, 3, 4, 1)).astype(jnp.float32)
    x = jnp.pad(x, ((0, 0), (0, 0), (0, 0), (0, 0), (0, Cpad - Cin)))
    residual = x.reshape(M, Cpad)

    def pack_w(w):
        wp = jnp.pad(w.astype(jnp.float32),
                     ((0, 0), (0, 0), (0, 0),
                      (0, Cpad - w.shape[3]), (0, Cpad - w.shape[4])))
        return wp.reshape(27 * Cpad, Cpad).astype(jnp.bfloat16)

    def pack_v(v):
        return jnp.pad(v.astype(jnp.float32), (0, Cpad - v.shape[0]))

    spad = ((0, 0), (1, 1), (1, 1), (1, 1), (0, 0))

    # conv1 -> BN1 -> ReLU   (kept bf16: it is conv2's MXU operand)
    x1 = jnp.pad(x.astype(jnp.bfloat16), spad)
    out1 = _conv_bn_stage(x1, pack_w(w1), pack_v(g1), pack_v(b1), None,
                          jnp.bfloat16, N=N, D=D, H=H, W=W, C=Cpad)

    # conv2 -> BN2 -> (+x) -> ReLU
    x2 = jnp.pad(out1.reshape(N, D, H, W, Cpad), spad)
    out2 = _conv_bn_stage(x2, pack_w(w2), pack_v(g2), pack_v(b2), residual,
                          jnp.float32, N=N, D=D, H=H, W=W, C=Cpad)

    out = out2.reshape(N, D, H, W, Cpad)[..., :Cp]
    return jnp.transpose(out, (0, 4, 1, 2, 3))


# ---------------------------------------------------------------------------
# Pure-JAX reference (XLA) for a numerical sanity check.
# ---------------------------------------------------------------------------
def _reference_forward(x_ncdhw, w1, g1, b1, w2, g2, b2):
    dn = ('NDHWC', 'DHWIO', 'NDHWC')
    x = jnp.transpose(x_ncdhw, (0, 2, 3, 4, 1)).astype(jnp.float32)

    def conv_bn_relu(inp, w, g, b, res=None):
        y = jax.lax.conv_general_dilated(
            inp, w.astype(jnp.float32), window_strides=(1, 1, 1),
            padding=((1, 1), (1, 1), (1, 1)), dimension_numbers=dn,
            precision=jax.lax.Precision.HIGHEST)
        mean = y.mean(axis=(0, 1, 2, 3))
        var = ((y - mean) ** 2).mean(axis=(0, 1, 2, 3))
        out = (y - mean) * jax.lax.rsqrt(var + EPS) * g + b
        if res is not None:
            out = out + res
        return jnp.maximum(out, 0.0)

    o1 = conv_bn_relu(x, w1, g1, b1)
    o2 = conv_bn_relu(o1, w2, g2, b2, res=x)
    return jnp.transpose(o2, (0, 4, 1, 2, 3))


if __name__ == "__main__":
    # inplanes == planes so the residual add is valid with downsample=None
    N, C, D, H, W = 2, 8, 8, 8, 8
    key = jax.random.PRNGKey(0)
    kx, kw1, kw2, kg1, kb1, kg2, kb2 = jax.random.split(key, 7)

    x = jax.random.normal(kx, (N, C, D, H, W), jnp.float32)
    w1 = 0.1 * jax.random.normal(kw1, (3, 3, 3, C, C), jnp.float32)
    w2 = 0.1 * jax.random.normal(kw2, (3, 3, 3, C, C), jnp.float32)
    g1 = 1.0 + 0.1 * jax.random.normal(kg1, (C,), jnp.float32)
    b1 = 0.1 * jax.random.normal(kb1, (C,), jnp.float32)
    g2 = 1.0 + 0.1 * jax.random.normal(kg2, (C,), jnp.float32)
    b2 = 0.1 * jax.random.normal(kb2, (C,), jnp.float32)

    out = jax.block_until_ready(basic_block_forward(x, w1, g1, b1, w2, g2, b2))
    assert out.shape == (N, C, D, H, W)
    assert bool(jnp.all(jnp.isfinite(out)))

    ref = jax.block_until_ready(_reference_forward(x, w1, g1, b1, w2, g2, b2))
    np.testing.assert_allclose(np.asarray(out), np.asarray(ref),
                               atol=5e-2, rtol=5e-2)
    print("KERNEL_OK")
</pallas_src>

<mosaic_0001>
module attributes {stable_mosaic.version = 11 : i64} {
  func.func @_conv3d_stats_kernel(%arg0: i32, %arg1: i32, %arg2: memref<1x1x10x10x128xbf16, #tpu.memory_space<vmem>>, %arg3: memref<1x1x10x10x128xbf16, #tpu.memory_space<vmem>>, %arg4: memref<1x1x10x10x128xbf16, #tpu.memory_space<vmem>>, %arg5: memref<3456x128xbf16, #tpu.memory_space<vmem>>, %arg6: memref<64x128xf32, #tpu.memory_space<vmem>>, %arg7: memref<8x128xf32, #tpu.memory_space<vmem>>, %arg8: memref<8x128xf32, #tpu.memory_space<vmem>>) attributes {dimension_semantics = [#tpu.dimension_semantics<parallel>, #tpu.dimension_semantics<parallel>], iteration_bounds = array<i64: 2, 8>, scalar_prefetch = 0 : i64, scratch_operands = 0 : i64, tpu.core_type = #tpu.core_type<tc>, window_params = [{transform_indices = @transform_0, window_bounds = array<i64: 1, 1, 10, 10, 128>}, {transform_indices = @transform_1, window_bounds = array<i64: 1, 1, 10, 10, 128>}, {transform_indices = @transform_2, window_bounds = array<i64: 1, 1, 10, 10, 128>}, {pipeline_mode = #tpu.pipeline_mode<synchronous>, transform_indices = @transform_3, window_bounds = array<i64: 3456, 128>}, {transform_indices = @transform_4, window_bounds = array<i64: 64, 128>}, {transform_indices = @transform_5, window_bounds = array<i64: 8, 128>}, {transform_indices = @transform_6, window_bounds = array<i64: 8, 128>}]} {
    %cst = arith.constant 0.000000e+00 : f32
    %0 = vector.broadcast %cst : f32 to vector<64x128xf32>
    %c0 = arith.constant 0 : index
    %c0_0 = arith.constant 0 : index
    %c0_1 = arith.constant 0 : index
    %c0_2 = arith.constant 0 : index
    %c0_3 = arith.constant 0 : index
    %1 = vector.load %arg2[%c0, %c0_0, %c0_1, %c0_2, %c0_3] : memref<1x1x10x10x128xbf16, #tpu.memory_space<vmem>>, vector<1x1x8x8x128xbf16>
    %2 = vector.shape_cast %1 : vector<1x1x8x8x128xbf16> to vector<8x8x128xbf16>
    %3 = vector.shape_cast %2 : vector<8x8x128xbf16> to vector<64x128xbf16>
    %c0_4 = arith.constant 0 : index
    %c0_5 = arith.constant 0 : index
    %4 = vector.load %arg5[%c0_4, %c0_5] : memref<3456x128xbf16, #tpu.memory_space<vmem>>, vector<128x128xbf16>
    %cst_6 = arith.constant dense<0.000000e+00> : vector<64x128xf32>
    %5 = tpu.matmul %3, %4, %cst_6 {dimension_numbers = #tpu.dot_dimension_numbers<[1], [0], [0], [1], [0, 0, 1, 1], [], []>} : vector<64x128xbf16>, vector<128x128xbf16>, vector<64x128xf32> -> vector<64x128xf32>
    %6 = arith.addf %0, %5 : vector<64x128xf32>
    %c0_7 = arith.constant 0 : index
    %c0_8 = arith.constant 0 : index
    %c0_9 = arith.constant 0 : index
    %c1 = arith.constant 1 : index
    %c0_10 = arith.constant 0 : index
    %7 = vector.load %arg2[%c0_7, %c0_8, %c0_9, %c1, %c0_10] : memref<1x1x10x10x128xbf16, #tpu.memory_space<vmem>>, vector<1x1x8x8x128xbf16>
    %8 = vector.shape_cast %7 : vector<1x1x8x8x128xbf16> to vector<8x8x128xbf16>
    %9 = vector.shape_cast %8 : vector<8x8x128xbf16> to vector<64x128xbf16>
    %c128 = arith.constant 128 : index
    %c0_11 = arith.constant 0 : index
    %10 = vector.load %arg5[%c128, %c0_11] : memref<3456x128xbf16, #tpu.memory_space<vmem>>, vector<128x128xbf16>
    %cst_12 = arith.constant dense<0.000000e+00> : vector<64x128xf32>
    %11 = tpu.matmul %9, %10, %cst_12 {dimension_numbers = #tpu.dot_dimension_numbers<[1], [0], [0], [1], [0, 0, 1, 1], [], []>} : vector<64x128xbf16>, vector<128x128xbf16>, vector<64x128xf32> -> vector<64x128xf32>
    %12 = arith.addf %6, %11 : vector<64x128xf32>
    %c0_13 = arith.constant 0 : index
    %c0_14 = arith.constant 0 : index
    %c0_15 = arith.constant 0 : index
    %c2 = arith.constant 2 : index
    %c0_16 = arith.constant 0 : index
    %13 = vector.load %arg2[%c0_13, %c0_14, %c0_15, %c2, %c0_16] : memref<1x1x10x10x128xbf16, #tpu.memory_space<vmem>>, vector<1x1x8x8x128xbf16>
    %14 = vector.shape_cast %13 : vector<1x1x8x8x128xbf16> to vector<8x8x128xbf16>
    %15 = vector.shape_cast %14 : vector<8x8x128xbf16> to vector<64x128xbf16>
    %c256 = arith.constant 256 : index
    %c0_17 = arith.constant 0 : index
    %16 = vector.load %arg5[%c256, %c0_17] : memref<3456x128xbf16, #tpu.memory_space<vmem>>, vector<128x128xbf16>
    %cst_18 = arith.constant dense<0.000000e+00> : vector<64x128xf32>
    %17 = tpu.matmul %15, %16, %cst_18 {dimension_numbers = #tpu.dot_dimension_numbers<[1], [0], [0], [1], [0, 0, 1, 1], [], []>} : vector<64x128xbf16>, vector<128x128xbf16>, vector<64x128xf32> -> vector<64x128xf32>
    %18 = arith.addf %12, %17 : vector<64x128xf32>
    %c0_19 = arith.constant 0 : index
    %c0_20 = arith.constant 0 : index
    %c1_21 = arith.constant 1 : index
    %c0_22 = arith.constant 0 : index
    %c0_23 = arith.constant 0 : index
    %19 = vector.load %arg2[%c0_19, %c0_20, %c1_21, %c0_22, %c0_23] : memref<1x1x10x10x128xbf16, #tpu.memory_space<vmem>>, vector<1x1x8x8x128xbf16>
    %20 = vector.shape_cast %19 : vector<1x1x8x8x128xbf16> to vector<8x8x128xbf16>
    %21 = vector.shape_cast %20 : vector<8x8x128xbf16> to vector<64x128xbf16>
    %c384 = arith.constant 384 : index
    %c0_24 = arith.constant 0 : index
    %22 = vector.load %arg5[%c384, %c0_24] : memref<3456x128xbf16, #tpu.memory_space<vmem>>, vector<128x128xbf16>
    %cst_25 = arith.constant dense<0.000000e+00> : vector<64x128xf32>
    %23 = tpu.matmul %21, %22, %cst_25 {dimension_numbers = #tpu.dot_dimension_numbers<[1], [0], [0], [1], [0, 0, 1, 1], [], []>} : vector<64x128xbf16>, vector<128x128xbf16>, vector<64x128xf32> -> vector<64x128xf32>
    %24 = arith.addf %18, %23 : vector<64x128xf32>
    %c0_26 = arith.constant 0 : index
    %c0_27 = arith.constant 0 : index
    %c1_28 = arith.constant 1 : index
    %c1_29 = arith.constant 1 : index
    %c0_30 = arith.constant 0 : index
    %25 = vector.load %arg2[%c0_26, %c0_27, %c1_28, %c1_29, %c0_30] : memref<1x1x10x10x128xbf16, #tpu.memory_space<vmem>>, vector<1x1x8x8x128xbf16>
    %26 = vector.shape_cast %25 : vector<1x1x8x8x128xbf16> to vector<8x8x128xbf16>
    %27 = vector.shape_cast %26 : vector<8x8x128xbf16> to vector<64x128xbf16>
    %c512 = arith.constant 512 : index
    %c0_31 = arith.constant 0 : index
    %28 = vector.load %arg5[%c512, %c0_31] : memref<3456x128xbf16, #tpu.memory_space<vmem>>, vector<128x128xbf16>
    %cst_32 = arith.constant dense<0.000000e+00> : vector<64x128xf32>
    %29 = tpu.matmul %27, %28, %cst_32 {dimension_numbers = #tpu.dot_dimension_numbers<[1], [0], [0], [1], [0, 0, 1, 1], [], []>} : vector<64x128xbf16>, vector<128x128xbf16>, vector<64x128xf32> -> vector<64x128xf32>
    %30 = arith.addf %24, %29 : vector<64x128xf32>
    %c0_33 = arith.constant 0 : index
    %c0_34 = arith.constant 0 : index
    %c1_35 = arith.constant 1 : index
    %c2_36 = arith.constant 2 : index
    %c0_37 = arith.constant 0 : index
    %31 = vector.load %arg2[%c0_33, %c0_34, %c1_35, %c2_36, %c0_37] : memref<1x1x10x10x128xbf16, #tpu.memory_space<vmem>>, vector<1x1x8x8x128xbf16>
    %32 = vector.shape_cast %31 : vector<1x1x8x8x128xbf16> to vector<8x8x128xbf16>
    %33 = vector.shape_cast %32 : vector<8x8x128xbf16> to vector<64x128xbf16>
    %c640 = arith.constant 640 : index
    %c0_38 = arith.constant 0 : index
    %34 = vector.load %arg5[%c640, %c0_38] : memref<3456x128xbf16, #tpu.memory_space<vmem>>, vector<128x128xbf16>
    %cst_39 = arith.constant dense<0.000000e+00> : vector<64x128xf32>
    %35 = tpu.matmul %33, %34, %cst_39 {dimension_numbers = #tpu.dot_dimension_numbers<[1], [0], [0], [1], [0, 0, 1, 1], [], []>} : vector<64x128xbf16>, vector<128x128xbf16>, vector<64x128xf32> -> vector<64x128xf32>
    %36 = arith.addf %30, %35 : vector<64x128xf32>
    %c0_40 = arith.constant 0 : index
    %c0_41 = arith.constant 0 : index
    %c2_42 = arith.constant 2 : index
    %c0_43 = arith.constant 0 : index
    %c0_44 = arith.constant 0 : index
    %37 = vector.load %arg2[%c0_40, %c0_41, %c2_42, %c0_43, %c0_44] : memref<1x1x10x10x128xbf16, #tpu.memory_space<vmem>>, vector<1x1x8x8x128xbf16>
    %38 = vector.shape_cast %37 : vector<1x1x8x8x128xbf16> to vector<8x8x128xbf16>
    %39 = vector.shape_cast %38 : vector<8x8x128xbf16> to vector<64x128xbf16>
    %c768 = arith.constant 768 : index
    %c0_45 = arith.constant 0 : index
    %40 = vector.load %arg5[%c768, %c0_45] : memref<3456x128xbf16, #tpu.memory_space<vmem>>, vector<128x128xbf16>
    %cst_46 = arith.constant dense<0.000000e+00> : vector<64x128xf32>
    %41 = tpu.matmul %39, %40, %cst_46 {dimension_numbers = #tpu.dot_dimension_numbers<[1], [0], [0], [1], [0, 0, 1, 1], [], []>} : vector<64x128xbf16>, vector<128x128xbf16>, vector<64x128xf32> -> vector<64x128xf32>
    %42 = arith.addf %36, %41 : vector<64x128xf32>
    %c0_47 = arith.constant 0 : index
    %c0_48 = arith.constant 0 : index
    %c2_49 = arith.constant 2 : index
    %c1_50 = arith.constant 1 : index
    %c0_51 = arith.constant 0 : index
    %43 = vector.load %arg2[%c0_47, %c0_48, %c2_49, %c1_50, %c0_51] : memref<1x1x10x10x128xbf16, #tpu.memory_space<vmem>>, vector<1x1x8x8x128xbf16>
    %44 = vector.shape_cast %43 : vector<1x1x8x8x128xbf16> to vector<8x8x128xbf16>
    %45 = vector.shape_cast %44 : vector<8x8x128xbf16> to vector<64x128xbf16>
    %c896 = arith.constant 896 : index
    %c0_52 = arith.constant 0 : index
    %46 = vector.load %arg5[%c896, %c0_52] : memref<3456x128xbf16, #tpu.memory_space<vmem>>, vector<128x128xbf16>
    %cst_53 = arith.constant dense<0.000000e+00> : vector<64x128xf32>
    %47 = tpu.matmul %45, %46, %cst_53 {dimension_numbers = #tpu.dot_dimension_numbers<[1], [0], [0], [1], [0, 0, 1, 1], [], []>} : vector<64x128xbf16>, vector<128x128xbf16>, vector<64x128xf32> -> vector<64x128xf32>
    %48 = arith.addf %42, %47 : vector<64x128xf32>
    %c0_54 = arith.constant 0 : index
    %c0_55 = arith.constant 0 : index
    %c2_56 = arith.constant 2 : index
    %c2_57 = arith.constant 2 : index
    %c0_58 = arith.constant 0 : index
    %49 = vector.load %arg2[%c0_54, %c0_55, %c2_56, %c2_57, %c0_58] : memref<1x1x10x10x128xbf16, #tpu.memory_space<vmem>>, vector<1x1x8x8x128xbf16>
    %50 = vector.shape_cast %49 : vector<1x1x8x8x128xbf16> to vector<8x8x128xbf16>
    %51 = vector.shape_cast %50 : vector<8x8x128xbf16> to vector<64x128xbf16>
    %c1024 = arith.constant 1024 : index
    %c0_59 = arith.constant 0 : index
    %52 = vector.load %arg5[%c1024, %c0_59] : memref<3456x128xbf16, #tpu.memory_space<vmem>>, vector<128x128xbf16>
    %cst_60 = arith.constant dense<0.000000e+00> : vector<64x128xf32>
    %53 = tpu.matmul %51, %52, %cst_60 {dimension_numbers = #tpu.dot_dimension_numbers<[1], [0], [0], [1], [0, 0, 1, 1], [], []>} : vector<64x128xbf16>, vector<128x128xbf16>, vector<64x128xf32> -> vector<64x128xf32>
    %54 = arith.addf %48, %53 : vector<64x128xf32>
    %c0_61 = arith.constant 0 : index
    %c0_62 = arith.constant 0 : index
    %c0_63 = arith.constant 0 : index
    %c0_64 = arith.constant 0 : index
    %c0_65 = arith.constant 0 : index
    %55 = vector.load %arg3[%c0_61, %c0_62, %c0_63, %c0_64, %c0_65] : memref<1x1x10x10x128xbf16, #tpu.memory_space<vmem>>, vector<1x1x8x8x128xbf16>
    %56 = vector.shape_cast %55 : vector<1x1x8x8x128xbf16> to vector<8x8x128xbf16>
    %57 = vector.shape_cast %56 : vector<8x8x128xbf16> to vector<64x128xbf16>
    %c1152 = arith.constant 1152 : index
    %c0_66 = arith.constant 0 : index
    %58 = vector.load %arg5[%c1152, %c0_66] : memref<3456x128xbf16, #tpu.memory_space<vmem>>, vector<128x128xbf16>
    %cst_67 = arith.constant dense<0.000000e+00> : vector<64x128xf32>
    %59 = tpu.matmul %57, %58, %cst_67 {dimension_numbers = #tpu.dot_dimension_numbers<[1], [0], [0], [1], [0, 0, 1, 1], [], []>} : vector<64x128xbf16>, vector<128x128xbf16>, vector<64x128xf32> -> vector<64x128xf32>
    %60 = arith.addf %54, %59 : vector<64x128xf32>
    %c0_68 = arith.constant 0 : index
    %c0_69 = arith.constant 0 : index
    %c0_70 = arith.constant 0 : index
    %c1_71 = arith.constant 1 : index
    %c0_72 = arith.constant 0 : index
    %61 = vector.load %arg3[%c0_68, %c0_69, %c0_70, %c1_71, %c0_72] : memref<1x1x10x10x128xbf16, #tpu.memory_space<vmem>>, vector<1x1x8x8x128xbf16>
    %62 = vector.shape_cast %61 : vector<1x1x8x8x128xbf16> to vector<8x8x128xbf16>
    %63 = vector.shape_cast %62 : vector<8x8x128xbf16> to vector<64x128xbf16>
    %c1280 = arith.constant 1280 : index
    %c0_73 = arith.constant 0 : index
    %64 = vector.load %arg5[%c1280, %c0_73] : memref<3456x128xbf16, #tpu.memory_space<vmem>>, vector<128x128xbf16>
    %cst_74 = arith.constant dense<0.000000e+00> : vector<64x128xf32>
    %65 = tpu.matmul %63, %64, %cst_74 {dimension_numbers = #tpu.dot_dimension_numbers<[1], [0], [0], [1], [0, 0, 1, 1], [], []>} : vector<64x128xbf16>, vector<128x128xbf16>, vector<64x128xf32> -> vector<64x128xf32>
    %66 = arith.addf %60, %65 : vector<64x128xf32>
    %c0_75 = arith.constant 0 : index
    %c0_76 = arith.constant 0 : index
    %c0_77 = arith.constant 0 : index
    %c2_78 = arith.constant 2 : index
    %c0_79 = arith.constant 0 : index
    %67 = vector.load %arg3[%c0_75, %c0_76, %c0_77, %c2_78, %c0_79] : memref<1x1x10x10x128xbf16, #tpu.memory_space<vmem>>, vector<1x1x8x8x128xbf16>
    %68 = vector.shape_cast %67 : vector<1x1x8x8x128xbf16> to vector<8x8x128xbf16>
    %69 = vector.shape_cast %68 : vector<8x8x128xbf16> to vector<64x128xbf16>
    %c1408 = arith.constant 1408 : index
    %c0_80 = arith.constant 0 : index
    %70 = vector.load %arg5[%c1408, %c0_80] : memref<3456x128xbf16, #tpu.memory_space<vmem>>, vector<128x128xbf16>
    %cst_81 = arith.constant dense<0.000000e+00> : vector<64x128xf32>
    %71 = tpu.matmul %69, %70, %cst_81 {dimension_numbers = #tpu.dot_dimension_numbers<[1], [0], [0], [1], [0, 0, 1, 1], [], []>} : vector<64x128xbf16>, vector<128x128xbf16>, vector<64x128xf32> -> vector<64x128xf32>
    %72 = arith.addf %66, %71 : vector<64x128xf32>
    %c0_82 = arith.constant 0 : index
    %c0_83 = arith.constant 0 : index
    %c1_84 = arith.constant 1 : index
    %c0_85 = arith.constant 0 : index
    %c0_86 = arith.constant 0 : index
    %73 = vector.load %arg3[%c0_82, %c0_83, %c1_84, %c0_85, %c0_86] : memref<1x1x10x10x128xbf16, #tpu.memory_space<vmem>>, vector<1x1x8x8x128xbf16>
    %74 = vector.shape_cast %73 : vector<1x1x8x8x128xbf16> to vector<8x8x128xbf16>
    %75 = vector.shape_cast %74 : vector<8x8x128xbf16> to vector<64x128xbf16>
    %c1536 = arith.constant 1536 : index
    %c0_87 = arith.constant 0 : index
    %76 = vector.load %arg5[%c1536, %c0_87] : memref<3456x128xbf16, #tpu.memory_space<vmem>>, vector<128x128xbf16>
    %cst_88 = arith.constant dense<0.000000e+00> : vector<64x128xf32>
    %77 = tpu.matmul %75, %76, %cst_88 {dimension_numbers = #tpu.dot_dimension_numbers<[1], [0], [0], [1], [0, 0, 1, 1], [], []>} : vector<64x128xbf16>, vector<128x128xbf16>, vector<64x128xf32> -> vector<64x128xf32>
    %78 = arith.addf %72, %77 : vector<64x128xf32>
    %c0_89 = arith.constant 0 : index
    %c0_90 = arith.constant 0 : index
    %c1_91 = arith.constant 1 : index
    %c1_92 = arith.constant 1 : index
    %c0_93 = arith.constant 0 : index
    %79 = vector.load %arg3[%c0_89, %c0_90, %c1_91, %c1_92, %c0_93] : memref<1x1x10x10x128xbf16, #tpu.memory_space<vmem>>, vector<1x1x8x8x128xbf16>
    %80 = vector.shape_cast %79 : vector<1x1x8x8x128xbf16> to vector<8x8x128xbf16>
    %81 = vector.shape_cast %80 : vector<8x8x128xbf16> to vector<64x128xbf16>
    %c1664 = arith.constant 1664 : index
    %c0_94 = arith.constant 0 : index
    %82 = vector.load %arg5[%c1664, %c0_94] : memref<3456x128xbf16, #tpu.memory_space<vmem>>, vector<128x128xbf16>
    %cst_95 = arith.constant dense<0.000000e+00> : vector<64x128xf32>
    %83 = tpu.matmul %81, %82, %cst_95 {dimension_numbers = #tpu.dot_dimension_numbers<[1], [0], [0], [1], [0, 0, 1, 1], [], []>} : vector<64x128xbf16>, vector<128x128xbf16>, vector<64x128xf32> -> vector<64x128xf32>
    %84 = arith.addf %78, %83 : vector<64x128xf32>
    %c0_96 = arith.constant 0 : index
    %c0_97 = arith.constant 0 : index
    %c1_98 = arith.constant 1 : index
    %c2_99 = arith.constant 2 : index
    %c0_100 = arith.constant 0 : index
    %85 = vector.load %arg3[%c0_96, %c0_97, %c1_98, %c2_99, %c0_100] : memref<1x1x10x10x128xbf16, #tpu.memory_space<vmem>>, vector<1x1x8x8x128xbf16>
    %86 = vector.shape_cast %85 : vector<1x1x8x8x128xbf16> to vector<8x8x128xbf16>
    %87 = vector.shape_cast %86 : vector<8x8x128xbf16> to vector<64x128xbf16>
    %c1792 = arith.constant 1792 : index
    %c0_101 = arith.constant 0 : index
    %88 = vector.load %arg5[%c1792, %c0_101] : memref<3456x128xbf16, #tpu.memory_space<vmem>>, vector<128x128xbf16>
    %cst_102 = arith.constant dense<0.000000e+00> : vector<64x128xf32>
    %89 = tpu.matmul %87, %88, %cst_102 {dimension_numbers = #tpu.dot_dimension_numbers<[1], [0], [0], [1], [0, 0, 1, 1], [], []>} : vector<64x128xbf16>, vector<128x128xbf16>, vector<64x128xf32> -> vector<64x128xf32>
    %90 = arith.addf %84, %89 : vector<64x128xf32>
    %c0_103 = arith.constant 0 : index
    %c0_104 = arith.constant 0 : index
    %c2_105 = arith.constant 2 : index
    %c0_106 = arith.constant 0 : index
    %c0_107 = arith.constant 0 : index
    %91 = vector.load %arg3[%c0_103, %c0_104, %c2_105, %c0_106, %c0_107] : memref<1x1x10x10x128xbf16, #tpu.memory_space<vmem>>, vector<1x1x8x8x128xbf16>
    %92 = vector.shape_cast %91 : vector<1x1x8x8x128xbf16> to vector<8x8x128xbf16>
    %93 = vector.shape_cast %92 : vector<8x8x128xbf16> to vector<64x128xbf16>
    %c1920 = arith.constant 1920 : index
    %c0_108 = arith.constant 0 : index
    %94 = vector.load %arg5[%c1920, %c0_108] : memref<3456x128xbf16, #tpu.memory_space<vmem>>, vector<128x128xbf16>
    %cst_109 = arith.constant dense<0.000000e+00> : vector<64x128xf32>
    %95 = tpu.matmul %93, %94, %cst_109 {dimension_numbers = #tpu.dot_dimension_numbers<[1], [0], [0], [1], [0, 0, 1, 1], [], []>} : vector<64x128xbf16>, vector<128x128xbf16>, vector<64x128xf32> -> vector<64x128xf32>
    %96 = arith.addf %90, %95 : vector<64x128xf32>
    %c0_110 = arith.constant 0 : index
    %c0_111 = arith.constant 0 : index
    %c2_112 = arith.constant 2 : index
    %c1_113 = arith.constant 1 : index
    %c0_114 = arith.constant 0 : index
    %97 = vector.load %arg3[%c0_110, %c0_111, %c2_112, %c1_113, %c0_114] : memref<1x1x10x10x128xbf16, #tpu.memory_space<vmem>>, vector<1x1x8x8x128xbf16>
    %98 = vector.shape_cast %97 : vector<1x1x8x8x128xbf16> to vector<8x8x128xbf16>
    %99 = vector.shape_cast %98 : vector<8x8x128xbf16> to vector<64x128xbf16>
    %c2048 = arith.constant 2048 : index
    %c0_115 = arith.constant 0 : index
    %100 = vector.load %arg5[%c2048, %c0_115] : memref<3456x128xbf16, #tpu.memory_space<vmem>>, vector<128x128xbf16>
    %cst_116 = arith.constant dense<0.000000e+00> : vector<64x128xf32>
    %101 = tpu.matmul %99, %100, %cst_116 {dimension_numbers = #tpu.dot_dimension_numbers<[1], [0], [0], [1], [0, 0, 1, 1], [], []>} : vector<64x128xbf16>, vector<128x128xbf16>, vector<64x128xf32> -> vector<64x128xf32>
    %102 = arith.addf %96, %101 : vector<64x128xf32>
    %c0_117 = arith.constant 0 : index
    %c0_118 = arith.constant 0 : index
    %c2_119 = arith.constant 2 : index
    %c2_120 = arith.constant 2 : index
    %c0_121 = arith.constant 0 : index
    %103 = vector.load %arg3[%c0_117, %c0_118, %c2_119, %c2_120, %c0_121] : memref<1x1x10x10x128xbf16, #tpu.memory_space<vmem>>, vector<1x1x8x8x128xbf16>
    %104 = vector.shape_cast %103 : vector<1x1x8x8x128xbf16> to vector<8x8x128xbf16>
    %105 = vector.shape_cast %104 : vector<8x8x128xbf16> to vector<64x128xbf16>
    %c2176 = arith.constant 2176 : index
    %c0_122 = arith.constant 0 : index
    %106 = vector.load %arg5[%c2176, %c0_122] : memref<3456x128xbf16, #tpu.memory_space<vmem>>, vector<128x128xbf16>
    %cst_123 = arith.constant dense<0.000000e+00> : vector<64x128xf32>
    %107 = tpu.matmul %105, %106, %cst_123 {dimension_numbers = #tpu.dot_dimension_numbers<[1], [0], [0], [1], [0, 0, 1, 1], [], []>} : vector<64x128xbf16>, vector<128x128xbf16>, vector<64x128xf32> -> vector<64x128xf32>
    %108 = arith.addf %102, %107 : vector<64x128xf32>
    %c0_124 = arith.constant 0 : index
    %c0_125 = arith.constant 0 : index
    %c0_126 = arith.constant 0 : index
    %c0_127 = arith.constant 0 : index
    %c0_128 = arith.constant 0 : index
    %109 = vector.load %arg4[%c0_124, %c0_125, %c0_126, %c0_127, %c0_128] : memref<1x1x10x10x128xbf16, #tpu.memory_space<vmem>>, vector<1x1x8x8x128xbf16>
    %110 = vector.shape_cast %109 : vector<1x1x8x8x128xbf16> to vector<8x8x128xbf16>
    %111 = vector.shape_cast %110 : vector<8x8x128xbf16> to vector<64x128xbf16>
    %c2304 = arith.constant 2304 : index
    %c0_129 = arith.constant 0 : index
    %112 = vector.load %arg5[%c2304, %c0_129] : memref<3456x128xbf16, #tpu.memory_space<vmem>>, vector<128x128xbf16>
    %cst_130 = arith.constant dense<0.000000e+00> : vector<64x128xf32>
    %113 = tpu.matmul %111, %112, %cst_130 {dimension_numbers = #tpu.dot_dimension_numbers<[1], [0], [0], [1], [0, 0, 1, 1], [], []>} : vector<64x128xbf16>, vector<128x128xbf16>, vector<64x128xf32> -> vector<64x128xf32>
    %114 = arith.addf %108, %113 : vector<64x128xf32>
    %c0_131 = arith.constant 0 : index
    %c0_132 = arith.constant 0 : index
    %c0_133 = arith.constant 0 : index
    %c1_134 = arith.constant 1 : index
    %c0_135 = arith.constant 0 : index
    %115 = vector.load %arg4[%c0_131, %c0_132, %c0_133, %c1_134, %c0_135] : memref<1x1x10x10x128xbf16, #tpu.memory_space<vmem>>, vector<1x1x8x8x128xbf16>
    %116 = vector.shape_cast %115 : vector<1x1x8x8x128xbf16> to vector<8x8x128xbf16>
    %117 = vector.shape_cast %116 : vector<8x8x128xbf16> to vector<64x128xbf16>
    %c2432 = arith.constant 2432 : index
    %c0_136 = arith.constant 0 : index
    %118 = vector.load %arg5[%c2432, %c0_136] : memref<3456x128xbf16, #tpu.memory_space<vmem>>, vector<128x128xbf16>
    %cst_137 = arith.constant dense<0.000000e+00> : vector<64x128xf32>
    %119 = tpu.matmul %117, %118, %cst_137 {dimension_numbers = #tpu.dot_dimension_numbers<[1], [0], [0], [1], [0, 0, 1, 1], [], []>} : vector<64x128xbf16>, vector<128x128xbf16>, vector<64x128xf32> -> vector<64x128xf32>
    %120 = arith.addf %114, %119 : vector<64x128xf32>
    %c0_138 = arith.constant 0 : index
    %c0_139 = arith.constant 0 : index
    %c0_140 = arith.constant 0 : index
    %c2_141 = arith.constant 2 : index
    %c0_142 = arith.constant 0 : index
    %121 = vector.load %arg4[%c0_138, %c0_139, %c0_140, %c2_141, %c0_142] : memref<1x1x10x10x128xbf16, #tpu.memory_space<vmem>>, vector<1x1x8x8x128xbf16>
    %122 = vector.shape_cast %121 : vector<1x1x8x8x128xbf16> to vector<8x8x128xbf16>
    %123 = vector.shape_cast %122 : vector<8x8x128xbf16> to vector<64x128xbf16>
    %c2560 = arith.constant 2560 : index
    %c0_143 = arith.constant 0 : index
    %124 = vector.load %arg5[%c2560, %c0_143] : memref<3456x128xbf16, #tpu.memory_space<vmem>>, vector<128x128xbf16>
    %cst_144 = arith.constant dense<0.000000e+00> : vector<64x128xf32>
    %125 = tpu.matmul %123, %124, %cst_144 {dimension_numbers = #tpu.dot_dimension_numbers<[1], [0], [0], [1], [0, 0, 1, 1], [], []>} : vector<64x128xbf16>, vector<128x128xbf16>, vector<64x128xf32> -> vector<64x128xf32>
    %126 = arith.addf %120, %125 : vector<64x128xf32>
    %c0_145 = arith.constant 0 : index
    %c0_146 = arith.constant 0 : index
    %c1_147 = arith.constant 1 : index
    %c0_148 = arith.constant 0 : index
    %c0_149 = arith.constant 0 : index
    %127 = vector.load %arg4[%c0_145, %c0_146, %c1_147, %c0_148, %c0_149] : memref<1x1x10x10x128xbf16, #tpu.memory_space<vmem>>, vector<1x1x8x8x128xbf16>
    %128 = vector.shape_cast %127 : vector<1x1x8x8x128xbf16> to vector<8x8x128xbf16>
    %129 = vector.shape_cast %128 : vector<8x8x128xbf16> to vector<64x128xbf16>
    %c2688 = arith.constant 2688 : index
    %c0_150 = arith.constant 0 : index
    %130 = vector.load %arg5[%c2688, %c0_150] : memref<3456x128xbf16, #tpu.memory_space<vmem>>, vector<128x128xbf16>
    %cst_151 = arith.constant dense<0.000000e+00> : vector<64x128xf32>
    %131 = tpu.matmul %129, %130, %cst_151 {dimension_numbers = #tpu.dot_dimension_numbers<[1], [0], [0], [1], [0, 0, 1, 1], [], []>} : vector<64x128xbf16>, vector<128x128xbf16>, vector<64x128xf32> -> vector<64x128xf32>
    %132 = arith.addf %126, %131 : vector<64x128xf32>
    %c0_152 = arith.constant 0 : index
    %c0_153 = arith.constant 0 : index
    %c1_154 = arith.constant 1 : index
    %c1_155 = arith.constant 1 : index
    %c0_156 = arith.constant 0 : index
    %133 = vector.load %arg4[%c0_152, %c0_153, %c1_154, %c1_155, %c0_156] : memref<1x1x10x10x128xbf16, #tpu.memory_space<vmem>>, vector<1x1x8x8x128xbf16>
    %134 = vector.shape_cast %133 : vector<1x1x8x8x128xbf16> to vector<8x8x128xbf16>
    %135 = vector.shape_cast %134 : vector<8x8x128xbf16> to vector<64x128xbf16>
    %c2816 = arith.constant 2816 : index
    %c0_157 = arith.constant 0 : index
    %136 = vector.load %arg5[%c2816, %c0_157] : memref<3456x128xbf16, #tpu.memory_space<vmem>>, vector<128x128xbf16>
    %cst_158 = arith.constant dense<0.000000e+00> : vector<64x128xf32>
    %137 = tpu.matmul %135, %136, %cst_158 {dimension_numbers = #tpu.dot_dimension_numbers<[1], [0], [0], [1], [0, 0, 1, 1], [], []>} : vector<64x128xbf16>, vector<128x128xbf16>, vector<64x128xf32> -> vector<64x128xf32>
    %138 = arith.addf %132, %137 : vector<64x128xf32>
    %c0_159 = arith.constant 0 : index
    %c0_160 = arith.constant 0 : index
    %c1_161 = arith.constant 1 : index
    %c2_162 = arith.constant 2 : index
    %c0_163 = arith.constant 0 : index
    %139 = vector.load %arg4[%c0_159, %c0_160, %c1_161, %c2_162, %c0_163] : memref<1x1x10x10x128xbf16, #tpu.memory_space<vmem>>, vector<1x1x8x8x128xbf16>
    %140 = vector.shape_cast %139 : vector<1x1x8x8x128xbf16> to vector<8x8x128xbf16>
    %141 = vector.shape_cast %140 : vector<8x8x128xbf16> to vector<64x128xbf16>
    %c2944 = arith.constant 2944 : index
    %c0_164 = arith.constant 0 : index
    %142 = vector.load %arg5[%c2944, %c0_164] : memref<3456x128xbf16, #tpu.memory_space<vmem>>, vector<128x128xbf16>
    %cst_165 = arith.constant dense<0.000000e+00> : vector<64x128xf32>
    %143 = tpu.matmul %141, %142, %cst_165 {dimension_numbers = #tpu.dot_dimension_numbers<[1], [0], [0], [1], [0, 0, 1, 1], [], []>} : vector<64x128xbf16>, vector<128x128xbf16>, vector<64x128xf32> -> vector<64x128xf32>
    %144 = arith.addf %138, %143 : vector<64x128xf32>
    %c0_166 = arith.constant 0 : index
    %c0_167 = arith.constant 0 : index
    %c2_168 = arith.constant 2 : index
    %c0_169 = arith.constant 0 : index
    %c0_170 = arith.constant 0 : index
    %145 = vector.load %arg4[%c0_166, %c0_167, %c2_168, %c0_169, %c0_170] : memref<1x1x10x10x128xbf16, #tpu.memory_space<vmem>>, vector<1x1x8x8x128xbf16>
    %146 = vector.shape_cast %145 : vector<1x1x8x8x128xbf16> to vector<8x8x128xbf16>
    %147 = vector.shape_cast %146 : vector<8x8x128xbf16> to vector<64x128xbf16>
    %c3072 = arith.constant 3072 : index
    %c0_171 = arith.constant 0 : index
    %148 = vector.load %arg5[%c3072, %c0_171] : memref<3456x128xbf16, #tpu.memory_space<vmem>>, vector<128x128xbf16>
    %cst_172 = arith.constant dense<0.000000e+00> : vector<64x128xf32>
    %149 = tpu.matmul %147, %148, %cst_172 {dimension_numbers = #tpu.dot_dimension_numbers<[1], [0], [0], [1], [0, 0, 1, 1], [], []>} : vector<64x128xbf16>, vector<128x128xbf16>, vector<64x128xf32> -> vector<64x128xf32>
    %150 = arith.addf %144, %149 : vector<64x128xf32>
    %c0_173 = arith.constant 0 : index
    %c0_174 = arith.constant 0 : index
    %c2_175 = arith.constant 2 : index
    %c1_176 = arith.constant 1 : index
    %c0_177 = arith.constant 0 : index
    %151 = vector.load %arg4[%c0_173, %c0_174, %c2_175, %c1_176, %c0_177] : memref<1x1x10x10x128xbf16, #tpu.memory_space<vmem>>, vector<1x1x8x8x128xbf16>
    %152 = vector.shape_cast %151 : vector<1x1x8x8x128xbf16> to vector<8x8x128xbf16>
    %153 = vector.shape_cast %152 : vector<8x8x128xbf16> to vector<64x128xbf16>
    %c3200 = arith.constant 3200 : index
    %c0_178 = arith.constant 0 : index
    %154 = vector.load %arg5[%c3200, %c0_178] : memref<3456x128xbf16, #tpu.memory_space<vmem>>, vector<128x128xbf16>
    %cst_179 = arith.constant dense<0.000000e+00> : vector<64x128xf32>
    %155 = tpu.matmul %153, %154, %cst_179 {dimension_numbers = #tpu.dot_dimension_numbers<[1], [0], [0], [1], [0, 0, 1, 1], [], []>} : vector<64x128xbf16>, vector<128x128xbf16>, vector<64x128xf32> -> vector<64x128xf32>
    %156 = arith.addf %150, %155 : vector<64x128xf32>
    %c0_180 = arith.constant 0 : index
    %c0_181 = arith.constant 0 : index
    %c2_182 = arith.constant 2 : index
    %c2_183 = arith.constant 2 : index
    %c0_184 = arith.constant 0 : index
    %157 = vector.load %arg4[%c0_180, %c0_181, %c2_182, %c2_183, %c0_184] : memref<1x1x10x10x128xbf16, #tpu.memory_space<vmem>>, vector<1x1x8x8x128xbf16>
    %158 = vector.shape_cast %157 : vector<1x1x8x8x128xbf16> to vector<8x8x128xbf16>
    %159 = vector.shape_cast %158 : vector<8x8x128xbf16> to vector<64x128xbf16>
    %c3328 = arith.constant 3328 : index
    %c0_185 = arith.constant 0 : index
    %160 = vector.load %arg5[%c3328, %c0_185] : memref<3456x128xbf16, #tpu.memory_space<vmem>>, vector<128x128xbf16>
    %cst_186 = arith.constant dense<0.000000e+00> : vector<64x128xf32>
    %161 = tpu.matmul %159, %160, %cst_186 {dimension_numbers = #tpu.dot_dimension_numbers<[1], [0], [0], [1], [0, 0, 1, 1], [], []>} : vector<64x128xbf16>, vector<128x128xbf16>, vector<64x128xf32> -> vector<64x128xf32>
    %162 = arith.addf %156, %161 : vector<64x128xf32>
    %c0_187 = arith.constant 0 : index
    %c0_188 = arith.constant 0 : index
    %163 = vector.load %arg6[%c0_187, %c0_188] : memref<64x128xf32, #tpu.memory_space<vmem>>, vector<64x128xf32>
    tpu.vector_store %arg6[%c0_187, %c0_188], %162 {strides = array<i32>} : memref<64x128xf32, #tpu.memory_space<vmem>>, vector<64x128xf32>,
    %cst_189 = arith.constant dense<0.000000e+00> : vector<128xf32>
    %164 = vector.multi_reduction <add>, %162, %cst_189 [0] : vector<64x128xf32> to vector<128xf32>
    %165 = vector.shape_cast %164 : vector<128xf32> to vector<1x128xf32>
    %166 = vector.shape_cast %165 : vector<1x128xf32> to vector<1x128xf32>
    %167 = vector.broadcast %166 : vector<1x128xf32> to vector<8x128xf32>
    %c0_190 = arith.constant 0 : index
    %c0_191 = arith.constant 0 : index
    %168 = vector.load %arg7[%c0_190, %c0_191] : memref<8x128xf32, #tpu.memory_space<vmem>>, vector<8x128xf32>
    tpu.vector_store %arg7[%c0_190, %c0_191], %167 {strides = array<i32>} : memref<8x128xf32, #tpu.memory_space<vmem>>, vector<8x128xf32>,
    %169 = arith.mulf %162, %162 : vector<64x128xf32>
    %cst_192 = arith.constant dense<0.000000e+00> : vector<128xf32>
    %170 = vector.multi_reduction <add>, %169, %cst_192 [0] : vector<64x128xf32> to vector<128xf32>
    %171 = vector.shape_cast %170 : vector<128xf32> to vector<1x128xf32>
    %172 = vector.shape_cast %171 : vector<1x128xf32> to vector<1x128xf32>
    %173 = vector.broadcast %172 : vector<1x128xf32> to vector<8x128xf32>
    %c0_193 = arith.constant 0 : index
    %c0_194 = arith.constant 0 : index
    %174 = vector.load %arg8[%c0_193, %c0_194] : memref<8x128xf32, #tpu.memory_space<vmem>>, vector<8x128xf32>
    tpu.vector_store %arg8[%c0_193, %c0_194], %173 {strides = array<i32>} : memref<8x128xf32, #tpu.memory_space<vmem>>, vector<8x128xf32>,
    return
  }
  func.func @transform_0(%arg0: i32, %arg1: i32) -> (i32, i32, i32, i32, i32) {
    %c0_i32 = arith.constant 0 : i32
    %0 = arith.addi %arg1, %c0_i32 : i32
    %c0_i32_0 = arith.constant 0 : i32
    %c0_i32_1 = arith.constant 0 : i32
    %c0_i32_2 = arith.constant 0 : i32
    %c0_i32_3 = arith.constant 0 : i32
    return %arg0, %0, %c0_i32_0, %c0_i32_1, %c0_i32_2 : i32, i32, i32, i32, i32
  }
  func.func @transform_1(%arg0: i32, %arg1: i32) -> (i32, i32, i32, i32, i32) {
    %c1_i32 = arith.constant 1 : i32
    %0 = arith.addi %arg1, %c1_i32 : i32
    %c0_i32 = arith.constant 0 : i32
    %c0_i32_0 = arith.constant 0 : i32
    %c0_i32_1 = arith.constant 0 : i32
    %c0_i32_2 = arith.constant 0 : i32
    return %arg0, %0, %c0_i32, %c0_i32_0, %c0_i32_1 : i32, i32, i32, i32, i32
  }
  func.func @transform_2(%arg0: i32, %arg1: i32) -> (i32, i32, i32, i32, i32) {
    %c2_i32 = arith.constant 2 : i32
    %0 = arith.addi %arg1, %c2_i32 : i32
    %c0_i32 = arith.constant 0 : i32
    %c0_i32_0 = arith.constant 0 : i32
    %c0_i32_1 = arith.constant 0 : i32
    %c0_i32_2 = arith.constant 0 : i32
    return %arg0, %0, %c0_i32, %c0_i32_0, %c0_i32_1 : i32, i32, i32, i32, i32
  }
  func.func @transform_3(%arg0: i32, %arg1: i32) -> (i32, i32) {
    %c0_i32 = arith.constant 0 : i32
    %c0_i32_0 = arith.constant 0 : i32
    %c0_i32_1 = arith.constant 0 : i32
    return %c0_i32, %c0_i32_0 : i32, i32
  }
  func.func @transform_4(%arg0: i32, %arg1: i32) -> (i32, i32) {
    %c8_i32 = arith.constant 8 : i32
    %0 = arith.muli %arg0, %c8_i32 : i32
    %1 = arith.addi %0, %arg1 : i32
    %c0_i32 = arith.constant 0 : i32
    %c0_i32_0 = arith.constant 0 : i32
    return %1, %c0_i32 : i32, i32
  }
  func.func @transform_5(%arg0: i32, %arg1: i32) -> (i32, i32) {
    %c8_i32 = arith.constant 8 : i32
    %0 = arith.muli %arg0, %c8_i32 : i32
    %1 = arith.addi %0, %arg1 : i32
    %c0_i32 = arith.constant 0 : i32
    %c0_i32_0 = arith.constant 0 : i32
    return %1, %c0_i32 : i32, i32
  }
  func.func @transform_6(%arg0: i32, %arg1: i32) -> (i32, i32) {
    %c8_i32 = arith.constant 8 : i32
    %0 = arith.muli %arg0, %c8_i32 : i32
    %1 = arith.addi %0, %arg1 : i32
    %c0_i32 = arith.constant 0 : i32
    %c0_i32_0 = arith.constant 0 : i32
    return %1, %c0_i32 : i32, i32
  }
}

module attributes {stable_mosaic.version = 11 : i64} {
  func.func @_bn_act_kernel(%arg0: i32, %arg1: memref<1024x128xf32, #tpu.memory_space<vmem>>, %arg2: memref<1x128xf32, #tpu.memory_space<vmem>>, %arg3: memref<1x128xf32, #tpu.memory_space<vmem>>, %arg4: memref<1024x128xbf16, #tpu.memory_space<vmem>>) attributes {dimension_semantics = [#tpu.dimension_semantics<parallel>], iteration_bounds = array<i64: 1>, scalar_prefetch = 0 : i64, scratch_operands = 0 : i64, tpu.core_type = #tpu.core_type<tc>, window_params = [{transform_indices = @transform_0, window_bounds = array<i64: 1024, 128>}, {pipeline_mode = #tpu.pipeline_mode<synchronous>, transform_indices = @transform_1, window_bounds = array<i64: 1, 128>}, {pipeline_mode = #tpu.pipeline_mode<synchronous>, transform_indices = @transform_2, window_bounds = array<i64: 1, 128>}, {transform_indices = @transform_3, window_bounds = array<i64: 1024, 128>}]} {
    %c0 = arith.constant 0 : index
    %c0_0 = arith.constant 0 : index
    %0 = vector.load %arg1[%c0, %c0_0] : memref<1024x128xf32, #tpu.memory_space<vmem>>, vector<1024x128xf32>
    %c0_1 = arith.constant 0 : index
    %c0_2 = arith.constant 0 : index
    %1 = vector.load %arg2[%c0_1, %c0_2] : memref<1x128xf32, #tpu.memory_space<vmem>>, vector<1x128xf32>
    %2 = vector.broadcast %1 : vector<1x128xf32> to vector<1024x128xf32>
    %3 = arith.mulf %0, %2 : vector<1024x128xf32>
    %c0_3 = arith.constant 0 : index
    %c0_4 = arith.constant 0 : index
    %4 = vector.load %arg3[%c0_3, %c0_4] : memref<1x128xf32, #tpu.memory_space<vmem>>, vector<1x128xf32>
    %5 = vector.broadcast %4 : vector<1x128xf32> to vector<1024x128xf32>
    %6 = arith.addf %3, %5 : vector<1024x128xf32>
    %cst = arith.constant 0.000000e+00 : f32
    %7 = vector.broadcast %cst : f32 to vector<1024x128xf32>
    %8 = arith.maximumf %6, %7 : vector<1024x128xf32>
    %9 = arith.truncf %8 : vector<1024x128xf32> to vector<1024x128xbf16>
    %c0_5 = arith.constant 0 : index
    %c0_6 = arith.constant 0 : index
    %10 = vector.load %arg4[%c0_5, %c0_6] : memref<1024x128xbf16, #tpu.memory_space<vmem>>, vector<1024x128xbf16>
    tpu.vector_store %arg4[%c0_5, %c0_6], %9 {strides = array<i32>} : memref<1024x128xbf16, #tpu.memory_space<vmem>>, vector<1024x128xbf16>,
    return
  }
  func.func @transform_0(%arg0: i32) -> (i32, i32) {
    %c0_i32 = arith.constant 0 : i32
    %c0_i32_0 = arith.constant 0 : i32
    return %arg0, %c0_i32 : i32, i32
  }
  func.func @transform_1(%arg0: i32) -> (i32, i32) {
    %c0_i32 = arith.constant 0 : i32
    %c0_i32_0 = arith.constant 0 : i32
    %c0_i32_1 = arith.constant 0 : i32
    return %c0_i32, %c0_i32_0 : i32, i32
  }
  func.func @transform_2(%arg0: i32) -> (i32, i32) {
    %c0_i32 = arith.constant 0 : i32
    %c0_i32_0 = arith.constant 0 : i32
    %c0_i32_1 = arith.constant 0 : i32
    return %c0_i32, %c0_i32_0 : i32, i32
  }
  func.func @transform_3(%arg0: i32) -> (i32, i32) {
    %c0_i32 = arith.constant 0 : i32
    %c0_i32_0 = arith.constant 0 : i32
    return %arg0, %c0_i32 : i32, i32
  }
}

module attributes {stable_mosaic.version = 11 : i64} {
  func.func @_bn_act_res_kernel(%arg0: i32, %arg1: memref<1024x128xf32, #tpu.memory_space<vmem>>, %arg2: memref<1x128xf32, #tpu.memory_space<vmem>>, %arg3: memref<1x128xf32, #tpu.memory_space<vmem>>, %arg4: memref<1024x128xf32, #tpu.memory_space<vmem>>, %arg5: memref<1024x128xf32, #tpu.memory_space<vmem>>) attributes {dimension_semantics = [#tpu.dimension_semantics<parallel>], iteration_bounds = array<i64: 1>, scalar_prefetch = 0 : i64, scratch_operands = 0 : i64, tpu.core_type = #tpu.core_type<tc>, window_params = [{transform_indices = @transform_0, window_bounds = array<i64: 1024, 128>}, {pipeline_mode = #tpu.pipeline_mode<synchronous>, transform_indices = @transform_1, window_bounds = array<i64: 1, 128>}, {pipeline_mode = #tpu.pipeline_mode<synchronous>, transform_indices = @transform_2, window_bounds = array<i64: 1, 128>}, {transform_indices = @transform_3, window_bounds = array<i64: 1024, 128>}, {transform_indices = @transform_4, window_bounds = array<i64: 1024, 128>}]} {
    %c0 = arith.constant 0 : index
    %c0_0 = arith.constant 0 : index
    %0 = vector.load %arg1[%c0, %c0_0] : memref<1024x128xf32, #tpu.memory_space<vmem>>, vector<1024x128xf32>
    %c0_1 = arith.constant 0 : index
    %c0_2 = arith.constant 0 : index
    %1 = vector.load %arg2[%c0_1, %c0_2] : memref<1x128xf32, #tpu.memory_space<vmem>>, vector<1x128xf32>
    %2 = vector.broadcast %1 : vector<1x128xf32> to vector<1024x128xf32>
    %3 = arith.mulf %0, %2 : vector<1024x128xf32>
    %c0_3 = arith.constant 0 : index
    %c0_4 = arith.constant 0 : index
    %4 = vector.load %arg3[%c0_3, %c0_4] : memref<1x128xf32, #tpu.memory_space<vmem>>, vector<1x128xf32>
    %5 = vector.broadcast %4 : vector<1x128xf32> to vector<1024x128xf32>
    %6 = arith.addf %3, %5 : vector<1024x128xf32>
    %c0_5 = arith.constant 0 : index
    %c0_6 = arith.constant 0 : index
    %7 = vector.load %arg4[%c0_5, %c0_6] : memref<1024x128xf32, #tpu.memory_space<vmem>>, vector<1024x128xf32>
    %8 = arith.addf %6, %7 : vector<1024x128xf32>
    %cst = arith.constant 0.000000e+00 : f32
    %9 = vector.broadcast %cst : f32 to vector<1024x128xf32>
    %10 = arith.maximumf %8, %9 : vector<1024x128xf32>
    %c0_7 = arith.constant 0 : index
    %c0_8 = arith.constant 0 : index
    %11 = vector.load %arg5[%c0_7, %c0_8] : memref<1024x128xf32, #tpu.memory_space<vmem>>, vector<1024x128xf32>
    tpu.vector_store %arg5[%c0_7, %c0_8], %10 {strides = array<i32>} : memref<1024x128xf32, #tpu.memory_space<vmem>>, vector<1024x128xf32>,
    return
  }
  func.func @transform_0(%arg0: i32) -> (i32, i32) {
    %c0_i32 = arith.constant 0 : i32
    %c0_i32_0 = arith.constant 0 : i32
    return %arg0, %c0_i32 : i32, i32
  }
  func.func @transform_1(%arg0: i32) -> (i32, i32) {
    %c0_i32 = arith.constant 0 : i32
    %c0_i32_0 = arith.constant 0 : i32
    %c0_i32_1 = arith.constant 0 : i32
    return %c0_i32, %c0_i32_0 : i32, i32
  }
  func.func @transform_2(%arg0: i32) -> (i32, i32) {
    %c0_i32 = arith.constant 0 : i32
    %c0_i32_0 = arith.constant 0 : i32
    %c0_i32_1 = arith.constant 0 : i32
    return %c0_i32, %c0_i32_0 : i32, i32
  }
  func.func @transform_3(%arg0: i32) -> (i32, i32) {
    %c0_i32 = arith.constant 0 : i32
    %c0_i32_0 = arith.constant 0 : i32
    return %arg0, %c0_i32 : i32, i32
  }
  func.func @transform_4(%arg0: i32) -> (i32, i32) {
    %c0_i32 = arith.constant 0 : i32
    %c0_i32_0 = arith.constant 0 : i32
    return %arg0, %c0_i32 : i32, i32
  }
}

</mosaic_0001>

<llo_original>
// kernel: basic_block_forward.5
$region0: #{basic_block_forward.5}
  #allocation0 [shape = 'u32[]', space=smem, size = 0x4, offset = 0x4, fixed_abs, tag = 'smem constant byte address 0x4 - core index']
  #allocation1 [shape = 'u32[144,128]{1,0:T(1,128)}', space=vmem, size = 0x12000, scoped, tag = 'internal scratch']
  %s0 = inlined_call_operand.vmem [shape: f32[1024,128], index: 0, kind: input, shape index: {}]
  %s1 = inlined_call_operand.vmem [shape: f32[1,128], index: 1, kind: input, shape index: {}]
  %s2 = inlined_call_operand.vmem [shape: f32[1,128], index: 2, kind: input, shape index: {}]
  %s3 = inlined_call_operand.vmem [shape: bf16[1024,128], index: 3, kind: output, shape index: {}]
  %s4 = sld [smem:[#allocation0]]
  $region22: #{basic_block_forward.5} parent=0
    _
  %s6 = ssub.s32 1, %s4
  %s7 = scalar_select 0, %s6, %s4
  // Predicated region
  $region2: #{basic_block_forward.5} parent=0 // pred_check
    _
  $region3: #{basic_block_forward.5} parent=0 // pred_check_branch
    %9 = sbr.rel (0) target = $region5
  $region4: #{basic_block_forward.5} parent=0 // pred_region
    _
  $region5: #{basic_block_forward.5} parent=0 // pred_fallthru
    _
  // Predicated region
  $region6: #{basic_block_forward.5} parent=0 // pred_check
    _
  $region7: #{basic_block_forward.5} parent=0 // pred_check_branch
    %11 = sbr.rel (0) target = $region9
  $region8: #{basic_block_forward.5} parent=0 // pred_region
    _
  $region9: #{basic_block_forward.5} parent=0 // pred_fallthru
    _
  // Predicated region
  $region10: #{basic_block_forward.5} parent=0 // pred_check
    _
  $region11: #{basic_block_forward.5} parent=0 // pred_check_branch
    %13 = sbr.rel (0) target = $region13
  $region12: #{basic_block_forward.5} parent=0 // pred_region
    _
  $region13: #{basic_block_forward.5} parent=0 // pred_fallthru
    _
  %v14 = vld [vmem:[%s0] sm:$0xff]
  %v15 = vld [vmem:[%s0 + $0x8] sm:$0xff]
  %v16 = vld [vmem:[%s0 + $0x10] sm:$0xff]
  %v17 = vld [vmem:[%s0 + $0x18] sm:$0xff]
  %v18 = vld [vmem:[%s0 + $0x20] sm:$0xff]
  %v19 = vld [vmem:[%s0 + $0x28] sm:$0xff]
  %v20 = vld [vmem:[%s0 + $0x30] sm:$0xff]
  %v21 = vld [vmem:[%s0 + $0x38] sm:$0xff]
  %v22 = vld [vmem:[%s0 + $0x40] sm:$0xff]
  %v23 = vld [vmem:[%s0 + $0x48] sm:$0xff]
  %v24 = vld [vmem:[%s0 + $0x50] sm:$0xff]
  %v25 = vld [vmem:[%s0 + $0x58] sm:$0xff]
  %v26 = vld [vmem:[%s0 + $0x60] sm:$0xff]
  %v27 = vld [vmem:[%s0 + $0x68] sm:$0xff]
  %v28 = vld [vmem:[%s0 + $0x70] sm:$0xff]
  %v29 = vld [vmem:[%s0 + $0x78] sm:$0xff]
  %v30 = vld [vmem:[%s0 + $0x80] sm:$0xff]
  %v31 = vld [vmem:[%s0 + $0x88] sm:$0xff]
  %v32 = vld [vmem:[%s0 + $0x90] sm:$0xff]
  %v33 = vld [vmem:[%s0 + $0x98] sm:$0xff]
  %v34 = vld [vmem:[%s0 + $0xa0] sm:$0xff]
  %v35 = vld [vmem:[%s0 + $0xa8] sm:$0xff]
  %v36 = vld [vmem:[%s0 + $0xb0] sm:$0xff]
  %v37 = vld [vmem:[%s0 + $0xb8] sm:$0xff]
  %v38 = vld [vmem:[%s0 + $0xc0] sm:$0xff]
  %v39 = vld [vmem:[%s0 + $0xc8] sm:$0xff]
  %v40 = vld [vmem:[%s0 + $0xd0] sm:$0xff]
  %v41 = vld [vmem:[%s0 + $0xd8] sm:$0xff]
  %v42 = vld [vmem:[%s0 + $0xe0] sm:$0xff]
  %v43 = vld [vmem:[%s0 + $0xe8] sm:$0xff]
  %v44 = vld [vmem:[%s0 + $0xf0] sm:$0xff]
  %v45 = vld [vmem:[%s0 + $0xf8] sm:$0xff]
  %v46 = vld [vmem:[%s0 + $0x100] sm:$0xff]
  %v47 = vld [vmem:[%s0 + $0x108] sm:$0xff]
  %v48 = vld [vmem:[%s0 + $0x110] sm:$0xff]
  %v49 = vld [vmem:[%s0 + $0x118] sm:$0xff]
  %v50 = vld [vmem:[%s0 + $0x120] sm:$0xff]
  %v51 = vld [vmem:[%s0 + $0x128] sm:$0xff]
  %v52 = vld [vmem:[%s0 + $0x130] sm:$0xff]
  %v53 = vld [vmem:[%s0 + $0x138] sm:$0xff]
  %v54 = vld [vmem:[%s0 + $0x140] sm:$0xff]
  %v55 = vld [vmem:[%s0 + $0x148] sm:$0xff]
  %v56 = vld [vmem:[%s0 + $0x150] sm:$0xff]
  %v57 = vld [vmem:[%s0 + $0x158] sm:$0xff]
  %v58 = vld [vmem:[%s0 + $0x160] sm:$0xff]
  %v59 = vld [vmem:[%s0 + $0x168] sm:$0xff]
  %v60 = vld [vmem:[%s0 + $0x170] sm:$0xff]
  %v61 = vld [vmem:[%s0 + $0x178] sm:$0xff]
  %v62 = vld [vmem:[%s0 + $0x180] sm:$0xff]
  %v63 = vld [vmem:[%s0 + $0x188] sm:$0xff]
  %v64 = vld [vmem:[%s0 + $0x190] sm:$0xff]
  %v65 = vld [vmem:[%s0 + $0x198] sm:$0xff]
  %v66 = vld [vmem:[%s0 + $0x1a0] sm:$0xff]
  %v67 = vld [vmem:[%s0 + $0x1a8] sm:$0xff]
  %v68 = vld [vmem:[%s0 + $0x1b0] sm:$0xff]
  %v69 = vld [vmem:[%s0 + $0x1b8] sm:$0xff]
  %v70 = vld [vmem:[%s0 + $0x1c0] sm:$0xff]
  %v71 = vld [vmem:[%s0 + $0x1c8] sm:$0xff]
  %v72 = vld [vmem:[%s0 + $0x1d0] sm:$0xff]
  %v73 = vld [vmem:[%s0 + $0x1d8] sm:$0xff]
  %v74 = vld [vmem:[%s0 + $0x1e0] sm:$0xff]
  %v75 = vld [vmem:[%s0 + $0x1e8] sm:$0xff]
  %v76 = vld [vmem:[%s0 + $0x1f0] sm:$0xff]
  %v77 = vld [vmem:[%s0 + $0x1f8] sm:$0xff]
  %v78 = vld [vmem:[%s0 + $0x200] sm:$0xff]
  %v79 = vld [vmem:[%s0 + $0x208] sm:$0xff]
  %v80 = vld [vmem:[%s0 + $0x210] sm:$0xff]
  %v81 = vld [vmem:[%s0 + $0x218] sm:$0xff]
  %v82 = vld [vmem:[%s0 + $0x220] sm:$0xff]
  %v83 = vld [vmem:[%s0 + $0x228] sm:$0xff]
  %v84 = vld [vmem:[%s0 + $0x230] sm:$0xff]
  %v85 = vld [vmem:[%s0 + $0x238] sm:$0xff]
  %v86 = vld [vmem:[%s0 + $0x240] sm:$0xff]
  %v87 = vld [vmem:[%s0 + $0x248] sm:$0xff]
  %v88 = vld [vmem:[%s0 + $0x250] sm:$0xff]
  %v89 = vld [vmem:[%s0 + $0x258] sm:$0xff]
  %v90 = vld [vmem:[%s0 + $0x260] sm:$0xff]
  %v91 = vld [vmem:[%s0 + $0x268] sm:$0xff]
  %v92 = vld [vmem:[%s0 + $0x270] sm:$0xff]
  %v93 = vld [vmem:[%s0 + $0x278] sm:$0xff]
  %v94 = vld [vmem:[%s0 + $0x280] sm:$0xff]
  %v95 = vld [vmem:[%s0 + $0x288] sm:$0xff]
  %v96 = vld [vmem:[%s0 + $0x290] sm:$0xff]
  %v97 = vld [vmem:[%s0 + $0x298] sm:$0xff]
  %v98 = vld [vmem:[%s0 + $0x2a0] sm:$0xff]
  %v99 = vld [vmem:[%s0 + $0x2a8] sm:$0xff]
  %v100 = vld [vmem:[%s0 + $0x2b0] sm:$0xff]
  %v101 = vld [vmem:[%s0 + $0x2b8] sm:$0xff]
  %v102 = vld [vmem:[%s0 + $0x2c0] sm:$0xff]
  %v103 = vld [vmem:[%s0 + $0x2c8] sm:$0xff]
  %v104 = vld [vmem:[%s0 + $0x2d0] sm:$0xff]
  %v105 = vld [vmem:[%s0 + $0x2d8] sm:$0xff]
  %v106 = vld [vmem:[%s0 + $0x2e0] sm:$0xff]
  %v107 = vld [vmem:[%s0 + $0x2e8] sm:$0xff]
  %v108 = vld [vmem:[%s0 + $0x2f0] sm:$0xff]
  %v109 = vld [vmem:[%s0 + $0x2f8] sm:$0xff]
  %v110 = vld [vmem:[%s0 + $0x300] sm:$0xff]
  %v111 = vld [vmem:[%s0 + $0x308] sm:$0xff]
  %v112 = vld [vmem:[%s0 + $0x310] sm:$0xff]
  %v113 = vld [vmem:[%s0 + $0x318] sm:$0xff]
  %v114 = vld [vmem:[%s0 + $0x320] sm:$0xff]
  %v115 = vld [vmem:[%s0 + $0x328] sm:$0xff]
  %v116 = vld [vmem:[%s0 + $0x330] sm:$0xff]
  %v117 = vld [vmem:[%s0 + $0x338] sm:$0xff]
  %v118 = vld [vmem:[%s0 + $0x340] sm:$0xff]
  %v119 = vld [vmem:[%s0 + $0x348] sm:$0xff]
  %v120 = vld [vmem:[%s0 + $0x350] sm:$0xff]
  %v121 = vld [vmem:[%s0 + $0x358] sm:$0xff]
  %v122 = vld [vmem:[%s0 + $0x360] sm:$0xff]
  %v123 = vld [vmem:[%s0 + $0x368] sm:$0xff]
  %v124 = vld [vmem:[%s0 + $0x370] sm:$0xff]
  %v125 = vld [vmem:[%s0 + $0x378] sm:$0xff]
  %v126 = vld [vmem:[%s0 + $0x380] sm:$0xff]
  %v127 = vld [vmem:[%s0 + $0x388] sm:$0xff]
  %v128 = vld [vmem:[%s0 + $0x390] sm:$0xff]
  %v129 = vld [vmem:[%s0 + $0x398] sm:$0xff]
  %v130 = vld [vmem:[%s0 + $0x3a0] sm:$0xff]
  %v131 = vld [vmem:[%s0 + $0x3a8] sm:$0xff]
  %v132 = vld [vmem:[%s0 + $0x3b0] sm:$0xff]
  %v133 = vld [vmem:[%s0 + $0x3b8] sm:$0xff]
  %v134 = vld [vmem:[%s0 + $0x3c0] sm:$0xff]
  %v135 = vld [vmem:[%s0 + $0x3c8] sm:$0xff]
  %v136 = vld [vmem:[%s0 + $0x3d0] sm:$0xff]
  %v137 = vld [vmem:[%s0 + $0x3d8] sm:$0xff]
  %v138 = vld [vmem:[%s0 + $0x3e0] sm:$0xff]
  %v139 = vld [vmem:[%s0 + $0x3e8] sm:$0xff]
  %v140 = vld [vmem:[%s0 + $0x3f0] sm:$0xff]
  %v141 = vld [vmem:[%s0 + $0x3f8] sm:$0xff]
  %v142 = vld [vmem:[%s1] sm:$0x1]
  %v144 = vlaneseq
  %v145 = vshrl.u32 %v144, 7
  %v146 = vsub.s32 0, %v145
  %v147 = vrot.slane %v142, %v146
  %v149 = vmul.f32 %v14, %v147
  %v150 = vmul.f32 %v15, %v147
  %v151 = vmul.f32 %v16, %v147
  %v152 = vmul.f32 %v17, %v147
  %v153 = vmul.f32 %v18, %v147
  %v154 = vmul.f32 %v19, %v147
  %v155 = vmul.f32 %v20, %v147
  %v156 = vmul.f32 %v21, %v147
  %v157 = vmul.f32 %v22, %v147
  %v158 = vmul.f32 %v23, %v147
  %v159 = vmul.f32 %v24, %v147
  %v160 = vmul.f32 %v25, %v147
  %v161 = vmul.f32 %v26, %v147
  %v162 = vmul.f32 %v27, %v147
  %v163 = vmul.f32 %v28, %v147
  %v164 = vmul.f32 %v29, %v147
  %v165 = vmul.f32 %v30, %v147
  %v166 = vmul.f32 %v31, %v147
  %v167 = vmul.f32 %v32, %v147
  %v168 = vmul.f32 %v33, %v147
  %v169 = vmul.f32 %v34, %v147
  %v170 = vmul.f32 %v35, %v147
  %v171 = vmul.f32 %v36, %v147
  %v172 = vmul.f32 %v37, %v147
  %v173 = vmul.f32 %v38, %v147
  %v174 = vmul.f32 %v39, %v147
  %v175 = vmul.f32 %v40, %v147
  %v176 = vmul.f32 %v41, %v147
  %v177 = vmul.f32 %v42, %v147
  %v178 = vmul.f32 %v43, %v147
  %v179 = vmul.f32 %v44, %v147
  %v180 = vmul.f32 %v45, %v147
  %v181 = vmul.f32 %v46, %v147
  %v182 = vmul.f32 %v47, %v147
  %v183 = vmul.f32 %v48, %v147
  %v184 = vmul.f32 %v49, %v147
  %v185 = vmul.f32 %v50, %v147
  %v186 = vmul.f32 %v51, %v147
  %v187 = vmul.f32 %v52, %v147
  %v188 = vmul.f32 %v53, %v147
  %v189 = vmul.f32 %v54, %v147
  %v190 = vmul.f32 %v55, %v147
  %v191 = vmul.f32 %v56, %v147
  %v192 = vmul.f32 %v57, %v147
  %v193 = vmul.f32 %v58, %v147
  %v194 = vmul.f32 %v59, %v147
  %v195 = vmul.f32 %v60, %v147
  %v196 = vmul.f32 %v61, %v147
  %v197 = vmul.f32 %v62, %v147
  %v198 = vmul.f32 %v63, %v147
  %v199 = vmul.f32 %v64, %v147
  %v200 = vmul.f32 %v65, %v147
  %v201 = vmul.f32 %v66, %v147
  %v202 = vmul.f32 %v67, %v147
  %v203 = vmul.f32 %v68, %v147
  %v204 = vmul.f32 %v69, %v147
  %v205 = vmul.f32 %v70, %v147
  %v206 = vmul.f32 %v71, %v147
  %v207 = vmul.f32 %v72, %v147
  %v208 = vmul.f32 %v73, %v147
  %v209 = vmul.f32 %v74, %v147
  %v210 = vmul.f32 %v75, %v147
  %v211 = vmul.f32 %v76, %v147
  %v212 = vmul.f32 %v77, %v147
  %v213 = vmul.f32 %v78, %v147
  %v214 = vmul.f32 %v79, %v147
  %v215 = vmul.f32 %v80, %v147
  %v216 = vmul.f32 %v81, %v147
  %v217 = vmul.f32 %v82, %v147
  %v218 = vmul.f32 %v83, %v147
  %v219 = vmul.f32 %v84, %v147
  %v220 = vmul.f32 %v85, %v147
  %v221 = vmul.f32 %v86, %v147
  %v222 = vmul.f32 %v87, %v147
  %v223 = vmul.f32 %v88, %v147
  %v224 = vmul.f32 %v89, %v147
  %v225 = vmul.f32 %v90, %v147
  %v226 = vmul.f32 %v91, %v147
  %v227 = vmul.f32 %v92, %v147
  %v228 = vmul.f32 %v93, %v147
  %v229 = vmul.f32 %v94, %v147
  %v230 = vmul.f32 %v95, %v147
  %v231 = vmul.f32 %v96, %v147
  %v232 = vmul.f32 %v97, %v147
  %v233 = vmul.f32 %v98, %v147
  %v234 = vmul.f32 %v99, %v147
  %v235 = vmul.f32 %v100, %v147
  %v236 = vmul.f32 %v101, %v147
  %v237 = vmul.f32 %v102, %v147
  %v238 = vmul.f32 %v103, %v147
  %v239 = vmul.f32 %v104, %v147
  %v240 = vmul.f32 %v105, %v147
  %v241 = vmul.f32 %v106, %v147
  %v242 = vmul.f32 %v107, %v147
  %v243 = vmul.f32 %v108, %v147
  %v244 = vmul.f32 %v109, %v147
  %v245 = vmul.f32 %v110, %v147
  %v246 = vmul.f32 %v111, %v147
  %v247 = vmul.f32 %v112, %v147
  %v248 = vmul.f32 %v113, %v147
  %v249 = vmul.f32 %v114, %v147
  %v250 = vmul.f32 %v115, %v147
  %v251 = vmul.f32 %v116, %v147
  %v252 = vmul.f32 %v117, %v147
  %v253 = vmul.f32 %v118, %v147
  %v254 = vmul.f32 %v119, %v147
  %v255 = vmul.f32 %v120, %v147
  %v256 = vmul.f32 %v121, %v147
  %v257 = vmul.f32 %v122, %v147
  %v258 = vmul.f32 %v123, %v147
  %v259 = vmul.f32 %v124, %v147
  %v260 = vmul.f32 %v125, %v147
  %v261 = vmul.f32 %v126, %v147
  %v262 = vmul.f32 %v127, %v147
  %v263 = vmul.f32 %v128, %v147
  %v264 = vmul.f32 %v129, %v147
  %v265 = vmul.f32 %v130, %v147
  %v266 = vmul.f32 %v131, %v147
  %v267 = vmul.f32 %v132, %v147
  %v268 = vmul.f32 %v133, %v147
  %v269 = vmul.f32 %v134, %v147
  %v270 = vmul.f32 %v135, %v147
  %v271 = vmul.f32 %v136, %v147
  %v272 = vmul.f32 %v137, %v147
  %v273 = vmul.f32 %v138, %v147
  %v274 = vmul.f32 %v139, %v147
  %v275 = vmul.f32 %v140, %v147
  %v276 = vmul.f32 %v141, %v147
  %v277 = vld [vmem:[%s2] sm:$0x1]
  %v279 = vlaneseq
  %v280 = vshrl.u32 %v279, 7
  %v281 = vsub.s32 0, %v280
  %v282 = vrot.slane %v277, %v281
  %v284 = vadd.f32 %v149, %v282
  %v285 = vadd.f32 %v150, %v282
  %v286 = vadd.f32 %v151, %v282
  %v287 = vadd.f32 %v152, %v282
  %v288 = vadd.f32 %v153, %v282
  %v289 = vadd.f32 %v154, %v282
  %v290 = vadd.f32 %v155, %v282
  %v291 = vadd.f32 %v156, %v282
  %v292 = vadd.f32 %v157, %v282
  %v293 = vadd.f32 %v158, %v282
  %v294 = vadd.f32 %v159, %v282
  %v295 = vadd.f32 %v160, %v282
  %v296 = vadd.f32 %v161, %v282
  %v297 = vadd.f32 %v162, %v282
  %v298 = vadd.f32 %v163, %v282
  %v299 = vadd.f32 %v164, %v282
  %v300 = vadd.f32 %v165, %v282
  %v301 = vadd.f32 %v166, %v282
  %v302 = vadd.f32 %v167, %v282
  %v303 = vadd.f32 %v168, %v282
  %v304 = vadd.f32 %v169, %v282
  %v305 = vadd.f32 %v170, %v282
  %v306 = vadd.f32 %v171, %v282
  %v307 = vadd.f32 %v172, %v282
  %v308 = vadd.f32 %v173, %v282
  %v309 = vadd.f32 %v174, %v282
  %v310 = vadd.f32 %v175, %v282
  %v311 = vadd.f32 %v176, %v282
  %v312 = vadd.f32 %v177, %v282
  %v313 = vadd.f32 %v178, %v282
  %v314 = vadd.f32 %v179, %v282
  %v315 = vadd.f32 %v180, %v282
  %v316 = vadd.f32 %v181, %v282
  %v317 = vadd.f32 %v182, %v282
  %v318 = vadd.f32 %v183, %v282
  %v319 = vadd.f32 %v184, %v282
  %v320 = vadd.f32 %v185, %v282
  %v321 = vadd.f32 %v186, %v282
  %v322 = vadd.f32 %v187, %v282
  %v323 = vadd.f32 %v188, %v282
  %v324 = vadd.f32 %v189, %v282
  %v325 = vadd.f32 %v190, %v282
  %v326 = vadd.f32 %v191, %v282
  %v327 = vadd.f32 %v192, %v282
  %v328 = vadd.f32 %v193, %v282
  %v329 = vadd.f32 %v194, %v282
  %v330 = vadd.f32 %v195, %v282
  %v331 = vadd.f32 %v196, %v282
  %v332 = vadd.f32 %v197, %v282
  %v333 = vadd.f32 %v198, %v282
  %v334 = vadd.f32 %v199, %v282
  %v335 = vadd.f32 %v200, %v282
  %v336 = vadd.f32 %v201, %v282
  %v337 = vadd.f32 %v202, %v282
  %v338 = vadd.f32 %v203, %v282
  %v339 = vadd.f32 %v204, %v282
  %v340 = vadd.f32 %v205, %v282
  %v341 = vadd.f32 %v206, %v282
  %v342 = vadd.f32 %v207, %v282
  %v343 = vadd.f32 %v208, %v282
  %v344 = vadd.f32 %v209, %v282
  %v345 = vadd.f32 %v210, %v282
  %v346 = vadd.f32 %v211, %v282
  %v347 = vadd.f32 %v212, %v282
  %v348 = vadd.f32 %v213, %v282
  %v349 = vadd.f32 %v214, %v282
  %v350 = vadd.f32 %v215, %v282
  %v351 = vadd.f32 %v216, %v282
  %v352 = vadd.f32 %v217, %v282
  %v353 = vadd.f32 %v218, %v282
  %v354 = vadd.f32 %v219, %v282
  %v355 = vadd.f32 %v220, %v282
  %v356 = vadd.f32 %v221, %v282
  %v357 = vadd.f32 %v222, %v282
  %v358 = vadd.f32 %v223, %v282
  %v359 = vadd.f32 %v224, %v282
  %v360 = vadd.f32 %v225, %v282
  %v361 = vadd.f32 %v226, %v282
  %v362 = vadd.f32 %v227, %v282
  %v363 = vadd.f32 %v228, %v282
  %v364 = vadd.f32 %v229, %v282
  %v365 = vadd.f32 %v230, %v282
  %v366 = vadd.f32 %v231, %v282
  %v367 = vadd.f32 %v232, %v282
  %v368 = vadd.f32 %v233, %v282
  %v369 = vadd.f32 %v234, %v282
  %v370 = vadd.f32 %v235, %v282
  %v371 = vadd.f32 %v236, %v282
  %v372 = vadd.f32 %v237, %v282
  %v373 = vadd.f32 %v238, %v282
  %v374 = vadd.f32 %v239, %v282
  %v375 = vadd.f32 %v240, %v282
  %v376 = vadd.f32 %v241, %v282
  %v377 = vadd.f32 %v242, %v282
  %v378 = vadd.f32 %v243, %v282
  %v379 = vadd.f32 %v244, %v282
  %v380 = vadd.f32 %v245, %v282
  %v381 = vadd.f32 %v246, %v282
  %v382 = vadd.f32 %v247, %v282
  %v383 = vadd.f32 %v248, %v282
  %v384 = vadd.f32 %v249, %v282
  %v385 = vadd.f32 %v250, %v282
  %v386 = vadd.f32 %v251, %v282
  %v387 = vadd.f32 %v252, %v282
  %v388 = vadd.f32 %v253, %v282
  %v389 = vadd.f32 %v254, %v282
  %v390 = vadd.f32 %v255, %v282
  %v391 = vadd.f32 %v256, %v282
  %v392 = vadd.f32 %v257, %v282
  %v393 = vadd.f32 %v258, %v282
  %v394 = vadd.f32 %v259, %v282
  %v395 = vadd.f32 %v260, %v282
  %v396 = vadd.f32 %v261, %v282
  %v397 = vadd.f32 %v262, %v282
  %v398 = vadd.f32 %v263, %v282
  %v399 = vadd.f32 %v264, %v282
  %v400 = vadd.f32 %v265, %v282
  %v401 = vadd.f32 %v266, %v282
  %v402 = vadd.f32 %v267, %v282
  %v403 = vadd.f32 %v268, %v282
  %v404 = vadd.f32 %v269, %v282
  %v405 = vadd.f32 %v270, %v282
  %v406 = vadd.f32 %v271, %v282
  %v407 = vadd.f32 %v272, %v282
  %v408 = vadd.f32 %v273, %v282
  %v409 = vadd.f32 %v274, %v282
  %v410 = vadd.f32 %v275, %v282
  %v411 = vadd.f32 %v276, %v282
  %v412 = vmax.f32 %v284, 0.0
  %v413 = vmax.f32 %v285, 0.0
  %v414 = vmax.f32 %v286, 0.0
  %v415 = vmax.f32 %v287, 0.0
  %v416 = vmax.f32 %v288, 0.0
  %v417 = vmax.f32 %v289, 0.0
  %v418 = vmax.f32 %v290, 0.0
  %v419 = vmax.f32 %v291, 0.0
  %v420 = vmax.f32 %v292, 0.0
  %v421 = vmax.f32 %v293, 0.0
  %v422 = vmax.f32 %v294, 0.0
  %v423 = vmax.f32 %v295, 0.0
  %v424 = vmax.f32 %v296, 0.0
  %v425 = vmax.f32 %v297, 0.0
  %v426 = vmax.f32 %v298, 0.0
  %v427 = vmax.f32 %v299, 0.0
  %v428 = vmax.f32 %v300, 0.0
  %v429 = vmax.f32 %v301, 0.0
  %v430 = vmax.f32 %v302, 0.0
  %v431 = vmax.f32 %v303, 0.0
  %v432 = vmax.f32 %v304, 0.0
  %v433 = vmax.f32 %v305, 0.0
  %v434 = vmax.f32 %v306, 0.0
  %v435 = vmax.f32 %v307, 0.0
  %v436 = vmax.f32 %v308, 0.0
  %v437 = vmax.f32 %v309, 0.0
  %v438 = vmax.f32 %v310, 0.0
  %v439 = vmax.f32 %v311, 0.0
  %v440 = vmax.f32 %v312, 0.0
  %v441 = vmax.f32 %v313, 0.0
  %v442 = vmax.f32 %v314, 0.0
  %v443 = vmax.f32 %v315, 0.0
  %v444 = vmax.f32 %v316, 0.0
  %v445 = vmax.f32 %v317, 0.0
  %v446 = vmax.f32 %v318, 0.0
  %v447 = vmax.f32 %v319, 0.0
  %v448 = vmax.f32 %v320, 0.0
  %v449 = vmax.f32 %v321, 0.0
  %v450 = vmax.f32 %v322, 0.0
  %v451 = vmax.f32 %v323, 0.0
  %v452 = vmax.f32 %v324, 0.0
  %v453 = vmax.f32 %v325, 0.0
  %v454 = vmax.f32 %v326, 0.0
  %v455 = vmax.f32 %v327, 0.0
  %v456 = vmax.f32 %v328, 0.0
  %v457 = vmax.f32 %v329, 0.0
  %v458 = vmax.f32 %v330, 0.0
  %v459 = vmax.f32 %v331, 0.0
  %v460 = vmax.f32 %v332, 0.0
  %v461 = vmax.f32 %v333, 0.0
  %v462 = vmax.f32 %v334, 0.0
  %v463 = vmax.f32 %v335, 0.0
  %v464 = vmax.f32 %v336, 0.0
  %v465 = vmax.f32 %v337, 0.0
  %v466 = vmax.f32 %v338, 0.0
  %v467 = vmax.f32 %v339, 0.0
  %v468 = vmax.f32 %v340, 0.0
  %v469 = vmax.f32 %v341, 0.0
  %v470 = vmax.f32 %v342, 0.0
  %v471 = vmax.f32 %v343, 0.0
  %v472 = vmax.f32 %v344, 0.0
  %v473 = vmax.f32 %v345, 0.0
  %v474 = vmax.f32 %v346, 0.0
  %v475 = vmax.f32 %v347, 0.0
  %v476 = vmax.f32 %v348, 0.0
  %v477 = vmax.f32 %v349, 0.0
  %v478 = vmax.f32 %v350, 0.0
  %v479 = vmax.f32 %v351, 0.0
  %v480 = vmax.f32 %v352, 0.0
  %v481 = vmax.f32 %v353, 0.0
  %v482 = vmax.f32 %v354, 0.0
  %v483 = vmax.f32 %v355, 0.0
  %v484 = vmax.f32 %v356, 0.0
  %v485 = vmax.f32 %v357, 0.0
  %v486 = vmax.f32 %v358, 0.0
  %v487 = vmax.f32 %v359, 0.0
  %v488 = vmax.f32 %v360, 0.0
  %v489 = vmax.f32 %v361, 0.0
  %v490 = vmax.f32 %v362, 0.0
  %v491 = vmax.f32 %v363, 0.0
  %v492 = vmax.f32 %v364, 0.0
  %v493 = vmax.f32 %v365, 0.0
  %v494 = vmax.f32 %v366, 0.0
  %v495 = vmax.f32 %v367, 0.0
  %v496 = vmax.f32 %v368, 0.0
  %v497 = vmax.f32 %v369, 0.0
  %v498 = vmax.f32 %v370, 0.0
  %v499 = vmax.f32 %v371, 0.0
  %v500 = vmax.f32 %v372, 0.0
  %v501 = vmax.f32 %v373, 0.0
  %v502 = vmax.f32 %v374, 0.0
  %v503 = vmax.f32 %v375, 0.0
  %v504 = vmax.f32 %v376, 0.0
  %v505 = vmax.f32 %v377, 0.0
  %v506 = vmax.f32 %v378, 0.0
  %v507 = vmax.f32 %v379, 0.0
  %v508 = vmax.f32 %v380, 0.0
  %v509 = vmax.f32 %v381, 0.0
  %v510 = vmax.f32 %v382, 0.0
  %v511 = vmax.f32 %v383, 0.0
  %v512 = vmax.f32 %v384, 0.0
  %v513 = vmax.f32 %v385, 0.0
  %v514 = vmax.f32 %v386, 0.0
  %v515 = vmax.f32 %v387, 0.0
  %v516 = vmax.f32 %v388, 0.0
  %v517 = vmax.f32 %v389, 0.0
  %v518 = vmax.f32 %v390, 0.0
  %v519 = vmax.f32 %v391, 0.0
  %v520 = vmax.f32 %v392, 0.0
  %v521 = vmax.f32 %v393, 0.0
  %v522 = vmax.f32 %v394, 0.0
  %v523 = vmax.f32 %v395, 0.0
  %v524 = vmax.f32 %v396, 0.0
  %v525 = vmax.f32 %v397, 0.0
  %v526 = vmax.f32 %v398, 0.0
  %v527 = vmax.f32 %v399, 0.0
  %v528 = vmax.f32 %v400, 0.0
  %v529 = vmax.f32 %v401, 0.0
  %v530 = vmax.f32 %v402, 0.0
  %v531 = vmax.f32 %v403, 0.0
  %v532 = vmax.f32 %v404, 0.0
  %v533 = vmax.f32 %v405, 0.0
  %v534 = vmax.f32 %v406, 0.0
  %v535 = vmax.f32 %v407, 0.0
  %v536 = vmax.f32 %v408, 0.0
  %v537 = vmax.f32 %v409, 0.0
  %v538 = vmax.f32 %v410, 0.0
  %v539 = vmax.f32 %v411, 0.0
  %v540 = vpack.c.bf16 %v413, %v412
  %v541 = vpack.c.bf16 %v415, %v414
  %v542 = vpack.c.bf16 %v417, %v416
  %v543 = vpack.c.bf16 %v419, %v418
  %v544 = vpack.c.bf16 %v421, %v420
  %v545 = vpack.c.bf16 %v423, %v422
  %v546 = vpack.c.bf16 %v425, %v424
  %v547 = vpack.c.bf16 %v427, %v426
  %v548 = vpack.c.bf16 %v429, %v428
  %v549 = vpack.c.bf16 %v431, %v430
  %v550 = vpack.c.bf16 %v433, %v432
  %v551 = vpack.c.bf16 %v435, %v434
  %v552 = vpack.c.bf16 %v437, %v436
  %v553 = vpack.c.bf16 %v439, %v438
  %v554 = vpack.c.bf16 %v441, %v440
  %v555 = vpack.c.bf16 %v443, %v442
  %v556 = vpack.c.bf16 %v445, %v444
  %v557 = vpack.c.bf16 %v447, %v446
  %v558 = vpack.c.bf16 %v449, %v448
  %v559 = vpack.c.bf16 %v451, %v450
  %v560 = vpack.c.bf16 %v453, %v452
  %v561 = vpack.c.bf16 %v455, %v454
  %v562 = vpack.c.bf16 %v457, %v456
  %v563 = vpack.c.bf16 %v459, %v458
  %v564 = vpack.c.bf16 %v461, %v460
  %v565 = vpack.c.bf16 %v463, %v462
  %v566 = vpack.c.bf16 %v465, %v464
  %v567 = vpack.c.bf16 %v467, %v466
  %v568 = vpack.c.bf16 %v469, %v468
  %v569 = vpack.c.bf16 %v471, %v470
  %v570 = vpack.c.bf16 %v473, %v472
  %v571 = vpack.c.bf16 %v475, %v474
  %v572 = vpack.c.bf16 %v477, %v476
  %v573 = vpack.c.bf16 %v479, %v478
  %v574 = vpack.c.bf16 %v481, %v480
  %v575 = vpack.c.bf16 %v483, %v482
  %v576 = vpack.c.bf16 %v485, %v484
  %v577 = vpack.c.bf16 %v487, %v486
  %v578 = vpack.c.bf16 %v489, %v488
  %v579 = vpack.c.bf16 %v491, %v490
  %v580 = vpack.c.bf16 %v493, %v492
  %v581 = vpack.c.bf16 %v495, %v494
  %v582 = vpack.c.bf16 %v497, %v496
  %v583 = vpack.c.bf16 %v499, %v498
  %v584 = vpack.c.bf16 %v501, %v500
  %v585 = vpack.c.bf16 %v503, %v502
  %v586 = vpack.c.bf16 %v505, %v504
  %v587 = vpack.c.bf16 %v507, %v506
  %v588 = vpack.c.bf16 %v509, %v508
  %v589 = vpack.c.bf16 %v511, %v510
  %v590 = vpack.c.bf16 %v513, %v512
  %v591 = vpack.c.bf16 %v515, %v514
  %v592 = vpack.c.bf16 %v517, %v516
  %v593 = vpack.c.bf16 %v519, %v518
  %v594 = vpack.c.bf16 %v521, %v520
  %v595 = vpack.c.bf16 %v523, %v522
  %v596 = vpack.c.bf16 %v525, %v524
  %v597 = vpack.c.bf16 %v527, %v526
  %v598 = vpack.c.bf16 %v529, %v528
  %v599 = vpack.c.bf16 %v531, %v530
  %v600 = vpack.c.bf16 %v533, %v532
  %v601 = vpack.c.bf16 %v535, %v534
  %v602 = vpack.c.bf16 %v537, %v536
  %v603 = vpack.c.bf16 %v539, %v538
  %v668 = vunpack.c.l.b16 %v540
  %v669 = vunpack.c.h.b16 %v540
  %v670 = vunpack.c.l.b16 %v541
  %v671 = vunpack.c.h.b16 %v541
  %v672 = vunpack.c.l.b16 %v542
  %v673 = vunpack.c.h.b16 %v542
  %v674 = vunpack.c.l.b16 %v543
  %v675 = vunpack.c.h.b16 %v543
  %v676 = vunpack.c.l.b16 %v544
  %v677 = vunpack.c.h.b16 %v544
  %v678 = vunpack.c.l.b16 %v545
  %v679 = vunpack.c.h.b16 %v545
  %v680 = vunpack.c.l.b16 %v546
  %v681 = vunpack.c.h.b16 %v546
  %v682 = vunpack.c.l.b16 %v547
  %v683 = vunpack.c.h.b16 %v547
  %v684 = vunpack.c.l.b16 %v548
  %v685 = vunpack.c.h.b16 %v548
  %v686 = vunpack.c.l.b16 %v549
  %v687 = vunpack.c.h.b16 %v549
  %v688 = vunpack.c.l.b16 %v550
  %v689 = vunpack.c.h.b16 %v550
  %v690 = vunpack.c.l.b16 %v551
  %v691 = vunpack.c.h.b16 %v551
  %v692 = vunpack.c.l.b16 %v552
  %v693 = vunpack.c.h.b16 %v552
  %v694 = vunpack.c.l.b16 %v553
  %v695 = vunpack.c.h.b16 %v553
  %v696 = vunpack.c.l.b16 %v554
  %v697 = vunpack.c.h.b16 %v554
  %v698 = vunpack.c.l.b16 %v555
  %v699 = vunpack.c.h.b16 %v555
  %v700 = vunpack.c.l.b16 %v556
  %v701 = vunpack.c.h.b16 %v556
  %v702 = vunpack.c.l.b16 %v557
  %v703 = vunpack.c.h.b16 %v557
  %v704 = vunpack.c.l.b16 %v558
  %v705 = vunpack.c.h.b16 %v558
  %v706 = vunpack.c.l.b16 %v559
  %v707 = vunpack.c.h.b16 %v559
  %v708 = vunpack.c.l.b16 %v560
  %v709 = vunpack.c.h.b16 %v560
  %v710 = vunpack.c.l.b16 %v561
  %v711 = vunpack.c.h.b16 %v561
  %v712 = vunpack.c.l.b16 %v562
  %v713 = vunpack.c.h.b16 %v562
  %v714 = vunpack.c.l.b16 %v563
  %v715 = vunpack.c.h.b16 %v563
  %v716 = vunpack.c.l.b16 %v564
  %v717 = vunpack.c.h.b16 %v564
  %v718 = vunpack.c.l.b16 %v565
  %v719 = vunpack.c.h.b16 %v565
  %v720 = vunpack.c.l.b16 %v566
  %v721 = vunpack.c.h.b16 %v566
  %v722 = vunpack.c.l.b16 %v567
  %v723 = vunpack.c.h.b16 %v567
  %v724 = vunpack.c.l.b16 %v568
  %v725 = vunpack.c.h.b16 %v568
  %v726 = vunpack.c.l.b16 %v569
  %v727 = vunpack.c.h.b16 %v569
  %v728 = vunpack.c.l.b16 %v570
  %v729 = vunpack.c.h.b16 %v570
  %v730 = vunpack.c.l.b16 %v571
  %v731 = vunpack.c.h.b16 %v571
  %v732 = vunpack.c.l.b16 %v572
  %v733 = vunpack.c.h.b16 %v572
  %v734 = vunpack.c.l.b16 %v573
  %v735 = vunpack.c.h.b16 %v573
  %v736 = vunpack.c.l.b16 %v574
  %v737 = vunpack.c.h.b16 %v574
  %v738 = vunpack.c.l.b16 %v575
  %v739 = vunpack.c.h.b16 %v575
  %v740 = vunpack.c.l.b16 %v576
  %v741 = vunpack.c.h.b16 %v576
  %v742 = vunpack.c.l.b16 %v577
  %v743 = vunpack.c.h.b16 %v577
  %v744 = vunpack.c.l.b16 %v578
  %v745 = vunpack.c.h.b16 %v578
  %v746 = vunpack.c.l.b16 %v579
  %v747 = vunpack.c.h.b16 %v579
  %v748 = vunpack.c.l.b16 %v580
  %v749 = vunpack.c.h.b16 %v580
  %v750 = vunpack.c.l.b16 %v581
  %v751 = vunpack.c.h.b16 %v581
  %v752 = vunpack.c.l.b16 %v582
  %v753 = vunpack.c.h.b16 %v582
  %v754 = vunpack.c.l.b16 %v583
  %v755 = vunpack.c.h.b16 %v583
  %v756 = vunpack.c.l.b16 %v584
  %v757 = vunpack.c.h.b16 %v584
  %v758 = vunpack.c.l.b16 %v585
  %v759 = vunpack.c.h.b16 %v585
  %v760 = vunpack.c.l.b16 %v586
  %v761 = vunpack.c.h.b16 %v586
  %v762 = vunpack.c.l.b16 %v587
  %v763 = vunpack.c.h.b16 %v587
  %v764 = vunpack.c.l.b16 %v588
  %v765 = vunpack.c.h.b16 %v588
  %v766 = vunpack.c.l.b16 %v589
  %v767 = vunpack.c.h.b16 %v589
  %v768 = vunpack.c.l.b16 %v590
  %v769 = vunpack.c.h.b16 %v590
  %v770 = vunpack.c.l.b16 %v591
  %v771 = vunpack.c.h.b16 %v591
  %v772 = vunpack.c.l.b16 %v592
  %v773 = vunpack.c.h.b16 %v592
  %v774 = vunpack.c.l.b16 %v593
  %v775 = vunpack.c.h.b16 %v593
  %v776 = vunpack.c.l.b16 %v594
  %v777 = vunpack.c.h.b16 %v594
  %v778 = vunpack.c.l.b16 %v595
  %v779 = vunpack.c.h.b16 %v595
  %v780 = vunpack.c.l.b16 %v596
  %v781 = vunpack.c.h.b16 %v596
  %v782 = vunpack.c.l.b16 %v597
  %v783 = vunpack.c.h.b16 %v597
  %v784 = vunpack.c.l.b16 %v598
  %v785 = vunpack.c.h.b16 %v598
  %v786 = vunpack.c.l.b16 %v599
  %v787 = vunpack.c.h.b16 %v599
  %v788 = vunpack.c.l.b16 %v600
  %v789 = vunpack.c.h.b16 %v600
  %v790 = vunpack.c.l.b16 %v601
  %v791 = vunpack.c.h.b16 %v601
  %v792 = vunpack.c.l.b16 %v602
  %v793 = vunpack.c.h.b16 %v602
  %v794 = vunpack.c.l.b16 %v603
  %v795 = vunpack.c.h.b16 %v603
  %v796 = vpack.c.b16 %v668, %v668
  %v797 = vpack.c.b16 %v669, %v669
  %v798 = vpack.c.b16 %v670, %v670
  %v799 = vpack.c.b16 %v671, %v671
  %v800 = vpack.c.b16 %v672, %v672
  %v801 = vpack.c.b16 %v673, %v673
  %v802 = vpack.c.b16 %v674, %v674
  %v803 = vpack.c.b16 %v675, %v675
  %v804 = vpack.c.b16 %v676, %v676
  %v805 = vpack.c.b16 %v677, %v677
  %v806 = vpack.c.b16 %v678, %v678
  %v807 = vpack.c.b16 %v679, %v679
  %v808 = vpack.c.b16 %v680, %v680
  %v809 = vpack.c.b16 %v681, %v681
  %v810 = vpack.c.b16 %v682, %v682
  %v811 = vpack.c.b16 %v683, %v683
  %v812 = vpack.c.b16 %v684, %v684
  %v813 = vpack.c.b16 %v685, %v685
  %v814 = vpack.c.b16 %v686, %v686
  %v815 = vpack.c.b16 %v687, %v687
  %v816 = vpack.c.b16 %v688, %v688
  %v817 = vpack.c.b16 %v689, %v689
  %v818 = vpack.c.b16 %v690, %v690
  %v819 = vpack.c.b16 %v691, %v691
  %v820 = vpack.c.b16 %v692, %v692
  %v821 = vpack.c.b16 %v693, %v693
  %v822 = vpack.c.b16 %v694, %v694
  %v823 = vpack.c.b16 %v695, %v695
  %v824 = vpack.c.b16 %v696, %v696
  %v825 = vpack.c.b16 %v697, %v697
  %v826 = vpack.c.b16 %v698, %v698
  %v827 = vpack.c.b16 %v699, %v699
  %v828 = vpack.c.b16 %v700, %v700
  %v829 = vpack.c.b16 %v701, %v701
  %v830 = vpack.c.b16 %v702, %v702
  %v831 = vpack.c.b16 %v703, %v703
  %v832 = vpack.c.b16 %v704, %v704
  %v833 = vpack.c.b16 %v705, %v705
  %v834 = vpack.c.b16 %v706, %v706
  %v835 = vpack.c.b16 %v707, %v707
  %v836 = vpack.c.b16 %v708, %v708
  %v837 = vpack.c.b16 %v709, %v709
  %v838 = vpack.c.b16 %v710, %v710
  %v839 = vpack.c.b16 %v711, %v711
  %v840 = vpack.c.b16 %v712, %v712
  %v841 = vpack.c.b16 %v713, %v713
  %v842 = vpack.c.b16 %v714, %v714
  %v843 = vpack.c.b16 %v715, %v715
  %v844 = vpack.c.b16 %v716, %v716
  %v845 = vpack.c.b16 %v717, %v717
  %v846 = vpack.c.b16 %v718, %v718
  %v847 = vpack.c.b16 %v719, %v719
  %v848 = vpack.c.b16 %v720, %v720
  %v849 = vpack.c.b16 %v721, %v721
  %v850 = vpack.c.b16 %v722, %v722
  %v851 = vpack.c.b16 %v723, %v723
  %v852 = vpack.c.b16 %v724, %v724
  %v853 = vpack.c.b16 %v725, %v725
  %v854 = vpack.c.b16 %v726, %v726
  %v855 = vpack.c.b16 %v727, %v727
  %v856 = vpack.c.b16 %v728, %v728
  %v857 = vpack.c.b16 %v729, %v729
  %v858 = vpack.c.b16 %v730, %v730
  %v859 = vpack.c.b16 %v731, %v731
  %v860 = vpack.c.b16 %v732, %v732
  %v861 = vpack.c.b16 %v733, %v733
  %v862 = vpack.c.b16 %v734, %v734
  %v863 = vpack.c.b16 %v735, %v735
  %v864 = vpack.c.b16 %v736, %v736
  %v865 = vpack.c.b16 %v737, %v737
  %v866 = vpack.c.b16 %v738, %v738
  %v867 = vpack.c.b16 %v739, %v739
  %v868 = vpack.c.b16 %v740, %v740
  %v869 = vpack.c.b16 %v741, %v741
  %v870 = vpack.c.b16 %v742, %v742
  %v871 = vpack.c.b16 %v743, %v743
  %v872 = vpack.c.b16 %v744, %v744
  %v873 = vpack.c.b16 %v745, %v745
  %v874 = vpack.c.b16 %v746, %v746
  %v875 = vpack.c.b16 %v747, %v747
  %v876 = vpack.c.b16 %v748, %v748
  %v877 = vpack.c.b16 %v749, %v749
  %v878 = vpack.c.b16 %v750, %v750
  %v879 = vpack.c.b16 %v751, %v751
  %v880 = vpack.c.b16 %v752, %v752
  %v881 = vpack.c.b16 %v753, %v753
  %v882 = vpack.c.b16 %v754, %v754
  %v883 = vpack.c.b16 %v755, %v755
  %v884 = vpack.c.b16 %v756, %v756
  %v885 = vpack.c.b16 %v757, %v757
  %v886 = vpack.c.b16 %v758, %v758
  %v887 = vpack.c.b16 %v759, %v759
  %v888 = vpack.c.b16 %v760, %v760
  %v889 = vpack.c.b16 %v761, %v761
  %v890 = vpack.c.b16 %v762, %v762
  %v891 = vpack.c.b16 %v763, %v763
  %v892 = vpack.c.b16 %v764, %v764
  %v893 = vpack.c.b16 %v765, %v765
  %v894 = vpack.c.b16 %v766, %v766
  %v895 = vpack.c.b16 %v767, %v767
  %v896 = vpack.c.b16 %v768, %v768
  %v897 = vpack.c.b16 %v769, %v769
  %v898 = vpack.c.b16 %v770, %v770
  %v899 = vpack.c.b16 %v771, %v771
  %v900 = vpack.c.b16 %v772, %v772
  %v901 = vpack.c.b16 %v773, %v773
  %v902 = vpack.c.b16 %v774, %v774
  %v903 = vpack.c.b16 %v775, %v775
  %v904 = vpack.c.b16 %v776, %v776
  %v905 = vpack.c.b16 %v777, %v777
  %v906 = vpack.c.b16 %v778, %v778
  %v907 = vpack.c.b16 %v779, %v779
  %v908 = vpack.c.b16 %v780, %v780
  %v909 = vpack.c.b16 %v781, %v781
  %v910 = vpack.c.b16 %v782, %v782
  %v911 = vpack.c.b16 %v783, %v783
  %v912 = vpack.c.b16 %v784, %v784
  %v913 = vpack.c.b16 %v785, %v785
  %v914 = vpack.c.b16 %v786, %v786
  %v915 = vpack.c.b16 %v787, %v787
  %v916 = vpack.c.b16 %v788, %v788
  %v917 = vpack.c.b16 %v789, %v789
  %v918 = vpack.c.b16 %v790, %v790
  %v919 = vpack.c.b16 %v791, %v791
  %v920 = vpack.c.b16 %v792, %v792
  %v921 = vpack.c.b16 %v793, %v793
  %v922 = vpack.c.b16 %v794, %v794
  %v923 = vpack.c.b16 %v795, %v795
  %1052 = vst [vmem:[%s3] sm:$0xf] %v796
  %1053 = vst [vmem:[%s3 + $0x4] sm:$0xf] %v797
  %1054 = vst [vmem:[%s3 + $0x8] sm:$0xf] %v798
  %1055 = vst [vmem:[%s3 + $0xc] sm:$0xf] %v799
  %1056 = vst [vmem:[%s3 + $0x10] sm:$0xf] %v800
  %1057 = vst [vmem:[%s3 + $0x14] sm:$0xf] %v801
  %1058 = vst [vmem:[%s3 + $0x18] sm:$0xf] %v802
  %1059 = vst [vmem:[%s3 + $0x1c] sm:$0xf] %v803
  %1060 = vst [vmem:[%s3 + $0x20] sm:$0xf] %v804
  %1061 = vst [vmem:[%s3 + $0x24] sm:$0xf] %v805
  %1062 = vst [vmem:[%s3 + $0x28] sm:$0xf] %v806
  %1063 = vst [vmem:[%s3 + $0x2c] sm:$0xf] %v807
  %1064 = vst [vmem:[%s3 + $0x30] sm:$0xf] %v808
  %1065 = vst [vmem:[%s3 + $0x34] sm:$0xf] %v809
  %1066 = vst [vmem:[%s3 + $0x38] sm:$0xf] %v810
  %1067 = vst [vmem:[%s3 + $0x3c] sm:$0xf] %v811
  %1068 = vst [vmem:[%s3 + $0x40] sm:$0xf] %v812
  %1069 = vst [vmem:[%s3 + $0x44] sm:$0xf] %v813
  %1070 = vst [vmem:[%s3 + $0x48] sm:$0xf] %v814
  %1071 = vst [vmem:[%s3 + $0x4c] sm:$0xf] %v815
  %1072 = vst [vmem:[%s3 + $0x50] sm:$0xf] %v816
  %1073 = vst [vmem:[%s3 + $0x54] sm:$0xf] %v817
  %1074 = vst [vmem:[%s3 + $0x58] sm:$0xf] %v818
  %1075 = vst [vmem:[%s3 + $0x5c] sm:$0xf] %v819
  %1076 = vst [vmem:[%s3 + $0x60] sm:$0xf] %v820
  %1077 = vst [vmem:[%s3 + $0x64] sm:$0xf] %v821
  %1078 = vst [vmem:[%s3 + $0x68] sm:$0xf] %v822
  %1079 = vst [vmem:[%s3 + $0x6c] sm:$0xf] %v823
  %1080 = vst [vmem:[%s3 + $0x70] sm:$0xf] %v824
  %1081 = vst [vmem:[%s3 + $0x74] sm:$0xf] %v825
  %1082 = vst [vmem:[%s3 + $0x78] sm:$0xf] %v826
  %1083 = vst [vmem:[%s3 + $0x7c] sm:$0xf] %v827
  %1084 = vst [vmem:[%s3 + $0x80] sm:$0xf] %v828
  %1085 = vst [vmem:[%s3 + $0x84] sm:$0xf] %v829
  %1086 = vst [vmem:[%s3 + $0x88] sm:$0xf] %v830
  %1087 = vst [vmem:[%s3 + $0x8c] sm:$0xf] %v831
  %1088 = vst [vmem:[%s3 + $0x90] sm:$0xf] %v832
  %1089 = vst [vmem:[%s3 + $0x94] sm:$0xf] %v833
  %1090 = vst [vmem:[%s3 + $0x98] sm:$0xf] %v834
  %1091 = vst [vmem:[%s3 + $0x9c] sm:$0xf] %v835
  %1092 = vst [vmem:[%s3 + $0xa0] sm:$0xf] %v836
  %1093 = vst [vmem:[%s3 + $0xa4] sm:$0xf] %v837
  %1094 = vst [vmem:[%s3 + $0xa8] sm:$0xf] %v838
  %1095 = vst [vmem:[%s3 + $0xac] sm:$0xf] %v839
  %1096 = vst [vmem:[%s3 + $0xb0] sm:$0xf] %v840
  %1097 = vst [vmem:[%s3 + $0xb4] sm:$0xf] %v841
  %1098 = vst [vmem:[%s3 + $0xb8] sm:$0xf] %v842
  %1099 = vst [vmem:[%s3 + $0xbc] sm:$0xf] %v843
  %1100 = vst [vmem:[%s3 + $0xc0] sm:$0xf] %v844
  %1101 = vst [vmem:[%s3 + $0xc4] sm:$0xf] %v845
  %1102 = vst [vmem:[%s3 + $0xc8] sm:$0xf] %v846
  %1103 = vst [vmem:[%s3 + $0xcc] sm:$0xf] %v847
  %1104 = vst [vmem:[%s3 + $0xd0] sm:$0xf] %v848
  %1105 = vst [vmem:[%s3 + $0xd4] sm:$0xf] %v849
  %1106 = vst [vmem:[%s3 + $0xd8] sm:$0xf] %v850
  %1107 = vst [vmem:[%s3 + $0xdc] sm:$0xf] %v851
  %1108 = vst [vmem:[%s3 + $0xe0] sm:$0xf] %v852
  %1109 = vst [vmem:[%s3 + $0xe4] sm:$0xf] %v853
  %1110 = vst [vmem:[%s3 + $0xe8] sm:$0xf] %v854
  %1111 = vst [vmem:[%s3 + $0xec] sm:$0xf] %v855
  %1112 = vst [vmem:[%s3 + $0xf0] sm:$0xf] %v856
  %1113 = vst [vmem:[%s3 + $0xf4] sm:$0xf] %v857
  %1114 = vst [vmem:[%s3 + $0xf8] sm:$0xf] %v858
  %1115 = vst [vmem:[%s3 + $0xfc] sm:$0xf] %v859
  %1116 = vst [vmem:[%s3 + $0x100] sm:$0xf] %v860
  %1117 = vst [vmem:[%s3 + $0x104] sm:$0xf] %v861
  %1118 = vst [vmem:[%s3 + $0x108] sm:$0xf] %v862
  %1119 = vst [vmem:[%s3 + $0x10c] sm:$0xf] %v863
  %1120 = vst [vmem:[%s3 + $0x110] sm:$0xf] %v864
  %1121 = vst [vmem:[%s3 + $0x114] sm:$0xf] %v865
  %1122 = vst [vmem:[%s3 + $0x118] sm:$0xf] %v866
  %1123 = vst [vmem:[%s3 + $0x11c] sm:$0xf] %v867
  %1124 = vst [vmem:[%s3 + $0x120] sm:$0xf] %v868
  %1125 = vst [vmem:[%s3 + $0x124] sm:$0xf] %v869
  %1126 = vst [vmem:[%s3 + $0x128] sm:$0xf] %v870
  %1127 = vst [vmem:[%s3 + $0x12c] sm:$0xf] %v871
  %1128 = vst [vmem:[%s3 + $0x130] sm:$0xf] %v872
  %1129 = vst [vmem:[%s3 + $0x134] sm:$0xf] %v873
  %1130 = vst [vmem:[%s3 + $0x138] sm:$0xf] %v874
  %1131 = vst [vmem:[%s3 + $0x13c] sm:$0xf] %v875
  %1132 = vst [vmem:[%s3 + $0x140] sm:$0xf] %v876
  %1133 = vst [vmem:[%s3 + $0x144] sm:$0xf] %v877
  %1134 = vst [vmem:[%s3 + $0x148] sm:$0xf] %v878
  %1135 = vst [vmem:[%s3 + $0x14c] sm:$0xf] %v879
  %1136 = vst [vmem:[%s3 + $0x150] sm:$0xf] %v880
  %1137 = vst [vmem:[%s3 + $0x154] sm:$0xf] %v881
  %1138 = vst [vmem:[%s3 + $0x158] sm:$0xf] %v882
  %1139 = vst [vmem:[%s3 + $0x15c] sm:$0xf] %v883
  %1140 = vst [vmem:[%s3 + $0x160] sm:$0xf] %v884
  %1141 = vst [vmem:[%s3 + $0x164] sm:$0xf] %v885
  %1142 = vst [vmem:[%s3 + $0x168] sm:$0xf] %v886
  %1143 = vst [vmem:[%s3 + $0x16c] sm:$0xf] %v887
  %1144 = vst [vmem:[%s3 + $0x170] sm:$0xf] %v888
  %1145 = vst [vmem:[%s3 + $0x174] sm:$0xf] %v889
  %1146 = vst [vmem:[%s3 + $0x178] sm:$0xf] %v890
  %1147 = vst [vmem:[%s3 + $0x17c] sm:$0xf] %v891
  %1148 = vst [vmem:[%s3 + $0x180] sm:$0xf] %v892
  %1149 = vst [vmem:[%s3 + $0x184] sm:$0xf] %v893
  %1150 = vst [vmem:[%s3 + $0x188] sm:$0xf] %v894
  %1151 = vst [vmem:[%s3 + $0x18c] sm:$0xf] %v895
  %1152 = vst [vmem:[%s3 + $0x190] sm:$0xf] %v896
  %1153 = vst [vmem:[%s3 + $0x194] sm:$0xf] %v897
  %1154 = vst [vmem:[%s3 + $0x198] sm:$0xf] %v898
  %1155 = vst [vmem:[%s3 + $0x19c] sm:$0xf] %v899
  %1156 = vst [vmem:[%s3 + $0x1a0] sm:$0xf] %v900
  %1157 = vst [vmem:[%s3 + $0x1a4] sm:$0xf] %v901
  %1158 = vst [vmem:[%s3 + $0x1a8] sm:$0xf] %v902
  %1159 = vst [vmem:[%s3 + $0x1ac] sm:$0xf] %v903
  %1160 = vst [vmem:[%s3 + $0x1b0] sm:$0xf] %v904
  %1161 = vst [vmem:[%s3 + $0x1b4] sm:$0xf] %v905
  %1162 = vst [vmem:[%s3 + $0x1b8] sm:$0xf] %v906
  %1163 = vst [vmem:[%s3 + $0x1bc] sm:$0xf] %v907
  %1164 = vst [vmem:[%s3 + $0x1c0] sm:$0xf] %v908
  %1165 = vst [vmem:[%s3 + $0x1c4] sm:$0xf] %v909
  %1166 = vst [vmem:[%s3 + $0x1c8] sm:$0xf] %v910
  %1167 = vst [vmem:[%s3 + $0x1cc] sm:$0xf] %v911
  %1168 = vst [vmem:[%s3 + $0x1d0] sm:$0xf] %v912
  %1169 = vst [vmem:[%s3 + $0x1d4] sm:$0xf] %v913
  %1170 = vst [vmem:[%s3 + $0x1d8] sm:$0xf] %v914
  %1171 = vst [vmem:[%s3 + $0x1dc] sm:$0xf] %v915
  %1172 = vst [vmem:[%s3 + $0x1e0] sm:$0xf] %v916
  %1173 = vst [vmem:[%s3 + $0x1e4] sm:$0xf] %v917
  %1174 = vst [vmem:[%s3 + $0x1e8] sm:$0xf] %v918
  %1175 = vst [vmem:[%s3 + $0x1ec] sm:$0xf] %v919
  %1176 = vst [vmem:[%s3 + $0x1f0] sm:$0xf] %v920
  %1177 = vst [vmem:[%s3 + $0x1f4] sm:$0xf] %v921
  %1178 = vst [vmem:[%s3 + $0x1f8] sm:$0xf] %v922
  %1179 = vst [vmem:[%s3 + $0x1fc] sm:$0xf] %v923
  // Predicated region
  $region14: #{basic_block_forward.5} parent=0 // pred_check
    _
  $region15: #{basic_block_forward.5} parent=0 // pred_check_branch
    %1181 = sbr.rel (0) target = $region17
  $region16: #{basic_block_forward.5} parent=0 // pred_region
    _
  $region17: #{basic_block_forward.5} parent=0 // pred_fallthru
    _
  // Predicated region
  $region18: #{basic_block_forward.5} parent=0 // pred_check
    _
  $region19: #{basic_block_forward.5} parent=0 // pred_check_branch
    %1183 = sbr.rel (0) target = $region21
  $region20: #{basic_block_forward.5} parent=0 // pred_region
    _
  $region21: #{basic_block_forward.5} parent=0 // pred_fallthru
    _

// kernel: basic_block_forward.7
$region0: #{basic_block_forward.7}
  #allocation0 [shape = 'u32[]', space=smem, size = 0x4, offset = 0x4, fixed_abs, tag = 'smem constant byte address 0x4 - core index']
  #allocation1 [shape = 'u32[144,128]{1,0:T(1,128)}', space=vmem, size = 0x12000, scoped, tag = 'internal scratch']
  %s0 = inlined_call_operand.vmem [shape: f32[1024,128], index: 0, kind: input, shape index: {}]
  %s1 = inlined_call_operand.vmem [shape: f32[1,128], index: 1, kind: input, shape index: {}]
  %s2 = inlined_call_operand.vmem [shape: f32[1,128], index: 2, kind: input, shape index: {}]
  %s3 = inlined_call_operand.vmem [shape: f32[1024,128], index: 3, kind: input, shape index: {}]
  %s4 = inlined_call_operand.vmem [shape: f32[1024,128], index: 4, kind: output, shape index: {}]
  %s5 = sld [smem:[#allocation0]]
  $region26: #{basic_block_forward.7} parent=0
    _
  %s7 = ssub.s32 1, %s5
  %s8 = scalar_select 0, %s7, %s5
  // Predicated region
  $region2: #{basic_block_forward.7} parent=0 // pred_check
    _
  $region3: #{basic_block_forward.7} parent=0 // pred_check_branch
    %10 = sbr.rel (0) target = $region5
  $region4: #{basic_block_forward.7} parent=0 // pred_region
    _
  $region5: #{basic_block_forward.7} parent=0 // pred_fallthru
    _
  // Predicated region
  $region6: #{basic_block_forward.7} parent=0 // pred_check
    _
  $region7: #{basic_block_forward.7} parent=0 // pred_check_branch
    %12 = sbr.rel (0) target = $region9
  $region8: #{basic_block_forward.7} parent=0 // pred_region
    _
  $region9: #{basic_block_forward.7} parent=0 // pred_fallthru
    _
  // Predicated region
  $region10: #{basic_block_forward.7} parent=0 // pred_check
    _
  $region11: #{basic_block_forward.7} parent=0 // pred_check_branch
    %14 = sbr.rel (0) target = $region13
  $region12: #{basic_block_forward.7} parent=0 // pred_region
    _
  $region13: #{basic_block_forward.7} parent=0 // pred_fallthru
    _
  // Predicated region
  $region14: #{basic_block_forward.7} parent=0 // pred_check
    _
  $region15: #{basic_block_forward.7} parent=0 // pred_check_branch
    %16 = sbr.rel (0) target = $region17
  $region16: #{basic_block_forward.7} parent=0 // pred_region
    _
  $region17: #{basic_block_forward.7} parent=0 // pred_fallthru
    _
  %v17 = vld [vmem:[%s0] sm:$0xff]
  %v18 = vld [vmem:[%s0 + $0x8] sm:$0xff]
  %v19 = vld [vmem:[%s0 + $0x10] sm:$0xff]
  %v20 = vld [vmem:[%s0 + $0x18] sm:$0xff]
  %v21 = vld [vmem:[%s0 + $0x20] sm:$0xff]
  %v22 = vld [vmem:[%s0 + $0x28] sm:$0xff]
  %v23 = vld [vmem:[%s0 + $0x30] sm:$0xff]
  %v24 = vld [vmem:[%s0 + $0x38] sm:$0xff]
  %v25 = vld [vmem:[%s0 + $0x40] sm:$0xff]
  %v26 = vld [vmem:[%s0 + $0x48] sm:$0xff]
  %v27 = vld [vmem:[%s0 + $0x50] sm:$0xff]
  %v28 = vld [vmem:[%s0 + $0x58] sm:$0xff]
  %v29 = vld [vmem:[%s0 + $0x60] sm:$0xff]
  %v30 = vld [vmem:[%s0 + $0x68] sm:$0xff]
  %v31 = vld [vmem:[%s0 + $0x70] sm:$0xff]
  %v32 = vld [vmem:[%s0 + $0x78] sm:$0xff]
  %v33 = vld [vmem:[%s0 + $0x80] sm:$0xff]
  %v34 = vld [vmem:[%s0 + $0x88] sm:$0xff]
  %v35 = vld [vmem:[%s0 + $0x90] sm:$0xff]
  %v36 = vld [vmem:[%s0 + $0x98] sm:$0xff]
  %v37 = vld [vmem:[%s0 + $0xa0] sm:$0xff]
  %v38 = vld [vmem:[%s0 + $0xa8] sm:$0xff]
  %v39 = vld [vmem:[%s0 + $0xb0] sm:$0xff]
  %v40 = vld [vmem:[%s0 + $0xb8] sm:$0xff]
  %v41 = vld [vmem:[%s0 + $0xc0] sm:$0xff]
  %v42 = vld [vmem:[%s0 + $0xc8] sm:$0xff]
  %v43 = vld [vmem:[%s0 + $0xd0] sm:$0xff]
  %v44 = vld [vmem:[%s0 + $0xd8] sm:$0xff]
  %v45 = vld [vmem:[%s0 + $0xe0] sm:$0xff]
  %v46 = vld [vmem:[%s0 + $0xe8] sm:$0xff]
  %v47 = vld [vmem:[%s0 + $0xf0] sm:$0xff]
  %v48 = vld [vmem:[%s0 + $0xf8] sm:$0xff]
  %v49 = vld [vmem:[%s0 + $0x100] sm:$0xff]
  %v50 = vld [vmem:[%s0 + $0x108] sm:$0xff]
  %v51 = vld [vmem:[%s0 + $0x110] sm:$0xff]
  %v52 = vld [vmem:[%s0 + $0x118] sm:$0xff]
  %v53 = vld [vmem:[%s0 + $0x120] sm:$0xff]
  %v54 = vld [vmem:[%s0 + $0x128] sm:$0xff]
  %v55 = vld [vmem:[%s0 + $0x130] sm:$0xff]
  %v56 = vld [vmem:[%s0 + $0x138] sm:$0xff]
  %v57 = vld [vmem:[%s0 + $0x140] sm:$0xff]
  %v58 = vld [vmem:[%s0 + $0x148] sm:$0xff]
  %v59 = vld [vmem:[%s0 + $0x150] sm:$0xff]
  %v60 = vld [vmem:[%s0 + $0x158] sm:$0xff]
  %v61 = vld [vmem:[%s0 + $0x160] sm:$0xff]
  %v62 = vld [vmem:[%s0 + $0x168] sm:$0xff]
  %v63 = vld [vmem:[%s0 + $0x170] sm:$0xff]
  %v64 = vld [vmem:[%s0 + $0x178] sm:$0xff]
  %v65 = vld [vmem:[%s0 + $0x180] sm:$0xff]
  %v66 = vld [vmem:[%s0 + $0x188] sm:$0xff]
  %v67 = vld [vmem:[%s0 + $0x190] sm:$0xff]
  %v68 = vld [vmem:[%s0 + $0x198] sm:$0xff]
  %v69 = vld [vmem:[%s0 + $0x1a0] sm:$0xff]
  %v70 = vld [vmem:[%s0 + $0x1a8] sm:$0xff]
  %v71 = vld [vmem:[%s0 + $0x1b0] sm:$0xff]
  %v72 = vld [vmem:[%s0 + $0x1b8] sm:$0xff]
  %v73 = vld [vmem:[%s0 + $0x1c0] sm:$0xff]
  %v74 = vld [vmem:[%s0 + $0x1c8] sm:$0xff]
  %v75 = vld [vmem:[%s0 + $0x1d0] sm:$0xff]
  %v76 = vld [vmem:[%s0 + $0x1d8] sm:$0xff]
  %v77 = vld [vmem:[%s0 + $0x1e0] sm:$0xff]
  %v78 = vld [vmem:[%s0 + $0x1e8] sm:$0xff]
  %v79 = vld [vmem:[%s0 + $0x1f0] sm:$0xff]
  %v80 = vld [vmem:[%s0 + $0x1f8] sm:$0xff]
  %v81 = vld [vmem:[%s0 + $0x200] sm:$0xff]
  %v82 = vld [vmem:[%s0 + $0x208] sm:$0xff]
  %v83 = vld [vmem:[%s0 + $0x210] sm:$0xff]
  %v84 = vld [vmem:[%s0 + $0x218] sm:$0xff]
  %v85 = vld [vmem:[%s0 + $0x220] sm:$0xff]
  %v86 = vld [vmem:[%s0 + $0x228] sm:$0xff]
  %v87 = vld [vmem:[%s0 + $0x230] sm:$0xff]
  %v88 = vld [vmem:[%s0 + $0x238] sm:$0xff]
  %v89 = vld [vmem:[%s0 + $0x240] sm:$0xff]
  %v90 = vld [vmem:[%s0 + $0x248] sm:$0xff]
  %v91 = vld [vmem:[%s0 + $0x250] sm:$0xff]
  %v92 = vld [vmem:[%s0 + $0x258] sm:$0xff]
  %v93 = vld [vmem:[%s0 + $0x260] sm:$0xff]
  %v94 = vld [vmem:[%s0 + $0x268] sm:$0xff]
  %v95 = vld [vmem:[%s0 + $0x270] sm:$0xff]
  %v96 = vld [vmem:[%s0 + $0x278] sm:$0xff]
  %v97 = vld [vmem:[%s0 + $0x280] sm:$0xff]
  %v98 = vld [vmem:[%s0 + $0x288] sm:$0xff]
  %v99 = vld [vmem:[%s0 + $0x290] sm:$0xff]
  %v100 = vld [vmem:[%s0 + $0x298] sm:$0xff]
  %v101 = vld [vmem:[%s0 + $0x2a0] sm:$0xff]
  %v102 = vld [vmem:[%s0 + $0x2a8] sm:$0xff]
  %v103 = vld [vmem:[%s0 + $0x2b0] sm:$0xff]
  %v104 = vld [vmem:[%s0 + $0x2b8] sm:$0xff]
  %v105 = vld [vmem:[%s0 + $0x2c0] sm:$0xff]
  %v106 = vld [vmem:[%s0 + $0x2c8] sm:$0xff]
  %v107 = vld [vmem:[%s0 + $0x2d0] sm:$0xff]
  %v108 = vld [vmem:[%s0 + $0x2d8] sm:$0xff]
  %v109 = vld [vmem:[%s0 + $0x2e0] sm:$0xff]
  %v110 = vld [vmem:[%s0 + $0x2e8] sm:$0xff]
  %v111 = vld [vmem:[%s0 + $0x2f0] sm:$0xff]
  %v112 = vld [vmem:[%s0 + $0x2f8] sm:$0xff]
  %v113 = vld [vmem:[%s0 + $0x300] sm:$0xff]
  %v114 = vld [vmem:[%s0 + $0x308] sm:$0xff]
  %v115 = vld [vmem:[%s0 + $0x310] sm:$0xff]
  %v116 = vld [vmem:[%s0 + $0x318] sm:$0xff]
  %v117 = vld [vmem:[%s0 + $0x320] sm:$0xff]
  %v118 = vld [vmem:[%s0 + $0x328] sm:$0xff]
  %v119 = vld [vmem:[%s0 + $0x330] sm:$0xff]
  %v120 = vld [vmem:[%s0 + $0x338] sm:$0xff]
  %v121 = vld [vmem:[%s0 + $0x340] sm:$0xff]
  %v122 = vld [vmem:[%s0 + $0x348] sm:$0xff]
  %v123 = vld [vmem:[%s0 + $0x350] sm:$0xff]
  %v124 = vld [vmem:[%s0 + $0x358] sm:$0xff]
  %v125 = vld [vmem:[%s0 + $0x360] sm:$0xff]
  %v126 = vld [vmem:[%s0 + $0x368] sm:$0xff]
  %v127 = vld [vmem:[%s0 + $0x370] sm:$0xff]
  %v128 = vld [vmem:[%s0 + $0x378] sm:$0xff]
  %v129 = vld [vmem:[%s0 + $0x380] sm:$0xff]
  %v130 = vld [vmem:[%s0 + $0x388] sm:$0xff]
  %v131 = vld [vmem:[%s0 + $0x390] sm:$0xff]
  %v132 = vld [vmem:[%s0 + $0x398] sm:$0xff]
  %v133 = vld [vmem:[%s0 + $0x3a0] sm:$0xff]
  %v134 = vld [vmem:[%s0 + $0x3a8] sm:$0xff]
  %v135 = vld [vmem:[%s0 + $0x3b0] sm:$0xff]
  %v136 = vld [vmem:[%s0 + $0x3b8] sm:$0xff]
  %v137 = vld [vmem:[%s0 + $0x3c0] sm:$0xff]
  %v138 = vld [vmem:[%s0 + $0x3c8] sm:$0xff]
  %v139 = vld [vmem:[%s0 + $0x3d0] sm:$0xff]
  %v140 = vld [vmem:[%s0 + $0x3d8] sm:$0xff]
  %v141 = vld [vmem:[%s0 + $0x3e0] sm:$0xff]
  %v142 = vld [vmem:[%s0 + $0x3e8] sm:$0xff]
  %v143 = vld [vmem:[%s0 + $0x3f0] sm:$0xff]
  %v144 = vld [vmem:[%s0 + $0x3f8] sm:$0xff]
  %v145 = vld [vmem:[%s1] sm:$0x1]
  %v147 = vlaneseq
  %v148 = vshrl.u32 %v147, 7
  %v149 = vsub.s32 0, %v148
  %v150 = vrot.slane %v145, %v149
  %v152 = vmul.f32 %v17, %v150
  %v153 = vmul.f32 %v18, %v150
  %v154 = vmul.f32 %v19, %v150
  %v155 = vmul.f32 %v20, %v150
  %v156 = vmul.f32 %v21, %v150
  %v157 = vmul.f32 %v22, %v150
  %v158 = vmul.f32 %v23, %v150
  %v159 = vmul.f32 %v24, %v150
  %v160 = vmul.f32 %v25, %v150
  %v161 = vmul.f32 %v26, %v150
  %v162 = vmul.f32 %v27, %v150
  %v163 = vmul.f32 %v28, %v150
  %v164 = vmul.f32 %v29, %v150
  %v165 = vmul.f32 %v30, %v150
  %v166 = vmul.f32 %v31, %v150
  %v167 = vmul.f32 %v32, %v150
  %v168 = vmul.f32 %v33, %v150
  %v169 = vmul.f32 %v34, %v150
  %v170 = vmul.f32 %v35, %v150
  %v171 = vmul.f32 %v36, %v150
  %v172 = vmul.f32 %v37, %v150
  %v173 = vmul.f32 %v38, %v150
  %v174 = vmul.f32 %v39, %v150
  %v175 = vmul.f32 %v40, %v150
  %v176 = vmul.f32 %v41, %v150
  %v177 = vmul.f32 %v42, %v150
  %v178 = vmul.f32 %v43, %v150
  %v179 = vmul.f32 %v44, %v150
  %v180 = vmul.f32 %v45, %v150
  %v181 = vmul.f32 %v46, %v150
  %v182 = vmul.f32 %v47, %v150
  %v183 = vmul.f32 %v48, %v150
  %v184 = vmul.f32 %v49, %v150
  %v185 = vmul.f32 %v50, %v150
  %v186 = vmul.f32 %v51, %v150
  %v187 = vmul.f32 %v52, %v150
  %v188 = vmul.f32 %v53, %v150
  %v189 = vmul.f32 %v54, %v150
  %v190 = vmul.f32 %v55, %v150
  %v191 = vmul.f32 %v56, %v150
  %v192 = vmul.f32 %v57, %v150
  %v193 = vmul.f32 %v58, %v150
  %v194 = vmul.f32 %v59, %v150
  %v195 = vmul.f32 %v60, %v150
  %v196 = vmul.f32 %v61, %v150
  %v197 = vmul.f32 %v62, %v150
  %v198 = vmul.f32 %v63, %v150
  %v199 = vmul.f32 %v64, %v150
  %v200 = vmul.f32 %v65, %v150
  %v201 = vmul.f32 %v66, %v150
  %v202 = vmul.f32 %v67, %v150
  %v203 = vmul.f32 %v68, %v150
  %v204 = vmul.f32 %v69, %v150
  %v205 = vmul.f32 %v70, %v150
  %v206 = vmul.f32 %v71, %v150
  %v207 = vmul.f32 %v72, %v150
  %v208 = vmul.f32 %v73, %v150
  %v209 = vmul.f32 %v74, %v150
  %v210 = vmul.f32 %v75, %v150
  %v211 = vmul.f32 %v76, %v150
  %v212 = vmul.f32 %v77, %v150
  %v213 = vmul.f32 %v78, %v150
  %v214 = vmul.f32 %v79, %v150
  %v215 = vmul.f32 %v80, %v150
  %v216 = vmul.f32 %v81, %v150
  %v217 = vmul.f32 %v82, %v150
  %v218 = vmul.f32 %v83, %v150
  %v219 = vmul.f32 %v84, %v150
  %v220 = vmul.f32 %v85, %v150
  %v221 = vmul.f32 %v86, %v150
  %v222 = vmul.f32 %v87, %v150
  %v223 = vmul.f32 %v88, %v150
  %v224 = vmul.f32 %v89, %v150
  %v225 = vmul.f32 %v90, %v150
  %v226 = vmul.f32 %v91, %v150
  %v227 = vmul.f32 %v92, %v150
  %v228 = vmul.f32 %v93, %v150
  %v229 = vmul.f32 %v94, %v150
  %v230 = vmul.f32 %v95, %v150
  %v231 = vmul.f32 %v96, %v150
  %v232 = vmul.f32 %v97, %v150
  %v233 = vmul.f32 %v98, %v150
  %v234 = vmul.f32 %v99, %v150
  %v235 = vmul.f32 %v100, %v150
  %v236 = vmul.f32 %v101, %v150
  %v237 = vmul.f32 %v102, %v150
  %v238 = vmul.f32 %v103, %v150
  %v239 = vmul.f32 %v104, %v150
  %v240 = vmul.f32 %v105, %v150
  %v241 = vmul.f32 %v106, %v150
  %v242 = vmul.f32 %v107, %v150
  %v243 = vmul.f32 %v108, %v150
  %v244 = vmul.f32 %v109, %v150
  %v245 = vmul.f32 %v110, %v150
  %v246 = vmul.f32 %v111, %v150
  %v247 = vmul.f32 %v112, %v150
  %v248 = vmul.f32 %v113, %v150
  %v249 = vmul.f32 %v114, %v150
  %v250 = vmul.f32 %v115, %v150
  %v251 = vmul.f32 %v116, %v150
  %v252 = vmul.f32 %v117, %v150
  %v253 = vmul.f32 %v118, %v150
  %v254 = vmul.f32 %v119, %v150
  %v255 = vmul.f32 %v120, %v150
  %v256 = vmul.f32 %v121, %v150
  %v257 = vmul.f32 %v122, %v150
  %v258 = vmul.f32 %v123, %v150
  %v259 = vmul.f32 %v124, %v150
  %v260 = vmul.f32 %v125, %v150
  %v261 = vmul.f32 %v126, %v150
  %v262 = vmul.f32 %v127, %v150
  %v263 = vmul.f32 %v128, %v150
  %v264 = vmul.f32 %v129, %v150
  %v265 = vmul.f32 %v130, %v150
  %v266 = vmul.f32 %v131, %v150
  %v267 = vmul.f32 %v132, %v150
  %v268 = vmul.f32 %v133, %v150
  %v269 = vmul.f32 %v134, %v150
  %v270 = vmul.f32 %v135, %v150
  %v271 = vmul.f32 %v136, %v150
  %v272 = vmul.f32 %v137, %v150
  %v273 = vmul.f32 %v138, %v150
  %v274 = vmul.f32 %v139, %v150
  %v275 = vmul.f32 %v140, %v150
  %v276 = vmul.f32 %v141, %v150
  %v277 = vmul.f32 %v142, %v150
  %v278 = vmul.f32 %v143, %v150
  %v279 = vmul.f32 %v144, %v150
  %v280 = vld [vmem:[%s2] sm:$0x1]
  %v282 = vlaneseq
  %v283 = vshrl.u32 %v282, 7
  %v284 = vsub.s32 0, %v283
  %v285 = vrot.slane %v280, %v284
  %v287 = vadd.f32 %v152, %v285
  %v288 = vadd.f32 %v153, %v285
  %v289 = vadd.f32 %v154, %v285
  %v290 = vadd.f32 %v155, %v285
  %v291 = vadd.f32 %v156, %v285
  %v292 = vadd.f32 %v157, %v285
  %v293 = vadd.f32 %v158, %v285
  %v294 = vadd.f32 %v159, %v285
  %v295 = vadd.f32 %v160, %v285
  %v296 = vadd.f32 %v161, %v285
  %v297 = vadd.f32 %v162, %v285
  %v298 = vadd.f32 %v163, %v285
  %v299 = vadd.f32 %v164, %v285
  %v300 = vadd.f32 %v165, %v285
  %v301 = vadd.f32 %v166, %v285
  %v302 = vadd.f32 %v167, %v285
  %v303 = vadd.f32 %v168, %v285
  %v304 = vadd.f32 %v169, %v285
  %v305 = vadd.f32 %v170, %v285
  %v306 = vadd.f32 %v171, %v285
  %v307 = vadd.f32 %v172, %v285
  %v308 = vadd.f32 %v173, %v285
  %v309 = vadd.f32 %v174, %v285
  %v310 = vadd.f32 %v175, %v285
  %v311 = vadd.f32 %v176, %v285
  %v312 = vadd.f32 %v177, %v285
  %v313 = vadd.f32 %v178, %v285
  %v314 = vadd.f32 %v179, %v285
  %v315 = vadd.f32 %v180, %v285
  %v316 = vadd.f32 %v181, %v285
  %v317 = vadd.f32 %v182, %v285
  %v318 = vadd.f32 %v183, %v285
  %v319 = vadd.f32 %v184, %v285
  %v320 = vadd.f32 %v185, %v285
  %v321 = vadd.f32 %v186, %v285
  %v322 = vadd.f32 %v187, %v285
  %v323 = vadd.f32 %v188, %v285
  %v324 = vadd.f32 %v189, %v285
  %v325 = vadd.f32 %v190, %v285
  %v326 = vadd.f32 %v191, %v285
  %v327 = vadd.f32 %v192, %v285
  %v328 = vadd.f32 %v193, %v285
  %v329 = vadd.f32 %v194, %v285
  %v330 = vadd.f32 %v195, %v285
  %v331 = vadd.f32 %v196, %v285
  %v332 = vadd.f32 %v197, %v285
  %v333 = vadd.f32 %v198, %v285
  %v334 = vadd.f32 %v199, %v285
  %v335 = vadd.f32 %v200, %v285
  %v336 = vadd.f32 %v201, %v285
  %v337 = vadd.f32 %v202, %v285
  %v338 = vadd.f32 %v203, %v285
  %v339 = vadd.f32 %v204, %v285
  %v340 = vadd.f32 %v205, %v285
  %v341 = vadd.f32 %v206, %v285
  %v342 = vadd.f32 %v207, %v285
  %v343 = vadd.f32 %v208, %v285
  %v344 = vadd.f32 %v209, %v285
  %v345 = vadd.f32 %v210, %v285
  %v346 = vadd.f32 %v211, %v285
  %v347 = vadd.f32 %v212, %v285
  %v348 = vadd.f32 %v213, %v285
  %v349 = vadd.f32 %v214, %v285
  %v350 = vadd.f32 %v215, %v285
  %v351 = vadd.f32 %v216, %v285
  %v352 = vadd.f32 %v217, %v285
  %v353 = vadd.f32 %v218, %v285
  %v354 = vadd.f32 %v219, %v285
  %v355 = vadd.f32 %v220, %v285
  %v356 = vadd.f32 %v221, %v285
  %v357 = vadd.f32 %v222, %v285
  %v358 = vadd.f32 %v223, %v285
  %v359 = vadd.f32 %v224, %v285
  %v360 = vadd.f32 %v225, %v285
  %v361 = vadd.f32 %v226, %v285
  %v362 = vadd.f32 %v227, %v285
  %v363 = vadd.f32 %v228, %v285
  %v364 = vadd.f32 %v229, %v285
  %v365 = vadd.f32 %v230, %v285
  %v366 = vadd.f32 %v231, %v285
  %v367 = vadd.f32 %v232, %v285
  %v368 = vadd.f32 %v233, %v285
  %v369 = vadd.f32 %v234, %v285
  %v370 = vadd.f32 %v235, %v285
  %v371 = vadd.f32 %v236, %v285
  %v372 = vadd.f32 %v237, %v285
  %v373 = vadd.f32 %v238, %v285
  %v374 = vadd.f32 %v239, %v285
  %v375 = vadd.f32 %v240, %v285
  %v376 = vadd.f32 %v241, %v285
  %v377 = vadd.f32 %v242, %v285
  %v378 = vadd.f32 %v243, %v285
  %v379 = vadd.f32 %v244, %v285
  %v380 = vadd.f32 %v245, %v285
  %v381 = vadd.f32 %v246, %v285
  %v382 = vadd.f32 %v247, %v285
  %v383 = vadd.f32 %v248, %v285
  %v384 = vadd.f32 %v249, %v285
  %v385 = vadd.f32 %v250, %v285
  %v386 = vadd.f32 %v251, %v285
  %v387 = vadd.f32 %v252, %v285
  %v388 = vadd.f32 %v253, %v285
  %v389 = vadd.f32 %v254, %v285
  %v390 = vadd.f32 %v255, %v285
  %v391 = vadd.f32 %v256, %v285
  %v392 = vadd.f32 %v257, %v285
  %v393 = vadd.f32 %v258, %v285
  %v394 = vadd.f32 %v259, %v285
  %v395 = vadd.f32 %v260, %v285
  %v396 = vadd.f32 %v261, %v285
  %v397 = vadd.f32 %v262, %v285
  %v398 = vadd.f32 %v263, %v285
  %v399 = vadd.f32 %v264, %v285
  %v400 = vadd.f32 %v265, %v285
  %v401 = vadd.f32 %v266, %v285
  %v402 = vadd.f32 %v267, %v285
  %v403 = vadd.f32 %v268, %v285
  %v404 = vadd.f32 %v269, %v285
  %v405 = vadd.f32 %v270, %v285
  %v406 = vadd.f32 %v271, %v285
  %v407 = vadd.f32 %v272, %v285
  %v408 = vadd.f32 %v273, %v285
  %v409 = vadd.f32 %v274, %v285
  %v410 = vadd.f32 %v275, %v285
  %v411 = vadd.f32 %v276, %v285
  %v412 = vadd.f32 %v277, %v285
  %v413 = vadd.f32 %v278, %v285
  %v414 = vadd.f32 %v279, %v285
  %v415 = vld [vmem:[%s3] sm:$0xff]
  %v416 = vld [vmem:[%s3 + $0x8] sm:$0xff]
  %v417 = vld [vmem:[%s3 + $0x10] sm:$0xff]
  %v418 = vld [vmem:[%s3 + $0x18] sm:$0xff]
  %v419 = vld [vmem:[%s3 + $0x20] sm:$0xff]
  %v420 = vld [vmem:[%s3 + $0x28] sm:$0xff]
  %v421 = vld [vmem:[%s3 + $0x30] sm:$0xff]
  %v422 = vld [vmem:[%s3 + $0x38] sm:$0xff]
  %v423 = vld [vmem:[%s3 + $0x40] sm:$0xff]
  %v424 = vld [vmem:[%s3 + $0x48] sm:$0xff]
  %v425 = vld [vmem:[%s3 + $0x50] sm:$0xff]
  %v426 = vld [vmem:[%s3 + $0x58] sm:$0xff]
  %v427 = vld [vmem:[%s3 + $0x60] sm:$0xff]
  %v428 = vld [vmem:[%s3 + $0x68] sm:$0xff]
  %v429 = vld [vmem:[%s3 + $0x70] sm:$0xff]
  %v430 = vld [vmem:[%s3 + $0x78] sm:$0xff]
  %v431 = vld [vmem:[%s3 + $0x80] sm:$0xff]
  %v432 = vld [vmem:[%s3 + $0x88] sm:$0xff]
  %v433 = vld [vmem:[%s3 + $0x90] sm:$0xff]
  %v434 = vld [vmem:[%s3 + $0x98] sm:$0xff]
  %v435 = vld [vmem:[%s3 + $0xa0] sm:$0xff]
  %v436 = vld [vmem:[%s3 + $0xa8] sm:$0xff]
  %v437 = vld [vmem:[%s3 + $0xb0] sm:$0xff]
  %v438 = vld [vmem:[%s3 + $0xb8] sm:$0xff]
  %v439 = vld [vmem:[%s3 + $0xc0] sm:$0xff]
  %v440 = vld [vmem:[%s3 + $0xc8] sm:$0xff]
  %v441 = vld [vmem:[%s3 + $0xd0] sm:$0xff]
  %v442 = vld [vmem:[%s3 + $0xd8] sm:$0xff]
  %v443 = vld [vmem:[%s3 + $0xe0] sm:$0xff]
  %v444 = vld [vmem:[%s3 + $0xe8] sm:$0xff]
  %v445 = vld [vmem:[%s3 + $0xf0] sm:$0xff]
  %v446 = vld [vmem:[%s3 + $0xf8] sm:$0xff]
  %v447 = vld [vmem:[%s3 + $0x100] sm:$0xff]
  %v448 = vld [vmem:[%s3 + $0x108] sm:$0xff]
  %v449 = vld [vmem:[%s3 + $0x110] sm:$0xff]
  %v450 = vld [vmem:[%s3 + $0x118] sm:$0xff]
  %v451 = vld [vmem:[%s3 + $0x120] sm:$0xff]
  %v452 = vld [vmem:[%s3 + $0x128] sm:$0xff]
  %v453 = vld [vmem:[%s3 + $0x130] sm:$0xff]
  %v454 = vld [vmem:[%s3 + $0x138] sm:$0xff]
  %v455 = vld [vmem:[%s3 + $0x140] sm:$0xff]
  %v456 = vld [vmem:[%s3 + $0x148] sm:$0xff]
  %v457 = vld [vmem:[%s3 + $0x150] sm:$0xff]
  %v458 = vld [vmem:[%s3 + $0x158] sm:$0xff]
  %v459 = vld [vmem:[%s3 + $0x160] sm:$0xff]
  %v460 = vld [vmem:[%s3 + $0x168] sm:$0xff]
  %v461 = vld [vmem:[%s3 + $0x170] sm:$0xff]
  %v462 = vld [vmem:[%s3 + $0x178] sm:$0xff]
  %v463 = vld [vmem:[%s3 + $0x180] sm:$0xff]
  %v464 = vld [vmem:[%s3 + $0x188] sm:$0xff]
  %v465 = vld [vmem:[%s3 + $0x190] sm:$0xff]
  %v466 = vld [vmem:[%s3 + $0x198] sm:$0xff]
  %v467 = vld [vmem:[%s3 + $0x1a0] sm:$0xff]
  %v468 = vld [vmem:[%s3 + $0x1a8] sm:$0xff]
  %v469 = vld [vmem:[%s3 + $0x1b0] sm:$0xff]
  %v470 = vld [vmem:[%s3 + $0x1b8] sm:$0xff]
  %v471 = vld [vmem:[%s3 + $0x1c0] sm:$0xff]
  %v472 = vld [vmem:[%s3 + $0x1c8] sm:$0xff]
  %v473 = vld [vmem:[%s3 + $0x1d0] sm:$0xff]
  %v474 = vld [vmem:[%s3 + $0x1d8] sm:$0xff]
  %v475 = vld [vmem:[%s3 + $0x1e0] sm:$0xff]
  %v476 = vld [vmem:[%s3 + $0x1e8] sm:$0xff]
  %v477 = vld [vmem:[%s3 + $0x1f0] sm:$0xff]
  %v478 = vld [vmem:[%s3 + $0x1f8] sm:$0xff]
  %v479 = vld [vmem:[%s3 + $0x200] sm:$0xff]
  %v480 = vld [vmem:[%s3 + $0x208] sm:$0xff]
  %v481 = vld [vmem:[%s3 + $0x210] sm:$0xff]
  %v482 = vld [vmem:[%s3 + $0x218] sm:$0xff]
  %v483 = vld [vmem:[%s3 + $0x220] sm:$0xff]
  %v484 = vld [vmem:[%s3 + $0x228] sm:$0xff]
  %v485 = vld [vmem:[%s3 + $0x230] sm:$0xff]
  %v486 = vld [vmem:[%s3 + $0x238] sm:$0xff]
  %v487 = vld [vmem:[%s3 + $0x240] sm:$0xff]
  %v488 = vld [vmem:[%s3 + $0x248] sm:$0xff]
  %v489 = vld [vmem:[%s3 + $0x250] sm:$0xff]
  %v490 = vld [vmem:[%s3 + $0x258] sm:$0xff]
  %v491 = vld [vmem:[%s3 + $0x260] sm:$0xff]
  %v492 = vld [vmem:[%s3 + $0x268] sm:$0xff]
  %v493 = vld [vmem:[%s3 + $0x270] sm:$0xff]
  %v494 = vld [vmem:[%s3 + $0x278] sm:$0xff]
  %v495 = vld [vmem:[%s3 + $0x280] sm:$0xff]
  %v496 = vld [vmem:[%s3 + $0x288] sm:$0xff]
  %v497 = vld [vmem:[%s3 + $0x290] sm:$0xff]
  %v498 = vld [vmem:[%s3 + $0x298] sm:$0xff]
  %v499 = vld [vmem:[%s3 + $0x2a0] sm:$0xff]
  %v500 = vld [vmem:[%s3 + $0x2a8] sm:$0xff]
  %v501 = vld [vmem:[%s3 + $0x2b0] sm:$0xff]
  %v502 = vld [vmem:[%s3 + $0x2b8] sm:$0xff]
  %v503 = vld [vmem:[%s3 + $0x2c0] sm:$0xff]
  %v504 = vld [vmem:[%s3 + $0x2c8] sm:$0xff]
  %v505 = vld [vmem:[%s3 + $0x2d0] sm:$0xff]
  %v506 = vld [vmem:[%s3 + $0x2d8] sm:$0xff]
  %v507 = vld [vmem:[%s3 + $0x2e0] sm:$0xff]
  %v508 = vld [vmem:[%s3 + $0x2e8] sm:$0xff]
  %v509 = vld [vmem:[%s3 + $0x2f0] sm:$0xff]
  %v510 = vld [vmem:[%s3 + $0x2f8] sm:$0xff]
  %v511 = vld [vmem:[%s3 + $0x300] sm:$0xff]
  %v512 = vld [vmem:[%s3 + $0x308] sm:$0xff]
  %v513 = vld [vmem:[%s3 + $0x310] sm:$0xff]
  %v514 = vld [vmem:[%s3 + $0x318] sm:$0xff]
  %v515 = vld [vmem:[%s3 + $0x320] sm:$0xff]
  %v516 = vld [vmem:[%s3 + $0x328] sm:$0xff]
  %v517 = vld [vmem:[%s3 + $0x330] sm:$0xff]
  %v518 = vld [vmem:[%s3 + $0x338] sm:$0xff]
  %v519 = vld [vmem:[%s3 + $0x340] sm:$0xff]
  %v520 = vld [vmem:[%s3 + $0x348] sm:$0xff]
  %v521 = vld [vmem:[%s3 + $0x350] sm:$0xff]
  %v522 = vld [vmem:[%s3 + $0x358] sm:$0xff]
  %v523 = vld [vmem:[%s3 + $0x360] sm:$0xff]
  %v524 = vld [vmem:[%s3 + $0x368] sm:$0xff]
  %v525 = vld [vmem:[%s3 + $0x370] sm:$0xff]
  %v526 = vld [vmem:[%s3 + $0x378] sm:$0xff]
  %v527 = vld [vmem:[%s3 + $0x380] sm:$0xff]
  %v528 = vld [vmem:[%s3 + $0x388] sm:$0xff]
  %v529 = vld [vmem:[%s3 + $0x390] sm:$0xff]
  %v530 = vld [vmem:[%s3 + $0x398] sm:$0xff]
  %v531 = vld [vmem:[%s3 + $0x3a0] sm:$0xff]
  %v532 = vld [vmem:[%s3 + $0x3a8] sm:$0xff]
  %v533 = vld [vmem:[%s3 + $0x3b0] sm:$0xff]
  %v534 = vld [vmem:[%s3 + $0x3b8] sm:$0xff]
  %v535 = vld [vmem:[%s3 + $0x3c0] sm:$0xff]
  %v536 = vld [vmem:[%s3 + $0x3c8] sm:$0xff]
  %v537 = vld [vmem:[%s3 + $0x3d0] sm:$0xff]
  %v538 = vld [vmem:[%s3 + $0x3d8] sm:$0xff]
  %v539 = vld [vmem:[%s3 + $0x3e0] sm:$0xff]
  %v540 = vld [vmem:[%s3 + $0x3e8] sm:$0xff]
  %v541 = vld [vmem:[%s3 + $0x3f0] sm:$0xff]
  %v542 = vld [vmem:[%s3 + $0x3f8] sm:$0xff]
  %v543 = vadd.f32 %v287, %v415
  %v544 = vadd.f32 %v288, %v416
  %v545 = vadd.f32 %v289, %v417
  %v546 = vadd.f32 %v290, %v418
  %v547 = vadd.f32 %v291, %v419
  %v548 = vadd.f32 %v292, %v420
  %v549 = vadd.f32 %v293, %v421
  %v550 = vadd.f32 %v294, %v422
  %v551 = vadd.f32 %v295, %v423
  %v552 = vadd.f32 %v296, %v424
  %v553 = vadd.f32 %v297, %v425
  %v554 = vadd.f32 %v298, %v426
  %v555 = vadd.f32 %v299, %v427
  %v556 = vadd.f32 %v300, %v428
  %v557 = vadd.f32 %v301, %v429
  %v558 = vadd.f32 %v302, %v430
  %v559 = vadd.f32 %v303, %v431
  %v560 = vadd.f32 %v304, %v432
  %v561 = vadd.f32 %v305, %v433
  %v562 = vadd.f32 %v306, %v434
  %v563 = vadd.f32 %v307, %v435
  %v564 = vadd.f32 %v308, %v436
  %v565 = vadd.f32 %v309, %v437
  %v566 = vadd.f32 %v310, %v438
  %v567 = vadd.f32 %v311, %v439
  %v568 = vadd.f32 %v312, %v440
  %v569 = vadd.f32 %v313, %v441
  %v570 = vadd.f32 %v314, %v442
  %v571 = vadd.f32 %v315, %v443
  %v572 = vadd.f32 %v316, %v444
  %v573 = vadd.f32 %v317, %v445
  %v574 = vadd.f32 %v318, %v446
  %v575 = vadd.f32 %v319, %v447
  %v576 = vadd.f32 %v320, %v448
  %v577 = vadd.f32 %v321, %v449
  %v578 = vadd.f32 %v322, %v450
  %v579 = vadd.f32 %v323, %v451
  %v580 = vadd.f32 %v324, %v452
  %v581 = vadd.f32 %v325, %v453
  %v582 = vadd.f32 %v326, %v454
  %v583 = vadd.f32 %v327, %v455
  %v584 = vadd.f32 %v328, %v456
  %v585 = vadd.f32 %v329, %v457
  %v586 = vadd.f32 %v330, %v458
  %v587 = vadd.f32 %v331, %v459
  %v588 = vadd.f32 %v332, %v460
  %v589 = vadd.f32 %v333, %v461
  %v590 = vadd.f32 %v334, %v462
  %v591 = vadd.f32 %v335, %v463
  %v592 = vadd.f32 %v336, %v464
  %v593 = vadd.f32 %v337, %v465
  %v594 = vadd.f32 %v338, %v466
  %v595 = vadd.f32 %v339, %v467
  %v596 = vadd.f32 %v340, %v468
  %v597 = vadd.f32 %v341, %v469
  %v598 = vadd.f32 %v342, %v470
  %v599 = vadd.f32 %v343, %v471
  %v600 = vadd.f32 %v344, %v472
  %v601 = vadd.f32 %v345, %v473
  %v602 = vadd.f32 %v346, %v474
  %v603 = vadd.f32 %v347, %v475
  %v604 = vadd.f32 %v348, %v476
  %v605 = vadd.f32 %v349, %v477
  %v606 = vadd.f32 %v350, %v478
  %v607 = vadd.f32 %v351, %v479
  %v608 = vadd.f32 %v352, %v480
  %v609 = vadd.f32 %v353, %v481
  %v610 = vadd.f32 %v354, %v482
  %v611 = vadd.f32 %v355, %v483
  %v612 = vadd.f32 %v356, %v484
  %v613 = vadd.f32 %v357, %v485
  %v614 = vadd.f32 %v358, %v486
  %v615 = vadd.f32 %v359, %v487
  %v616 = vadd.f32 %v360, %v488
  %v617 = vadd.f32 %v361, %v489
  %v618 = vadd.f32 %v362, %v490
  %v619 = vadd.f32 %v363, %v491
  %v620 = vadd.f32 %v364, %v492
  %v621 = vadd.f32 %v365, %v493
  %v622 = vadd.f32 %v366, %v494
  %v623 = vadd.f32 %v367, %v495
  %v624 = vadd.f32 %v368, %v496
  %v625 = vadd.f32 %v369, %v497
  %v626 = vadd.f32 %v370, %v498
  %v627 = vadd.f32 %v371, %v499
  %v628 = vadd.f32 %v372, %v500
  %v629 = vadd.f32 %v373, %v501
  %v630 = vadd.f32 %v374, %v502
  %v631 = vadd.f32 %v375, %v503
  %v632 = vadd.f32 %v376, %v504
  %v633 = vadd.f32 %v377, %v505
  %v634 = vadd.f32 %v378, %v506
  %v635 = vadd.f32 %v379, %v507
  %v636 = vadd.f32 %v380, %v508
  %v637 = vadd.f32 %v381, %v509
  %v638 = vadd.f32 %v382, %v510
  %v639 = vadd.f32 %v383, %v511
  %v640 = vadd.f32 %v384, %v512
  %v641 = vadd.f32 %v385, %v513
  %v642 = vadd.f32 %v386, %v514
  %v643 = vadd.f32 %v387, %v515
  %v644 = vadd.f32 %v388, %v516
  %v645 = vadd.f32 %v389, %v517
  %v646 = vadd.f32 %v390, %v518
  %v647 = vadd.f32 %v391, %v519
  %v648 = vadd.f32 %v392, %v520
  %v649 = vadd.f32 %v393, %v521
  %v650 = vadd.f32 %v394, %v522
  %v651 = vadd.f32 %v395, %v523
  %v652 = vadd.f32 %v396, %v524
  %v653 = vadd.f32 %v397, %v525
  %v654 = vadd.f32 %v398, %v526
  %v655 = vadd.f32 %v399, %v527
  %v656 = vadd.f32 %v400, %v528
  %v657 = vadd.f32 %v401, %v529
  %v658 = vadd.f32 %v402, %v530
  %v659 = vadd.f32 %v403, %v531
  %v660 = vadd.f32 %v404, %v532
  %v661 = vadd.f32 %v405, %v533
  %v662 = vadd.f32 %v406, %v534
  %v663 = vadd.f32 %v407, %v535
  %v664 = vadd.f32 %v408, %v536
  %v665 = vadd.f32 %v409, %v537
  %v666 = vadd.f32 %v410, %v538
  %v667 = vadd.f32 %v411, %v539
  %v668 = vadd.f32 %v412, %v540
  %v669 = vadd.f32 %v413, %v541
  %v670 = vadd.f32 %v414, %v542
  %v671 = vmax.f32 %v543, 0.0
  %v672 = vmax.f32 %v544, 0.0
  %v673 = vmax.f32 %v545, 0.0
  %v674 = vmax.f32 %v546, 0.0
  %v675 = vmax.f32 %v547, 0.0
  %v676 = vmax.f32 %v548, 0.0
  %v677 = vmax.f32 %v549, 0.0
  %v678 = vmax.f32 %v550, 0.0
  %v679 = vmax.f32 %v551, 0.0
  %v680 = vmax.f32 %v552, 0.0
  %v681 = vmax.f32 %v553, 0.0
  %v682 = vmax.f32 %v554, 0.0
  %v683 = vmax.f32 %v555, 0.0
  %v684 = vmax.f32 %v556, 0.0
  %v685 = vmax.f32 %v557, 0.0
  %v686 = vmax.f32 %v558, 0.0
  %v687 = vmax.f32 %v559, 0.0
  %v688 = vmax.f32 %v560, 0.0
  %v689 = vmax.f32 %v561, 0.0
  %v690 = vmax.f32 %v562, 0.0
  %v691 = vmax.f32 %v563, 0.0
  %v692 = vmax.f32 %v564, 0.0
  %v693 = vmax.f32 %v565, 0.0
  %v694 = vmax.f32 %v566, 0.0
  %v695 = vmax.f32 %v567, 0.0
  %v696 = vmax.f32 %v568, 0.0
  %v697 = vmax.f32 %v569, 0.0
  %v698 = vmax.f32 %v570, 0.0
  %v699 = vmax.f32 %v571, 0.0
  %v700 = vmax.f32 %v572, 0.0
  %v701 = vmax.f32 %v573, 0.0
  %v702 = vmax.f32 %v574, 0.0
  %v703 = vmax.f32 %v575, 0.0
  %v704 = vmax.f32 %v576, 0.0
  %v705 = vmax.f32 %v577, 0.0
  %v706 = vmax.f32 %v578, 0.0
  %v707 = vmax.f32 %v579, 0.0
  %v708 = vmax.f32 %v580, 0.0
  %v709 = vmax.f32 %v581, 0.0
  %v710 = vmax.f32 %v582, 0.0
  %v711 = vmax.f32 %v583, 0.0
  %v712 = vmax.f32 %v584, 0.0
  %v713 = vmax.f32 %v585, 0.0
  %v714 = vmax.f32 %v586, 0.0
  %v715 = vmax.f32 %v587, 0.0
  %v716 = vmax.f32 %v588, 0.0
  %v717 = vmax.f32 %v589, 0.0
  %v718 = vmax.f32 %v590, 0.0
  %v719 = vmax.f32 %v591, 0.0
  %v720 = vmax.f32 %v592, 0.0
  %v721 = vmax.f32 %v593, 0.0
  %v722 = vmax.f32 %v594, 0.0
  %v723 = vmax.f32 %v595, 0.0
  %v724 = vmax.f32 %v596, 0.0
  %v725 = vmax.f32 %v597, 0.0
  %v726 = vmax.f32 %v598, 0.0
  %v727 = vmax.f32 %v599, 0.0
  %v728 = vmax.f32 %v600, 0.0
  %v729 = vmax.f32 %v601, 0.0
  %v730 = vmax.f32 %v602, 0.0
  %v731 = vmax.f32 %v603, 0.0
  %v732 = vmax.f32 %v604, 0.0
  %v733 = vmax.f32 %v605, 0.0
  %v734 = vmax.f32 %v606, 0.0
  %v735 = vmax.f32 %v607, 0.0
  %v736 = vmax.f32 %v608, 0.0
  %v737 = vmax.f32 %v609, 0.0
  %v738 = vmax.f32 %v610, 0.0
  %v739 = vmax.f32 %v611, 0.0
  %v740 = vmax.f32 %v612, 0.0
  %v741 = vmax.f32 %v613, 0.0
  %v742 = vmax.f32 %v614, 0.0
  %v743 = vmax.f32 %v615, 0.0
  %v744 = vmax.f32 %v616, 0.0
  %v745 = vmax.f32 %v617, 0.0
  %v746 = vmax.f32 %v618, 0.0
  %v747 = vmax.f32 %v619, 0.0
  %v748 = vmax.f32 %v620, 0.0
  %v749 = vmax.f32 %v621, 0.0
  %v750 = vmax.f32 %v622, 0.0
  %v751 = vmax.f32 %v623, 0.0
  %v752 = vmax.f32 %v624, 0.0
  %v753 = vmax.f32 %v625, 0.0
  %v754 = vmax.f32 %v626, 0.0
  %v755 = vmax.f32 %v627, 0.0
  %v756 = vmax.f32 %v628, 0.0
  %v757 = vmax.f32 %v629, 0.0
  %v758 = vmax.f32 %v630, 0.0
  %v759 = vmax.f32 %v631, 0.0
  %v760 = vmax.f32 %v632, 0.0
  %v761 = vmax.f32 %v633, 0.0
  %v762 = vmax.f32 %v634, 0.0
  %v763 = vmax.f32 %v635, 0.0
  %v764 = vmax.f32 %v636, 0.0
  %v765 = vmax.f32 %v637, 0.0
  %v766 = vmax.f32 %v638, 0.0
  %v767 = vmax.f32 %v639, 0.0
  %v768 = vmax.f32 %v640, 0.0
  %v769 = vmax.f32 %v641, 0.0
  %v770 = vmax.f32 %v642, 0.0
  %v771 = vmax.f32 %v643, 0.0
  %v772 = vmax.f32 %v644, 0.0
  %v773 = vmax.f32 %v645, 0.0
  %v774 = vmax.f32 %v646, 0.0
  %v775 = vmax.f32 %v647, 0.0
  %v776 = vmax.f32 %v648, 0.0
  %v777 = vmax.f32 %v649, 0.0
  %v778 = vmax.f32 %v650, 0.0
  %v779 = vmax.f32 %v651, 0.0
  %v780 = vmax.f32 %v652, 0.0
  %v781 = vmax.f32 %v653, 0.0
  %v782 = vmax.f32 %v654, 0.0
  %v783 = vmax.f32 %v655, 0.0
  %v784 = vmax.f32 %v656, 0.0
  %v785 = vmax.f32 %v657, 0.0
  %v786 = vmax.f32 %v658, 0.0
  %v787 = vmax.f32 %v659, 0.0
  %v788 = vmax.f32 %v660, 0.0
  %v789 = vmax.f32 %v661, 0.0
  %v790 = vmax.f32 %v662, 0.0
  %v791 = vmax.f32 %v663, 0.0
  %v792 = vmax.f32 %v664, 0.0
  %v793 = vmax.f32 %v665, 0.0
  %v794 = vmax.f32 %v666, 0.0
  %v795 = vmax.f32 %v667, 0.0
  %v796 = vmax.f32 %v668, 0.0
  %v797 = vmax.f32 %v669, 0.0
  %v798 = vmax.f32 %v670, 0.0
  %799 = vst [vmem:[%s4] sm:$0xff] %v671
  %800 = vst [vmem:[%s4 + $0x8] sm:$0xff] %v672
  %801 = vst [vmem:[%s4 + $0x10] sm:$0xff] %v673
  %802 = vst [vmem:[%s4 + $0x18] sm:$0xff] %v674
  %803 = vst [vmem:[%s4 + $0x20] sm:$0xff] %v675
  %804 = vst [vmem:[%s4 + $0x28] sm:$0xff] %v676
  %805 = vst [vmem:[%s4 + $0x30] sm:$0xff] %v677
  %806 = vst [vmem:[%s4 + $0x38] sm:$0xff] %v678
  %807 = vst [vmem:[%s4 + $0x40] sm:$0xff] %v679
  %808 = vst [vmem:[%s4 + $0x48] sm:$0xff] %v680
  %809 = vst [vmem:[%s4 + $0x50] sm:$0xff] %v681
  %810 = vst [vmem:[%s4 + $0x58] sm:$0xff] %v682
  %811 = vst [vmem:[%s4 + $0x60] sm:$0xff] %v683
  %812 = vst [vmem:[%s4 + $0x68] sm:$0xff] %v684
  %813 = vst [vmem:[%s4 + $0x70] sm:$0xff] %v685
  %814 = vst [vmem:[%s4 + $0x78] sm:$0xff] %v686
  %815 = vst [vmem:[%s4 + $0x80] sm:$0xff] %v687
  %816 = vst [vmem:[%s4 + $0x88] sm:$0xff] %v688
  %817 = vst [vmem:[%s4 + $0x90] sm:$0xff] %v689
  %818 = vst [vmem:[%s4 + $0x98] sm:$0xff] %v690
  %819 = vst [vmem:[%s4 + $0xa0] sm:$0xff] %v691
  %820 = vst [vmem:[%s4 + $0xa8] sm:$0xff] %v692
  %821 = vst [vmem:[%s4 + $0xb0] sm:$0xff] %v693
  %822 = vst [vmem:[%s4 + $0xb8] sm:$0xff] %v694
  %823 = vst [vmem:[%s4 + $0xc0] sm:$0xff] %v695
  %824 = vst [vmem:[%s4 + $0xc8] sm:$0xff] %v696
  %825 = vst [vmem:[%s4 + $0xd0] sm:$0xff] %v697
  %826 = vst [vmem:[%s4 + $0xd8] sm:$0xff] %v698
  %827 = vst [vmem:[%s4 + $0xe0] sm:$0xff] %v699
  %828 = vst [vmem:[%s4 + $0xe8] sm:$0xff] %v700
  %829 = vst [vmem:[%s4 + $0xf0] sm:$0xff] %v701
  %830 = vst [vmem:[%s4 + $0xf8] sm:$0xff] %v702
  %831 = vst [vmem:[%s4 + $0x100] sm:$0xff] %v703
  %832 = vst [vmem:[%s4 + $0x108] sm:$0xff] %v704
  %833 = vst [vmem:[%s4 + $0x110] sm:$0xff] %v705
  %834 = vst [vmem:[%s4 + $0x118] sm:$0xff] %v706
  %835 = vst [vmem:[%s4 + $0x120] sm:$0xff] %v707
  %836 = vst [vmem:[%s4 + $0x128] sm:$0xff] %v708
  %837 = vst [vmem:[%s4 + $0x130] sm:$0xff] %v709
  %838 = vst [vmem:[%s4 + $0x138] sm:$0xff] %v710
  %839 = vst [vmem:[%s4 + $0x140] sm:$0xff] %v711
  %840 = vst [vmem:[%s4 + $0x148] sm:$0xff] %v712
  %841 = vst [vmem:[%s4 + $0x150] sm:$0xff] %v713
  %842 = vst [vmem:[%s4 + $0x158] sm:$0xff] %v714
  %843 = vst [vmem:[%s4 + $0x160] sm:$0xff] %v715
  %844 = vst [vmem:[%s4 + $0x168] sm:$0xff] %v716
  %845 = vst [vmem:[%s4 + $0x170] sm:$0xff] %v717
  %846 = vst [vmem:[%s4 + $0x178] sm:$0xff] %v718
  %847 = vst [vmem:[%s4 + $0x180] sm:$0xff] %v719
  %848 = vst [vmem:[%s4 + $0x188] sm:$0xff] %v720
  %849 = vst [vmem:[%s4 + $0x190] sm:$0xff] %v721
  %850 = vst [vmem:[%s4 + $0x198] sm:$0xff] %v722
  %851 = vst [vmem:[%s4 + $0x1a0] sm:$0xff] %v723
  %852 = vst [vmem:[%s4 + $0x1a8] sm:$0xff] %v724
  %853 = vst [vmem:[%s4 + $0x1b0] sm:$0xff] %v725
  %854 = vst [vmem:[%s4 + $0x1b8] sm:$0xff] %v726
  %855 = vst [vmem:[%s4 + $0x1c0] sm:$0xff] %v727
  %856 = vst [vmem:[%s4 + $0x1c8] sm:$0xff] %v728
  %857 = vst [vmem:[%s4 + $0x1d0] sm:$0xff] %v729
  %858 = vst [vmem:[%s4 + $0x1d8] sm:$0xff] %v730
  %859 = vst [vmem:[%s4 + $0x1e0] sm:$0xff] %v731
  %860 = vst [vmem:[%s4 + $0x1e8] sm:$0xff] %v732
  %861 = vst [vmem:[%s4 + $0x1f0] sm:$0xff] %v733
  %862 = vst [vmem:[%s4 + $0x1f8] sm:$0xff] %v734
  %863 = vst [vmem:[%s4 + $0x200] sm:$0xff] %v735
  %864 = vst [vmem:[%s4 + $0x208] sm:$0xff] %v736
  %865 = vst [vmem:[%s4 + $0x210] sm:$0xff] %v737
  %866 = vst [vmem:[%s4 + $0x218] sm:$0xff] %v738
  %867 = vst [vmem:[%s4 + $0x220] sm:$0xff] %v739
  %868 = vst [vmem:[%s4 + $0x228] sm:$0xff] %v740
  %869 = vst [vmem:[%s4 + $0x230] sm:$0xff] %v741
  %870 = vst [vmem:[%s4 + $0x238] sm:$0xff] %v742
  %871 = vst [vmem:[%s4 + $0x240] sm:$0xff] %v743
  %872 = vst [vmem:[%s4 + $0x248] sm:$0xff] %v744
  %873 = vst [vmem:[%s4 + $0x250] sm:$0xff] %v745
  %874 = vst [vmem:[%s4 + $0x258] sm:$0xff] %v746
  %875 = vst [vmem:[%s4 + $0x260] sm:$0xff] %v747
  %876 = vst [vmem:[%s4 + $0x268] sm:$0xff] %v748
  %877 = vst [vmem:[%s4 + $0x270] sm:$0xff] %v749
  %878 = vst [vmem:[%s4 + $0x278] sm:$0xff] %v750
  %879 = vst [vmem:[%s4 + $0x280] sm:$0xff] %v751
  %880 = vst [vmem:[%s4 + $0x288] sm:$0xff] %v752
  %881 = vst [vmem:[%s4 + $0x290] sm:$0xff] %v753
  %882 = vst [vmem:[%s4 + $0x298] sm:$0xff] %v754
  %883 = vst [vmem:[%s4 + $0x2a0] sm:$0xff] %v755
  %884 = vst [vmem:[%s4 + $0x2a8] sm:$0xff] %v756
  %885 = vst [vmem:[%s4 + $0x2b0] sm:$0xff] %v757
  %886 = vst [vmem:[%s4 + $0x2b8] sm:$0xff] %v758
  %887 = vst [vmem:[%s4 + $0x2c0] sm:$0xff] %v759
  %888 = vst [vmem:[%s4 + $0x2c8] sm:$0xff] %v760
  %889 = vst [vmem:[%s4 + $0x2d0] sm:$0xff] %v761
  %890 = vst [vmem:[%s4 + $0x2d8] sm:$0xff] %v762
  %891 = vst [vmem:[%s4 + $0x2e0] sm:$0xff] %v763
  %892 = vst [vmem:[%s4 + $0x2e8] sm:$0xff] %v764
  %893 = vst [vmem:[%s4 + $0x2f0] sm:$0xff] %v765
  %894 = vst [vmem:[%s4 + $0x2f8] sm:$0xff] %v766
  %895 = vst [vmem:[%s4 + $0x300] sm:$0xff] %v767
  %896 = vst [vmem:[%s4 + $0x308] sm:$0xff] %v768
  %897 = vst [vmem:[%s4 + $0x310] sm:$0xff] %v769
  %898 = vst [vmem:[%s4 + $0x318] sm:$0xff] %v770
  %899 = vst [vmem:[%s4 + $0x320] sm:$0xff] %v771
  %900 = vst [vmem:[%s4 + $0x328] sm:$0xff] %v772
  %901 = vst [vmem:[%s4 + $0x330] sm:$0xff] %v773
  %902 = vst [vmem:[%s4 + $0x338] sm:$0xff] %v774
  %903 = vst [vmem:[%s4 + $0x340] sm:$0xff] %v775
  %904 = vst [vmem:[%s4 + $0x348] sm:$0xff] %v776
  %905 = vst [vmem:[%s4 + $0x350] sm:$0xff] %v777
  %906 = vst [vmem:[%s4 + $0x358] sm:$0xff] %v778
  %907 = vst [vmem:[%s4 + $0x360] sm:$0xff] %v779
  %908 = vst [vmem:[%s4 + $0x368] sm:$0xff] %v780
  %909 = vst [vmem:[%s4 + $0x370] sm:$0xff] %v781
  %910 = vst [vmem:[%s4 + $0x378] sm:$0xff] %v782
  %911 = vst [vmem:[%s4 + $0x380] sm:$0xff] %v783
  %912 = vst [vmem:[%s4 + $0x388] sm:$0xff] %v784
  %913 = vst [vmem:[%s4 + $0x390] sm:$0xff] %v785
  %914 = vst [vmem:[%s4 + $0x398] sm:$0xff] %v786
  %915 = vst [vmem:[%s4 + $0x3a0] sm:$0xff] %v787
  %916 = vst [vmem:[%s4 + $0x3a8] sm:$0xff] %v788
  %917 = vst [vmem:[%s4 + $0x3b0] sm:$0xff] %v789
  %918 = vst [vmem:[%s4 + $0x3b8] sm:$0xff] %v790
  %919 = vst [vmem:[%s4 + $0x3c0] sm:$0xff] %v791
  %920 = vst [vmem:[%s4 + $0x3c8] sm:$0xff] %v792
  %921 = vst [vmem:[%s4 + $0x3d0] sm:$0xff] %v793
  %922 = vst [vmem:[%s4 + $0x3d8] sm:$0xff] %v794
  %923 = vst [vmem:[%s4 + $0x3e0] sm:$0xff] %v795
  %924 = vst [vmem:[%s4 + $0x3e8] sm:$0xff] %v796
  %925 = vst [vmem:[%s4 + $0x3f0] sm:$0xff] %v797
  %926 = vst [vmem:[%s4 + $0x3f8] sm:$0xff] %v798
  // Predicated region
  $region18: #{basic_block_forward.7} parent=0 // pred_check
    _
  $region19: #{basic_block_forward.7} parent=0 // pred_check_branch
    %928 = sbr.rel (0) target = $region21
  $region20: #{basic_block_forward.7} parent=0 // pred_region
    _
  $region21: #{basic_block_forward.7} parent=0 // pred_fallthru
    _
  // Predicated region
  $region22: #{basic_block_forward.7} parent=0 // pred_check
    _
  $region23: #{basic_block_forward.7} parent=0 // pred_check_branch
    %930 = sbr.rel (0) target = $region25
  $region24: #{basic_block_forward.7} parent=0 // pred_region
    _
  $region25: #{basic_block_forward.7} parent=0 // pred_fallthru
    _

// kernel: basic_block_forward.4
$region0: #{basic_block_forward.4}
  #allocation0 [shape = 'u32[]', space=smem, size = 0x4, offset = 0x4, fixed_abs, tag = 'smem constant byte address 0x4 - core index']
  #allocation1 [shape = 'u32[144,128]{1,0:T(1,128)}', space=vmem, size = 0x12000, scoped, tag = 'internal scratch']
  %s0 = inlined_call_operand.vmem [shape: bf16[2,10,10,10,128], index: 0, kind: input, shape index: {}, may-alias: {0,1,2}]
  %s1 = inlined_call_operand.vmem [shape: bf16[2,10,10,10,128], index: 1, kind: input, shape index: {}, may-alias: {0,1,2}]
  %s2 = inlined_call_operand.vmem [shape: bf16[2,10,10,10,128], index: 2, kind: input, shape index: {}, may-alias: {0,1,2}]
  %s3 = inlined_call_operand.vmem [shape: bf16[3456,128], index: 3, kind: input, shape index: {}]
  %s4 = inlined_call_operand.vmem [shape: f32[1024,128], index: 4, kind: output, shape index: {0}]
  %s5 = inlined_call_operand.vmem [shape: f32[128,128], index: 5, kind: output, shape index: {1}]
  %s6 = inlined_call_operand.vmem [shape: f32[128,128], index: 6, kind: output, shape index: {2}]
  %7 = xla_tuple %s4, %s5, %s6
  %s8 = sld [smem:[#allocation0]]
  $region65: #{basic_block_forward.4} parent=0
    _
  %s10 = ssub.s32 1, %s8
  %s11 = scalar_select 0, %s10, %s8
  loop: start=0, step=1, limit=18
  $region2: #{basic_block_forward.4} parent=0 // loop_pre_header
    _
  $region3: #{basic_block_forward.4} parent=0 // loop_header
    %s13 = sphi 0, %s17
    %p14 = scmp.ge.s32.totalorder %s13, 18
    %s20 = sphi 0, %s32
    %s21 = sphi 0, %s28
    %s22 = sphi 0, %s20
    %s23 = sphi 0, %s21
    %s24 = sphi 0, %s22
    %s25 = sphi 0, %s23
    %s37 = sphi 0, %s39
    %s40 = sphi 0, %s37
    %s41 = sphi 0, %s40
    %s57 = sphi 0, %s41
    %s67 = sphi 0, %s69
    %s70 = sphi 0, %s67
    %s71 = sphi 0, %s70
    %s87 = sphi 0, %s71
    %s97 = sphi 0, %s99
    %s100 = sphi 0, %s97
    %s101 = sphi 0, %s100
    %s117 = sphi 0, %s101
    %s121 = sphi 0, %s121
    %s123 = sphi 0, %s121
    %s124 = sphi 0, %s123
    %s138 = sphi 0, %s124
    %s148 = sphi 0, %s150
    %s151 = sphi 0, %s148
    %s152 = sphi 0, %s151
    %s168 = sphi 0, %s152
    %s178 = sphi 0, %s180
    %s181 = sphi 0, %s178
    %s182 = sphi 0, %s181
    %s198 = sphi 0, %s182
    %s208 = sphi 0, %s210
    %s211 = sphi 0, %s208
    %s212 = sphi 0, %s211
    %s228 = sphi 0, %s212
  $region4: #{basic_block_forward.4} parent=0 // loop_header_branch
    %16 = sbr.rel (%p14) target = $region8
  $region5: #{basic_block_forward.4} parent=0 // loop_body
    %s18 = ssub.s32 %s13, 1
    %s19 = ssub.s32 %s13, 2
    %s26 = sadd.s32 1, %s21
    %p27 = scmp.ge.s32.totalorder %s26, 8
    %s28 = scalar_select %p27, 0, %s26
    %s29 = sadd.s32 1, %s20
    %s30 = scalar_select %p27, %s29, %s20
    %p31 = scmp.ge.s32.totalorder %s30, 2
    %s32 = scalar_select %p31, 0, %s30
    %s33 = ssub.s32 %s20, %s32
    %s34 = ssub.s32 %s21, %s28
    %s35 = sor.u32 %s33, %s34
    %p36 = scmp.eq.s32.totalorder %s35, 0
    %s38 = sadd.s32 %s37, 1
    %s39 = scalar_select %p36, %s37, %s38
    %p42 = pneg %p36
    %p43 = scmp.eq.s32.totalorder %s13, 15
    %p44 = por %p42, %p43
    %p45 = scmp.ne.s32.totalorder %s37, %s40
    %p46 = scmp.eq.s32.totalorder %s13, 0
    %p47 = por %p45, %p46
    %p48 = scmp.ne.s32.totalorder %s37, %s40
    %p49 = scmp.eq.s32.totalorder %s18, 15
    %p50 = por %p48, %p49
    %p51 = scmp.ne.s32.totalorder %s40, %s41
    %p52 = scmp.eq.s32.totalorder %s18, 0
    %p53 = por %p51, %p52
    %p54 = scmp.ne.s32.totalorder %s40, %s41
    %p55 = scmp.eq.s32.totalorder %s19, 15
    %p56 = por %p54, %p55
    %p58 = scmp.ne.s32.totalorder %s41, %s57
    %p59 = scmp.eq.s32.totalorder %s19, 0
    %p60 = por %p58, %p59
    %s61 = sadd.s32 %s21, 1
    %s62 = sadd.s32 %s28, 1
    %s63 = ssub.s32 %s20, %s32
    %s64 = ssub.s32 %s61, %s62
    %s65 = sor.u32 %s63, %s64
    %p66 = scmp.eq.s32.totalorder %s65, 0
    %s68 = sadd.s32 %s67, 1
    %s69 = scalar_select %p66, %s67, %s68
    %p72 = pneg %p66
    %p73 = scmp.eq.s32.totalorder %s13, 15
    %p74 = por %p72, %p73
    %p75 = scmp.ne.s32.totalorder %s67, %s70
    %p76 = scmp.eq.s32.totalorder %s13, 0
    %p77 = por %p75, %p76
    %p78 = scmp.ne.s32.totalorder %s67, %s70
    %p79 = scmp.eq.s32.totalorder %s18, 15
    %p80 = por %p78, %p79
    %p81 = scmp.ne.s32.totalorder %s70, %s71
    %p82 = scmp.eq.s32.totalorder %s18, 0
    %p83 = por %p81, %p82
    %p84 = scmp.ne.s32.totalorder %s70, %s71
    %p85 = scmp.eq.s32.totalorder %s19, 15
    %p86 = por %p84, %p85
    %p88 = scmp.ne.s32.totalorder %s71, %s87
    %p89 = scmp.eq.s32.totalorder %s19, 0
    %p90 = por %p88, %p89
    %s91 = sadd.s32 %s21, 2
    %s92 = sadd.s32 %s28, 2
    %s93 = ssub.s32 %s20, %s32
    %s94 = ssub.s32 %s91, %s92
    %s95 = sor.u32 %s93, %s94
    %p96 = scmp.eq.s32.totalorder %s95, 0
    %s98 = sadd.s32 %s97, 1
    %s99 = scalar_select %p96, %s97, %s98
    %p102 = pneg %p96
    %p103 = scmp.eq.s32.totalorder %s13, 15
    %p104 = por %p102, %p103
    %p105 = scmp.ne.s32.totalorder %s97, %s100
    %p106 = scmp.eq.s32.totalorder %s13, 0
    %p107 = por %p105, %p106
    %p108 = scmp.ne.s32.totalorder %s97, %s100
    %p109 = scmp.eq.s32.totalorder %s18, 15
    %p110 = por %p108, %p109
    %p111 = scmp.ne.s32.totalorder %s100, %s101
    %p112 = scmp.eq.s32.totalorder %s18, 0
    %p113 = por %p111, %p112
    %p114 = scmp.ne.s32.totalorder %s100, %s101
    %p115 = scmp.eq.s32.totalorder %s19, 15
    %p116 = por %p114, %p115
    %p118 = scmp.ne.s32.totalorder %s101, %s117
    %p119 = scmp.eq.s32.totalorder %s19, 0
    %p120 = por %p118, %p119
    %s122 = sadd.s32 %s121, 1
    %p125 = scmp.eq.s32.totalorder %s13, 15
    %p126 = scmp.ne.s32.totalorder %s121, %s123
    %p127 = scmp.eq.s32.totalorder %s13, 0
    %p128 = por %p126, %p127
    %p129 = scmp.ne.s32.totalorder %s121, %s123
    %p130 = scmp.eq.s32.totalorder %s18, 15
    %p131 = por %p129, %p130
    %p132 = scmp.ne.s32.totalorder %s123, %s124
    %p133 = scmp.eq.s32.totalorder %s18, 0
    %p134 = por %p132, %p133
    %p135 = scmp.ne.s32.totalorder %s123, %s124
    %p136 = scmp.eq.s32.totalorder %s19, 15
    %p137 = por %p135, %p136
    %p139 = scmp.ne.s32.totalorder %s124, %s138
    %p140 = scmp.eq.s32.totalorder %s19, 0
    %p141 = por %p139, %p140
    %s142 = smul.u32 %s20, 8
    %s143 = sadd.s32 %s142, %s21
    %s144 = smul.u32 %s32, 8
    %s145 = sadd.s32 %s144, %s28
    %s146 = ssub.s32 %s143, %s145
    %p147 = scmp.eq.s32.totalorder %s146, 0
    %s149 = sadd.s32 %s148, 1
    %s150 = scalar_select %p147, %s148, %s149
    %p153 = pneg %p147
    %p154 = scmp.eq.s32.totalorder %s13, 15
    %p155 = por %p153, %p154
    %p156 = scmp.ne.s32.totalorder %s148, %s151
    %p157 = scmp.eq.s32.totalorder %s13, 0
    %p158 = por %p156, %p157
    %p159 = scmp.ne.s32.totalorder %s148, %s151
    %p160 = scmp.eq.s32.totalorder %s18, 15
    %p161 = por %p159, %p160
    %p162 = scmp.ne.s32.totalorder %s151, %s152
    %p163 = scmp.eq.s32.totalorder %s18, 0
    %p164 = por %p162, %p163
    %p165 = scmp.ne.s32.totalorder %s151, %s152
    %p166 = scmp.eq.s32.totalorder %s19, 15
    %p167 = por %p165, %p166
    %p169 = scmp.ne.s32.totalorder %s152, %s168
    %p170 = scmp.eq.s32.totalorder %s19, 0
    %p171 = por %p169, %p170
    %s172 = smul.u32 %s20, 8
    %s173 = sadd.s32 %s172, %s21
    %s174 = smul.u32 %s32, 8
    %s175 = sadd.s32 %s174, %s28
    %s176 = ssub.s32 %s173, %s175
    %p177 = scmp.eq.s32.totalorder %s176, 0
    %s179 = sadd.s32 %s178, 1
    %s180 = scalar_select %p177, %s178, %s179
    %p183 = pneg %p177
    %p184 = scmp.eq.s32.totalorder %s13, 15
    %p185 = por %p183, %p184
    %p186 = scmp.ne.s32.totalorder %s178, %s181
    %p187 = scmp.eq.s32.totalorder %s13, 0
    %p188 = por %p186, %p187
    %p189 = scmp.ne.s32.totalorder %s178, %s181
    %p190 = scmp.eq.s32.totalorder %s18, 15
    %p191 = por %p189, %p190
    %p192 = scmp.ne.s32.totalorder %s181, %s182
    %p193 = scmp.eq.s32.totalorder %s18, 0
    %p194 = por %p192, %p193
    %p195 = scmp.ne.s32.totalorder %s181, %s182
    %p196 = scmp.eq.s32.totalorder %s19, 15
    %p197 = por %p195, %p196
    %p199 = scmp.ne.s32.totalorder %s182, %s198
    %p200 = scmp.eq.s32.totalorder %s19, 0
    %p201 = por %p199, %p200
    %s202 = smul.u32 %s20, 8
    %s203 = sadd.s32 %s202, %s21
    %s204 = smul.u32 %s32, 8
    %s205 = sadd.s32 %s204, %s28
    %s206 = ssub.s32 %s203, %s205
    %p207 = scmp.eq.s32.totalorder %s206, 0
    %s209 = sadd.s32 %s208, 1
    %s210 = scalar_select %p207, %s208, %s209
    %p213 = pneg %p207
    %p214 = scmp.eq.s32.totalorder %s13, 15
    %p215 = por %p213, %p214
    %p216 = scmp.ne.s32.totalorder %s208, %s211
    %p217 = scmp.eq.s32.totalorder %s13, 0
    %p218 = por %p216, %p217
    %p219 = scmp.ne.s32.totalorder %s208, %s211
    %p220 = scmp.eq.s32.totalorder %s18, 15
    %p221 = por %p219, %p220
    %p222 = scmp.ne.s32.totalorder %s211, %s212
    %p223 = scmp.eq.s32.totalorder %s18, 0
    %p224 = por %p222, %p223
    %p225 = scmp.ne.s32.totalorder %s211, %s212
    %p226 = scmp.eq.s32.totalorder %s19, 15
    %p227 = por %p225, %p226
    %p229 = scmp.ne.s32.totalorder %s212, %s228
    %p230 = scmp.eq.s32.totalorder %s19, 0
    %p231 = por %p229, %p230
    %p232 = scmp.le.s32.totalorder 1, %s13
    %p233 = scmp.lt.s32.totalorder %s13, 17
    %p234 = pnand %p232, %p233
    %p235 = pneg %p234
    // Predicated region
    $region9: #{basic_block_forward.4} parent=5 // pred_check
      _
    $region10: #{basic_block_forward.4} parent=5 // pred_check_branch
      %237 = sbr.rel (%p234) target = $region12
    $region11: #{basic_block_forward.4} parent=5 // pred_region
      %s238 = ssub.s32 %s13, 1
      // Predicated region
      $region13: #{basic_block_forward.4} parent=11 // pred_check
        %p239 = pneg %p134
      $region14: #{basic_block_forward.4} parent=11 // pred_check_branch
        %241 = sbr.rel (%p239) target = $region16
      $region15: #{basic_block_forward.4} parent=11 // pred_region
        _
      $region16: #{basic_block_forward.4} parent=11 // pred_fallthru
        _
    $region12: #{basic_block_forward.4} parent=5 // pred_fallthru
      _
    %p242 = scmp.lt.s32.totalorder %s13, 16
    // Predicated region
    $region17: #{basic_block_forward.4} parent=5 // pred_check
      %p243 = pneg %p242
    $region18: #{basic_block_forward.4} parent=5 // pred_check_branch
      %245 = sbr.rel (%p243) target = $region20
    $region19: #{basic_block_forward.4} parent=5 // pred_region
      // Predicated region
      $region21: #{basic_block_forward.4} parent=19 // pred_check
        %p246 = pneg %p47
      $region22: #{basic_block_forward.4} parent=19 // pred_check_branch
        %248 = sbr.rel (%p246) target = $region24
      $region23: #{basic_block_forward.4} parent=19 // pred_region
        %p249 = scmp.lt.s32.totalorder %s20, 1
        %s250 = scalar_select %p249, %s20, 1
        %p251 = scmp.lt.s32.totalorder %s21, 9
        %s252 = scalar_select %p251, %s21, 9
        %s253 = smul.addr %s252, 20
        %s254 = smul.addr %s250, 200
        %s255 = sadd.s32 %s253, %s254
        %s256 = smul.addr %s255, 4
        %s257 = scalar_lea.vmem %s0, %s256
      $region24: #{basic_block_forward.4} parent=19 // pred_fallthru
        _
      // Predicated region
      $region25: #{basic_block_forward.4} parent=19 // pred_check
        %p258 = pneg %p77
      $region26: #{basic_block_forward.4} parent=19 // pred_check_branch
        %260 = sbr.rel (%p258) target = $region28
      $region27: #{basic_block_forward.4} parent=19 // pred_region
        %s261 = sadd.s32 %s21, 1
        %p262 = scmp.lt.s32.totalorder %s20, 1
        %s263 = scalar_select %p262, %s20, 1
        %p264 = scmp.lt.s32.totalorder %s261, 9
        %s265 = scalar_select %p264, %s261, 9
        %s266 = smul.addr %s265, 20
        %s267 = smul.addr %s263, 200
        %s268 = sadd.s32 %s266, %s267
        %s269 = smul.addr %s268, 4
        %s270 = scalar_lea.vmem %s1, %s269
        %s271 = sadd.s32 %s21, 1
      $region28: #{basic_block_forward.4} parent=19 // pred_fallthru
        _
      // Predicated region
      $region29: #{basic_block_forward.4} parent=19 // pred_check
        %p272 = pneg %p107
      $region30: #{basic_block_forward.4} parent=19 // pred_check_branch
        %274 = sbr.rel (%p272) target = $region32
      $region31: #{basic_block_forward.4} parent=19 // pred_region
        %s275 = sadd.s32 %s21, 2
        %p276 = scmp.lt.s32.totalorder %s20, 1
        %s277 = scalar_select %p276, %s20, 1
        %p278 = scmp.lt.s32.totalorder %s275, 9
        %s279 = scalar_select %p278, %s275, 9
        %s280 = smul.addr %s279, 20
        %s281 = smul.addr %s277, 200
        %s282 = sadd.s32 %s280, %s281
        %s283 = smul.addr %s282, 4
        %s284 = scalar_lea.vmem %s2, %s283
        %s285 = sadd.s32 %s21, 2
      $region32: #{basic_block_forward.4} parent=19 // pred_fallthru
        _
    $region20: #{basic_block_forward.4} parent=5 // pred_fallthru
      _
    %p286 = scmp.le.s32.totalorder 1, %s13
    %p287 = scmp.lt.s32.totalorder %s13, 17
    %p288 = pnand %p286, %p287
    %p289 = pneg %p288
    // Predicated region
    $region33: #{basic_block_forward.4} parent=5 // pred_check
      _
    $region34: #{basic_block_forward.4} parent=5 // pred_check_branch
      %291 = sbr.rel (%p288) target = $region36
    $region35: #{basic_block_forward.4} parent=5 // pred_region
      %s292 = ssub.s32 %s13, 1
      %p293 = scmp.lt.s32.totalorder %s22, 1
      %s294 = scalar_select %p293, %s22, 1
      %p295 = scmp.lt.s32.totalorder %s23, 9
      %s296 = scalar_select %p295, %s23, 9
      %s297 = smul.addr %s296, 20
      %s298 = smul.addr %s294, 200
      %s299 = sadd.s32 %s297, %s298
      %s300 = smul.addr %s299, 4
      %s301 = scalar_lea.vmem %s0, %s300
      %p302 = pneg %p53
      %p303 = pneg %p50
      %s304 = sadd.s32 %s23, 1
      %p305 = scmp.lt.s32.totalorder %s22, 1
      %s306 = scalar_select %p305, %s22, 1
      %p307 = scmp.lt.s32.totalorder %s304, 9
      %s308 = scalar_select %p307, %s304, 9
      %s309 = smul.addr %s308, 20
      %s310 = smul.addr %s306, 200
      %s311 = sadd.s32 %s309, %s310
      %s312 = smul.addr %s311, 4
      %s313 = scalar_lea.vmem %s1, %s312
      %p314 = pneg %p83
      %p315 = pneg %p80
      %s316 = sadd.s32 %s23, 2
      %p317 = scmp.lt.s32.totalorder %s22, 1
      %s318 = scalar_select %p317, %s22, 1
      %p319 = scmp.lt.s32.totalorder %s316, 9
      %s320 = scalar_select %p319, %s316, 9
      %s321 = smul.addr %s320, 20
      %s322 = smul.addr %s318, 200
      %s323 = sadd.s32 %s321, %s322
      %s324 = smul.addr %s323, 4
      %s325 = scalar_lea.vmem %s2, %s324
      %p326 = pneg %p113
      %p327 = pneg %p110
      %p328 = pneg %p134
      %p329 = pneg %p131
      %p330 = pneg %p164
      %p331 = pneg %p161
      %s332 = smul.u32 %s22, 8
      %s333 = sadd.s32 %s332, %s23
      %s334 = smul.u32 8, %s333
      %p335 = scmp.lt.s32.totalorder %s334, 127
      %s336 = scalar_select %p335, %s334, 127
      %s337 = smul.addr %s336, 8
      %s338 = scalar_lea.vmem %s4, %s337
      %p339 = pneg %p194
      %p340 = pneg %p191
      %s341 = smul.u32 %s22, 8
      %s342 = sadd.s32 %s341, %s23
      %p343 = scmp.lt.s32.totalorder %s342, 15
      %s344 = scalar_select %p343, %s342, 15
      %s345 = smul.addr %s344, 8
      %s346 = scalar_lea.vmem %s5, %s345
      %p347 = pneg %p224
      %p348 = pneg %p221
      %s349 = smul.u32 %s22, 8
      %s350 = sadd.s32 %s349, %s23
      %p351 = scmp.lt.s32.totalorder %s350, 15
      %s352 = scalar_select %p351, %s350, 15
      %s353 = smul.addr %s352, 8
      %s354 = scalar_lea.vmem %s6, %s353
      %p355 = scmp.lt.s32.totalorder %s22, 1
      %s356 = scalar_select %p355, %s22, 1
      %p357 = scmp.lt.s32.totalorder %s23, 9
      %s358 = scalar_select %p357, %s23, 9
      %s359 = smul.addr %s358, 20
      %s360 = smul.addr %s356, 200
      %s361 = sadd.s32 %s359, %s360
      %s362 = smul.addr %s361, 4
      %s363 = scalar_lea.vmem %s0, %s362
      %s364 = sadd.s32 %s23, 1
      %p365 = scmp.lt.s32.totalorder %s22, 1
      %s366 = scalar_select %p365, %s22, 1
      %p367 = scmp.lt.s32.totalorder %s364, 9
      %s368 = scalar_select %p367, %s364, 9
      %s369 = smul.addr %s368, 20
      %s370 = smul.addr %s366, 200
      %s371 = sadd.s32 %s369, %s370
      %s372 = smul.addr %s371, 4
      %s373 = scalar_lea.vmem %s1, %s372
      %s374 = sadd.s32 %s23, 1
      %s375 = sadd.s32 %s23, 2
      %p376 = scmp.lt.s32.totalorder %s22, 1
      %s377 = scalar_select %p376, %s22, 1
      %p378 = scmp.lt.s32.totalorder %s375, 9
      %s379 = scalar_select %p378, %s375, 9
      %s380 = smul.addr %s379, 20
      %s381 = smul.addr %s377, 200
      %s382 = sadd.s32 %s380, %s381
      %s383 = smul.addr %s382, 4
      %s384 = scalar_lea.vmem %s2, %s383
      %s385 = sadd.s32 %s23, 2
      %s386 = smul.u32 %s22, 8
      %s387 = sadd.s32 %s386, %s23
      %s388 = smul.u32 8, %s387
      %p389 = scmp.lt.s32.totalorder %s388, 127
      %s390 = scalar_select %p389, %s388, 127
      %s391 = smul.addr %s390, 8
      %s392 = scalar_lea.vmem %s4, %s391
      %s393 = smul.u32 %s22, 8
      %s394 = sadd.s32 %s393, %s23
      %s395 = smul.u32 8, %s394
      %s396 = smul.u32 %s22, 8
      %s397 = sadd.s32 %s396, %s23
      %p398 = scmp.lt.s32.totalorder %s397, 15
      %s399 = scalar_select %p398, %s397, 15
      %s400 = smul.addr %s399, 8
      %s401 = scalar_lea.vmem %s5, %s400
      %s402 = smul.u32 %s22, 8
      %s403 = sadd.s32 %s402, %s23
      %s404 = smul.u32 %s22, 8
      %s405 = sadd.s32 %s404, %s23
      %p406 = scmp.lt.s32.totalorder %s405, 15
      %s407 = scalar_select %p406, %s405, 15
      %s408 = smul.addr %s407, 8
      %s409 = scalar_lea.vmem %s6, %s408
      %s410 = smul.u32 %s22, 8
      %s411 = sadd.s32 %s410, %s23
      %v413 = vld [vmem:[%s363] sm:$0xf]
      %v414 = vld [vmem:[%s363 + $0x8] sm:$0xf]
      %v415 = vld [vmem:[%s363 + $0x10] sm:$0xf]
      %v416 = vld [vmem:[%s363 + $0x18] sm:$0xf]
      %v417 = vld [vmem:[%s363 + $0x20] sm:$0xf]
      %v418 = vld [vmem:[%s363 + $0x28] sm:$0xf]
      %v419 = vld [vmem:[%s363 + $0x30] sm:$0xf]
      %v420 = vld [vmem:[%s363 + $0x38] sm:$0xf]
      %v421 = vld [vmem:[%s3] sm:$0xf]
      %v422 = vld [vmem:[%s3 + $0x4] sm:$0xf]
      %v423 = vld [vmem:[%s3 + $0x8] sm:$0xf]
      %v424 = vld [vmem:[%s3 + $0xc] sm:$0xf]
      %v425 = vld [vmem:[%s3 + $0x10] sm:$0xf]
      %v426 = vld [vmem:[%s3 + $0x14] sm:$0xf]
      %v427 = vld [vmem:[%s3 + $0x18] sm:$0xf]
      %v428 = vld [vmem:[%s3 + $0x1c] sm:$0xf]
      %v429 = vld [vmem:[%s3 + $0x20] sm:$0xf]
      %v430 = vld [vmem:[%s3 + $0x24] sm:$0xf]
      %v431 = vld [vmem:[%s3 + $0x28] sm:$0xf]
      %v432 = vld [vmem:[%s3 + $0x2c] sm:$0xf]
      %v433 = vld [vmem:[%s3 + $0x30] sm:$0xf]
      %v434 = vld [vmem:[%s3 + $0x34] sm:$0xf]
      %v435 = vld [vmem:[%s3 + $0x38] sm:$0xf]
      %v436 = vld [vmem:[%s3 + $0x3c] sm:$0xf]
      %v437 = vld [vmem:[%s363 + $0x4] sm:$0x1]
      %v438 = vld [vmem:[%s363 + $0xc] sm:$0x1]
      %v439 = vld [vmem:[%s363 + $0x14] sm:$0x1]
      %v440 = vld [vmem:[%s363 + $0x1c] sm:$0x1]
      %v441 = vld [vmem:[%s363 + $0x24] sm:$0x1]
      %v442 = vld [vmem:[%s363 + $0x2c] sm:$0x1]
      %v443 = vld [vmem:[%s363 + $0x34] sm:$0x1]
      %v444 = vld [vmem:[%s363 + $0x3c] sm:$0x1]
      %vm445 = vsmask.f32 3328
      %vm446 = vsmask.f32 7440
      %vm447 = vmor %vm445, %vm446
      %v449 = vshrl.u32 %v413, 16
      %v451 = vrot.slane %v449, 4
      %v452 = vshll.u32 %v413, 16
      %v454 = vrot.slane %v452, 5
      %v455 = vor.u32 %v451, %v454
      %v456 = vrot.slane %v455, 4
      %v458 = vshll.u32 %v437, 16
      %v460 = vrot.slane %v458, 5
      %v461 = vsel %vm447, %v456, %v460
      %v463 = vshrl.u32 %v414, 16
      %v465 = vrot.slane %v463, 4
      %v466 = vshll.u32 %v414, 16
      %v468 = vrot.slane %v466, 5
      %v469 = vor.u32 %v465, %v468
      %v470 = vrot.slane %v469, 4
      %v472 = vshll.u32 %v438, 16
      %v474 = vrot.slane %v472, 5
      %v475 = vsel %vm447, %v470, %v474
      %v477 = vshrl.u32 %v415, 16
      %v479 = vrot.slane %v477, 4
      %v480 = vshll.u32 %v415, 16
      %v482 = vrot.slane %v480, 5
      %v483 = vor.u32 %v479, %v482
      %v484 = vrot.slane %v483, 4
      %v486 = vshll.u32 %v439, 16
      %v488 = vrot.slane %v486, 5
      %v489 = vsel %vm447, %v484, %v488
      %v491 = vshrl.u32 %v416, 16
      %v493 = vrot.slane %v491, 4
      %v494 = vshll.u32 %v416, 16
      %v496 = vrot.slane %v494, 5
      %v497 = vor.u32 %v493, %v496
      %v498 = vrot.slane %v497, 4
      %v500 = vshll.u32 %v440, 16
      %v502 = vrot.slane %v500, 5
      %v503 = vsel %vm447, %v498, %v502
      %v505 = vshrl.u32 %v417, 16
      %v507 = vrot.slane %v505, 4
      %v508 = vshll.u32 %v417, 16
      %v510 = vrot.slane %v508, 5
      %v511 = vor.u32 %v507, %v510
      %v512 = vrot.slane %v511, 4
      %v514 = vshll.u32 %v441, 16
      %v516 = vrot.slane %v514, 5
      %v517 = vsel %vm447, %v512, %v516
      %v519 = vshrl.u32 %v418, 16
      %v521 = vrot.slane %v519, 4
      %v522 = vshll.u32 %v418, 16
      %v524 = vrot.slane %v522, 5
      %v525 = vor.u32 %v521, %v524
      %v526 = vrot.slane %v525, 4
      %v528 = vshll.u32 %v442, 16
      %v530 = vrot.slane %v528, 5
      %v531 = vsel %vm447, %v526, %v530
      %v533 = vshrl.u32 %v419, 16
      %v535 = vrot.slane %v533, 4
      %v536 = vshll.u32 %v419, 16
      %v538 = vrot.slane %v536, 5
      %v539 = vor.u32 %v535, %v538
      %v540 = vrot.slane %v539, 4
      %v542 = vshll.u32 %v443, 16
      %v544 = vrot.slane %v542, 5
      %v545 = vsel %vm447, %v540, %v544
      %v547 = vshrl.u32 %v420, 16
      %v549 = vrot.slane %v547, 4
      %v550 = vshll.u32 %v420, 16
      %v552 = vrot.slane %v550, 5
      %v553 = vor.u32 %v549, %v552
      %v554 = vrot.slane %v553, 4
      %v556 = vshll.u32 %v444, 16
      %v558 = vrot.slane %v556, 5
      %v559 = vsel %vm447, %v554, %v558
      %v560 = vld [vmem:[%s3 + $0x40] sm:$0xf]
      %v561 = vld [vmem:[%s3 + $0x44] sm:$0xf]
      %v562 = vld [vmem:[%s3 + $0x48] sm:$0xf]
      %v563 = vld [vmem:[%s3 + $0x4c] sm:$0xf]
      %v564 = vld [vmem:[%s3 + $0x50] sm:$0xf]
      %v565 = vld [vmem:[%s3 + $0x54] sm:$0xf]
      %v566 = vld [vmem:[%s3 + $0x58] sm:$0xf]
      %v567 = vld [vmem:[%s3 + $0x5c] sm:$0xf]
      %v568 = vld [vmem:[%s3 + $0x60] sm:$0xf]
      %v569 = vld [vmem:[%s3 + $0x64] sm:$0xf]
      %v570 = vld [vmem:[%s3 + $0x68] sm:$0xf]
      %v571 = vld [vmem:[%s3 + $0x6c] sm:$0xf]
      %v572 = vld [vmem:[%s3 + $0x70] sm:$0xf]
      %v573 = vld [vmem:[%s3 + $0x74] sm:$0xf]
      %v574 = vld [vmem:[%s3 + $0x78] sm:$0xf]
      %v575 = vld [vmem:[%s3 + $0x7c] sm:$0xf]
      %v576 = vunpack.c.l.b16 %v461
      %v577 = vunpack.c.l.b16 %v475
      %v578 = vunpack.c.l.b16 %v489
      %v579 = vunpack.c.l.b16 %v503
      %v580 = vunpack.c.l.b16 %v517
      %v581 = vunpack.c.l.b16 %v531
      %v582 = vunpack.c.l.b16 %v545
      %v583 = vunpack.c.l.b16 %v559
      %v584 = vpack.c.b16 %v577, %v576
      %v585 = vpack.c.b16 %v579, %v578
      %v586 = vpack.c.b16 %v581, %v580
      %v587 = vpack.c.b16 %v583, %v582
      %v608 = vunpack.c.l.b16 %v560
      %v609 = vunpack.c.l.b16 %v561
      %v610 = vunpack.c.l.b16 %v562
      %v611 = vunpack.c.l.b16 %v563
      %v612 = vunpack.c.l.b16 %v564
      %v613 = vunpack.c.l.b16 %v565
      %v614 = vunpack.c.l.b16 %v566
      %v615 = vunpack.c.l.b16 %v567
      %v616 = vunpack.c.l.b16 %v568
      %v617 = vunpack.c.l.b16 %v569
      %v618 = vunpack.c.l.b16 %v570
      %v619 = vunpack.c.l.b16 %v571
      %v620 = vunpack.c.l.b16 %v572
      %v621 = vunpack.c.l.b16 %v573
      %v622 = vunpack.c.l.b16 %v574
      %v623 = vunpack.c.l.b16 %v575
      %v624 = vpack.c.b16 %v609, %v608
      %v625 = vpack.c.b16 %v611, %v610
      %v626 = vpack.c.b16 %v613, %v612
      %v627 = vpack.c.b16 %v615, %v614
      %v628 = vpack.c.b16 %v617, %v616
      %v629 = vpack.c.b16 %v619, %v618
      %v630 = vpack.c.b16 %v621, %v620
      %v631 = vpack.c.b16 %v623, %v622
      %640 = vmatprep.subr.bf16.mxu0 0
      %641 = vmatpush1.bf16.msra.mxu0 %v624
      %642 = vmatprep.subr.bf16.mxu0 0
      %643 = vmatpush1.bf16.msra.mxu0 %v625
      %644 = vmatprep.subr.bf16.mxu0 0
      %645 = vmatpush1.bf16.msra.mxu0 %v626
      %646 = vmatprep.subr.bf16.mxu0 0
      %647 = vmatpush1.bf16.msra.mxu0 %v627
      %648 = vmatprep.subr.bf16.mxu0 0
      %649 = vmatpush1.bf16.msra.mxu0 %v628
      %650 = vmatprep.subr.bf16.mxu0 0
      %651 = vmatpush1.bf16.msra.mxu0 %v629
      %652 = vmatprep.subr.bf16.mxu0 0
      %653 = vmatpush1.bf16.msra.mxu0 %v630
      %654 = vmatprep.subr.bf16.mxu0 0
      %655 = vmatpush1.bf16.msra.mxu0 %v631
      %656 = vmatprep.subr.bf16.mxu0 0
      %657 = vmatpush1.bf16.msra.mxu0 0
      %658 = vmatprep.subr.bf16.mxu0 0
      %659 = vmatpush1.bf16.msra.mxu0 0
      %660 = vmatprep.subr.bf16.mxu0 0
      %661 = vmatpush1.bf16.msra.mxu0 0
      %662 = vmatprep.subr.bf16.mxu0 0
      %663 = vmatpush1.bf16.msra.mxu0 0
      %664 = vmatprep.subr.bf16.mxu0 0
      %665 = vmatpush1.bf16.msra.mxu0 0
      %666 = vmatprep.subr.bf16.mxu0 0
      %667 = vmatpush1.bf16.msra.mxu0 0
      %668 = vmatprep.subr.bf16.mxu0 0
      %669 = vmatpush1.bf16.msra.mxu0 0
      %670 = vmatprep.subr.bf16.mxu0 0
      %671 = vmatpush1.bf16.msra.mxu0 0
      %672 = vmatprep.mubr.bf16.mxu0 0
      %673 = vmatmul.mubr.bf16.gmra.mrb[0].mxu0 %v584
      %v674 = vpop.f32.mrb[0].mxu0
      %v675 = vadd.f32 0.0, %v674
      %v676 = vpop.f32.mrb[0].mxu0
      %v677 = vpop.f32.mrb[0].mxu0
      %v678 = vadd.f32 0.0, %v677
      %v679 = vpop.f32.mrb[0].mxu0
      %680 = vmatprep.mubr.bf16.mxu0 0
      %681 = vmatmul.mubr.bf16.gmra.mrb[0].mxu0 %v585
      %v682 = vpop.f32.mrb[0].mxu0
      %v683 = vadd.f32 0.0, %v682
      %v684 = vpop.f32.mrb[0].mxu0
      %v685 = vpop.f32.mrb[0].mxu0
      %v686 = vadd.f32 0.0, %v685
      %v687 = vpop.f32.mrb[0].mxu0
      %688 = vmatprep.mubr.bf16.mxu0 0
      %689 = vmatmul.mubr.bf16.gmra.mrb[0].mxu0 %v586
      %v690 = vpop.f32.mrb[0].mxu0
      %v691 = vadd.f32 0.0, %v690
      %v692 = vpop.f32.mrb[0].mxu0
      %v693 = vpop.f32.mrb[0].mxu0
      %v694 = vadd.f32 0.0, %v693
      %v695 = vpop.f32.mrb[0].mxu0
      %696 = vmatprep.mubr.bf16.mxu0 0
      %697 = vmatmul.mubr.bf16.gmra.mrb[0].mxu0 %v587
      %v698 = vpop.f32.mrb[0].mxu0
      %v699 = vadd.f32 0.0, %v698
      %v700 = vpop.f32.mrb[0].mxu0
      %v701 = vpop.f32.mrb[0].mxu0
      %v702 = vadd.f32 0.0, %v701
      %v703 = vpop.f32.mrb[0].mxu0
      %704 = vdwg.mxu0
      %v713 = vunpack.c.l.b16 %v413
      %v714 = vunpack.c.l.b16 %v414
      %v715 = vunpack.c.l.b16 %v415
      %v716 = vunpack.c.l.b16 %v416
      %v717 = vunpack.c.l.b16 %v417
      %v718 = vunpack.c.l.b16 %v418
      %v719 = vunpack.c.l.b16 %v419
      %v720 = vunpack.c.l.b16 %v420
      %v721 = vpack.c.b16 %v714, %v713
      %v722 = vpack.c.b16 %v716, %v715
      %v723 = vpack.c.b16 %v718, %v717
      %v724 = vpack.c.b16 %v720, %v719
      %v745 = vunpack.c.l.b16 %v421
      %v746 = vunpack.c.l.b16 %v422
      %v747 = vunpack.c.l.b16 %v423
      %v748 = vunpack.c.l.b16 %v424
      %v749 = vunpack.c.l.b16 %v425
      %v750 = vunpack.c.l.b16 %v426
      %v751 = vunpack.c.l.b16 %v427
      %v752 = vunpack.c.l.b16 %v428
      %v753 = vunpack.c.l.b16 %v429
      %v754 = vunpack.c.l.b16 %v430
      %v755 = vunpack.c.l.b16 %v431
      %v756 = vunpack.c.l.b16 %v432
      %v757 = vunpack.c.l.b16 %v433
      %v758 = vunpack.c.l.b16 %v434
      %v759 = vunpack.c.l.b16 %v435
      %v760 = vunpack.c.l.b16 %v436
      %v761 = vpack.c.b16 %v746, %v745
      %v762 = vpack.c.b16 %v748, %v747
      %v763 = vpack.c.b16 %v750, %v749
      %v764 = vpack.c.b16 %v752, %v751
      %v765 = vpack.c.b16 %v754, %v753
      %v766 = vpack.c.b16 %v756, %v755
      %v767 = vpack.c.b16 %v758, %v757
      %v768 = vpack.c.b16 %v760, %v759
      %777 = vmatprep.subr.bf16.mxu0 0
      %778 = vmatpush1.bf16.msra.mxu0 %v761
      %779 = vmatprep.subr.bf16.mxu0 0
      %780 = vmatpush1.bf16.msra.mxu0 %v762
      %781 = vmatprep.subr.bf16.mxu0 0
      %782 = vmatpush1.bf16.msra.mxu0 %v763
      %783 = vmatprep.subr.bf16.mxu0 0
      %784 = vmatpush1.bf16.msra.mxu0 %v764
      %785 = vmatprep.subr.bf16.mxu0 0
      %786 = vmatpush1.bf16.msra.mxu0 %v765
      %787 = vmatprep.subr.bf16.mxu0 0
      %788 = vmatpush1.bf16.msra.mxu0 %v766
      %789 = vmatprep.subr.bf16.mxu0 0
      %790 = vmatpush1.bf16.msra.mxu0 %v767
      %791 = vmatprep.subr.bf16.mxu0 0
      %792 = vmatpush1.bf16.msra.mxu0 %v768
      %793 = vmatprep.subr.bf16.mxu0 0
      %794 = vmatpush1.bf16.msra.mxu0 0
      %795 = vmatprep.subr.bf16.mxu0 0
      %796 = vmatpush1.bf16.msra.mxu0 0
      %797 = vmatprep.subr.bf16.mxu0 0
      %798 = vmatpush1.bf16.msra.mxu0 0
      %799 = vmatprep.subr.bf16.mxu0 0
      %800 = vmatpush1.bf16.msra.mxu0 0
      %801 = vmatprep.subr.bf16.mxu0 0
      %802 = vmatpush1.bf16.msra.mxu0 0
      %803 = vmatprep.subr.bf16.mxu0 0
      %804 = vmatpush1.bf16.msra.mxu0 0
      %805 = vmatprep.subr.bf16.mxu0 0
      %806 = vmatpush1.bf16.msra.mxu0 0
      %807 = vmatprep.subr.bf16.mxu0 0
      %808 = vmatpush1.bf16.msra.mxu0 0
      %809 = vmatprep.mubr.bf16.mxu0 0
      %810 = vmatmul.mubr.bf16.gmra.mrb[0].mxu0 %v721
      %v811 = vpop.f32.mrb[0].mxu0
      %v812 = vadd.f32 %v675, %v811
      %v813 = vpop.f32.mrb[0].mxu0
      %v814 = vpop.f32.mrb[0].mxu0
      %v815 = vadd.f32 %v678, %v814
      %v816 = vpop.f32.mrb[0].mxu0
      %817 = vmatprep.mubr.bf16.mxu0 0
      %818 = vmatmul.mubr.bf16.gmra.mrb[0].mxu0 %v722
      %v819 = vpop.f32.mrb[0].mxu0
      %v820 = vadd.f32 %v683, %v819
      %v821 = vpop.f32.mrb[0].mxu0
      %v822 = vpop.f32.mrb[0].mxu0
      %v823 = vadd.f32 %v686, %v822
      %v824 = vpop.f32.mrb[0].mxu0
      %825 = vmatprep.mubr.bf16.mxu0 0
      %826 = vmatmul.mubr.bf16.gmra.mrb[0].mxu0 %v723
      %v827 = vpop.f32.mrb[0].mxu0
      %v828 = vadd.f32 %v691, %v827
      %v829 = vpop.f32.mrb[0].mxu0
      %v830 = vpop.f32.mrb[0].mxu0
      %v831 = vadd.f32 %v694, %v830
      %v832 = vpop.f32.mrb[0].mxu0
      %833 = vmatprep.mubr.bf16.mxu0 0
      %834 = vmatmul.mubr.bf16.gmra.mrb[0].mxu0 %v724
      %v835 = vpop.f32.mrb[0].mxu0
      %v836 = vadd.f32 %v699, %v835
      %v837 = vpop.f32.mrb[0].mxu0
      %v838 = vpop.f32.mrb[0].mxu0
      %v839 = vadd.f32 %v702, %v838
      %v840 = vpop.f32.mrb[0].mxu0
      %841 = vdwg.mxu0
      %v842 = vld [vmem:[%s363] sm:$0xe]
      %v843 = vld [vmem:[%s363 + $0x8] sm:$0xe]
      %v844 = vld [vmem:[%s363 + $0x10] sm:$0xe]
      %v845 = vld [vmem:[%s363 + $0x18] sm:$0xe]
      %v846 = vld [vmem:[%s363 + $0x20] sm:$0xe]
      %v847 = vld [vmem:[%s363 + $0x28] sm:$0xe]
      %v848 = vld [vmem:[%s363 + $0x30] sm:$0xe]
      %v849 = vld [vmem:[%s363 + $0x38] sm:$0xe]
      %vm866 = vcmask 1042432
      %vm867 = vcmask 1046532
      %vm868 = vmor %vm866, %vm867
      %v869 = vrot.slane %v842, 5
      %v870 = vrot.slane %v869, 4
      %v871 = vrot.slane %v437, 5
      %v872 = vsel %vm868, %v870, %v871
      %v873 = vrot.slane %v843, 5
      %v874 = vrot.slane %v873, 4
      %v875 = vrot.slane %v438, 5
      %v876 = vsel %vm868, %v874, %v875
      %v877 = vrot.slane %v844, 5
      %v878 = vrot.slane %v877, 4
      %v879 = vrot.slane %v439, 5
      %v880 = vsel %vm868, %v878, %v879
      %v881 = vrot.slane %v845, 5
      %v882 = vrot.slane %v881, 4
      %v883 = vrot.slane %v440, 5
      %v884 = vsel %vm868, %v882, %v883
      %v885 = vrot.slane %v846, 5
      %v886 = vrot.slane %v885, 4
      %v887 = vrot.slane %v441, 5
      %v888 = vsel %vm868, %v886, %v887
      %v889 = vrot.slane %v847, 5
      %v890 = vrot.slane %v889, 4
      %v891 = vrot.slane %v442, 5
      %v892 = vsel %vm868, %v890, %v891
      %v893 = vrot.slane %v848, 5
      %v894 = vrot.slane %v893, 4
      %v895 = vrot.slane %v443, 5
      %v896 = vsel %vm868, %v894, %v895
      %v897 = vrot.slane %v849, 5
      %v898 = vrot.slane %v897, 4
      %v899 = vrot.slane %v444, 5
      %v900 = vsel %vm868, %v898, %v899
      %v901 = vld [vmem:[%s3 + $0x80] sm:$0xf]
      %v902 = vld [vmem:[%s3 + $0x84] sm:$0xf]
      %v903 = vld [vmem:[%s3 + $0x88] sm:$0xf]
      %v904 = vld [vmem:[%s3 + $0x8c] sm:$0xf]
      %v905 = vld [vmem:[%s3 + $0x90] sm:$0xf]
      %v906 = vld [vmem:[%s3 + $0x94] sm:$0xf]
      %v907 = vld [vmem:[%s3 + $0x98] sm:$0xf]
      %v908 = vld [vmem:[%s3 + $0x9c] sm:$0xf]
      %v909 = vld [vmem:[%s3 + $0xa0] sm:$0xf]
      %v910 = vld [vmem:[%s3 + $0xa4] sm:$0xf]
      %v911 = vld [vmem:[%s3 + $0xa8] sm:$0xf]
      %v912 = vld [vmem:[%s3 + $0xac] sm:$0xf]
      %v913 = vld [vmem:[%s3 + $0xb0] sm:$0xf]
      %v914 = vld [vmem:[%s3 + $0xb4] sm:$0xf]
      %v915 = vld [vmem:[%s3 + $0xb8] sm:$0xf]
      %v916 = vld [vmem:[%s3 + $0xbc] sm:$0xf]
      %v917 = vunpack.c.l.b16 %v872
      %v918 = vunpack.c.l.b16 %v876
      %v919 = vunpack.c.l.b16 %v880
      %v920 = vunpack.c.l.b16 %v884
      %v921 = vunpack.c.l.b16 %v888
      %v922 = vunpack.c.l.b16 %v892
      %v923 = vunpack.c.l.b16 %v896
      %v924 = vunpack.c.l.b16 %v900
      %v925 = vpack.c.b16 %v918, %v917
      %v926 = vpack.c.b16 %v920, %v919
      %v927 = vpack.c.b16 %v922, %v921
      %v928 = vpack.c.b16 %v924, %v923
      %v949 = vunpack.c.l.b16 %v901
      %v950 = vunpack.c.l.b16 %v902
      %v951 = vunpack.c.l.b16 %v903
      %v952 = vunpack.c.l.b16 %v904
      %v953 = vunpack.c.l.b16 %v905
      %v954 = vunpack.c.l.b16 %v906
      %v955 = vunpack.c.l.b16 %v907
      %v956 = vunpack.c.l.b16 %v908
      %v957 = vunpack.c.l.b16 %v909
      %v958 = vunpack.c.l.b16 %v910
      %v959 = vunpack.c.l.b16 %v911
      %v960 = vunpack.c.l.b16 %v912
      %v961 = vunpack.c.l.b16 %v913
      %v962 = vunpack.c.l.b16 %v914
      %v963 = vunpack.c.l.b16 %v915
      %v964 = vunpack.c.l.b16 %v916
      %v965 = vpack.c.b16 %v950, %v949
      %v966 = vpack.c.b16 %v952, %v951
      %v967 = vpack.c.b16 %v954, %v953
      %v968 = vpack.c.b16 %v956, %v955
      %v969 = vpack.c.b16 %v958, %v957
      %v970 = vpack.c.b16 %v960, %v959
      %v971 = vpack.c.b16 %v962, %v961
      %v972 = vpack.c.b16 %v964, %v963
      %981 = vmatprep.subr.bf16.mxu0 0
      %982 = vmatpush1.bf16.msra.mxu0 %v965
      %983 = vmatprep.subr.bf16.mxu0 0
      %984 = vmatpush1.bf16.msra.mxu0 %v966
      %985 = vmatprep.subr.bf16.mxu0 0
      %986 = vmatpush1.bf16.msra.mxu0 %v967
      %987 = vmatprep.subr.bf16.mxu0 0
      %988 = vmatpush1.bf16.msra.mxu0 %v968
      %989 = vmatprep.subr.bf16.mxu0 0
      %990 = vmatpush1.bf16.msra.mxu0 %v969
      %991 = vmatprep.subr.bf16.mxu0 0
      %992 = vmatpush1.bf16.msra.mxu0 %v970
      %993 = vmatprep.subr.bf16.mxu0 0
      %994 = vmatpush1.bf16.msra.mxu0 %v971
      %995 = vmatprep.subr.bf16.mxu0 0
      %996 = vmatpush1.bf16.msra.mxu0 %v972
      %997 = vmatprep.subr.bf16.mxu0 0
      %998 = vmatpush1.bf16.msra.mxu0 0
      %999 = vmatprep.subr.bf16.mxu0 0
      %1000 = vmatpush1.bf16.msra.mxu0 0
      %1001 = vmatprep.subr.bf16.mxu0 0
      %1002 = vmatpush1.bf16.msra.mxu0 0
      %1003 = vmatprep.subr.bf16.mxu0 0
      %1004 = vmatpush1.bf16.msra.mxu0 0
      %1005 = vmatprep.subr.bf16.mxu0 0
      %1006 = vmatpush1.bf16.msra.mxu0 0
      %1007 = vmatprep.subr.bf16.mxu0 0
      %1008 = vmatpush1.bf16.msra.mxu0 0
      %1009 = vmatprep.subr.bf16.mxu0 0
      %1010 = vmatpush1.bf16.msra.mxu0 0
      %1011 = vmatprep.subr.bf16.mxu0 0
      %1012 = vmatpush1.bf16.msra.mxu0 0
      %1013 = vmatprep.mubr.bf16.mxu0 0
      %1014 = vmatmul.mubr.bf16.gmra.mrb[0].mxu0 %v925
      %v1015 = vpop.f32.mrb[0].mxu0
      %v1016 = vadd.f32 0.0, %v1015
      %v1017 = vpop.f32.mrb[0].mxu0
      %v1018 = vpop.f32.mrb[0].mxu0
      %v1019 = vadd.f32 0.0, %v1018
      %v1020 = vpop.f32.mrb[0].mxu0
      %1021 = vmatprep.mubr.bf16.mxu0 0
      %1022 = vmatmul.mubr.bf16.gmra.mrb[0].mxu0 %v926
      %v1023 = vpop.f32.mrb[0].mxu0
      %v1024 = vadd.f32 0.0, %v1023
      %v1025 = vpop.f32.mrb[0].mxu0
      %v1026 = vpop.f32.mrb[0].mxu0
      %v1027 = vadd.f32 0.0, %v1026
      %v1028 = vpop.f32.mrb[0].mxu0
      %1029 = vmatprep.mubr.bf16.mxu0 0
      %1030 = vmatmul.mubr.bf16.gmra.mrb[0].mxu0 %v927
      %v1031 = vpop.f32.mrb[0].mxu0
      %v1032 = vadd.f32 0.0, %v1031
      %v1033 = vpop.f32.mrb[0].mxu0
      %v1034 = vpop.f32.mrb[0].mxu0
      %v1035 = vadd.f32 0.0, %v1034
      %v1036 = vpop.f32.mrb[0].mxu0
      %1037 = vmatprep.mubr.bf16.mxu0 0
      %1038 = vmatmul.mubr.bf16.gmra.mrb[0].mxu0 %v928
      %v1039 = vpop.f32.mrb[0].mxu0
      %v1040 = vadd.f32 0.0, %v1039
      %v1041 = vpop.f32.mrb[0].mxu0
      %v1042 = vpop.f32.mrb[0].mxu0
      %v1043 = vadd.f32 0.0, %v1042
      %v1044 = vpop.f32.mrb[0].mxu0
      %1045 = vdwg.mxu0
      %v1046 = vadd.f32 %v812, %v1016
      %v1047 = vadd.f32 %v815, %v1019
      %v1048 = vadd.f32 %v820, %v1024
      %v1049 = vadd.f32 %v823, %v1027
      %v1050 = vadd.f32 %v828, %v1032
      %v1051 = vadd.f32 %v831, %v1035
      %v1052 = vadd.f32 %v836, %v1040
      %v1053 = vadd.f32 %v839, %v1043
      %s1054 = scalar_lea.vmem %s363, 8
      %v1055 = vld [vmem:[%s1054] sm:$0xf]
      %v1056 = vld [vmem:[%s1054 + $0x8] sm:$0xf]
      %v1057 = vld [vmem:[%s1054 + $0x10] sm:$0xf]
      %v1058 = vld [vmem:[%s1054 + $0x18] sm:$0xf]
      %v1059 = vld [vmem:[%s1054 + $0x20] sm:$0xf]
      %v1060 = vld [vmem:[%s1054 + $0x28] sm:$0xf]
      %v1061 = vld [vmem:[%s1054 + $0x30] sm:$0xf]
      %v1062 = vld [vmem:[%s1054 + $0x38] sm:$0xf]
      %v1063 = vld [vmem:[%s3 + $0xc0] sm:$0xf]
      %v1064 = vld [vmem:[%s3 + $0xc4] sm:$0xf]
      %v1065 = vld [vmem:[%s3 + $0xc8] sm:$0xf]
      %v1066 = vld [vmem:[%s3 + $0xcc] sm:$0xf]
      %v1067 = vld [vmem:[%s3 + $0xd0] sm:$0xf]
      %v1068 = vld [vmem:[%s3 + $0xd4] sm:$0xf]
      %v1069 = vld [vmem:[%s3 + $0xd8] sm:$0xf]
      %v1070 = vld [vmem:[%s3 + $0xdc] sm:$0xf]
      %v1071 = vld [vmem:[%s3 + $0xe0] sm:$0xf]
      %v1072 = vld [vmem:[%s3 + $0xe4] sm:$0xf]
      %v1073 = vld [vmem:[%s3 + $0xe8] sm:$0xf]
      %v1074 = vld [vmem:[%s3 + $0xec] sm:$0xf]
      %v1075 = vld [vmem:[%s3 + $0xf0] sm:$0xf]
      %v1076 = vld [vmem:[%s3 + $0xf4] sm:$0xf]
      %v1077 = vld [vmem:[%s3 + $0xf8] sm:$0xf]
      %v1078 = vld [vmem:[%s3 + $0xfc] sm:$0xf]
      %v1087 = vunpack.c.l.b16 %v1055
      %v1088 = vunpack.c.l.b16 %v1056
      %v1089 = vunpack.c.l.b16 %v1057
      %v1090 = vunpack.c.l.b16 %v1058
      %v1091 = vunpack.c.l.b16 %v1059
      %v1092 = vunpack.c.l.b16 %v1060
      %v1093 = vunpack.c.l.b16 %v1061
      %v1094 = vunpack.c.l.b16 %v1062
      %v1095 = vpack.c.b16 %v1088, %v1087
      %v1096 = vpack.c.b16 %v1090, %v1089
      %v1097 = vpack.c.b16 %v1092, %v1091
      %v1098 = vpack.c.b16 %v1094, %v1093
      %v1119 = vunpack.c.l.b16 %v1063
      %v1120 = vunpack.c.l.b16 %v1064
      %v1121 = vunpack.c.l.b16 %v1065
      %v1122 = vunpack.c.l.b16 %v1066
      %v1123 = vunpack.c.l.b16 %v1067
      %v1124 = vunpack.c.l.b16 %v1068
      %v1125 = vunpack.c.l.b16 %v1069
      %v1126 = vunpack.c.l.b16 %v1070
      %v1127 = vunpack.c.l.b16 %v1071
      %v1128 = vunpack.c.l.b16 %v1072
      %v1129 = vunpack.c.l.b16 %v1073
      %v1130 = vunpack.c.l.b16 %v1074
      %v1131 = vunpack.c.l.b16 %v1075
      %v1132 = vunpack.c.l.b16 %v1076
      %v1133 = vunpack.c.l.b16 %v1077
      %v1134 = vunpack.c.l.b16 %v1078
      %v1135 = vpack.c.b16 %v1120, %v1119
      %v1136 = vpack.c.b16 %v1122, %v1121
      %v1137 = vpack.c.b16 %v1124, %v1123
      %v1138 = vpack.c.b16 %v1126, %v1125
      %v1139 = vpack.c.b16 %v1128, %v1127
      %v1140 = vpack.c.b16 %v1130, %v1129
      %v1141 = vpack.c.b16 %v1132, %v1131
      %v1142 = vpack.c.b16 %v1134, %v1133
      %1151 = vmatprep.subr.bf16.mxu0 0
      %1152 = vmatpush1.bf16.msra.mxu0 %v1135
      %1153 = vmatprep.subr.bf16.mxu0 0
      %1154 = vmatpush1.bf16.msra.mxu0 %v1136
      %1155 = vmatprep.subr.bf16.mxu0 0
      %1156 = vmatpush1.bf16.msra.mxu0 %v1137
      %1157 = vmatprep.subr.bf16.mxu0 0
      %1158 = vmatpush1.bf16.msra.mxu0 %v1138
      %1159 = vmatprep.subr.bf16.mxu0 0
      %1160 = vmatpush1.bf16.msra.mxu0 %v1139
      %1161 = vmatprep.subr.bf16.mxu0 0
      %1162 = vmatpush1.bf16.msra.mxu0 %v1140
      %1163 = vmatprep.subr.bf16.mxu0 0
      %1164 = vmatpush1.bf16.msra.mxu0 %v1141
      %1165 = vmatprep.subr.bf16.mxu0 0
      %1166 = vmatpush1.bf16.msra.mxu0 %v1142
      %1167 = vmatprep.subr.bf16.mxu0 0
      %1168 = vmatpush1.bf16.msra.mxu0 0
      %1169 = vmatprep.subr.bf16.mxu0 0
      %1170 = vmatpush1.bf16.msra.mxu0 0
      %1171 = vmatprep.subr.bf16.mxu0 0
      %1172 = vmatpush1.bf16.msra.mxu0 0
      %1173 = vmatprep.subr.bf16.mxu0 0
      %1174 = vmatpush1.bf16.msra.mxu0 0
      %1175 = vmatprep.subr.bf16.mxu0 0
      %1176 = vmatpush1.bf16.msra.mxu0 0
      %1177 = vmatprep.subr.bf16.mxu0 0
      %1178 = vmatpush1.bf16.msra.mxu0 0
      %1179 = vmatprep.subr.bf16.mxu0 0
      %1180 = vmatpush1.bf16.msra.mxu0 0
      %1181 = vmatprep.subr.bf16.mxu0 0
      %1182 = vmatpush1.bf16.msra.mxu0 0
      %1183 = vmatprep.mubr.bf16.mxu0 0
      %1184 = vmatmul.mubr.bf16.gmra.mrb[0].mxu0 %v1095
      %v1185 = vpop.f32.mrb[0].mxu0
      %v1186 = vadd.f32 0.0, %v1185
      %v1187 = vpop.f32.mrb[0].mxu0
      %v1188 = vpop.f32.mrb[0].mxu0
      %v1189 = vadd.f32 0.0, %v1188
      %v1190 = vpop.f32.mrb[0].mxu0
      %1191 = vmatprep.mubr.bf16.mxu0 0
      %1192 = vmatmul.mubr.bf16.gmra.mrb[0].mxu0 %v1096
      %v1193 = vpop.f32.mrb[0].mxu0
      %v1194 = vadd.f32 0.0, %v1193
      %v1195 = vpop.f32.mrb[0].mxu0
      %v1196 = vpop.f32.mrb[0].mxu0
      %v1197 = vadd.f32 0.0, %v1196
      %v1198 = vpop.f32.mrb[0].mxu0
      %1199 = vmatprep.mubr.bf16.mxu0 0
      %1200 = vmatmul.mubr.bf16.gmra.mrb[0].mxu0 %v1097
      %v1201 = vpop.f32.mrb[0].mxu0
      %v1202 = vadd.f32 0.0, %v1201
      %v1203 = vpop.f32.mrb[0].mxu0
      %v1204 = vpop.f32.mrb[0].mxu0
      %v1205 = vadd.f32 0.0, %v1204
      %v1206 = vpop.f32.mrb[0].mxu0
      %1207 = vmatprep.mubr.bf16.mxu0 0
      %1208 = vmatmul.mubr.bf16.gmra.mrb[0].mxu0 %v1098
      %v1209 = vpop.f32.mrb[0].mxu0
      %v1210 = vadd.f32 0.0, %v1209
      %v1211 = vpop.f32.mrb[0].mxu0
      %v1212 = vpop.f32.mrb[0].mxu0
      %v1213 = vadd.f32 0.0, %v1212
      %v1214 = vpop.f32.mrb[0].mxu0
      %1215 = vdwg.mxu0
      %v1216 = vadd.f32 %v1046, %v1186
      %v1217 = vadd.f32 %v1047, %v1189
      %v1218 = vadd.f32 %v1048, %v1194
      %v1219 = vadd.f32 %v1049, %v1197
      %v1220 = vadd.f32 %v1050, %v1202
      %v1221 = vadd.f32 %v1051, %v1205
      %v1222 = vadd.f32 %v1052, %v1210
      %v1223 = vadd.f32 %v1053, %v1213
      %v1224 = vld [vmem:[%s1054] sm:$0xf]
      %v1225 = vld [vmem:[%s1054 + $0x4] sm:$0x1]
      %v1226 = vld [vmem:[%s1054 + $0x8] sm:$0xf]
      %v1227 = vld [vmem:[%s1054 + $0xc] sm:$0x1]
      %v1228 = vld [vmem:[%s1054 + $0x10] sm:$0xf]
      %v1229 = vld [vmem:[%s1054 + $0x14] sm:$0x1]
      %v1230 = vld [vmem:[%s1054 + $0x18] sm:$0xf]
      %v1231 = vld [vmem:[%s1054 + $0x1c] sm:$0x1]
      %v1232 = vld [vmem:[%s1054 + $0x20] sm:$0xf]
      %v1233 = vld [vmem:[%s1054 + $0x24] sm:$0x1]
      %v1234 = vld [vmem:[%s1054 + $0x28] sm:$0xf]
      %v1235 = vld [vmem:[%s1054 + $0x2c] sm:$0x1]
      %v1236 = vld [vmem:[%s1054 + $0x30] sm:$0xf]
      %v1237 = vld [vmem:[%s1054 + $0x34] sm:$0x1]
      %v1238 = vld [vmem:[%s1054 + $0x38] sm:$0xf]
      %v1239 = vld [vmem:[%s1054 + $0x3c] sm:$0x1]
      %v1241 = vshrl.u32 %v1224, 16
      %v1243 = vrot.slane %v1241, 4
      %v1244 = vshll.u32 %v1224, 16
      %v1246 = vrot.slane %v1244, 5
      %v1247 = vor.u32 %v1243, %v1246
      %v1248 = vrot.slane %v1247, 4
      %v1250 = vshll.u32 %v1225, 16
      %v1252 = vrot.slane %v1250, 5
      %v1253 = vsel %vm447, %v1248, %v1252
      %v1255 = vshrl.u32 %v1226, 16
      %v1257 = vrot.slane %v1255, 4
      %v1258 = vshll.u32 %v1226, 16
      %v1260 = vrot.slane %v1258, 5
      %v1261 = vor.u32 %v1257, %v1260
      %v1262 = vrot.slane %v1261, 4
      %v1264 = vshll.u32 %v1227, 16
      %v1266 = vrot.slane %v1264, 5
      %v1267 = vsel %vm447, %v1262, %v1266
      %v1269 = vshrl.u32 %v1228, 16
      %v1271 = vrot.slane %v1269, 4
      %v1272 = vshll.u32 %v1228, 16
      %v1274 = vrot.slane %v1272, 5
      %v1275 = vor.u32 %v1271, %v1274
      %v1276 = vrot.slane %v1275, 4
      %v1278 = vshll.u32 %v1229, 16
      %v1280 = vrot.slane %v1278, 5
      %v1281 = vsel %vm447, %v1276, %v1280
      %v1283 = vshrl.u32 %v1230, 16
      %v1285 = vrot.slane %v1283, 4
      %v1286 = vshll.u32 %v1230, 16
      %v1288 = vrot.slane %v1286, 5
      %v1289 = vor.u32 %v1285, %v1288
      %v1290 = vrot.slane %v1289, 4
      %v1292 = vshll.u32 %v1231, 16
      %v1294 = vrot.slane %v1292, 5
      %v1295 = vsel %vm447, %v1290, %v1294
      %v1297 = vshrl.u32 %v1232, 16
      %v1299 = vrot.slane %v1297, 4
      %v1300 = vshll.u32 %v1232, 16
      %v1302 = vrot.slane %v1300, 5
      %v1303 = vor.u32 %v1299, %v1302
      %v1304 = vrot.slane %v1303, 4
      %v1306 = vshll.u32 %v1233, 16
      %v1308 = vrot.slane %v1306, 5
      %v1309 = vsel %vm447, %v1304, %v1308
      %v1311 = vshrl.u32 %v1234, 16
      %v1313 = vrot.slane %v1311, 4
      %v1314 = vshll.u32 %v1234, 16
      %v1316 = vrot.slane %v1314, 5
      %v1317 = vor.u32 %v1313, %v1316
      %v1318 = vrot.slane %v1317, 4
      %v1320 = vshll.u32 %v1235, 16
      %v1322 = vrot.slane %v1320, 5
      %v1323 = vsel %vm447, %v1318, %v1322
      %v1325 = vshrl.u32 %v1236, 16
      %v1327 = vrot.slane %v1325, 4
      %v1328 = vshll.u32 %v1236, 16
      %v1330 = vrot.slane %v1328, 5
      %v1331 = vor.u32 %v1327, %v1330
      %v1332 = vrot.slane %v1331, 4
      %v1334 = vshll.u32 %v1237, 16
      %v1336 = vrot.slane %v1334, 5
      %v1337 = vsel %vm447, %v1332, %v1336
      %v1339 = vshrl.u32 %v1238, 16
      %v1341 = vrot.slane %v1339, 4
      %v1342 = vshll.u32 %v1238, 16
      %v1344 = vrot.slane %v1342, 5
      %v1345 = vor.u32 %v1341, %v1344
      %v1346 = vrot.slane %v1345, 4
      %v1348 = vshll.u32 %v1239, 16
      %v1350 = vrot.slane %v1348, 5
      %v1351 = vsel %vm447, %v1346, %v1350
      %v1352 = vld [vmem:[%s3 + $0x100] sm:$0xf]
      %v1353 = vld [vmem:[%s3 + $0x104] sm:$0xf]
      %v1354 = vld [vmem:[%s3 + $0x108] sm:$0xf]
      %v1355 = vld [vmem:[%s3 + $0x10c] sm:$0xf]
      %v1356 = vld [vmem:[%s3 + $0x110] sm:$0xf]
      %v1357 = vld [vmem:[%s3 + $0x114] sm:$0xf]
      %v1358 = vld [vmem:[%s3 + $0x118] sm:$0xf]
      %v1359 = vld [vmem:[%s3 + $0x11c] sm:$0xf]
      %v1360 = vld [vmem:[%s3 + $0x120] sm:$0xf]
      %v1361 = vld [vmem:[%s3 + $0x124] sm:$0xf]
      %v1362 = vld [vmem:[%s3 + $0x128] sm:$0xf]
      %v1363 = vld [vmem:[%s3 + $0x12c] sm:$0xf]
      %v1364 = vld [vmem:[%s3 + $0x130] sm:$0xf]
      %v1365 = vld [vmem:[%s3 + $0x134] sm:$0xf]
      %v1366 = vld [vmem:[%s3 + $0x138] sm:$0xf]
      %v1367 = vld [vmem:[%s3 + $0x13c] sm:$0xf]
      %v1368 = vunpack.c.l.b16 %v1253
      %v1369 = vunpack.c.l.b16 %v1267
      %v1370 = vunpack.c.l.b16 %v1281
      %v1371 = vunpack.c.l.b16 %v1295
      %v1372 = vunpack.c.l.b16 %v1309
      %v1373 = vunpack.c.l.b16 %v1323
      %v1374 = vunpack.c.l.b16 %v1337
      %v1375 = vunpack.c.l.b16 %v1351
      %v1376 = vpack.c.b16 %v1369, %v1368
      %v1377 = vpack.c.b16 %v1371, %v1370
      %v1378 = vpack.c.b16 %v1373, %v1372
      %v1379 = vpack.c.b16 %v1375, %v1374
      %v1400 = vunpack.c.l.b16 %v1352
      %v1401 = vunpack.c.l.b16 %v1353
      %v1402 = vunpack.c.l.b16 %v1354
      %v1403 = vunpack.c.l.b16 %v1355
      %v1404 = vunpack.c.l.b16 %v1356
      %v1405 = vunpack.c.l.b16 %v1357
      %v1406 = vunpack.c.l.b16 %v1358
      %v1407 = vunpack.c.l.b16 %v1359
      %v1408 = vunpack.c.l.b16 %v1360
      %v1409 = vunpack.c.l.b16 %v1361
      %v1410 = vunpack.c.l.b16 %v1362
      %v1411 = vunpack.c.l.b16 %v1363
      %v1412 = vunpack.c.l.b16 %v1364
      %v1413 = vunpack.c.l.b16 %v1365
      %v1414 = vunpack.c.l.b16 %v1366
      %v1415 = vunpack.c.l.b16 %v1367
      %v1416 = vpack.c.b16 %v1401, %v1400
      %v1417 = vpack.c.b16 %v1403, %v1402
      %v1418 = vpack.c.b16 %v1405, %v1404
      %v1419 = vpack.c.b16 %v1407, %v1406
      %v1420 = vpack.c.b16 %v1409, %v1408
      %v1421 = vpack.c.b16 %v1411, %v1410
      %v1422 = vpack.c.b16 %v1413, %v1412
      %v1423 = vpack.c.b16 %v1415, %v1414
      %1432 = vmatprep.subr.bf16.mxu0 0
      %1433 = vmatpush1.bf16.msra.mxu0 %v1416
      %1434 = vmatprep.subr.bf16.mxu0 0
      %1435 = vmatpush1.bf16.msra.mxu0 %v1417
      %1436 = vmatprep.subr.bf16.mxu0 0
      %1437 = vmatpush1.bf16.msra.mxu0 %v1418
      %1438 = vmatprep.subr.bf16.mxu0 0
      %1439 = vmatpush1.bf16.msra.mxu0 %v1419
      %1440 = vmatprep.subr.bf16.mxu0 0
      %1441 = vmatpush1.bf16.msra.mxu0 %v1420
      %1442 = vmatprep.subr.bf16.mxu0 0
      %1443 = vmatpush1.bf16.msra.mxu0 %v1421
      %1444 = vmatprep.subr.bf16.mxu0 0
      %1445 = vmatpush1.bf16.msra.mxu0 %v1422
      %1446 = vmatprep.subr.bf16.mxu0 0
      %1447 = vmatpush1.bf16.msra.mxu0 %v1423
      %1448 = vmatprep.subr.bf16.mxu0 0
      %1449 = vmatpush1.bf16.msra.mxu0 0
      %1450 = vmatprep.subr.bf16.mxu0 0
      %1451 = vmatpush1.bf16.msra.mxu0 0
      %1452 = vmatprep.subr.bf16.mxu0 0
      %1453 = vmatpush1.bf16.msra.mxu0 0
      %1454 = vmatprep.subr.bf16.mxu0 0
      %1455 = vmatpush1.bf16.msra.mxu0 0
      %1456 = vmatprep.subr.bf16.mxu0 0
      %1457 = vmatpush1.bf16.msra.mxu0 0
      %1458 = vmatprep.subr.bf16.mxu0 0
      %1459 = vmatpush1.bf16.msra.mxu0 0
      %1460 = vmatprep.subr.bf16.mxu0 0
      %1461 = vmatpush1.bf16.msra.mxu0 0
      %1462 = vmatprep.subr.bf16.mxu0 0
      %1463 = vmatpush1.bf16.msra.mxu0 0
      %1464 = vmatprep.mubr.bf16.mxu0 0
      %1465 = vmatmul.mubr.bf16.gmra.mrb[0].mxu0 %v1376
      %v1466 = vpop.f32.mrb[0].mxu0
      %v1467 = vadd.f32 0.0, %v1466
      %v1468 = vpop.f32.mrb[0].mxu0
      %v1469 = vpop.f32.mrb[0].mxu0
      %v1470 = vadd.f32 0.0, %v1469
      %v1471 = vpop.f32.mrb[0].mxu0
      %1472 = vmatprep.mubr.bf16.mxu0 0
      %1473 = vmatmul.mubr.bf16.gmra.mrb[0].mxu0 %v1377
      %v1474 = vpop.f32.mrb[0].mxu0
      %v1475 = vadd.f32 0.0, %v1474
      %v1476 = vpop.f32.mrb[0].mxu0
      %v1477 = vpop.f32.mrb[0].mxu0
      %v1478 = vadd.f32 0.0, %v1477
      %v1479 = vpop.f32.mrb[0].mxu0
      %1480 = vmatprep.mubr.bf16.mxu0 0
      %1481 = vmatmul.mubr.bf16.gmra.mrb[0].mxu0 %v1378
      %v1482 = vpop.f32.mrb[0].mxu0
      %v1483 = vadd.f32 0.0, %v1482
      %v1484 = vpop.f32.mrb[0].mxu0
      %v1485 = vpop.f32.mrb[0].mxu0
      %v1486 = vadd.f32 0.0, %v1485
      %v1487 = vpop.f32.mrb[0].mxu0
      %1488 = vmatprep.mubr.bf16.mxu0 0
      %1489 = vmatmul.mubr.bf16.gmra.mrb[0].mxu0 %v1379
      %v1490 = vpop.f32.mrb[0].mxu0
      %v1491 = vadd.f32 0.0, %v1490
      %v1492 = vpop.f32.mrb[0].mxu0
      %v1493 = vpop.f32.mrb[0].mxu0
      %v1494 = vadd.f32 0.0, %v1493
      %v1495 = vpop.f32.mrb[0].mxu0
      %1496 = vdwg.mxu0
      %v1497 = vadd.f32 %v1216, %v1467
      %v1498 = vadd.f32 %v1217, %v1470
      %v1499 = vadd.f32 %v1218, %v1475
      %v1500 = vadd.f32 %v1219, %v1478
      %v1501 = vadd.f32 %v1220, %v1483
      %v1502 = vadd.f32 %v1221, %v1486
      %v1503 = vadd.f32 %v1222, %v1491
      %v1504 = vadd.f32 %v1223, %v1494
      %v1505 = vld [vmem:[%s1054] sm:$0xe]
      %v1506 = vld [vmem:[%s1054 + $0x8] sm:$0xe]
      %v1507 = vld [vmem:[%s1054 + $0x10] sm:$0xe]
      %v1508 = vld [vmem:[%s1054 + $0x18] sm:$0xe]
      %v1509 = vld [vmem:[%s1054 + $0x20] sm:$0xe]
      %v1510 = vld [vmem:[%s1054 + $0x28] sm:$0xe]
      %v1511 = vld [vmem:[%s1054 + $0x30] sm:$0xe]
      %v1512 = vld [vmem:[%s1054 + $0x38] sm:$0xe]
      %v1529 = vrot.slane %v1505, 5
      %v1530 = vrot.slane %v1529, 4
      %v1531 = vrot.slane %v1225, 5
      %v1532 = vsel %vm868, %v1530, %v1531
      %v1533 = vrot.slane %v1506, 5
      %v1534 = vrot.slane %v1533, 4
      %v1535 = vrot.slane %v1227, 5
      %v1536 = vsel %vm868, %v1534, %v1535
      %v1537 = vrot.slane %v1507, 5
      %v1538 = vrot.slane %v1537, 4
      %v1539 = vrot.slane %v1229, 5
      %v1540 = vsel %vm868, %v1538, %v1539
      %v1541 = vrot.slane %v1508, 5
      %v1542 = vrot.slane %v1541, 4
      %v1543 = vrot.slane %v1231, 5
      %v1544 = vsel %vm868, %v1542, %v1543
      %v1545 = vrot.slane %v1509, 5
      %v1546 = vrot.slane %v1545, 4
      %v1547 = vrot.slane %v1233, 5
      %v1548 = vsel %vm868, %v1546, %v1547
      %v1549 = vrot.slane %v1510, 5
      %v1550 = vrot.slane %v1549, 4
      %v1551 = vrot.slane %v1235, 5
      %v1552 = vsel %vm868, %v1550, %v1551
      %v1553 = vrot.slane %v1511, 5
      %v1554 = vrot.slane %v1553, 4
      %v1555 = vrot.slane %v1237, 5
      %v1556 = vsel %vm868, %v1554, %v1555
      %v1557 = vrot.slane %v1512, 5
      %v1558 = vrot.slane %v1557, 4
      %v1559 = vrot.slane %v1239, 5
      %v1560 = vsel %vm868, %v1558, %v1559
      %v1561 = vld [vmem:[%s3 + $0x140] sm:$0xf]
      %v1562 = vld [vmem:[%s3 + $0x144] sm:$0xf]
      %v1563 = vld [vmem:[%s3 + $0x148] sm:$0xf]
      %v1564 = vld [vmem:[%s3 + $0x14c] sm:$0xf]
      %v1565 = vld [vmem:[%s3 + $0x150] sm:$0xf]
      %v1566 = vld [vmem:[%s3 + $0x154] sm:$0xf]
      %v1567 = vld [vmem:[%s3 + $0x158] sm:$0xf]
      %v1568 = vld [vmem:[%s3 + $0x15c] sm:$0xf]
      %v1569 = vld [vmem:[%s3 + $0x160] sm:$0xf]
      %v1570 = vld [vmem:[%s3 + $0x164] sm:$0xf]
      %v1571 = vld [vmem:[%s3 + $0x168] sm:$0xf]
      %v1572 = vld [vmem:[%s3 + $0x16c] sm:$0xf]
      %v1573 = vld [vmem:[%s3 + $0x170] sm:$0xf]
      %v1574 = vld [vmem:[%s3 + $0x174] sm:$0xf]
      %v1575 = vld [vmem:[%s3 + $0x178] sm:$0xf]
      %v1576 = vld [vmem:[%s3 + $0x17c] sm:$0xf]
      %v1577 = vunpack.c.l.b16 %v1532
      %v1578 = vunpack.c.l.b16 %v1536
      %v1579 = vunpack.c.l.b16 %v1540
      %v1580 = vunpack.c.l.b16 %v1544
      %v1581 = vunpack.c.l.b16 %v1548
      %v1582 = vunpack.c.l.b16 %v1552
      %v1583 = vunpack.c.l.b16 %v1556
      %v1584 = vunpack.c.l.b16 %v1560
      %v1585 = vpack.c.b16 %v1578, %v1577
      %v1586 = vpack.c.b16 %v1580, %v1579
      %v1587 = vpack.c.b16 %v1582, %v1581
      %v1588 = vpack.c.b16 %v1584, %v1583
      %v1609 = vunpack.c.l.b16 %v1561
      %v1610 = vunpack.c.l.b16 %v1562
      %v1611 = vunpack.c.l.b16 %v1563
      %v1612 = vunpack.c.l.b16 %v1564
      %v1613 = vunpack.c.l.b16 %v1565
      %v1614 = vunpack.c.l.b16 %v1566
      %v1615 = vunpack.c.l.b16 %v1567
      %v1616 = vunpack.c.l.b16 %v1568
      %v1617 = vunpack.c.l.b16 %v1569
      %v1618 = vunpack.c.l.b16 %v1570
      %v1619 = vunpack.c.l.b16 %v1571
      %v1620 = vunpack.c.l.b16 %v1572
      %v1621 = vunpack.c.l.b16 %v1573
      %v1622 = vunpack.c.l.b16 %v1574
      %v1623 = vunpack.c.l.b16 %v1575
      %v1624 = vunpack.c.l.b16 %v1576
      %v1625 = vpack.c.b16 %v1610, %v1609
      %v1626 = vpack.c.b16 %v1612, %v1611
      %v1627 = vpack.c.b16 %v1614, %v1613
      %v1628 = vpack.c.b16 %v1616, %v1615
      %v1629 = vpack.c.b16 %v1618, %v1617
      %v1630 = vpack.c.b16 %v1620, %v1619
      %v1631 = vpack.c.b16 %v1622, %v1621
      %v1632 = vpack.c.b16 %v1624, %v1623
      %1641 = vmatprep.subr.bf16.mxu0 0
      %1642 = vmatpush1.bf16.msra.mxu0 %v1625
      %1643 = vmatprep.subr.bf16.mxu0 0
      %1644 = vmatpush1.bf16.msra.mxu0 %v1626
      %1645 = vmatprep.subr.bf16.mxu0 0
      %1646 = vmatpush1.bf16.msra.mxu0 %v1627
      %1647 = vmatprep.subr.bf16.mxu0 0
      %1648 = vmatpush1.bf16.msra.mxu0 %v1628
      %1649 = vmatprep.subr.bf16.mxu0 0
      %1650 = vmatpush1.bf16.msra.mxu0 %v1629
      %1651 = vmatprep.subr.bf16.mxu0 0
      %1652 = vmatpush1.bf16.msra.mxu0 %v1630
      %1653 = vmatprep.subr.bf16.mxu0 0
      %1654 = vmatpush1.bf16.msra.mxu0 %v1631
      %1655 = vmatprep.subr.bf16.mxu0 0
      %1656 = vmatpush1.bf16.msra.mxu0 %v1632
      %1657 = vmatprep.subr.bf16.mxu0 0
      %1658 = vmatpush1.bf16.msra.mxu0 0
      %1659 = vmatprep.subr.bf16.mxu0 0
      %1660 = vmatpush1.bf16.msra.mxu0 0
      %1661 = vmatprep.subr.bf16.mxu0 0
      %1662 = vmatpush1.bf16.msra.mxu0 0
      %1663 = vmatprep.subr.bf16.mxu0 0
      %1664 = vmatpush1.bf16.msra.mxu0 0
      %1665 = vmatprep.subr.bf16.mxu0 0
      %1666 = vmatpush1.bf16.msra.mxu0 0
      %1667 = vmatprep.subr.bf16.mxu0 0
      %1668 = vmatpush1.bf16.msra.mxu0 0
      %1669 = vmatprep.subr.bf16.mxu0 0
      %1670 = vmatpush1.bf16.msra.mxu0 0
      %1671 = vmatprep.subr.bf16.mxu0 0
      %1672 = vmatpush1.bf16.msra.mxu0 0
      %1673 = vmatprep.mubr.bf16.mxu0 0
      %1674 = vmatmul.mubr.bf16.gmra.mrb[0].mxu0 %v1585
      %v1675 = vpop.f32.mrb[0].mxu0
      %v1676 = vadd.f32 0.0, %v1675
      %v1677 = vpop.f32.mrb[0].mxu0
      %v1678 = vpop.f32.mrb[0].mxu0
      %v1679 = vadd.f32 0.0, %v1678
      %v1680 = vpop.f32.mrb[0].mxu0
      %1681 = vmatprep.mubr.bf16.mxu0 0
      %1682 = vmatmul.mubr.bf16.gmra.mrb[0].mxu0 %v1586
      %v1683 = vpop.f32.mrb[0].mxu0
      %v1684 = vadd.f32 0.0, %v1683
      %v1685 = vpop.f32.mrb[0].mxu0
      %v1686 = vpop.f32.mrb[0].mxu0
      %v1687 = vadd.f32 0.0, %v1686
      %v1688 = vpop.f32.mrb[0].mxu0
      %1689 = vmatprep.mubr.bf16.mxu0 0
      %1690 = vmatmul.mubr.bf16.gmra.mrb[0].mxu0 %v1587
      %v1691 = vpop.f32.mrb[0].mxu0
      %v1692 = vadd.f32 0.0, %v1691
      %v1693 = vpop.f32.mrb[0].mxu0
      %v1694 = vpop.f32.mrb[0].mxu0
      %v1695 = vadd.f32 0.0, %v1694
      %v1696 = vpop.f32.mrb[0].mxu0
      %1697 = vmatprep.mubr.bf16.mxu0 0
      %1698 = vmatmul.mubr.bf16.gmra.mrb[0].mxu0 %v1588
      %v1699 = vpop.f32.mrb[0].mxu0
      %v1700 = vadd.f32 0.0, %v1699
      %v1701 = vpop.f32.mrb[0].mxu0
      %v1702 = vpop.f32.mrb[0].mxu0
      %v1703 = vadd.f32 0.0, %v1702
      %v1704 = vpop.f32.mrb[0].mxu0
      %1705 = vdwg.mxu0
      %v1706 = vadd.f32 %v1497, %v1676
      %v1707 = vadd.f32 %v1498, %v1679
      %v1708 = vadd.f32 %v1499, %v1684
      %v1709 = vadd.f32 %v1500, %v1687
      %v1710 = vadd.f32 %v1501, %v1692
      %v1711 = vadd.f32 %v1502, %v1695
      %v1712 = vadd.f32 %v1503, %v1700
      %v1713 = vadd.f32 %v1504, %v1703
      %s1714 = scalar_lea.vmem %s363, 16
      %v1715 = vld [vmem:[%s1714] sm:$0xf]
      %v1716 = vld [vmem:[%s1714 + $0x8] sm:$0xf]
      %v1717 = vld [vmem:[%s1714 + $0x10] sm:$0xf]
      %v1718 = vld [vmem:[%s1714 + $0x18] sm:$0xf]
      %v1719 = vld [vmem:[%s1714 + $0x20] sm:$0xf]
      %v1720 = vld [vmem:[%s1714 + $0x28] sm:$0xf]
      %v1721 = vld [vmem:[%s1714 + $0x30] sm:$0xf]
      %v1722 = vld [vmem:[%s1714 + $0x38] sm:$0xf]
      %v1723 = vld [vmem:[%s3 + $0x180] sm:$0xf]
      %v1724 = vld [vmem:[%s3 + $0x184] sm:$0xf]
      %v1725 = vld [vmem:[%s3 + $0x188] sm:$0xf]
      %v1726 = vld [vmem:[%s3 + $0x18c] sm:$0xf]
      %v1727 = vld [vmem:[%s3 + $0x190] sm:$0xf]
      %v1728 = vld [vmem:[%s3 + $0x194] sm:$0xf]
      %v1729 = vld [vmem:[%s3 + $0x198] sm:$0xf]
      %v1730 = vld [vmem:[%s3 + $0x19c] sm:$0xf]
      %v1731 = vld [vmem:[%s3 + $0x1a0] sm:$0xf]
      %v1732 = vld [vmem:[%s3 + $0x1a4] sm:$0xf]
      %v1733 = vld [vmem:[%s3 + $0x1a8] sm:$0xf]
      %v1734 = vld [vmem:[%s3 + $0x1ac] sm:$0xf]
      %v1735 = vld [vmem:[%s3 + $0x1b0] sm:$0xf]
      %v1736 = vld [vmem:[%s3 + $0x1b4] sm:$0xf]
      %v1737 = vld [vmem:[%s3 + $0x1b8] sm:$0xf]
      %v1738 = vld [vmem:[%s3 + $0x1bc] sm:$0xf]
      %v1747 = vunpack.c.l.b16 %v1715
      %v1748 = vunpack.c.l.b16 %v1716
      %v1749 = vunpack.c.l.b16 %v1717
      %v1750 = vunpack.c.l.b16 %v1718
      %v1751 = vunpack.c.l.b16 %v1719
      %v1752 = vunpack.c.l.b16 %v1720
      %v1753 = vunpack.c.l.b16 %v1721
      %v1754 = vunpack.c.l.b16 %v1722
      %v1755 = vpack.c.b16 %v1748, %v1747
      %v1756 = vpack.c.b16 %v1750, %v1749
      %v1757 = vpack.c.b16 %v1752, %v1751
      %v1758 = vpack.c.b16 %v1754, %v1753
      %v1779 = vunpack.c.l.b16 %v1723
      %v1780 = vunpack.c.l.b16 %v1724
      %v1781 = vunpack.c.l.b16 %v1725
      %v1782 = vunpack.c.l.b16 %v1726
      %v1783 = vunpack.c.l.b16 %v1727
      %v1784 = vunpack.c.l.b16 %v1728
      %v1785 = vunpack.c.l.b16 %v1729
      %v1786 = vunpack.c.l.b16 %v1730
      %v1787 = vunpack.c.l.b16 %v1731
      %v1788 = vunpack.c.l.b16 %v1732
      %v1789 = vunpack.c.l.b16 %v1733
      %v1790 = vunpack.c.l.b16 %v1734
      %v1791 = vunpack.c.l.b16 %v1735
      %v1792 = vunpack.c.l.b16 %v1736
      %v1793 = vunpack.c.l.b16 %v1737
      %v1794 = vunpack.c.l.b16 %v1738
      %v1795 = vpack.c.b16 %v1780, %v1779
      %v1796 = vpack.c.b16 %v1782, %v1781
      %v1797 = vpack.c.b16 %v1784, %v1783
      %v1798 = vpack.c.b16 %v1786, %v1785
      %v1799 = vpack.c.b16 %v1788, %v1787
      %v1800 = vpack.c.b16 %v1790, %v1789
      %v1801 = vpack.c.b16 %v1792, %v1791
      %v1802 = vpack.c.b16 %v1794, %v1793
      %1811 = vmatprep.subr.bf16.mxu0 0
      %1812 = vmatpush1.bf16.msra.mxu0 %v1795
      %1813 = vmatprep.subr.bf16.mxu0 0
      %1814 = vmatpush1.bf16.msra.mxu0 %v1796
      %1815 = vmatprep.subr.bf16.mxu0 0
      %1816 = vmatpush1.bf16.msra.mxu0 %v1797
      %1817 = vmatprep.subr.bf16.mxu0 0
      %1818 = vmatpush1.bf16.msra.mxu0 %v1798
      %1819 = vmatprep.subr.bf16.mxu0 0
      %1820 = vmatpush1.bf16.msra.mxu0 %v1799
      %1821 = vmatprep.subr.bf16.mxu0 0
      %1822 = vmatpush1.bf16.msra.mxu0 %v1800
      %1823 = vmatprep.subr.bf16.mxu0 0
      %1824 = vmatpush1.bf16.msra.mxu0 %v1801
      %1825 = vmatprep.subr.bf16.mxu0 0
      %1826 = vmatpush1.bf16.msra.mxu0 %v1802
      %1827 = vmatprep.subr.bf16.mxu0 0
      %1828 = vmatpush1.bf16.msra.mxu0 0
      %1829 = vmatprep.subr.bf16.mxu0 0
      %1830 = vmatpush1.bf16.msra.mxu0 0
      %1831 = vmatprep.subr.bf16.mxu0 0
      %1832 = vmatpush1.bf16.msra.mxu0 0
      %1833 = vmatprep.subr.bf16.mxu0 0
      %1834 = vmatpush1.bf16.msra.mxu0 0
      %1835 = vmatprep.subr.bf16.mxu0 0
      %1836 = vmatpush1.bf16.msra.mxu0 0
      %1837 = vmatprep.subr.bf16.mxu0 0
      %1838 = vmatpush1.bf16.msra.mxu0 0
      %1839 = vmatprep.subr.bf16.mxu0 0
      %1840 = vmatpush1.bf16.msra.mxu0 0
      %1841 = vmatprep.subr.bf16.mxu0 0
      %1842 = vmatpush1.bf16.msra.mxu0 0
      %1843 = vmatprep.mubr.bf16.mxu0 0
      %1844 = vmatmul.mubr.bf16.gmra.mrb[0].mxu0 %v1755
      %v1845 = vpop.f32.mrb[0].mxu0
      %v1846 = vadd.f32 0.0, %v1845
      %v1847 = vpop.f32.mrb[0].mxu0
      %v1848 = vpop.f32.mrb[0].mxu0
      %v1849 = vadd.f32 0.0, %v1848
      %v1850 = vpop.f32.mrb[0].mxu0
      %1851 = vmatprep.mubr.bf16.mxu0 0
      %1852 = vmatmul.mubr.bf16.gmra.mrb[0].mxu0 %v1756
      %v1853 = vpop.f32.mrb[0].mxu0
      %v1854 = vadd.f32 0.0, %v1853
      %v1855 = vpop.f32.mrb[0].mxu0
      %v1856 = vpop.f32.mrb[0].mxu0
      %v1857 = vadd.f32 0.0, %v1856
      %v1858 = vpop.f32.mrb[0].mxu0
      %1859 = vmatprep.mubr.bf16.mxu0 0
      %1860 = vmatmul.mubr.bf16.gmra.mrb[0].mxu0 %v1757
      %v1861 = vpop.f32.mrb[0].mxu0
      %v1862 = vadd.f32 0.0, %v1861
      %v1863 = vpop.f32.mrb[0].mxu0
      %v1864 = vpop.f32.mrb[0].mxu0
      %v1865 = vadd.f32 0.0, %v1864
      %v1866 = vpop.f32.mrb[0].mxu0
      %1867 = vmatprep.mubr.bf16.mxu0 0
      %1868 = vmatmul.mubr.bf16.gmra.mrb[0].mxu0 %v1758
      %v1869 = vpop.f32.mrb[0].mxu0
      %v1870 = vadd.f32 0.0, %v1869
      %v1871 = vpop.f32.mrb[0].mxu0
      %v1872 = vpop.f32.mrb[0].mxu0
      %v1873 = vadd.f32 0.0, %v1872
      %v1874 = vpop.f32.mrb[0].mxu0
      %1875 = vdwg.mxu0
      %v1876 = vadd.f32 %v1706, %v1846
      %v1877 = vadd.f32 %v1707, %v1849
      %v1878 = vadd.f32 %v1708, %v1854
      %v1879 = vadd.f32 %v1709, %v1857
      %v1880 = vadd.f32 %v1710, %v1862
      %v1881 = vadd.f32 %v1711, %v1865
      %v1882 = vadd.f32 %v1712, %v1870
      %v1883 = vadd.f32 %v1713, %v1873
      %v1884 = vld [vmem:[%s1714] sm:$0xf]
      %v1885 = vld [vmem:[%s1714 + $0x4] sm:$0x1]
      %v1886 = vld [vmem:[%s1714 + $0x8] sm:$0xf]
      %v1887 = vld [vmem:[%s1714 + $0xc] sm:$0x1]
      %v1888 = vld [vmem:[%s1714 + $0x10] sm:$0xf]
      %v1889 = vld [vmem:[%s1714 + $0x14] sm:$0x1]
      %v1890 = vld [vmem:[%s1714 + $0x18] sm:$0xf]
      %v1891 = vld [vmem:[%s1714 + $0x1c] sm:$0x1]
      %v1892 = vld [vmem:[%s1714 + $0x20] sm:$0xf]
      %v1893 = vld [vmem:[%s1714 + $0x24] sm:$0x1]
      %v1894 = vld [vmem:[%s1714 + $0x28] sm:$0xf]
      %v1895 = vld [vmem:[%s1714 + $0x2c] sm:$0x1]
      %v1896 = vld [vmem:[%s1714 + $0x30] sm:$0xf]
      %v1897 = vld [vmem:[%s1714 + $0x34] sm:$0x1]
      %v1898 = vld [vmem:[%s1714 + $0x38] sm:$0xf]
      %v1899 = vld [vmem:[%s1714 + $0x3c] sm:$0x1]
      %v1901 = vshrl.u32 %v1884, 16
      %v1903 = vrot.slane %v1901, 4
      %v1904 = vshll.u32 %v1884, 16
      %v1906 = vrot.slane %v1904, 5
      %v1907 = vor.u32 %v1903, %v1906
      %v1908 = vrot.slane %v1907, 4
      %v1910 = vshll.u32 %v1885, 16
      %v1912 = vrot.slane %v1910, 5
      %v1913 = vsel %vm447, %v1908, %v1912
      %v1915 = vshrl.u32 %v1886, 16
      %v1917 = vrot.slane %v1915, 4
      %v1918 = vshll.u32 %v1886, 16
      %v1920 = vrot.slane %v1918, 5
      %v1921 = vor.u32 %v1917, %v1920
      %v1922 = vrot.slane %v1921, 4
      %v1924 = vshll.u32 %v1887, 16
      %v1926 = vrot.slane %v1924, 5
      %v1927 = vsel %vm447, %v1922, %v1926
      %v1929 = vshrl.u32 %v1888, 16
      %v1931 = vrot.slane %v1929, 4
      %v1932 = vshll.u32 %v1888, 16
      %v1934 = vrot.slane %v1932, 5
      %v1935 = vor.u32 %v1931, %v1934
      %v1936 = vrot.slane %v1935, 4
      %v1938 = vshll.u32 %v1889, 16
      %v1940 = vrot.slane %v1938, 5
      %v1941 = vsel %vm447, %v1936, %v1940
      %v1943 = vshrl.u32 %v1890, 16
      %v1945 = vrot.slane %v1943, 4
      %v1946 = vshll.u32 %v1890, 16
      %v1948 = vrot.slane %v1946, 5
      %v1949 = vor.u32 %v1945, %v1948
      %v1950 = vrot.slane %v1949, 4
      %v1952 = vshll.u32 %v1891, 16
      %v1954 = vrot.slane %v1952, 5
      %v1955 = vsel %vm447, %v1950, %v1954
      %v1957 = vshrl.u32 %v1892, 16
      %v1959 = vrot.slane %v1957, 4
      %v1960 = vshll.u32 %v1892, 16
      %v1962 = vrot.slane %v1960, 5
      %v1963 = vor.u32 %v1959, %v1962
      %v1964 = vrot.slane %v1963, 4
      %v1966 = vshll.u32 %v1893, 16
      %v1968 = vrot.slane %v1966, 5
      %v1969 = vsel %vm447, %v1964, %v1968
      %v1971 = vshrl.u32 %v1894, 16
      %v1973 = vrot.slane %v1971, 4
      %v1974 = vshll.u32 %v1894, 16
      %v1976 = vrot.slane %v1974, 5
      %v1977 = vor.u32 %v1973, %v1976
      %v1978 = vrot.slane %v1977, 4
      %v1980 = vshll.u32 %v1895, 16
      %v1982 = vrot.slane %v1980, 5
      %v1983 = vsel %vm447, %v1978, %v1982
      %v1985 = vshrl.u32 %v1896, 16
      %v1987 = vrot.slane %v1985, 4
      %v1988 = vshll.u32 %v1896, 16
      %v1990 = vrot.slane %v1988, 5
      %v1991 = vor.u32 %v1987, %v1990
      %v1992 = vrot.slane %v1991, 4
      %v1994 = vshll.u32 %v1897, 16
      %v1996 = vrot.slane %v1994, 5
      %v1997 = vsel %vm447, %v1992, %v1996
      %v1999 = vshrl.u32 %v1898, 16
      %v2001 = vrot.slane %v1999, 4
      %v2002 = vshll.u32 %v1898, 16
      %v2004 = vrot.slane %v2002, 5
      %v2005 = vor.u32 %v2001, %v2004
      %v2006 = vrot.slane %v2005, 4
      %v2008 = vshll.u32 %v1899, 16
      %v2010 = vrot.slane %v2008, 5
      %v2011 = vsel %vm447, %v2006, %v2010
      %v2012 = vld [vmem:[%s3 + $0x1c0] sm:$0xf]
      %v2013 = vld [vmem:[%s3 + $0x1c4] sm:$0xf]
      %v2014 = vld [vmem:[%s3 + $0x1c8] sm:$0xf]
      %v2015 = vld [vmem:[%s3 + $0x1cc] sm:$0xf]
      %v2016 = vld [vmem:[%s3 + $0x1d0] sm:$0xf]
      %v2017 = vld [vmem:[%s3 + $0x1d4] sm:$0xf]
      %v2018 = vld [vmem:[%s3 + $0x1d8] sm:$0xf]
      %v2019 = vld [vmem:[%s3 + $0x1dc] sm:$0xf]
      %v2020 = vld [vmem:[%s3 + $0x1e0] sm:$0xf]
      %v2021 = vld [vmem:[%s3 + $0x1e4] sm:$0xf]
      %v2022 = vld [vmem:[%s3 + $0x1e8] sm:$0xf]
      %v2023 = vld [vmem:[%s3 + $0x1ec] sm:$0xf]
      %v2024 = vld [vmem:[%s3 + $0x1f0] sm:$0xf]
      %v2025 = vld [vmem:[%s3 + $0x1f4] sm:$0xf]
      %v2026 = vld [vmem:[%s3 + $0x1f8] sm:$0xf]
      %v2027 = vld [vmem:[%s3 + $0x1fc] sm:$0xf]
      %v2028 = vunpack.c.l.b16 %v1913
      %v2029 = vunpack.c.l.b16 %v1927
      %v2030 = vunpack.c.l.b16 %v1941
      %v2031 = vunpack.c.l.b16 %v1955
      %v2032 = vunpack.c.l.b16 %v1969
      %v2033 = vunpack.c.l.b16 %v1983
      %v2034 = vunpack.c.l.b16 %v1997
      %v2035 = vunpack.c.l.b16 %v2011
      %v2036 = vpack.c.b16 %v2029, %v2028
      %v2037 = vpack.c.b16 %v2031, %v2030
      %v2038 = vpack.c.b16 %v2033, %v2032
      %v2039 = vpack.c.b16 %v2035, %v2034
      %v2060 = vunpack.c.l.b16 %v2012
      %v2061 = vunpack.c.l.b16 %v2013
      %v2062 = vunpack.c.l.b16 %v2014
      %v2063 = vunpack.c.l.b16 %v2015
      %v2064 = vunpack.c.l.b16 %v2016
      %v2065 = vunpack.c.l.b16 %v2017
      %v2066 = vunpack.c.l.b16 %v2018
      %v2067 = vunpack.c.l.b16 %v2019
      %v2068 = vunpack.c.l.b16 %v2020
      %v2069 = vunpack.c.l.b16 %v2021
      %v2070 = vunpack.c.l.b16 %v2022
      %v2071 = vunpack.c.l.b16 %v2023
      %v2072 = vunpack.c.l.b16 %v2024
      %v2073 = vunpack.c.l.b16 %v2025
      %v2074 = vunpack.c.l.b16 %v2026
      %v2075 = vunpack.c.l.b16 %v2027
      %v2076 = vpack.c.b16 %v2061, %v2060
      %v2077 = vpack.c.b16 %v2063, %v2062
      %v2078 = vpack.c.b16 %v2065, %v2064
      %v2079 = vpack.c.b16 %v2067, %v2066
      %v2080 = vpack.c.b16 %v2069, %v2068
      %v2081 = vpack.c.b16 %v2071, %v2070
      %v2082 = vpack.c.b16 %v2073, %v2072
      %v2083 = vpack.c.b16 %v2075, %v2074
      %2092 = vmatprep.subr.bf16.mxu0 0
      %2093 = vmatpush1.bf16.msra.mxu0 %v2076
      %2094 = vmatprep.subr.bf16.mxu0 0
      %2095 = vmatpush1.bf16.msra.mxu0 %v2077
      %2096 = vmatprep.subr.bf16.mxu0 0
      %2097 = vmatpush1.bf16.msra.mxu0 %v2078
      %2098 = vmatprep.subr.bf16.mxu0 0
      %2099 = vmatpush1.bf16.msra.mxu0 %v2079
      %2100 = vmatprep.subr.bf16.mxu0 0
      %2101 = vmatpush1.bf16.msra.mxu0 %v2080
      %2102 = vmatprep.subr.bf16.mxu0 0
      %2103 = vmatpush1.bf16.msra.mxu0 %v2081
      %2104 = vmatprep.subr.bf16.mxu0 0
      %2105 = vmatpush1.bf16.msra.mxu0 %v2082
      %2106 = vmatprep.subr.bf16.mxu0 0
      %2107 = vmatpush1.bf16.msra.mxu0 %v2083
      %2108 = vmatprep.subr.bf16.mxu0 0
      %2109 = vmatpush1.bf16.msra.mxu0 0
      %2110 = vmatprep.subr.bf16.mxu0 0
      %2111 = vmatpush1.bf16.msra.mxu0 0
      %2112 = vmatprep.subr.bf16.mxu0 0
      %2113 = vmatpush1.bf16.msra.mxu0 0
      %2114 = vmatprep.subr.bf16.mxu0 0
      %2115 = vmatpush1.bf16.msra.mxu0 0
      %2116 = vmatprep.subr.bf16.mxu0 0
      %2117 = vmatpush1.bf16.msra.mxu0 0
      %2118 = vmatprep.subr.bf16.mxu0 0
      %2119 = vmatpush1.bf16.msra.mxu0 0
      %2120 = vmatprep.subr.bf16.mxu0 0
      %2121 = vmatpush1.bf16.msra.mxu0 0
      %2122 = vmatprep.subr.bf16.mxu0 0
      %2123 = vmatpush1.bf16.msra.mxu0 0
      %2124 = vmatprep.mubr.bf16.mxu0 0
      %2125 = vmatmul.mubr.bf16.gmra.mrb[0].mxu0 %v2036
      %v2126 = vpop.f32.mrb[0].mxu0
      %v2127 = vadd.f32 0.0, %v2126
      %v2128 = vpop.f32.mrb[0].mxu0
      %v2129 = vpop.f32.mrb[0].mxu0
      %v2130 = vadd.f32 0.0, %v2129
      %v2131 = vpop.f32.mrb[0].mxu0
      %2132 = vmatprep.mubr.bf16.mxu0 0
      %2133 = vmatmul.mubr.bf16.gmra.mrb[0].mxu0 %v2037
      %v2134 = vpop.f32.mrb[0].mxu0
      %v2135 = vadd.f32 0.0, %v2134
      %v2136 = vpop.f32.mrb[0].mxu0
      %v2137 = vpop.f32.mrb[0].mxu0
      %v2138 = vadd.f32 0.0, %v2137
      %v2139 = vpop.f32.mrb[0].mxu0
      %2140 = vmatprep.mubr.bf16.mxu0 0
      %2141 = vmatmul.mubr.bf16.gmra.mrb[0].mxu0 %v2038
      %v2142 = vpop.f32.mrb[0].mxu0
      %v2143 = vadd.f32 0.0, %v2142
      %v2144 = vpop.f32.mrb[0].mxu0
      %v2145 = vpop.f32.mrb[0].mxu0
      %v2146 = vadd.f32 0.0, %v2145
      %v2147 = vpop.f32.mrb[0].mxu0
      %2148 = vmatprep.mubr.bf16.mxu0 0
      %2149 = vmatmul.mubr.bf16.gmra.mrb[0].mxu0 %v2039
      %v2150 = vpop.f32.mrb[0].mxu0
      %v2151 = vadd.f32 0.0, %v2150
      %v2152 = vpop.f32.mrb[0].mxu0
      %v2153 = vpop.f32.mrb[0].mxu0
      %v2154 = vadd.f32 0.0, %v2153
      %v2155 = vpop.f32.mrb[0].mxu0
      %2156 = vdwg.mxu0
      %v2157 = vadd.f32 %v1876, %v2127
      %v2158 = vadd.f32 %v1877, %v2130
      %v2159 = vadd.f32 %v1878, %v2135
      %v2160 = vadd.f32 %v1879, %v2138
      %v2161 = vadd.f32 %v1880, %v2143
      %v2162 = vadd.f32 %v1881, %v2146
      %v2163 = vadd.f32 %v1882, %v2151
      %v2164 = vadd.f32 %v1883, %v2154
      %v2165 = vld [vmem:[%s1714] sm:$0xe]
      %v2166 = vld [vmem:[%s1714 + $0x8] sm:$0xe]
      %v2167 = vld [vmem:[%s1714 + $0x10] sm:$0xe]
      %v2168 = vld [vmem:[%s1714 + $0x18] sm:$0xe]
      %v2169 = vld [vmem:[%s1714 + $0x20] sm:$0xe]
      %v2170 = vld [vmem:[%s1714 + $0x28] sm:$0xe]
      %v2171 = vld [vmem:[%s1714 + $0x30] sm:$0xe]
      %v2172 = vld [vmem:[%s1714 + $0x38] sm:$0xe]
      %v2189 = vrot.slane %v2165, 5
      %v2190 = vrot.slane %v2189, 4
      %v2191 = vrot.slane %v1885, 5
      %v2192 = vsel %vm868, %v2190, %v2191
      %v2193 = vrot.slane %v2166, 5
      %v2194 = vrot.slane %v2193, 4
      %v2195 = vrot.slane %v1887, 5
      %v2196 = vsel %vm868, %v2194, %v2195
      %v2197 = vrot.slane %v2167, 5
      %v2198 = vrot.slane %v2197, 4
      %v2199 = vrot.slane %v1889, 5
      %v2200 = vsel %vm868, %v2198, %v2199
      %v2201 = vrot.slane %v2168, 5
      %v2202 = vrot.slane %v2201, 4
      %v2203 = vrot.slane %v1891, 5
      %v2204 = vsel %vm868, %v2202, %v2203
      %v2205 = vrot.slane %v2169, 5
      %v2206 = vrot.slane %v2205, 4
      %v2207 = vrot.slane %v1893, 5
      %v2208 = vsel %vm868, %v2206, %v2207
      %v2209 = vrot.slane %v2170, 5
      %v2210 = vrot.slane %v2209, 4
      %v2211 = vrot.slane %v1895, 5
      %v2212 = vsel %vm868, %v2210, %v2211
      %v2213 = vrot.slane %v2171, 5
      %v2214 = vrot.slane %v2213, 4
      %v2215 = vrot.slane %v1897, 5
      %v2216 = vsel %vm868, %v2214, %v2215
      %v2217 = vrot.slane %v2172, 5
      %v2218 = vrot.slane %v2217, 4
      %v2219 = vrot.slane %v1899, 5
      %v2220 = vsel %vm868, %v2218, %v2219
      %v2221 = vld [vmem:[%s3 + $0x200] sm:$0xf]
      %v2222 = vld [vmem:[%s3 + $0x204] sm:$0xf]
      %v2223 = vld [vmem:[%s3 + $0x208] sm:$0xf]
      %v2224 = vld [vmem:[%s3 + $0x20c] sm:$0xf]
      %v2225 = vld [vmem:[%s3 + $0x210] sm:$0xf]
      %v2226 = vld [vmem:[%s3 + $0x214] sm:$0xf]
      %v2227 = vld [vmem:[%s3 + $0x218] sm:$0xf]
      %v2228 = vld [vmem:[%s3 + $0x21c] sm:$0xf]
      %v2229 = vld [vmem:[%s3 + $0x220] sm:$0xf]
      %v2230 = vld [vmem:[%s3 + $0x224] sm:$0xf]
      %v2231 = vld [vmem:[%s3 + $0x228] sm:$0xf]
      %v2232 = vld [vmem:[%s3 + $0x22c] sm:$0xf]
      %v2233 = vld [vmem:[%s3 + $0x230] sm:$0xf]
      %v2234 = vld [vmem:[%s3 + $0x234] sm:$0xf]
      %v2235 = vld [vmem:[%s3 + $0x238] sm:$0xf]
      %v2236 = vld [vmem:[%s3 + $0x23c] sm:$0xf]
      %v2237 = vunpack.c.l.b16 %v2192
      %v2238 = vunpack.c.l.b16 %v2196
      %v2239 = vunpack.c.l.b16 %v2200
      %v2240 = vunpack.c.l.b16 %v2204
      %v2241 = vunpack.c.l.b16 %v2208
      %v2242 = vunpack.c.l.b16 %v2212
      %v2243 = vunpack.c.l.b16 %v2216
      %v2244 = vunpack.c.l.b16 %v2220
      %v2245 = vpack.c.b16 %v2238, %v2237
      %v2246 = vpack.c.b16 %v2240, %v2239
      %v2247 = vpack.c.b16 %v2242, %v2241
      %v2248 = vpack.c.b16 %v2244, %v2243
      %v2269 = vunpack.c.l.b16 %v2221
      %v2270 = vunpack.c.l.b16 %v2222
      %v2271 = vunpack.c.l.b16 %v2223
      %v2272 = vunpack.c.l.b16 %v2224
      %v2273 = vunpack.c.l.b16 %v2225
      %v2274 = vunpack.c.l.b16 %v2226
      %v2275 = vunpack.c.l.b16 %v2227
      %v2276 = vunpack.c.l.b16 %v2228
      %v2277 = vunpack.c.l.b16 %v2229
      %v2278 = vunpack.c.l.b16 %v2230
      %v2279 = vunpack.c.l.b16 %v2231
      %v2280 = vunpack.c.l.b16 %v2232
      %v2281 = vunpack.c.l.b16 %v2233
      %v2282 = vunpack.c.l.b16 %v2234
      %v2283 = vunpack.c.l.b16 %v2235
      %v2284 = vunpack.c.l.b16 %v2236
      %v2285 = vpack.c.b16 %v2270, %v2269
      %v2286 = vpack.c.b16 %v2272, %v2271
      %v2287 = vpack.c.b16 %v2274, %v2273
      %v2288 = vpack.c.b16 %v2276, %v2275
      %v2289 = vpack.c.b16 %v2278, %v2277
      %v2290 = vpack.c.b16 %v2280, %v2279
      %v2291 = vpack.c.b16 %v2282, %v2281
      %v2292 = vpack.c.b16 %v2284, %v2283
      %2301 = vmatprep.subr.bf16.mxu0 0
      %2302 = vmatpush1.bf16.msra.mxu0 %v2285
      %2303 = vmatprep.subr.bf16.mxu0 0
      %2304 = vmatpush1.bf16.msra.mxu0 %v2286
      %2305 = vmatprep.subr.bf16.mxu0 0
      %2306 = vmatpush1.bf16.msra.mxu0 %v2287
      %2307 = vmatprep.subr.bf16.mxu0 0
      %2308 = vmatpush1.bf16.msra.mxu0 %v2288
      %2309 = vmatprep.subr.bf16.mxu0 0
      %2310 = vmatpush1.bf16.msra.mxu0 %v2289
      %2311 = vmatprep.subr.bf16.mxu0 0
      %2312 = vmatpush1.bf16.msra.mxu0 %v2290
      %2313 = vmatprep.subr.bf16.mxu0 0
      %2314 = vmatpush1.bf16.msra.mxu0 %v2291
      %2315 = vmatprep.subr.bf16.mxu0 0
      %2316 = vmatpush1.bf16.msra.mxu0 %v2292
      %2317 = vmatprep.subr.bf16.mxu0 0
      %2318 = vmatpush1.bf16.msra.mxu0 0
      %2319 = vmatprep.subr.bf16.mxu0 0
      %2320 = vmatpush1.bf16.msra.mxu0 0
      %2321 = vmatprep.subr.bf16.mxu0 0
      %2322 = vmatpush1.bf16.msra.mxu0 0
      %2323 = vmatprep.subr.bf16.mxu0 0
      %2324 = vmatpush1.bf16.msra.mxu0 0
      %2325 = vmatprep.subr.bf16.mxu0 0
      %2326 = vmatpush1.bf16.msra.mxu0 0
      %2327 = vmatprep.subr.bf16.mxu0 0
      %2328 = vmatpush1.bf16.msra.mxu0 0
      %2329 = vmatprep.subr.bf16.mxu0 0
      %2330 = vmatpush1.bf16.msra.mxu0 0
      %2331 = vmatprep.subr.bf16.mxu0 0
      %2332 = vmatpush1.bf16.msra.mxu0 0
      %2333 = vmatprep.mubr.bf16.mxu0 0
      %2334 = vmatmul.mubr.bf16.gmra.mrb[0].mxu0 %v2245
      %v2335 = vpop.f32.mrb[0].mxu0
      %v2336 = vadd.f32 0.0, %v2335
      %v2337 = vpop.f32.mrb[0].mxu0
      %v2338 = vpop.f32.mrb[0].mxu0
      %v2339 = vadd.f32 0.0, %v2338
      %v2340 = vpop.f32.mrb[0].mxu0
      %2341 = vmatprep.mubr.bf16.mxu0 0
      %2342 = vmatmul.mubr.bf16.gmra.mrb[0].mxu0 %v2246
      %v2343 = vpop.f32.mrb[0].mxu0
      %v2344 = vadd.f32 0.0, %v2343
      %v2345 = vpop.f32.mrb[0].mxu0
      %v2346 = vpop.f32.mrb[0].mxu0
      %v2347 = vadd.f32 0.0, %v2346
      %v2348 = vpop.f32.mrb[0].mxu0
      %2349 = vmatprep.mubr.bf16.mxu0 0
      %2350 = vmatmul.mubr.bf16.gmra.mrb[0].mxu0 %v2247
      %v2351 = vpop.f32.mrb[0].mxu0
      %v2352 = vadd.f32 0.0, %v2351
      %v2353 = vpop.f32.mrb[0].mxu0
      %v2354 = vpop.f32.mrb[0].mxu0
      %v2355 = vadd.f32 0.0, %v2354
      %v2356 = vpop.f32.mrb[0].mxu0
      %2357 = vmatprep.mubr.bf16.mxu0 0
      %2358 = vmatmul.mubr.bf16.gmra.mrb[0].mxu0 %v2248
      %v2359 = vpop.f32.mrb[0].mxu0
      %v2360 = vadd.f32 0.0, %v2359
      %v2361 = vpop.f32.mrb[0].mxu0
      %v2362 = vpop.f32.mrb[0].mxu0
      %v2363 = vadd.f32 0.0, %v2362
      %v2364 = vpop.f32.mrb[0].mxu0
      %2365 = vdwg.mxu0
      %v2366 = vadd.f32 %v2157, %v2336
      %v2367 = vadd.f32 %v2158, %v2339
      %v2368 = vadd.f32 %v2159, %v2344
      %v2369 = vadd.f32 %v2160, %v2347
      %v2370 = vadd.f32 %v2161, %v2352
      %v2371 = vadd.f32 %v2162, %v2355
      %v2372 = vadd.f32 %v2163, %v2360
      %v2373 = vadd.f32 %v2164, %v2363
      %v2374 = vld [vmem:[%s373] sm:$0xf]
      %v2375 = vld [vmem:[%s373 + $0x8] sm:$0xf]
      %v2376 = vld [vmem:[%s373 + $0x10] sm:$0xf]
      %v2377 = vld [vmem:[%s373 + $0x18] sm:$0xf]
      %v2378 = vld [vmem:[%s373 + $0x20] sm:$0xf]
      %v2379 = vld [vmem:[%s373 + $0x28] sm:$0xf]
      %v2380 = vld [vmem:[%s373 + $0x30] sm:$0xf]
      %v2381 = vld [vmem:[%s373 + $0x38] sm:$0xf]
      %v2382 = vld [vmem:[%s3 + $0x240] sm:$0xf]
      %v2383 = vld [vmem:[%s3 + $0x244] sm:$0xf]
      %v2384 = vld [vmem:[%s3 + $0x248] sm:$0xf]
      %v2385 = vld [vmem:[%s3 + $0x24c] sm:$0xf]
      %v2386 = vld [vmem:[%s3 + $0x250] sm:$0xf]
      %v2387 = vld [vmem:[%s3 + $0x254] sm:$0xf]
      %v2388 = vld [vmem:[%s3 + $0x258] sm:$0xf]
      %v2389 = vld [vmem:[%s3 + $0x25c] sm:$0xf]
      %v2390 = vld [vmem:[%s3 + $0x260] sm:$0xf]
      %v2391 = vld [vmem:[%s3 + $0x264] sm:$0xf]
      %v2392 = vld [vmem:[%s3 + $0x268] sm:$0xf]
      %v2393 = vld [vmem:[%s3 + $0x26c] sm:$0xf]
      %v2394 = vld [vmem:[%s3 + $0x270] sm:$0xf]
      %v2395 = vld [vmem:[%s3 + $0x274] sm:$0xf]
      %v2396 = vld [vmem:[%s3 + $0x278] sm:$0xf]
      %v2397 = vld [vmem:[%s3 + $0x27c] sm:$0xf]
      %v2406 = vunpack.c.l.b16 %v2374
      %v2407 = vunpack.c.l.b16 %v2375
      %v2408 = vunpack.c.l.b16 %v2376
      %v2409 = vunpack.c.l.b16 %v2377
      %v2410 = vunpack.c.l.b16 %v2378
      %v2411 = vunpack.c.l.b16 %v2379
      %v2412 = vunpack.c.l.b16 %v2380
      %v2413 = vunpack.c.l.b16 %v2381
      %v2414 = vpack.c.b16 %v2407, %v2406
      %v2415 = vpack.c.b16 %v2409, %v2408
      %v2416 = vpack.c.b16 %v2411, %v2410
      %v2417 = vpack.c.b16 %v2413, %v2412
      %v2438 = vunpack.c.l.b16 %v2382
      %v2439 = vunpack.c.l.b16 %v2383
      %v2440 = vunpack.c.l.b16 %v2384
      %v2441 = vunpack.c.l.b16 %v2385
      %v2442 = vunpack.c.l.b16 %v2386
      %v2443 = vunpack.c.l.b16 %v2387
      %v2444 = vunpack.c.l.b16 %v2388
      %v2445 = vunpack.c.l.b16 %v2389
      %v2446 = vunpack.c.l.b16 %v2390
      %v2447 = vunpack.c.l.b16 %v2391
      %v2448 = vunpack.c.l.b16 %v2392
      %v2449 = vunpack.c.l.b16 %v2393
      %v2450 = vunpack.c.l.b16 %v2394
      %v2451 = vunpack.c.l.b16 %v2395
      %v2452 = vunpack.c.l.b16 %v2396
      %v2453 = vunpack.c.l.b16 %v2397
      %v2454 = vpack.c.b16 %v2439, %v2438
      %v2455 = vpack.c.b16 %v2441, %v2440
      %v2456 = vpack.c.b16 %v2443, %v2442
      %v2457 = vpack.c.b16 %v2445, %v2444
      %v2458 = vpack.c.b16 %v2447, %v2446
      %v2459 = vpack.c.b16 %v2449, %v2448
      %v2460 = vpack.c.b16 %v2451, %v2450
      %v2461 = vpack.c.b16 %v2453, %v2452
      %2470 = vmatprep.subr.bf16.mxu0 0
      %2471 = vmatpush1.bf16.msra.mxu0 %v2454
      %2472 = vmatprep.subr.bf16.mxu0 0
      %2473 = vmatpush1.bf16.msra.mxu0 %v2455
      %2474 = vmatprep.subr.bf16.mxu0 0
      %2475 = vmatpush1.bf16.msra.mxu0 %v2456
      %2476 = vmatprep.subr.bf16.mxu0 0
      %2477 = vmatpush1.bf16.msra.mxu0 %v2457
      %2478 = vmatprep.subr.bf16.mxu0 0
      %2479 = vmatpush1.bf16.msra.mxu0 %v2458
      %2480 = vmatprep.subr.bf16.mxu0 0
      %2481 = vmatpush1.bf16.msra.mxu0 %v2459
      %2482 = vmatprep.subr.bf16.mxu0 0
      %2483 = vmatpush1.bf16.msra.mxu0 %v2460
      %2484 = vmatprep.subr.bf16.mxu0 0
      %2485 = vmatpush1.bf16.msra.mxu0 %v2461
      %2486 = vmatprep.subr.bf16.mxu0 0
      %2487 = vmatpush1.bf16.msra.mxu0 0
      %2488 = vmatprep.subr.bf16.mxu0 0
      %2489 = vmatpush1.bf16.msra.mxu0 0
      %2490 = vmatprep.subr.bf16.mxu0 0
      %2491 = vmatpush1.bf16.msra.mxu0 0
      %2492 = vmatprep.subr.bf16.mxu0 0
      %2493 = vmatpush1.bf16.msra.mxu0 0
      %2494 = vmatprep.subr.bf16.mxu0 0
      %2495 = vmatpush1.bf16.msra.mxu0 0
      %2496 = vmatprep.subr.bf16.mxu0 0
      %2497 = vmatpush1.bf16.msra.mxu0 0
      %2498 = vmatprep.subr.bf16.mxu0 0
      %2499 = vmatpush1.bf16.msra.mxu0 0
      %2500 = vmatprep.subr.bf16.mxu0 0
      %2501 = vmatpush1.bf16.msra.mxu0 0
      %2502 = vmatprep.mubr.bf16.mxu0 0
      %2503 = vmatmul.mubr.bf16.gmra.mrb[0].mxu0 %v2414
      %v2504 = vpop.f32.mrb[0].mxu0
      %v2505 = vadd.f32 0.0, %v2504
      %v2506 = vpop.f32.mrb[0].mxu0
      %v2507 = vpop.f32.mrb[0].mxu0
      %v2508 = vadd.f32 0.0, %v2507
      %v2509 = vpop.f32.mrb[0].mxu0
      %2510 = vmatprep.mubr.bf16.mxu0 0
      %2511 = vmatmul.mubr.bf16.gmra.mrb[0].mxu0 %v2415
      %v2512 = vpop.f32.mrb[0].mxu0
      %v2513 = vadd.f32 0.0, %v2512
      %v2514 = vpop.f32.mrb[0].mxu0
      %v2515 = vpop.f32.mrb[0].mxu0
      %v2516 = vadd.f32 0.0, %v2515
      %v2517 = vpop.f32.mrb[0].mxu0
      %2518 = vmatprep.mubr.bf16.mxu0 0
      %2519 = vmatmul.mubr.bf16.gmra.mrb[0].mxu0 %v2416
      %v2520 = vpop.f32.mrb[0].mxu0
      %v2521 = vadd.f32 0.0, %v2520
      %v2522 = vpop.f32.mrb[0].mxu0
      %v2523 = vpop.f32.mrb[0].mxu0
      %v2524 = vadd.f32 0.0, %v2523
      %v2525 = vpop.f32.mrb[0].mxu0
      %2526 = vmatprep.mubr.bf16.mxu0 0
      %2527 = vmatmul.mubr.bf16.gmra.mrb[0].mxu0 %v2417
      %v2528 = vpop.f32.mrb[0].mxu0
      %v2529 = vadd.f32 0.0, %v2528
      %v2530 = vpop.f32.mrb[0].mxu0
      %v2531 = vpop.f32.mrb[0].mxu0
      %v2532 = vadd.f32 0.0, %v2531
      %v2533 = vpop.f32.mrb[0].mxu0
      %2534 = vdwg.mxu0
      %v2535 = vadd.f32 %v2366, %v2505
      %v2536 = vadd.f32 %v2367, %v2508
      %v2537 = vadd.f32 %v2368, %v2513
      %v2538 = vadd.f32 %v2369, %v2516
      %v2539 = vadd.f32 %v2370, %v2521
      %v2540 = vadd.f32 %v2371, %v2524
      %v2541 = vadd.f32 %v2372, %v2529
      %v2542 = vadd.f32 %v2373, %v2532
      %v2543 = vld [vmem:[%s373] sm:$0xf]
      %v2544 = vld [vmem:[%s373 + $0x4] sm:$0x1]
      %v2545 = vld [vmem:[%s373 + $0x8] sm:$0xf]
      %v2546 = vld [vmem:[%s373 + $0xc] sm:$0x1]
      %v2547 = vld [vmem:[%s373 + $0x10] sm:$0xf]
      %v2548 = vld [vmem:[%s373 + $0x14] sm:$0x1]
      %v2549 = vld [vmem:[%s373 + $0x18] sm:$0xf]
      %v2550 = vld [vmem:[%s373 + $0x1c] sm:$0x1]
      %v2551 = vld [vmem:[%s373 + $0x20] sm:$0xf]
      %v2552 = vld [vmem:[%s373 + $0x24] sm:$0x1]
      %v2553 = vld [vmem:[%s373 + $0x28] sm:$0xf]
      %v2554 = vld [vmem:[%s373 + $0x2c] sm:$0x1]
      %v2555 = vld [vmem:[%s373 + $0x30] sm:$0xf]
      %v2556 = vld [vmem:[%s373 + $0x34] sm:$0x1]
      %v2557 = vld [vmem:[%s373 + $0x38] sm:$0xf]
      %v2558 = vld [vmem:[%s373 + $0x3c] sm:$0x1]
      %v2560 = vshrl.u32 %v2543, 16
      %v2562 = vrot.slane %v2560, 4
      %v2563 = vshll.u32 %v2543, 16
      %v2565 = vrot.slane %v2563, 5
      %v2566 = vor.u32 %v2562, %v2565
      %v2567 = vrot.slane %v2566, 4
      %v2569 = vshll.u32 %v2544, 16
      %v2571 = vrot.slane %v2569, 5
      %v2572 = vsel %vm447, %v2567, %v2571
      %v2574 = vshrl.u32 %v2545, 16
      %v2576 = vrot.slane %v2574, 4
      %v2577 = vshll.u32 %v2545, 16
      %v2579 = vrot.slane %v2577, 5
      %v2580 = vor.u32 %v2576, %v2579
      %v2581 = vrot.slane %v2580, 4
      %v2583 = vshll.u32 %v2546, 16
      %v2585 = vrot.slane %v2583, 5
      %v2586 = vsel %vm447, %v2581, %v2585
      %v2588 = vshrl.u32 %v2547, 16
      %v2590 = vrot.slane %v2588, 4
      %v2591 = vshll.u32 %v2547, 16
      %v2593 = vrot.slane %v2591, 5
      %v2594 = vor.u32 %v2590, %v2593
      %v2595 = vrot.slane %v2594, 4
      %v2597 = vshll.u32 %v2548, 16
      %v2599 = vrot.slane %v2597, 5
      %v2600 = vsel %vm447, %v2595, %v2599
      %v2602 = vshrl.u32 %v2549, 16
      %v2604 = vrot.slane %v2602, 4
      %v2605 = vshll.u32 %v2549, 16
      %v2607 = vrot.slane %v2605, 5
      %v2608 = vor.u32 %v2604, %v2607
      %v2609 = vrot.slane %v2608, 4
      %v2611 = vshll.u32 %v2550, 16
      %v2613 = vrot.slane %v2611, 5
      %v2614 = vsel %vm447, %v2609, %v2613
      %v2616 = vshrl.u32 %v2551, 16
      %v2618 = vrot.slane %v2616, 4
      %v2619 = vshll.u32 %v2551, 16
      %v2621 = vrot.slane %v2619, 5
      %v2622 = vor.u32 %v2618, %v2621
      %v2623 = vrot.slane %v2622, 4
      %v2625 = vshll.u32 %v2552, 16
      %v2627 = vrot.slane %v2625, 5
      %v2628 = vsel %vm447, %v2623, %v2627
      %v2630 = vshrl.u32 %v2553, 16
      %v2632 = vrot.slane %v2630, 4
      %v2633 = vshll.u32 %v2553, 16
      %v2635 = vrot.slane %v2633, 5
      %v2636 = vor.u32 %v2632, %v2635
      %v2637 = vrot.slane %v2636, 4
      %v2639 = vshll.u32 %v2554, 16
      %v2641 = vrot.slane %v2639, 5
      %v2642 = vsel %vm447, %v2637, %v2641
      %v2644 = vshrl.u32 %v2555, 16
      %v2646 = vrot.slane %v2644, 4
      %v2647 = vshll.u32 %v2555, 16
      %v2649 = vrot.slane %v2647, 5
      %v2650 = vor.u32 %v2646, %v2649
      %v2651 = vrot.slane %v2650, 4
      %v2653 = vshll.u32 %v2556, 16
      %v2655 = vrot.slane %v2653, 5
      %v2656 = vsel %vm447, %v2651, %v2655
      %v2658 = vshrl.u32 %v2557, 16
      %v2660 = vrot.slane %v2658, 4
      %v2661 = vshll.u32 %v2557, 16
      %v2663 = vrot.slane %v2661, 5
      %v2664 = vor.u32 %v2660, %v2663
      %v2665 = vrot.slane %v2664, 4
      %v2667 = vshll.u32 %v2558, 16
      %v2669 = vrot.slane %v2667, 5
      %v2670 = vsel %vm447, %v2665, %v2669
      %v2671 = vld [vmem:[%s3 + $0x280] sm:$0xf]
      %v2672 = vld [vmem:[%s3 + $0x284] sm:$0xf]
      %v2673 = vld [vmem:[%s3 + $0x288] sm:$0xf]
      %v2674 = vld [vmem:[%s3 + $0x28c] sm:$0xf]
      %v2675 = vld [vmem:[%s3 + $0x290] sm:$0xf]
      %v2676 = vld [vmem:[%s3 + $0x294] sm:$0xf]
      %v2677 = vld [vmem:[%s3 + $0x298] sm:$0xf]
      %v2678 = vld [vmem:[%s3 + $0x29c] sm:$0xf]
      %v2679 = vld [vmem:[%s3 + $0x2a0] sm:$0xf]
      %v2680 = vld [vmem:[%s3 + $0x2a4] sm:$0xf]
      %v2681 = vld [vmem:[%s3 + $0x2a8] sm:$0xf]
      %v2682 = vld [vmem:[%s3 + $0x2ac] sm:$0xf]
      %v2683 = vld [vmem:[%s3 + $0x2b0] sm:$0xf]
      %v2684 = vld [vmem:[%s3 + $0x2b4] sm:$0xf]
      %v2685 = vld [vmem:[%s3 + $0x2b8] sm:$0xf]
      %v2686 = vld [vmem:[%s3 + $0x2bc] sm:$0xf]
      %v2687 = vunpack.c.l.b16 %v2572
      %v2688 = vunpack.c.l.b16 %v2586
      %v2689 = vunpack.c.l.b16 %v2600
      %v2690 = vunpack.c.l.b16 %v2614
      %v2691 = vunpack.c.l.b16 %v2628
      %v2692 = vunpack.c.l.b16 %v2642
      %v2693 = vunpack.c.l.b16 %v2656
      %v2694 = vunpack.c.l.b16 %v2670
      %v2695 = vpack.c.b16 %v2688, %v2687
      %v2696 = vpack.c.b16 %v2690, %v2689
      %v2697 = vpack.c.b16 %v2692, %v2691
      %v2698 = vpack.c.b16 %v2694, %v2693
      %v2719 = vunpack.c.l.b16 %v2671
      %v2720 = vunpack.c.l.b16 %v2672
      %v2721 = vunpack.c.l.b16 %v2673
      %v2722 = vunpack.c.l.b16 %v2674
      %v2723 = vunpack.c.l.b16 %v2675
      %v2724 = vunpack.c.l.b16 %v2676
      %v2725 = vunpack.c.l.b16 %v2677
      %v2726 = vunpack.c.l.b16 %v2678
      %v2727 = vunpack.c.l.b16 %v2679
      %v2728 = vunpack.c.l.b16 %v2680
      %v2729 = vunpack.c.l.b16 %v2681
      %v2730 = vunpack.c.l.b16 %v2682
      %v2731 = vunpack.c.l.b16 %v2683
      %v2732 = vunpack.c.l.b16 %v2684
      %v2733 = vunpack.c.l.b16 %v2685
      %v2734 = vunpack.c.l.b16 %v2686
      %v2735 = vpack.c.b16 %v2720, %v2719
      %v2736 = vpack.c.b16 %v2722, %v2721
      %v2737 = vpack.c.b16 %v2724, %v2723
      %v2738 = vpack.c.b16 %v2726, %v2725
      %v2739 = vpack.c.b16 %v2728, %v2727
      %v2740 = vpack.c.b16 %v2730, %v2729
      %v2741 = vpack.c.b16 %v2732, %v2731
      %v2742 = vpack.c.b16 %v2734, %v2733
      %2751 = vmatprep.subr.bf16.mxu0 0
      %2752 = vmatpush1.bf16.msra.mxu0 %v2735
      %2753 = vmatprep.subr.bf16.mxu0 0
      %2754 = vmatpush1.bf16.msra.mxu0 %v2736
      %2755 = vmatprep.subr.bf16.mxu0 0
      %2756 = vmatpush1.bf16.msra.mxu0 %v2737
      %2757 = vmatprep.subr.bf16.mxu0 0
      %2758 = vmatpush1.bf16.msra.mxu0 %v2738
      %2759 = vmatprep.subr.bf16.mxu0 0
      %2760 = vmatpush1.bf16.msra.mxu0 %v2739
      %2761 = vmatprep.subr.bf16.mxu0 0
      %2762 = vmatpush1.bf16.msra.mxu0 %v2740
      %2763 = vmatprep.subr.bf16.mxu0 0
      %2764 = vmatpush1.bf16.msra.mxu0 %v2741
      %2765 = vmatprep.subr.bf16.mxu0 0
      %2766 = vmatpush1.bf16.msra.mxu0 %v2742
      %2767 = vmatprep.subr.bf16.mxu0 0
      %2768 = vmatpush1.bf16.msra.mxu0 0
      %2769 = vmatprep.subr.bf16.mxu0 0
      %2770 = vmatpush1.bf16.msra.mxu0 0
      %2771 = vmatprep.subr.bf16.mxu0 0
      %2772 = vmatpush1.bf16.msra.mxu0 0
      %2773 = vmatprep.subr.bf16.mxu0 0
      %2774 = vmatpush1.bf16.msra.mxu0 0
      %2775 = vmatprep.subr.bf16.mxu0 0
      %2776 = vmatpush1.bf16.msra.mxu0 0
      %2777 = vmatprep.subr.bf16.mxu0 0
      %2778 = vmatpush1.bf16.msra.mxu0 0
      %2779 = vmatprep.subr.bf16.mxu0 0
      %2780 = vmatpush1.bf16.msra.mxu0 0
      %2781 = vmatprep.subr.bf16.mxu0 0
      %2782 = vmatpush1.bf16.msra.mxu0 0
      %2783 = vmatprep.mubr.bf16.mxu0 0
      %2784 = vmatmul.mubr.bf16.gmra.mrb[0].mxu0 %v2695
      %v2785 = vpop.f32.mrb[0].mxu0
      %v2786 = vadd.f32 0.0, %v2785
      %v2787 = vpop.f32.mrb[0].mxu0
      %v2788 = vpop.f32.mrb[0].mxu0
      %v2789 = vadd.f32 0.0, %v2788
      %v2790 = vpop.f32.mrb[0].mxu0
      %2791 = vmatprep.mubr.bf16.mxu0 0
      %2792 = vmatmul.mubr.bf16.gmra.mrb[0].mxu0 %v2696
      %v2793 = vpop.f32.mrb[0].mxu0
      %v2794 = vadd.f32 0.0, %v2793
      %v2795 = vpop.f32.mrb[0].mxu0
      %v2796 = vpop.f32.mrb[0].mxu0
      %v2797 = vadd.f32 0.0, %v2796
      %v2798 = vpop.f32.mrb[0].mxu0
      %2799 = vmatprep.mubr.bf16.mxu0 0
      %2800 = vmatmul.mubr.bf16.gmra.mrb[0].mxu0 %v2697
      %v2801 = vpop.f32.mrb[0].mxu0
      %v2802 = vadd.f32 0.0, %v2801
      %v2803 = vpop.f32.mrb[0].mxu0
      %v2804 = vpop.f32.mrb[0].mxu0
      %v2805 = vadd.f32 0.0, %v2804
      %v2806 = vpop.f32.mrb[0].mxu0
      %2807 = vmatprep.mubr.bf16.mxu0 0
      %2808 = vmatmul.mubr.bf16.gmra.mrb[0].mxu0 %v2698
      %v2809 = vpop.f32.mrb[0].mxu0
      %v2810 = vadd.f32 0.0, %v2809
      %v2811 = vpop.f32.mrb[0].mxu0
      %v2812 = vpop.f32.mrb[0].mxu0
      %v2813 = vadd.f32 0.0, %v2812
      %v2814 = vpop.f32.mrb[0].mxu0
      %2815 = vdwg.mxu0
      %v2816 = vadd.f32 %v2535, %v2786
      %v2817 = vadd.f32 %v2536, %v2789
      %v2818 = vadd.f32 %v2537, %v2794
      %v2819 = vadd.f32 %v2538, %v2797
      %v2820 = vadd.f32 %v2539, %v2802
      %v2821 = vadd.f32 %v2540, %v2805
      %v2822 = vadd.f32 %v2541, %v2810
      %v2823 = vadd.f32 %v2542, %v2813
      %v2824 = vld [vmem:[%s373] sm:$0xe]
      %v2825 = vld [vmem:[%s373 + $0x8] sm:$0xe]
      %v2826 = vld [vmem:[%s373 + $0x10] sm:$0xe]
      %v2827 = vld [vmem:[%s373 + $0x18] sm:$0xe]
      %v2828 = vld [vmem:[%s373 + $0x20] sm:$0xe]
      %v2829 = vld [vmem:[%s373 + $0x28] sm:$0xe]
      %v2830 = vld [vmem:[%s373 + $0x30] sm:$0xe]
      %v2831 = vld [vmem:[%s373 + $0x38] sm:$0xe]
      %v2848 = vrot.slane %v2824, 5
      %v2849 = vrot.slane %v2848, 4
      %v2850 = vrot.slane %v2544, 5
      %v2851 = vsel %vm868, %v2849, %v2850
      %v2852 = vrot.slane %v2825, 5
      %v2853 = vrot.slane %v2852, 4
      %v2854 = vrot.slane %v2546, 5
      %v2855 = vsel %vm868, %v2853, %v2854
      %v2856 = vrot.slane %v2826, 5
      %v2857 = vrot.slane %v2856, 4
      %v2858 = vrot.slane %v2548, 5
      %v2859 = vsel %vm868, %v2857, %v2858
      %v2860 = vrot.slane %v2827, 5
      %v2861 = vrot.slane %v2860, 4
      %v2862 = vrot.slane %v2550, 5
      %v2863 = vsel %vm868, %v2861, %v2862
      %v2864 = vrot.slane %v2828, 5
      %v2865 = vrot.slane %v2864, 4
      %v2866 = vrot.slane %v2552, 5
      %v2867 = vsel %vm868, %v2865, %v2866
      %v2868 = vrot.slane %v2829, 5
      %v2869 = vrot.slane %v2868, 4
      %v2870 = vrot.slane %v2554, 5
      %v2871 = vsel %vm868, %v2869, %v2870
      %v2872 = vrot.slane %v2830, 5
      %v2873 = vrot.slane %v2872, 4
      %v2874 = vrot.slane %v2556, 5
      %v2875 = vsel %vm868, %v2873, %v2874
      %v2876 = vrot.slane %v2831, 5
      %v2877 = vrot.slane %v2876, 4
      %v2878 = vrot.slane %v2558, 5
      %v2879 = vsel %vm868, %v2877, %v2878
      %v2880 = vld [vmem:[%s3 + $0x2c0] sm:$0xf]
      %v2881 = vld [vmem:[%s3 + $0x2c4] sm:$0xf]
      %v2882 = vld [vmem:[%s3 + $0x2c8] sm:$0xf]
      %v2883 = vld [vmem:[%s3 + $0x2cc] sm:$0xf]
      %v2884 = vld [vmem:[%s3 + $0x2d0] sm:$0xf]
      %v2885 = vld [vmem:[%s3 + $0x2d4] sm:$0xf]
      %v2886 = vld [vmem:[%s3 + $0x2d8] sm:$0xf]
      %v2887 = vld [vmem:[%s3 + $0x2dc] sm:$0xf]
      %v2888 = vld [vmem:[%s3 + $0x2e0] sm:$0xf]
      %v2889 = vld [vmem:[%s3 + $0x2e4] sm:$0xf]
      %v2890 = vld [vmem:[%s3 + $0x2e8] sm:$0xf]
      %v2891 = vld [vmem:[%s3 + $0x2ec] sm:$0xf]
      %v2892 = vld [vmem:[%s3 + $0x2f0] sm:$0xf]
      %v2893 = vld [vmem:[%s3 + $0x2f4] sm:$0xf]
      %v2894 = vld [vmem:[%s3 + $0x2f8] sm:$0xf]
      %v2895 = vld [vmem:[%s3 + $0x2fc] sm:$0xf]
      %v2896 = vunpack.c.l.b16 %v2851
      %v2897 = vunpack.c.l.b16 %v2855
      %v2898 = vunpack.c.l.b16 %v2859
      %v2899 = vunpack.c.l.b16 %v2863
      %v2900 = vunpack.c.l.b16 %v2867
      %v2901 = vunpack.c.l.b16 %v2871
      %v2902 = vunpack.c.l.b16 %v2875
      %v2903 = vunpack.c.l.b16 %v2879
      %v2904 = vpack.c.b16 %v2897, %v2896
      %v2905 = vpack.c.b16 %v2899, %v2898
      %v2906 = vpack.c.b16 %v2901, %v2900
      %v2907 = vpack.c.b16 %v2903, %v2902
      %v2928 = vunpack.c.l.b16 %v2880
      %v2929 = vunpack.c.l.b16 %v2881
      %v2930 = vunpack.c.l.b16 %v2882
      %v2931 = vunpack.c.l.b16 %v2883
      %v2932 = vunpack.c.l.b16 %v2884
      %v2933 = vunpack.c.l.b16 %v2885
      %v2934 = vunpack.c.l.b16 %v2886
      %v2935 = vunpack.c.l.b16 %v2887
      %v2936 = vunpack.c.l.b16 %v2888
      %v2937 = vunpack.c.l.b16 %v2889
      %v2938 = vunpack.c.l.b16 %v2890
      %v2939 = vunpack.c.l.b16 %v2891
      %v2940 = vunpack.c.l.b16 %v2892
      %v2941 = vunpack.c.l.b16 %v2893
      %v2942 = vunpack.c.l.b16 %v2894
      %v2943 = vunpack.c.l.b16 %v2895
      %v2944 = vpack.c.b16 %v2929, %v2928
      %v2945 = vpack.c.b16 %v2931, %v2930
      %v2946 = vpack.c.b16 %v2933, %v2932
      %v2947 = vpack.c.b16 %v2935, %v2934
      %v2948 = vpack.c.b16 %v2937, %v2936
      %v2949 = vpack.c.b16 %v2939, %v2938
      %v2950 = vpack.c.b16 %v2941, %v2940
      %v2951 = vpack.c.b16 %v2943, %v2942
      %2960 = vmatprep.subr.bf16.mxu0 0
      %2961 = vmatpush1.bf16.msra.mxu0 %v2944
      %2962 = vmatprep.subr.bf16.mxu0 0
      %2963 = vmatpush1.bf16.msra.mxu0 %v2945
      %2964 = vmatprep.subr.bf16.mxu0 0
      %2965 = vmatpush1.bf16.msra.mxu0 %v2946
      %2966 = vmatprep.subr.bf16.mxu0 0
      %2967 = vmatpush1.bf16.msra.mxu0 %v2947
      %2968 = vmatprep.subr.bf16.mxu0 0
      %2969 = vmatpush1.bf16.msra.mxu0 %v2948
      %2970 = vmatprep.subr.bf16.mxu0 0
      %2971 = vmatpush1.bf16.msra.mxu0 %v2949
      %2972 = vmatprep.subr.bf16.mxu0 0
      %2973 = vmatpush1.bf16.msra.mxu0 %v2950
      %2974 = vmatprep.subr.bf16.mxu0 0
      %2975 = vmatpush1.bf16.msra.mxu0 %v2951
      %2976 = vmatprep.subr.bf16.mxu0 0
      %2977 = vmatpush1.bf16.msra.mxu0 0
      %2978 = vmatprep.subr.bf16.mxu0 0
      %2979 = vmatpush1.bf16.msra.mxu0 0
      %2980 = vmatprep.subr.bf16.mxu0 0
      %2981 = vmatpush1.bf16.msra.mxu0 0
      %2982 = vmatprep.subr.bf16.mxu0 0
      %2983 = vmatpush1.bf16.msra.mxu0 0
      %2984 = vmatprep.subr.bf16.mxu0 0
      %2985 = vmatpush1.bf16.msra.mxu0 0
      %2986 = vmatprep.subr.bf16.mxu0 0
      %2987 = vmatpush1.bf16.msra.mxu0 0
      %2988 = vmatprep.subr.bf16.mxu0 0
      %2989 = vmatpush1.bf16.msra.mxu0 0
      %2990 = vmatprep.subr.bf16.mxu0 0
      %2991 = vmatpush1.bf16.msra.mxu0 0
      %2992 = vmatprep.mubr.bf16.mxu0 0
      %2993 = vmatmul.mubr.bf16.gmra.mrb[0].mxu0 %v2904
      %v2994 = vpop.f32.mrb[0].mxu0
      %v2995 = vadd.f32 0.0, %v2994
      %v2996 = vpop.f32.mrb[0].mxu0
      %v2997 = vpop.f32.mrb[0].mxu0
      %v2998 = vadd.f32 0.0, %v2997
      %v2999 = vpop.f32.mrb[0].mxu0
      %3000 = vmatprep.mubr.bf16.mxu0 0
      %3001 = vmatmul.mubr.bf16.gmra.mrb[0].mxu0 %v2905
      %v3002 = vpop.f32.mrb[0].mxu0
      %v3003 = vadd.f32 0.0, %v3002
      %v3004 = vpop.f32.mrb[0].mxu0
      %v3005 = vpop.f32.mrb[0].mxu0
      %v3006 = vadd.f32 0.0, %v3005
      %v3007 = vpop.f32.mrb[0].mxu0
      %3008 = vmatprep.mubr.bf16.mxu0 0
      %3009 = vmatmul.mubr.bf16.gmra.mrb[0].mxu0 %v2906
      %v3010 = vpop.f32.mrb[0].mxu0
      %v3011 = vadd.f32 0.0, %v3010
      %v3012 = vpop.f32.mrb[0].mxu0
      %v3013 = vpop.f32.mrb[0].mxu0
      %v3014 = vadd.f32 0.0, %v3013
      %v3015 = vpop.f32.mrb[0].mxu0
      %3016 = vmatprep.mubr.bf16.mxu0 0
      %3017 = vmatmul.mubr.bf16.gmra.mrb[0].mxu0 %v2907
      %v3018 = vpop.f32.mrb[0].mxu0
      %v3019 = vadd.f32 0.0, %v3018
      %v3020 = vpop.f32.mrb[0].mxu0
      %v3021 = vpop.f32.mrb[0].mxu0
      %v3022 = vadd.f32 0.0, %v3021
      %v3023 = vpop.f32.mrb[0].mxu0
      %3024 = vdwg.mxu0
      %v3025 = vadd.f32 %v2816, %v2995
      %v3026 = vadd.f32 %v2817, %v2998
      %v3027 = vadd.f32 %v2818, %v3003
      %v3028 = vadd.f32 %v2819, %v3006
      %v3029 = vadd.f32 %v2820, %v3011
      %v3030 = vadd.f32 %v2821, %v3014
      %v3031 = vadd.f32 %v2822, %v3019
      %v3032 = vadd.f32 %v2823, %v3022
      %s3033 = scalar_lea.vmem %s373, 8
      %v3034 = vld [vmem:[%s3033] sm:$0xf]
      %v3035 = vld [vmem:[%s3033 + $0x8] sm:$0xf]
      %v3036 = vld [vmem:[%s3033 + $0x10] sm:$0xf]
      %v3037 = vld [vmem:[%s3033 + $0x18] sm:$0xf]
      %v3038 = vld [vmem:[%s3033 + $0x20] sm:$0xf]
      %v3039 = vld [vmem:[%s3033 + $0x28] sm:$0xf]
      %v3040 = vld [vmem:[%s3033 + $0x30] sm:$0xf]
      %v3041 = vld [vmem:[%s3033 + $0x38] sm:$0xf]
      %v3042 = vld [vmem:[%s3 + $0x300] sm:$0xf]
      %v3043 = vld [vmem:[%s3 + $0x304] sm:$0xf]
      %v3044 = vld [vmem:[%s3 + $0x308] sm:$0xf]
      %v3045 = vld [vmem:[%s3 + $0x30c] sm:$0xf]
      %v3046 = vld [vmem:[%s3 + $0x310] sm:$0xf]
      %v3047 = vld [vmem:[%s3 + $0x314] sm:$0xf]
      %v3048 = vld [vmem:[%s3 + $0x318] sm:$0xf]
      %v3049 = vld [vmem:[%s3 + $0x31c] sm:$0xf]
      %v3050 = vld [vmem:[%s3 + $0x320] sm:$0xf]
      %v3051 = vld [vmem:[%s3 + $0x324] sm:$0xf]
      %v3052 = vld [vmem:[%s3 + $0x328] sm:$0xf]
      %v3053 = vld [vmem:[%s3 + $0x32c] sm:$0xf]
      %v3054 = vld [vmem:[%s3 + $0x330] sm:$0xf]
      %v3055 = vld [vmem:[%s3 + $0x334] sm:$0xf]
      %v3056 = vld [vmem:[%s3 + $0x338] sm:$0xf]
      %v3057 = vld [vmem:[%s3 + $0x33c] sm:$0xf]
      %v3066 = vunpack.c.l.b16 %v3034
      %v3067 = vunpack.c.l.b16 %v3035
      %v3068 = vunpack.c.l.b16 %v3036
      %v3069 = vunpack.c.l.b16 %v3037
      %v3070 = vunpack.c.l.b16 %v3038
      %v3071 = vunpack.c.l.b16 %v3039
      %v3072 = vunpack.c.l.b16 %v3040
      %v3073 = vunpack.c.l.b16 %v3041
      %v3074 = vpack.c.b16 %v3067, %v3066
      %v3075 = vpack.c.b16 %v3069, %v3068
      %v3076 = vpack.c.b16 %v3071, %v3070
      %v3077 = vpack.c.b16 %v3073, %v3072
      %v3098 = vunpack.c.l.b16 %v3042
      %v3099 = vunpack.c.l.b16 %v3043
      %v3100 = vunpack.c.l.b16 %v3044
      %v3101 = vunpack.c.l.b16 %v3045
      %v3102 = vunpack.c.l.b16 %v3046
      %v3103 = vunpack.c.l.b16 %v3047
      %v3104 = vunpack.c.l.b16 %v3048
      %v3105 = vunpack.c.l.b16 %v3049
      %v3106 = vunpack.c.l.b16 %v3050
      %v3107 = vunpack.c.l.b16 %v3051
      %v3108 = vunpack.c.l.b16 %v3052
      %v3109 = vunpack.c.l.b16 %v3053
      %v3110 = vunpack.c.l.b16 %v3054
      %v3111 = vunpack.c.l.b16 %v3055
      %v3112 = vunpack.c.l.b16 %v3056
      %v3113 = vunpack.c.l.b16 %v3057
      %v3114 = vpack.c.b16 %v3099, %v3098
      %v3115 = vpack.c.b16 %v3101, %v3100
      %v3116 = vpack.c.b16 %v3103, %v3102
      %v3117 = vpack.c.b16 %v3105, %v3104
      %v3118 = vpack.c.b16 %v3107, %v3106
      %v3119 = vpack.c.b16 %v3109, %v3108
      %v3120 = vpack.c.b16 %v3111, %v3110
      %v3121 = vpack.c.b16 %v3113, %v3112
      %3130 = vmatprep.subr.bf16.mxu0 0
      %3131 = vmatpush1.bf16.msra.mxu0 %v3114
      %3132 = vmatprep.subr.bf16.mxu0 0
      %3133 = vmatpush1.bf16.msra.mxu0 %v3115
      %3134 = vmatprep.subr.bf16.mxu0 0
      %3135 = vmatpush1.bf16.msra.mxu0 %v3116
      %3136 = vmatprep.subr.bf16.mxu0 0
      %3137 = vmatpush1.bf16.msra.mxu0 %v3117
      %3138 = vmatprep.subr.bf16.mxu0 0
      %3139 = vmatpush1.bf16.msra.mxu0 %v3118
      %3140 = vmatprep.subr.bf16.mxu0 0
      %3141 = vmatpush1.bf16.msra.mxu0 %v3119
      %3142 = vmatprep.subr.bf16.mxu0 0
      %3143 = vmatpush1.bf16.msra.mxu0 %v3120
      %3144 = vmatprep.subr.bf16.mxu0 0
      %3145 = vmatpush1.bf16.msra.mxu0 %v3121
      %3146 = vmatprep.subr.bf16.mxu0 0
      %3147 = vmatpush1.bf16.msra.mxu0 0
      %3148 = vmatprep.subr.bf16.mxu0 0
      %3149 = vmatpush1.bf16.msra.mxu0 0
      %3150 = vmatprep.subr.bf16.mxu0 0
      %3151 = vmatpush1.bf16.msra.mxu0 0
      %3152 = vmatprep.subr.bf16.mxu0 0
      %3153 = vmatpush1.bf16.msra.mxu0 0
      %3154 = vmatprep.subr.bf16.mxu0 0
      %3155 = vmatpush1.bf16.msra.mxu0 0
      %3156 = vmatprep.subr.bf16.mxu0 0
      %3157 = vmatpush1.bf16.msra.mxu0 0
      %3158 = vmatprep.subr.bf16.mxu0 0
      %3159 = vmatpush1.bf16.msra.mxu0 0
      %3160 = vmatprep.subr.bf16.mxu0 0
      %3161 = vmatpush1.bf16.msra.mxu0 0
      %3162 = vmatprep.mubr.bf16.mxu0 0
      %3163 = vmatmul.mubr.bf16.gmra.mrb[0].mxu0 %v3074
      %v3164 = vpop.f32.mrb[0].mxu0
      %v3165 = vadd.f32 0.0, %v3164
      %v3166 = vpop.f32.mrb[0].mxu0
      %v3167 = vpop.f32.mrb[0].mxu0
      %v3168 = vadd.f32 0.0, %v3167
      %v3169 = vpop.f32.mrb[0].mxu0
      %3170 = vmatprep.mubr.bf16.mxu0 0
      %3171 = vmatmul.mubr.bf16.gmra.mrb[0].mxu0 %v3075
      %v3172 = vpop.f32.mrb[0].mxu0
      %v3173 = vadd.f32 0.0, %v3172
      %v3174 = vpop.f32.mrb[0].mxu0
      %v3175 = vpop.f32.mrb[0].mxu0
      %v3176 = vadd.f32 0.0, %v3175
      %v3177 = vpop.f32.mrb[0].mxu0
      %3178 = vmatprep.mubr.bf16.mxu0 0
      %3179 = vmatmul.mubr.bf16.gmra.mrb[0].mxu0 %v3076
      %v3180 = vpop.f32.mrb[0].mxu0
      %v3181 = vadd.f32 0.0, %v3180
      %v3182 = vpop.f32.mrb[0].mxu0
      %v3183 = vpop.f32.mrb[0].mxu0
      %v3184 = vadd.f32 0.0, %v3183
      %v3185 = vpop.f32.mrb[0].mxu0
      %3186 = vmatprep.mubr.bf16.mxu0 0
      %3187 = vmatmul.mubr.bf16.gmra.mrb[0].mxu0 %v3077
      %v3188 = vpop.f32.mrb[0].mxu0
      %v3189 = vadd.f32 0.0, %v3188
      %v3190 = vpop.f32.mrb[0].mxu0
      %v3191 = vpop.f32.mrb[0].mxu0
      %v3192 = vadd.f32 0.0, %v3191
      %v3193 = vpop.f32.mrb[0].mxu0
      %3194 = vdwg.mxu0
      %v3195 = vadd.f32 %v3025, %v3165
      %v3196 = vadd.f32 %v3026, %v3168
      %v3197 = vadd.f32 %v3027, %v3173
      %v3198 = vadd.f32 %v3028, %v3176
      %v3199 = vadd.f32 %v3029, %v3181
      %v3200 = vadd.f32 %v3030, %v3184
      %v3201 = vadd.f32 %v3031, %v3189
      %v3202 = vadd.f32 %v3032, %v3192
      %v3203 = vld [vmem:[%s3033] sm:$0xf]
      %v3204 = vld [vmem:[%s3033 + $0x4] sm:$0x1]
      %v3205 = vld [vmem:[%s3033 + $0x8] sm:$0xf]
      %v3206 = vld [vmem:[%s3033 + $0xc] sm:$0x1]
      %v3207 = vld [vmem:[%s3033 + $0x10] sm:$0xf]
      %v3208 = vld [vmem:[%s3033 + $0x14] sm:$0x1]
      %v3209 = vld [vmem:[%s3033 + $0x18] sm:$0xf]
      %v3210 = vld [vmem:[%s3033 + $0x1c] sm:$0x1]
      %v3211 = vld [vmem:[%s3033 + $0x20] sm:$0xf]
      %v3212 = vld [vmem:[%s3033 + $0x24] sm:$0x1]
      %v3213 = vld [vmem:[%s3033 + $0x28] sm:$0xf]
      %v3214 = vld [vmem:[%s3033 + $0x2c] sm:$0x1]
      %v3215 = vld [vmem:[%s3033 + $0x30] sm:$0xf]
      %v3216 = vld [vmem:[%s3033 + $0x34] sm:$0x1]
      %v3217 = vld [vmem:[%s3033 + $0x38] sm:$0xf]
      %v3218 = vld [vmem:[%s3033 + $0x3c] sm:$0x1]
      %v3220 = vshrl.u32 %v3203, 16
      %v3222 = vrot.slane %v3220, 4
      %v3223 = vshll.u32 %v3203, 16
      %v3225 = vrot.slane %v3223, 5
      %v3226 = vor.u32 %v3222, %v3225
      %v3227 = vrot.slane %v3226, 4
      %v3229 = vshll.u32 %v3204, 16
      %v3231 = vrot.slane %v3229, 5
      %v3232 = vsel %vm447, %v3227, %v3231
      %v3234 = vshrl.u32 %v3205, 16
      %v3236 = vrot.slane %v3234, 4
      %v3237 = vshll.u32 %v3205, 16
      %v3239 = vrot.slane %v3237, 5
      %v3240 = vor.u32 %v3236, %v3239
      %v3241 = vrot.slane %v3240, 4
      %v3243 = vshll.u32 %v3206, 16
      %v3245 = vrot.slane %v3243, 5
      %v3246 = vsel %vm447, %v3241, %v3245
      %v3248 = vshrl.u32 %v3207, 16
      %v3250 = vrot.slane %v3248, 4
      %v3251 = vshll.u32 %v3207, 16
      %v3253 = vrot.slane %v3251, 5
      %v3254 = vor.u32 %v3250, %v3253
      %v3255 = vrot.slane %v3254, 4
      %v3257 = vshll.u32 %v3208, 16
      %v3259 = vrot.slane %v3257, 5
      %v3260 = vsel %vm447, %v3255, %v3259
      %v3262 = vshrl.u32 %v3209, 16
      %v3264 = vrot.slane %v3262, 4
      %v3265 = vshll.u32 %v3209, 16
      %v3267 = vrot.slane %v3265, 5
      %v3268 = vor.u32 %v3264, %v3267
      %v3269 = vrot.slane %v3268, 4
      %v3271 = vshll.u32 %v3210, 16
      %v3273 = vrot.slane %v3271, 5
      %v3274 = vsel %vm447, %v3269, %v3273
      %v3276 = vshrl.u32 %v3211, 16
      %v3278 = vrot.slane %v3276, 4
      %v3279 = vshll.u32 %v3211, 16
      %v3281 = vrot.slane %v3279, 5
      %v3282 = vor.u32 %v3278, %v3281
      %v3283 = vrot.slane %v3282, 4
      %v3285 = vshll.u32 %v3212, 16
      %v3287 = vrot.slane %v3285, 5
      %v3288 = vsel %vm447, %v3283, %v3287
      %v3290 = vshrl.u32 %v3213, 16
      %v3292 = vrot.slane %v3290, 4
      %v3293 = vshll.u32 %v3213, 16
      %v3295 = vrot.slane %v3293, 5
      %v3296 = vor.u32 %v3292, %v3295
      %v3297 = vrot.slane %v3296, 4
      %v3299 = vshll.u32 %v3214, 16
      %v3301 = vrot.slane %v3299, 5
      %v3302 = vsel %vm447, %v3297, %v3301
      %v3304 = vshrl.u32 %v3215, 16
      %v3306 = vrot.slane %v3304, 4
      %v3307 = vshll.u32 %v3215, 16
      %v3309 = vrot.slane %v3307, 5
      %v3310 = vor.u32 %v3306, %v3309
      %v3311 = vrot.slane %v3310, 4
      %v3313 = vshll.u32 %v3216, 16
      %v3315 = vrot.slane %v3313, 5
      %v3316 = vsel %vm447, %v3311, %v3315
      %v3318 = vshrl.u32 %v3217, 16
      %v3320 = vrot.slane %v3318, 4
      %v3321 = vshll.u32 %v3217, 16
      %v3323 = vrot.slane %v3321, 5
      %v3324 = vor.u32 %v3320, %v3323
      %v3325 = vrot.slane %v3324, 4
      %v3327 = vshll.u32 %v3218, 16
      %v3329 = vrot.slane %v3327, 5
      %v3330 = vsel %vm447, %v3325, %v3329
      %v3331 = vld [vmem:[%s3 + $0x340] sm:$0xf]
      %v3332 = vld [vmem:[%s3 + $0x344] sm:$0xf]
      %v3333 = vld [vmem:[%s3 + $0x348] sm:$0xf]
      %v3334 = vld [vmem:[%s3 + $0x34c] sm:$0xf]
      %v3335 = vld [vmem:[%s3 + $0x350] sm:$0xf]
      %v3336 = vld [vmem:[%s3 + $0x354] sm:$0xf]
      %v3337 = vld [vmem:[%s3 + $0x358] sm:$0xf]
      %v3338 = vld [vmem:[%s3 + $0x35c] sm:$0xf]
      %v3339 = vld [vmem:[%s3 + $0x360] sm:$0xf]
      %v3340 = vld [vmem:[%s3 + $0x364] sm:$0xf]
      %v3341 = vld [vmem:[%s3 + $0x368] sm:$0xf]
      %v3342 = vld [vmem:[%s3 + $0x36c] sm:$0xf]
      %v3343 = vld [vmem:[%s3 + $0x370] sm:$0xf]
      %v3344 = vld [vmem:[%s3 + $0x374] sm:$0xf]
      %v3345 = vld [vmem:[%s3 + $0x378] sm:$0xf]
      %v3346 = vld [vmem:[%s3 + $0x37c] sm:$0xf]
      %v3347 = vunpack.c.l.b16 %v3232
      %v3348 = vunpack.c.l.b16 %v3246
      %v3349 = vunpack.c.l.b16 %v3260
      %v3350 = vunpack.c.l.b16 %v3274
      %v3351 = vunpack.c.l.b16 %v3288
      %v3352 = vunpack.c.l.b16 %v3302
      %v3353 = vunpack.c.l.b16 %v3316
      %v3354 = vunpack.c.l.b16 %v3330
      %v3355 = vpack.c.b16 %v3348, %v3347
      %v3356 = vpack.c.b16 %v3350, %v3349
      %v3357 = vpack.c.b16 %v3352, %v3351
      %v3358 = vpack.c.b16 %v3354, %v3353
      %v3379 = vunpack.c.l.b16 %v3331
      %v3380 = vunpack.c.l.b16 %v3332
      %v3381 = vunpack.c.l.b16 %v3333
      %v3382 = vunpack.c.l.b16 %v3334
      %v3383 = vunpack.c.l.b16 %v3335
      %v3384 = vunpack.c.l.b16 %v3336
      %v3385 = vunpack.c.l.b16 %v3337
      %v3386 = vunpack.c.l.b16 %v3338
      %v3387 = vunpack.c.l.b16 %v3339
      %v3388 = vunpack.c.l.b16 %v3340
      %v3389 = vunpack.c.l.b16 %v3341
      %v3390 = vunpack.c.l.b16 %v3342
      %v3391 = vunpack.c.l.b16 %v3343
      %v3392 = vunpack.c.l.b16 %v3344
      %v3393 = vunpack.c.l.b16 %v3345
      %v3394 = vunpack.c.l.b16 %v3346
      %v3395 = vpack.c.b16 %v3380, %v3379
      %v3396 = vpack.c.b16 %v3382, %v3381
      %v3397 = vpack.c.b16 %v3384, %v3383
      %v3398 = vpack.c.b16 %v3386, %v3385
      %v3399 = vpack.c.b16 %v3388, %v3387
      %v3400 = vpack.c.b16 %v3390, %v3389
      %v3401 = vpack.c.b16 %v3392, %v3391
      %v3402 = vpack.c.b16 %v3394, %v3393
      %3411 = vmatprep.subr.bf16.mxu0 0
      %3412 = vmatpush1.bf16.msra.mxu0 %v3395
      %3413 = vmatprep.subr.bf16.mxu0 0
      %3414 = vmatpush1.bf16.msra.mxu0 %v3396
      %3415 = vmatprep.subr.bf16.mxu0 0
      %3416 = vmatpush1.bf16.msra.mxu0 %v3397
      %3417 = vmatprep.subr.bf16.mxu0 0
      %3418 = vmatpush1.bf16.msra.mxu0 %v3398
      %3419 = vmatprep.subr.bf16.mxu0 0
      %3420 = vmatpush1.bf16.msra.mxu0 %v3399
      %3421 = vmatprep.subr.bf16.mxu0 0
      %3422 = vmatpush1.bf16.msra.mxu0 %v3400
      %3423 = vmatprep.subr.bf16.mxu0 0
      %3424 = vmatpush1.bf16.msra.mxu0 %v3401
      %3425 = vmatprep.subr.bf16.mxu0 0
      %3426 = vmatpush1.bf16.msra.mxu0 %v3402
      %3427 = vmatprep.subr.bf16.mxu0 0
      %3428 = vmatpush1.bf16.msra.mxu0 0
      %3429 = vmatprep.subr.bf16.mxu0 0
      %3430 = vmatpush1.bf16.msra.mxu0 0
      %3431 = vmatprep.subr.bf16.mxu0 0
      %3432 = vmatpush1.bf16.msra.mxu0 0
      %3433 = vmatprep.subr.bf16.mxu0 0
      %3434 = vmatpush1.bf16.msra.mxu0 0
      %3435 = vmatprep.subr.bf16.mxu0 0
      %3436 = vmatpush1.bf16.msra.mxu0 0
      %3437 = vmatprep.subr.bf16.mxu0 0
      %3438 = vmatpush1.bf16.msra.mxu0 0
      %3439 = vmatprep.subr.bf16.mxu0 0
      %3440 = vmatpush1.bf16.msra.mxu0 0
      %3441 = vmatprep.subr.bf16.mxu0 0
      %3442 = vmatpush1.bf16.msra.mxu0 0
      %3443 = vmatprep.mubr.bf16.mxu0 0
      %3444 = vmatmul.mubr.bf16.gmra.mrb[0].mxu0 %v3355
      %v3445 = vpop.f32.mrb[0].mxu0
      %v3446 = vadd.f32 0.0, %v3445
      %v3447 = vpop.f32.mrb[0].mxu0
      %v3448 = vpop.f32.mrb[0].mxu0
      %v3449 = vadd.f32 0.0, %v3448
      %v3450 = vpop.f32.mrb[0].mxu0
      %3451 = vmatprep.mubr.bf16.mxu0 0
      %3452 = vmatmul.mubr.bf16.gmra.mrb[0].mxu0 %v3356
      %v3453 = vpop.f32.mrb[0].mxu0
      %v3454 = vadd.f32 0.0, %v3453
      %v3455 = vpop.f32.mrb[0].mxu0
      %v3456 = vpop.f32.mrb[0].mxu0
      %v3457 = vadd.f32 0.0, %v3456
      %v3458 = vpop.f32.mrb[0].mxu0
      %3459 = vmatprep.mubr.bf16.mxu0 0
      %3460 = vmatmul.mubr.bf16.gmra.mrb[0].mxu0 %v3357
      %v3461 = vpop.f32.mrb[0].mxu0
      %v3462 = vadd.f32 0.0, %v3461
      %v3463 = vpop.f32.mrb[0].mxu0
      %v3464 = vpop.f32.mrb[0].mxu0
      %v3465 = vadd.f32 0.0, %v3464
      %v3466 = vpop.f32.mrb[0].mxu0
      %3467 = vmatprep.mubr.bf16.mxu0 0
      %3468 = vmatmul.mubr.bf16.gmra.mrb[0].mxu0 %v3358
      %v3469 = vpop.f32.mrb[0].mxu0
      %v3470 = vadd.f32 0.0, %v3469
      %v3471 = vpop.f32.mrb[0].mxu0
      %v3472 = vpop.f32.mrb[0].mxu0
      %v3473 = vadd.f32 0.0, %v3472
      %v3474 = vpop.f32.mrb[0].mxu0
      %3475 = vdwg.mxu0
      %v3476 = vadd.f32 %v3195, %v3446
      %v3477 = vadd.f32 %v3196, %v3449
      %v3478 = vadd.f32 %v3197, %v3454
      %v3479 = vadd.f32 %v3198, %v3457
      %v3480 = vadd.f32 %v3199, %v3462
      %v3481 = vadd.f32 %v3200, %v3465
      %v3482 = vadd.f32 %v3201, %v3470
      %v3483 = vadd.f32 %v3202, %v3473
      %v3484 = vld [vmem:[%s3033] sm:$0xe]
      %v3485 = vld [vmem:[%s3033 + $0x8] sm:$0xe]
      %v3486 = vld [vmem:[%s3033 + $0x10] sm:$0xe]
      %v3487 = vld [vmem:[%s3033 + $0x18] sm:$0xe]
      %v3488 = vld [vmem:[%s3033 + $0x20] sm:$0xe]
      %v3489 = vld [vmem:[%s3033 + $0x28] sm:$0xe]
      %v3490 = vld [vmem:[%s3033 + $0x30] sm:$0xe]
      %v3491 = vld [vmem:[%s3033 + $0x38] sm:$0xe]
      %v3508 = vrot.slane %v3484, 5
      %v3509 = vrot.slane %v3508, 4
      %v3510 = vrot.slane %v3204, 5
      %v3511 = vsel %vm868, %v3509, %v3510
      %v3512 = vrot.slane %v3485, 5
      %v3513 = vrot.slane %v3512, 4
      %v3514 = vrot.slane %v3206, 5
      %v3515 = vsel %vm868, %v3513, %v3514
      %v3516 = vrot.slane %v3486, 5
      %v3517 = vrot.slane %v3516, 4
      %v3518 = vrot.slane %v3208, 5
      %v3519 = vsel %vm868, %v3517, %v3518
      %v3520 = vrot.slane %v3487, 5
      %v3521 = vrot.slane %v3520, 4
      %v3522 = vrot.slane %v3210, 5
      %v3523 = vsel %vm868, %v3521, %v3522
      %v3524 = vrot.slane %v3488, 5
      %v3525 = vrot.slane %v3524, 4
      %v3526 = vrot.slane %v3212, 5
      %v3527 = vsel %vm868, %v3525, %v3526
      %v3528 = vrot.slane %v3489, 5
      %v3529 = vrot.slane %v3528, 4
      %v3530 = vrot.slane %v3214, 5
      %v3531 = vsel %vm868, %v3529, %v3530
      %v3532 = vrot.slane %v3490, 5
      %v3533 = vrot.slane %v3532, 4
      %v3534 = vrot.slane %v3216, 5
      %v3535 = vsel %vm868, %v3533, %v3534
      %v3536 = vrot.slane %v3491, 5
      %v3537 = vrot.slane %v3536, 4
      %v3538 = vrot.slane %v3218, 5
      %v3539 = vsel %vm868, %v3537, %v3538
      %v3540 = vld [vmem:[%s3 + $0x380] sm:$0xf]
      %v3541 = vld [vmem:[%s3 + $0x384] sm:$0xf]
      %v3542 = vld [vmem:[%s3 + $0x388] sm:$0xf]
      %v3543 = vld [vmem:[%s3 + $0x38c] sm:$0xf]
      %v3544 = vld [vmem:[%s3 + $0x390] sm:$0xf]
      %v3545 = vld [vmem:[%s3 + $0x394] sm:$0xf]
      %v3546 = vld [vmem:[%s3 + $0x398] sm:$0xf]
      %v3547 = vld [vmem:[%s3 + $0x39c] sm:$0xf]
      %v3548 = vld [vmem:[%s3 + $0x3a0] sm:$0xf]
      %v3549 = vld [vmem:[%s3 + $0x3a4] sm:$0xf]
      %v3550 = vld [vmem:[%s3 + $0x3a8] sm:$0xf]
      %v3551 = vld [vmem:[%s3 + $0x3ac] sm:$0xf]
      %v3552 = vld [vmem:[%s3 + $0x3b0] sm:$0xf]
      %v3553 = vld [vmem:[%s3 + $0x3b4] sm:$0xf]
      %v3554 = vld [vmem:[%s3 + $0x3b8] sm:$0xf]
      %v3555 = vld [vmem:[%s3 + $0x3bc] sm:$0xf]
      %v3556 = vunpack.c.l.b16 %v3511
      %v3557 = vunpack.c.l.b16 %v3515
      %v3558 = vunpack.c.l.b16 %v3519
      %v3559 = vunpack.c.l.b16 %v3523
      %v3560 = vunpack.c.l.b16 %v3527
      %v3561 = vunpack.c.l.b16 %v3531
      %v3562 = vunpack.c.l.b16 %v3535
      %v3563 = vunpack.c.l.b16 %v3539
      %v3564 = vpack.c.b16 %v3557, %v3556
      %v3565 = vpack.c.b16 %v3559, %v3558
      %v3566 = vpack.c.b16 %v3561, %v3560
      %v3567 = vpack.c.b16 %v3563, %v3562
      %v3588 = vunpack.c.l.b16 %v3540
      %v3589 = vunpack.c.l.b16 %v3541
      %v3590 = vunpack.c.l.b16 %v3542
      %v3591 = vunpack.c.l.b16 %v3543
      %v3592 = vunpack.c.l.b16 %v3544
      %v3593 = vunpack.c.l.b16 %v3545
      %v3594 = vunpack.c.l.b16 %v3546
      %v3595 = vunpack.c.l.b16 %v3547
      %v3596 = vunpack.c.l.b16 %v3548
      %v3597 = vunpack.c.l.b16 %v3549
      %v3598 = vunpack.c.l.b16 %v3550
      %v3599 = vunpack.c.l.b16 %v3551
      %v3600 = vunpack.c.l.b16 %v3552
      %v3601 = vunpack.c.l.b16 %v3553
      %v3602 = vunpack.c.l.b16 %v3554
      %v3603 = vunpack.c.l.b16 %v3555
      %v3604 = vpack.c.b16 %v3589, %v3588
      %v3605 = vpack.c.b16 %v3591, %v3590
      %v3606 = vpack.c.b16 %v3593, %v3592
      %v3607 = vpack.c.b16 %v3595, %v3594
      %v3608 = vpack.c.b16 %v3597, %v3596
      %v3609 = vpack.c.b16 %v3599, %v3598
      %v3610 = vpack.c.b16 %v3601, %v3600
      %v3611 = vpack.c.b16 %v3603, %v3602
      %3620 = vmatprep.subr.bf16.mxu0 0
      %3621 = vmatpush1.bf16.msra.mxu0 %v3604
      %3622 = vmatprep.subr.bf16.mxu0 0
      %3623 = vmatpush1.bf16.msra.mxu0 %v3605
      %3624 = vmatprep.subr.bf16.mxu0 0
      %3625 = vmatpush1.bf16.msra.mxu0 %v3606
      %3626 = vmatprep.subr.bf16.mxu0 0
      %3627 = vmatpush1.bf16.msra.mxu0 %v3607
      %3628 = vmatprep.subr.bf16.mxu0 0
      %3629 = vmatpush1.bf16.msra.mxu0 %v3608
      %3630 = vmatprep.subr.bf16.mxu0 0
      %3631 = vmatpush1.bf16.msra.mxu0 %v3609
      %3632 = vmatprep.subr.bf16.mxu0 0
      %3633 = vmatpush1.bf16.msra.mxu0 %v3610
      %3634 = vmatprep.subr.bf16.mxu0 0
      %3635 = vmatpush1.bf16.msra.mxu0 %v3611
      %3636 = vmatprep.subr.bf16.mxu0 0
      %3637 = vmatpush1.bf16.msra.mxu0 0
      %3638 = vmatprep.subr.bf16.mxu0 0
      %3639 = vmatpush1.bf16.msra.mxu0 0
      %3640 = vmatprep.subr.bf16.mxu0 0
      %3641 = vmatpush1.bf16.msra.mxu0 0
      %3642 = vmatprep.subr.bf16.mxu0 0
      %3643 = vmatpush1.bf16.msra.mxu0 0
      %3644 = vmatprep.subr.bf16.mxu0 0
      %3645 = vmatpush1.bf16.msra.mxu0 0
      %3646 = vmatprep.subr.bf16.mxu0 0
      %3647 = vmatpush1.bf16.msra.mxu0 0
      %3648 = vmatprep.subr.bf16.mxu0 0
      %3649 = vmatpush1.bf16.msra.mxu0 0
      %3650 = vmatprep.subr.bf16.mxu0 0
      %3651 = vmatpush1.bf16.msra.mxu0 0
      %3652 = vmatprep.mubr.bf16.mxu0 0
      %3653 = vmatmul.mubr.bf16.gmra.mrb[0].mxu0 %v3564
      %v3654 = vpop.f32.mrb[0].mxu0
      %v3655 = vadd.f32 0.0, %v3654
      %v3656 = vpop.f32.mrb[0].mxu0
      %v3657 = vpop.f32.mrb[0].mxu0
      %v3658 = vadd.f32 0.0, %v3657
      %v3659 = vpop.f32.mrb[0].mxu0
      %3660 = vmatprep.mubr.bf16.mxu0 0
      %3661 = vmatmul.mubr.bf16.gmra.mrb[0].mxu0 %v3565
      %v3662 = vpop.f32.mrb[0].mxu0
      %v3663 = vadd.f32 0.0, %v3662
      %v3664 = vpop.f32.mrb[0].mxu0
      %v3665 = vpop.f32.mrb[0].mxu0
      %v3666 = vadd.f32 0.0, %v3665
      %v3667 = vpop.f32.mrb[0].mxu0
      %3668 = vmatprep.mubr.bf16.mxu0 0
      %3669 = vmatmul.mubr.bf16.gmra.mrb[0].mxu0 %v3566
      %v3670 = vpop.f32.mrb[0].mxu0
      %v3671 = vadd.f32 0.0, %v3670
      %v3672 = vpop.f32.mrb[0].mxu0
      %v3673 = vpop.f32.mrb[0].mxu0
      %v3674 = vadd.f32 0.0, %v3673
      %v3675 = vpop.f32.mrb[0].mxu0
      %3676 = vmatprep.mubr.bf16.mxu0 0
      %3677 = vmatmul.mubr.bf16.gmra.mrb[0].mxu0 %v3567
      %v3678 = vpop.f32.mrb[0].mxu0
      %v3679 = vadd.f32 0.0, %v3678
      %v3680 = vpop.f32.mrb[0].mxu0
      %v3681 = vpop.f32.mrb[0].mxu0
      %v3682 = vadd.f32 0.0, %v3681
      %v3683 = vpop.f32.mrb[0].mxu0
      %3684 = vdwg.mxu0
      %v3685 = vadd.f32 %v3476, %v3655
      %v3686 = vadd.f32 %v3477, %v3658
      %v3687 = vadd.f32 %v3478, %v3663
      %v3688 = vadd.f32 %v3479, %v3666
      %v3689 = vadd.f32 %v3480, %v3671
      %v3690 = vadd.f32 %v3481, %v3674
      %v3691 = vadd.f32 %v3482, %v3679
      %v3692 = vadd.f32 %v3483, %v3682
      %s3693 = scalar_lea.vmem %s373, 16
      %v3694 = vld [vmem:[%s3693] sm:$0xf]
      %v3695 = vld [vmem:[%s3693 + $0x8] sm:$0xf]
      %v3696 = vld [vmem:[%s3693 + $0x10] sm:$0xf]
      %v3697 = vld [vmem:[%s3693 + $0x18] sm:$0xf]
      %v3698 = vld [vmem:[%s3693 + $0x20] sm:$0xf]
      %v3699 = vld [vmem:[%s3693 + $0x28] sm:$0xf]
      %v3700 = vld [vmem:[%s3693 + $0x30] sm:$0xf]
      %v3701 = vld [vmem:[%s3693 + $0x38] sm:$0xf]
      %v3702 = vld [vmem:[%s3 + $0x3c0] sm:$0xf]
      %v3703 = vld [vmem:[%s3 + $0x3c4] sm:$0xf]
      %v3704 = vld [vmem:[%s3 + $0x3c8] sm:$0xf]
      %v3705 = vld [vmem:[%s3 + $0x3cc] sm:$0xf]
      %v3706 = vld [vmem:[%s3 + $0x3d0] sm:$0xf]
      %v3707 = vld [vmem:[%s3 + $0x3d4] sm:$0xf]
      %v3708 = vld [vmem:[%s3 + $0x3d8] sm:$0xf]
      %v3709 = vld [vmem:[%s3 + $0x3dc] sm:$0xf]
      %v3710 = vld [vmem:[%s3 + $0x3e0] sm:$0xf]
      %v3711 = vld [vmem:[%s3 + $0x3e4] sm:$0xf]
      %v3712 = vld [vmem:[%s3 + $0x3e8] sm:$0xf]
      %v3713 = vld [vmem:[%s3 + $0x3ec] sm:$0xf]
      %v3714 = vld [vmem:[%s3 + $0x3f0] sm:$0xf]
      %v3715 = vld [vmem:[%s3 + $0x3f4] sm:$0xf]
      %v3716 = vld [vmem:[%s3 + $0x3f8] sm:$0xf]
      %v3717 = vld [vmem:[%s3 + $0x3fc] sm:$0xf]
      %v3726 = vunpack.c.l.b16 %v3694
      %v3727 = vunpack.c.l.b16 %v3695
      %v3728 = vunpack.c.l.b16 %v3696
      %v3729 = vunpack.c.l.b16 %v3697
      %v3730 = vunpack.c.l.b16 %v3698
      %v3731 = vunpack.c.l.b16 %v3699
      %v3732 = vunpack.c.l.b16 %v3700
      %v3733 = vunpack.c.l.b16 %v3701
      %v3734 = vpack.c.b16 %v3727, %v3726
      %v3735 = vpack.c.b16 %v3729, %v3728
      %v3736 = vpack.c.b16 %v3731, %v3730
      %v3737 = vpack.c.b16 %v3733, %v3732
      %v3758 = vunpack.c.l.b16 %v3702
      %v3759 = vunpack.c.l.b16 %v3703
      %v3760 = vunpack.c.l.b16 %v3704
      %v3761 = vunpack.c.l.b16 %v3705
      %v3762 = vunpack.c.l.b16 %v3706
      %v3763 = vunpack.c.l.b16 %v3707
      %v3764 = vunpack.c.l.b16 %v3708
      %v3765 = vunpack.c.l.b16 %v3709
      %v3766 = vunpack.c.l.b16 %v3710
      %v3767 = vunpack.c.l.b16 %v3711
      %v3768 = vunpack.c.l.b16 %v3712
      %v3769 = vunpack.c.l.b16 %v3713
      %v3770 = vunpack.c.l.b16 %v3714
      %v3771 = vunpack.c.l.b16 %v3715
      %v3772 = vunpack.c.l.b16 %v3716
      %v3773 = vunpack.c.l.b16 %v3717
      %v3774 = vpack.c.b16 %v3759, %v3758
      %v3775 = vpack.c.b16 %v3761, %v3760
      %v3776 = vpack.c.b16 %v3763, %v3762
      %v3777 = vpack.c.b16 %v3765, %v3764
      %v3778 = vpack.c.b16 %v3767, %v3766
      %v3779 = vpack.c.b16 %v3769, %v3768
      %v3780 = vpack.c.b16 %v3771, %v3770
      %v3781 = vpack.c.b16 %v3773, %v3772
      %3790 = vmatprep.subr.bf16.mxu0 0
      %3791 = vmatpush1.bf16.msra.mxu0 %v3774
      %3792 = vmatprep.subr.bf16.mxu0 0
      %3793 = vmatpush1.bf16.msra.mxu0 %v3775
      %3794 = vmatprep.subr.bf16.mxu0 0
      %3795 = vmatpush1.bf16.msra.mxu0 %v3776
      %3796 = vmatprep.subr.bf16.mxu0 0
      %3797 = vmatpush1.bf16.msra.mxu0 %v3777
      %3798 = vmatprep.subr.bf16.mxu0 0
      %3799 = vmatpush1.bf16.msra.mxu0 %v3778
      %3800 = vmatprep.subr.bf16.mxu0 0
      %3801 = vmatpush1.bf16.msra.mxu0 %v3779
      %3802 = vmatprep.subr.bf16.mxu0 0
      %3803 = vmatpush1.bf16.msra.mxu0 %v3780
      %3804 = vmatprep.subr.bf16.mxu0 0
      %3805 = vmatpush1.bf16.msra.mxu0 %v3781
      %3806 = vmatprep.subr.bf16.mxu0 0
      %3807 = vmatpush1.bf16.msra.mxu0 0
      %3808 = vmatprep.subr.bf16.mxu0 0
      %3809 = vmatpush1.bf16.msra.mxu0 0
      %3810 = vmatprep.subr.bf16.mxu0 0
      %3811 = vmatpush1.bf16.msra.mxu0 0
      %3812 = vmatprep.subr.bf16.mxu0 0
      %3813 = vmatpush1.bf16.msra.mxu0 0
      %3814 = vmatprep.subr.bf16.mxu0 0
      %3815 = vmatpush1.bf16.msra.mxu0 0
      %3816 = vmatprep.subr.bf16.mxu0 0
      %3817 = vmatpush1.bf16.msra.mxu0 0
      %3818 = vmatprep.subr.bf16.mxu0 0
      %3819 = vmatpush1.bf16.msra.mxu0 0
      %3820 = vmatprep.subr.bf16.mxu0 0
      %3821 = vmatpush1.bf16.msra.mxu0 0
      %3822 = vmatprep.mubr.bf16.mxu0 0
      %3823 = vmatmul.mubr.bf16.gmra.mrb[0].mxu0 %v3734
      %v3824 = vpop.f32.mrb[0].mxu0
      %v3825 = vadd.f32 0.0, %v3824
      %v3826 = vpop.f32.mrb[0].mxu0
      %v3827 = vpop.f32.mrb[0].mxu0
      %v3828 = vadd.f32 0.0, %v3827
      %v3829 = vpop.f32.mrb[0].mxu0
      %3830 = vmatprep.mubr.bf16.mxu0 0
      %3831 = vmatmul.mubr.bf16.gmra.mrb[0].mxu0 %v3735
      %v3832 = vpop.f32.mrb[0].mxu0
      %v3833 = vadd.f32 0.0, %v3832
      %v3834 = vpop.f32.mrb[0].mxu0
      %v3835 = vpop.f32.mrb[0].mxu0
      %v3836 = vadd.f32 0.0, %v3835
      %v3837 = vpop.f32.mrb[0].mxu0
      %3838 = vmatprep.mubr.bf16.mxu0 0
      %3839 = vmatmul.mubr.bf16.gmra.mrb[0].mxu0 %v3736
      %v3840 = vpop.f32.mrb[0].mxu0
      %v3841 = vadd.f32 0.0, %v3840
      %v3842 = vpop.f32.mrb[0].mxu0
      %v3843 = vpop.f32.mrb[0].mxu0
      %v3844 = vadd.f32 0.0, %v3843
      %v3845 = vpop.f32.mrb[0].mxu0
      %3846 = vmatprep.mubr.bf16.mxu0 0
      %3847 = vmatmul.mubr.bf16.gmra.mrb[0].mxu0 %v3737
      %v3848 = vpop.f32.mrb[0].mxu0
      %v3849 = vadd.f32 0.0, %v3848
      %v3850 = vpop.f32.mrb[0].mxu0
      %v3851 = vpop.f32.mrb[0].mxu0
      %v3852 = vadd.f32 0.0, %v3851
      %v3853 = vpop.f32.mrb[0].mxu0
      %3854 = vdwg.mxu0
      %v3855 = vadd.f32 %v3685, %v3825
      %v3856 = vadd.f32 %v3686, %v3828
      %v3857 = vadd.f32 %v3687, %v3833
      %v3858 = vadd.f32 %v3688, %v3836
      %v3859 = vadd.f32 %v3689, %v3841
      %v3860 = vadd.f32 %v3690, %v3844
      %v3861 = vadd.f32 %v3691, %v3849
      %v3862 = vadd.f32 %v3692, %v3852
      %v3863 = vld [vmem:[%s3693] sm:$0xf]
      %v3864 = vld [vmem:[%s3693 + $0x4] sm:$0x1]
      %v3865 = vld [vmem:[%s3693 + $0x8] sm:$0xf]
      %v3866 = vld [vmem:[%s3693 + $0xc] sm:$0x1]
      %v3867 = vld [vmem:[%s3693 + $0x10] sm:$0xf]
      %v3868 = vld [vmem:[%s3693 + $0x14] sm:$0x1]
      %v3869 = vld [vmem:[%s3693 + $0x18] sm:$0xf]
      %v3870 = vld [vmem:[%s3693 + $0x1c] sm:$0x1]
      %v3871 = vld [vmem:[%s3693 + $0x20] sm:$0xf]
      %v3872 = vld [vmem:[%s3693 + $0x24] sm:$0x1]
      %v3873 = vld [vmem:[%s3693 + $0x28] sm:$0xf]
      %v3874 = vld [vmem:[%s3693 + $0x2c] sm:$0x1]
      %v3875 = vld [vmem:[%s3693 + $0x30] sm:$0xf]
      %v3876 = vld [vmem:[%s3693 + $0x34] sm:$0x1]
      %v3877 = vld [vmem:[%s3693 + $0x38] sm:$0xf]
      %v3878 = vld [vmem:[%s3693 + $0x3c] sm:$0x1]
      %v3880 = vshrl.u32 %v3863, 16
      %v3882 = vrot.slane %v3880, 4
      %v3883 = vshll.u32 %v3863, 16
      %v3885 = vrot.slane %v3883, 5
      %v3886 = vor.u32 %v3882, %v3885
      %v3887 = vrot.slane %v3886, 4
      %v3889 = vshll.u32 %v3864, 16
      %v3891 = vrot.slane %v3889, 5
      %v3892 = vsel %vm447, %v3887, %v3891
      %v3894 = vshrl.u32 %v3865, 16
      %v3896 = vrot.slane %v3894, 4
      %v3897 = vshll.u32 %v3865, 16
      %v3899 = vrot.slane %v3897, 5
      %v3900 = vor.u32 %v3896, %v3899
      %v3901 = vrot.slane %v3900, 4
      %v3903 = vshll.u32 %v3866, 16
      %v3905 = vrot.slane %v3903, 5
      %v3906 = vsel %vm447, %v3901, %v3905
      %v3908 = vshrl.u32 %v3867, 16
      %v3910 = vrot.slane %v3908, 4
      %v3911 = vshll.u32 %v3867, 16
      %v3913 = vrot.slane %v3911, 5
      %v3914 = vor.u32 %v3910, %v3913
      %v3915 = vrot.slane %v3914, 4
      %v3917 = vshll.u32 %v3868, 16
      %v3919 = vrot.slane %v3917, 5
      %v3920 = vsel %vm447, %v3915, %v3919
      %v3922 = vshrl.u32 %v3869, 16
      %v3924 = vrot.slane %v3922, 4
      %v3925 = vshll.u32 %v3869, 16
      %v3927 = vrot.slane %v3925, 5
      %v3928 = vor.u32 %v3924, %v3927
      %v3929 = vrot.slane %v3928, 4
      %v3931 = vshll.u32 %v3870, 16
      %v3933 = vrot.slane %v3931, 5
      %v3934 = vsel %vm447, %v3929, %v3933
      %v3936 = vshrl.u32 %v3871, 16
      %v3938 = vrot.slane %v3936, 4
      %v3939 = vshll.u32 %v3871, 16
      %v3941 = vrot.slane %v3939, 5
      %v3942 = vor.u32 %v3938, %v3941
      %v3943 = vrot.slane %v3942, 4
      %v3945 = vshll.u32 %v3872, 16
      %v3947 = vrot.slane %v3945, 5
      %v3948 = vsel %vm447, %v3943, %v3947
      %v3950 = vshrl.u32 %v3873, 16
      %v3952 = vrot.slane %v3950, 4
      %v3953 = vshll.u32 %v3873, 16
      %v3955 = vrot.slane %v3953, 5
      %v3956 = vor.u32 %v3952, %v3955
      %v3957 = vrot.slane %v3956, 4
      %v3959 = vshll.u32 %v3874, 16
      %v3961 = vrot.slane %v3959, 5
      %v3962 = vsel %vm447, %v3957, %v3961
      %v3964 = vshrl.u32 %v3875, 16
      %v3966 = vrot.slane %v3964, 4
      %v3967 = vshll.u32 %v3875, 16
      %v3969 = vrot.slane %v3967, 5
      %v3970 = vor.u32 %v3966, %v3969
      %v3971 = vrot.slane %v3970, 4
      %v3973 = vshll.u32 %v3876, 16
      %v3975 = vrot.slane %v3973, 5
      %v3976 = vsel %vm447, %v3971, %v3975
      %v3978 = vshrl.u32 %v3877, 16
      %v3980 = vrot.slane %v3978, 4
      %v3981 = vshll.u32 %v3877, 16
      %v3983 = vrot.slane %v3981, 5
      %v3984 = vor.u32 %v3980, %v3983
      %v3985 = vrot.slane %v3984, 4
      %v3987 = vshll.u32 %v3878, 16
      %v3989 = vrot.slane %v3987, 5
      %v3990 = vsel %vm447, %v3985, %v3989
      %v3991 = vld [vmem:[%s3 + $0x400] sm:$0xf]
      %v3992 = vld [vmem:[%s3 + $0x404] sm:$0xf]
      %v3993 = vld [vmem:[%s3 + $0x408] sm:$0xf]
      %v3994 = vld [vmem:[%s3 + $0x40c] sm:$0xf]
      %v3995 = vld [vmem:[%s3 + $0x410] sm:$0xf]
      %v3996 = vld [vmem:[%s3 + $0x414] sm:$0xf]
      %v3997 = vld [vmem:[%s3 + $0x418] sm:$0xf]
      %v3998 = vld [vmem:[%s3 + $0x41c] sm:$0xf]
      %v3999 = vld [vmem:[%s3 + $0x420] sm:$0xf]
      %v4000 = vld [vmem:[%s3 + $0x424] sm:$0xf]
      %v4001 = vld [vmem:[%s3 + $0x428] sm:$0xf]
      %v4002 = vld [vmem:[%s3 + $0x42c] sm:$0xf]
      %v4003 = vld [vmem:[%s3 + $0x430] sm:$0xf]
      %v4004 = vld [vmem:[%s3 + $0x434] sm:$0xf]
      %v4005 = vld [vmem:[%s3 + $0x438] sm:$0xf]
      %v4006 = vld [vmem:[%s3 + $0x43c] sm:$0xf]
      %v4007 = vunpack.c.l.b16 %v3892
      %v4008 = vunpack.c.l.b16 %v3906
      %v4009 = vunpack.c.l.b16 %v3920
      %v4010 = vunpack.c.l.b16 %v3934
      %v4011 = vunpack.c.l.b16 %v3948
      %v4012 = vunpack.c.l.b16 %v3962
      %v4013 = vunpack.c.l.b16 %v3976
      %v4014 = vunpack.c.l.b16 %v3990
      %v4015 = vpack.c.b16 %v4008, %v4007
      %v4016 = vpack.c.b16 %v4010, %v4009
      %v4017 = vpack.c.b16 %v4012, %v4011
      %v4018 = vpack.c.b16 %v4014, %v4013
      %v4039 = vunpack.c.l.b16 %v3991
      %v4040 = vunpack.c.l.b16 %v3992
      %v4041 = vunpack.c.l.b16 %v3993
      %v4042 = vunpack.c.l.b16 %v3994
      %v4043 = vunpack.c.l.b16 %v3995
      %v4044 = vunpack.c.l.b16 %v3996
      %v4045 = vunpack.c.l.b16 %v3997
      %v4046 = vunpack.c.l.b16 %v3998
      %v4047 = vunpack.c.l.b16 %v3999
      %v4048 = vunpack.c.l.b16 %v4000
      %v4049 = vunpack.c.l.b16 %v4001
      %v4050 = vunpack.c.l.b16 %v4002
      %v4051 = vunpack.c.l.b16 %v4003
      %v4052 = vunpack.c.l.b16 %v4004
      %v4053 = vunpack.c.l.b16 %v4005
      %v4054 = vunpack.c.l.b16 %v4006
      %v4055 = vpack.c.b16 %v4040, %v4039
      %v4056 = vpack.c.b16 %v4042, %v4041
      %v4057 = vpack.c.b16 %v4044, %v4043
      %v4058 = vpack.c.b16 %v4046, %v4045
      %v4059 = vpack.c.b16 %v4048, %v4047
      %v4060 = vpack.c.b16 %v4050, %v4049
      %v4061 = vpack.c.b16 %v4052, %v4051
      %v4062 = vpack.c.b16 %v4054, %v4053
      %4071 = vmatprep.subr.bf16.mxu0 0
      %4072 = vmatpush1.bf16.msra.mxu0 %v4055
      %4073 = vmatprep.subr.bf16.mxu0 0
      %4074 = vmatpush1.bf16.msra.mxu0 %v4056
      %4075 = vmatprep.subr.bf16.mxu0 0
      %4076 = vmatpush1.bf16.msra.mxu0 %v4057
      %4077 = vmatprep.subr.bf16.mxu0 0
      %4078 = vmatpush1.bf16.msra.mxu0 %v4058
      %4079 = vmatprep.subr.bf16.mxu0 0
      %4080 = vmatpush1.bf16.msra.mxu0 %v4059
      %4081 = vmatprep.subr.bf16.mxu0 0
      %4082 = vmatpush1.bf16.msra.mxu0 %v4060
      %4083 = vmatprep.subr.bf16.mxu0 0
      %4084 = vmatpush1.bf16.msra.mxu0 %v4061
      %4085 = vmatprep.subr.bf16.mxu0 0
      %4086 = vmatpush1.bf16.msra.mxu0 %v4062
      %4087 = vmatprep.subr.bf16.mxu0 0
      %4088 = vmatpush1.bf16.msra.mxu0 0
      %4089 = vmatprep.subr.bf16.mxu0 0
      %4090 = vmatpush1.bf16.msra.mxu0 0
      %4091 = vmatprep.subr.bf16.mxu0 0
      %4092 = vmatpush1.bf16.msra.mxu0 0
      %4093 = vmatprep.subr.bf16.mxu0 0
      %4094 = vmatpush1.bf16.msra.mxu0 0
      %4095 = vmatprep.subr.bf16.mxu0 0
      %4096 = vmatpush1.bf16.msra.mxu0 0
      %4097 = vmatprep.subr.bf16.mxu0 0
      %4098 = vmatpush1.bf16.msra.mxu0 0
      %4099 = vmatprep.subr.bf16.mxu0 0
      %4100 = vmatpush1.bf16.msra.mxu0 0
      %4101 = vmatprep.subr.bf16.mxu0 0
      %4102 = vmatpush1.bf16.msra.mxu0 0
      %4103 = vmatprep.mubr.bf16.mxu0 0
      %4104 = vmatmul.mubr.bf16.gmra.mrb[0].mxu0 %v4015
      %v4105 = vpop.f32.mrb[0].mxu0
      %v4106 = vadd.f32 0.0, %v4105
      %v4107 = vpop.f32.mrb[0].mxu0
      %v4108 = vpop.f32.mrb[0].mxu0
      %v4109 = vadd.f32 0.0, %v4108
      %v4110 = vpop.f32.mrb[0].mxu0
      %4111 = vmatprep.mubr.bf16.mxu0 0
      %4112 = vmatmul.mubr.bf16.gmra.mrb[0].mxu0 %v4016
      %v4113 = vpop.f32.mrb[0].mxu0
      %v4114 = vadd.f32 0.0, %v4113
      %v4115 = vpop.f32.mrb[0].mxu0
      %v4116 = vpop.f32.mrb[0].mxu0
      %v4117 = vadd.f32 0.0, %v4116
      %v4118 = vpop.f32.mrb[0].mxu0
      %4119 = vmatprep.mubr.bf16.mxu0 0
      %4120 = vmatmul.mubr.bf16.gmra.mrb[0].mxu0 %v4017
      %v4121 = vpop.f32.mrb[0].mxu0
      %v4122 = vadd.f32 0.0, %v4121
      %v4123 = vpop.f32.mrb[0].mxu0
      %v4124 = vpop.f32.mrb[0].mxu0
      %v4125 = vadd.f32 0.0, %v4124
      %v4126 = vpop.f32.mrb[0].mxu0
      %4127 = vmatprep.mubr.bf16.mxu0 0
      %4128 = vmatmul.mubr.bf16.gmra.mrb[0].mxu0 %v4018
      %v4129 = vpop.f32.mrb[0].mxu0
      %v4130 = vadd.f32 0.0, %v4129
      %v4131 = vpop.f32.mrb[0].mxu0
      %v4132 = vpop.f32.mrb[0].mxu0
      %v4133 = vadd.f32 0.0, %v4132
      %v4134 = vpop.f32.mrb[0].mxu0
      %4135 = vdwg.mxu0
      %v4136 = vadd.f32 %v3855, %v4106
      %v4137 = vadd.f32 %v3856, %v4109
      %v4138 = vadd.f32 %v3857, %v4114
      %v4139 = vadd.f32 %v3858, %v4117
      %v4140 = vadd.f32 %v3859, %v4122
      %v4141 = vadd.f32 %v3860, %v4125
      %v4142 = vadd.f32 %v3861, %v4130
      %v4143 = vadd.f32 %v3862, %v4133
      %v4144 = vld [vmem:[%s3693] sm:$0xe]
      %v4145 = vld [vmem:[%s3693 + $0x8] sm:$0xe]
      %v4146 = vld [vmem:[%s3693 + $0x10] sm:$0xe]
      %v4147 = vld [vmem:[%s3693 + $0x18] sm:$0xe]
      %v4148 = vld [vmem:[%s3693 + $0x20] sm:$0xe]
      %v4149 = vld [vmem:[%s3693 + $0x28] sm:$0xe]
      %v4150 = vld [vmem:[%s3693 + $0x30] sm:$0xe]
      %v4151 = vld [vmem:[%s3693 + $0x38] sm:$0xe]
      %v4168 = vrot.slane %v4144, 5
      %v4169 = vrot.slane %v4168, 4
      %v4170 = vrot.slane %v3864, 5
      %v4171 = vsel %vm868, %v4169, %v4170
      %v4172 = vrot.slane %v4145, 5
      %v4173 = vrot.slane %v4172, 4
      %v4174 = vrot.slane %v3866, 5
      %v4175 = vsel %vm868, %v4173, %v4174
      %v4176 = vrot.slane %v4146, 5
      %v4177 = vrot.slane %v4176, 4
      %v4178 = vrot.slane %v3868, 5
      %v4179 = vsel %vm868, %v4177, %v4178
      %v4180 = vrot.slane %v4147, 5
      %v4181 = vrot.slane %v4180, 4
      %v4182 = vrot.slane %v3870, 5
      %v4183 = vsel %vm868, %v4181, %v4182
      %v4184 = vrot.slane %v4148, 5
      %v4185 = vrot.slane %v4184, 4
      %v4186 = vrot.slane %v3872, 5
      %v4187 = vsel %vm868, %v4185, %v4186
      %v4188 = vrot.slane %v4149, 5
      %v4189 = vrot.slane %v4188, 4
      %v4190 = vrot.slane %v3874, 5
      %v4191 = vsel %vm868, %v4189, %v4190
      %v4192 = vrot.slane %v4150, 5
      %v4193 = vrot.slane %v4192, 4
      %v4194 = vrot.slane %v3876, 5
      %v4195 = vsel %vm868, %v4193, %v4194
      %v4196 = vrot.slane %v4151, 5
      %v4197 = vrot.slane %v4196, 4
      %v4198 = vrot.slane %v3878, 5
      %v4199 = vsel %vm868, %v4197, %v4198
      %v4200 = vld [vmem:[%s3 + $0x440] sm:$0xf]
      %v4201 = vld [vmem:[%s3 + $0x444] sm:$0xf]
      %v4202 = vld [vmem:[%s3 + $0x448] sm:$0xf]
      %v4203 = vld [vmem:[%s3 + $0x44c] sm:$0xf]
      %v4204 = vld [vmem:[%s3 + $0x450] sm:$0xf]
      %v4205 = vld [vmem:[%s3 + $0x454] sm:$0xf]
      %v4206 = vld [vmem:[%s3 + $0x458] sm:$0xf]
      %v4207 = vld [vmem:[%s3 + $0x45c] sm:$0xf]
      %v4208 = vld [vmem:[%s3 + $0x460] sm:$0xf]
      %v4209 = vld [vmem:[%s3 + $0x464] sm:$0xf]
      %v4210 = vld [vmem:[%s3 + $0x468] sm:$0xf]
      %v4211 = vld [vmem:[%s3 + $0x46c] sm:$0xf]
      %v4212 = vld [vmem:[%s3 + $0x470] sm:$0xf]
      %v4213 = vld [vmem:[%s3 + $0x474] sm:$0xf]
      %v4214 = vld [vmem:[%s3 + $0x478] sm:$0xf]
      %v4215 = vld [vmem:[%s3 + $0x47c] sm:$0xf]
      %v4216 = vunpack.c.l.b16 %v4171
      %v4217 = vunpack.c.l.b16 %v4175
      %v4218 = vunpack.c.l.b16 %v4179
      %v4219 = vunpack.c.l.b16 %v4183
      %v4220 = vunpack.c.l.b16 %v4187
      %v4221 = vunpack.c.l.b16 %v4191
      %v4222 = vunpack.c.l.b16 %v4195
      %v4223 = vunpack.c.l.b16 %v4199
      %v4224 = vpack.c.b16 %v4217, %v4216
      %v4225 = vpack.c.b16 %v4219, %v4218
      %v4226 = vpack.c.b16 %v4221, %v4220
      %v4227 = vpack.c.b16 %v4223, %v4222
      %v4248 = vunpack.c.l.b16 %v4200
      %v4249 = vunpack.c.l.b16 %v4201
      %v4250 = vunpack.c.l.b16 %v4202
      %v4251 = vunpack.c.l.b16 %v4203
      %v4252 = vunpack.c.l.b16 %v4204
      %v4253 = vunpack.c.l.b16 %v4205
      %v4254 = vunpack.c.l.b16 %v4206
      %v4255 = vunpack.c.l.b16 %v4207
      %v4256 = vunpack.c.l.b16 %v4208
      %v4257 = vunpack.c.l.b16 %v4209
      %v4258 = vunpack.c.l.b16 %v4210
      %v4259 = vunpack.c.l.b16 %v4211
      %v4260 = vunpack.c.l.b16 %v4212
      %v4261 = vunpack.c.l.b16 %v4213
      %v4262 = vunpack.c.l.b16 %v4214
      %v4263 = vunpack.c.l.b16 %v4215
      %v4264 = vpack.c.b16 %v4249, %v4248
      %v4265 = vpack.c.b16 %v4251, %v4250
      %v4266 = vpack.c.b16 %v4253, %v4252
      %v4267 = vpack.c.b16 %v4255, %v4254
      %v4268 = vpack.c.b16 %v4257, %v4256
      %v4269 = vpack.c.b16 %v4259, %v4258
      %v4270 = vpack.c.b16 %v4261, %v4260
      %v4271 = vpack.c.b16 %v4263, %v4262
      %4280 = vmatprep.subr.bf16.mxu0 0
      %4281 = vmatpush1.bf16.msra.mxu0 %v4264
      %4282 = vmatprep.subr.bf16.mxu0 0
      %4283 = vmatpush1.bf16.msra.mxu0 %v4265
      %4284 = vmatprep.subr.bf16.mxu0 0
      %4285 = vmatpush1.bf16.msra.mxu0 %v4266
      %4286 = vmatprep.subr.bf16.mxu0 0
      %4287 = vmatpush1.bf16.msra.mxu0 %v4267
      %4288 = vmatprep.subr.bf16.mxu0 0
      %4289 = vmatpush1.bf16.msra.mxu0 %v4268
      %4290 = vmatprep.subr.bf16.mxu0 0
      %4291 = vmatpush1.bf16.msra.mxu0 %v4269
      %4292 = vmatprep.subr.bf16.mxu0 0
      %4293 = vmatpush1.bf16.msra.mxu0 %v4270
      %4294 = vmatprep.subr.bf16.mxu0 0
      %4295 = vmatpush1.bf16.msra.mxu0 %v4271
      %4296 = vmatprep.subr.bf16.mxu0 0
      %4297 = vmatpush1.bf16.msra.mxu0 0
      %4298 = vmatprep.subr.bf16.mxu0 0
      %4299 = vmatpush1.bf16.msra.mxu0 0
      %4300 = vmatprep.subr.bf16.mxu0 0
      %4301 = vmatpush1.bf16.msra.mxu0 0
      %4302 = vmatprep.subr.bf16.mxu0 0
      %4303 = vmatpush1.bf16.msra.mxu0 0
      %4304 = vmatprep.subr.bf16.mxu0 0
      %4305 = vmatpush1.bf16.msra.mxu0 0
      %4306 = vmatprep.subr.bf16.mxu0 0
      %4307 = vmatpush1.bf16.msra.mxu0 0
      %4308 = vmatprep.subr.bf16.mxu0 0
      %4309 = vmatpush1.bf16.msra.mxu0 0
      %4310 = vmatprep.subr.bf16.mxu0 0
      %4311 = vmatpush1.bf16.msra.mxu0 0
      %4312 = vmatprep.mubr.bf16.mxu0 0
      %4313 = vmatmul.mubr.bf16.gmra.mrb[0].mxu0 %v4224
      %v4314 = vpop.f32.mrb[0].mxu0
      %v4315 = vadd.f32 0.0, %v4314
      %v4316 = vpop.f32.mrb[0].mxu0
      %v4317 = vpop.f32.mrb[0].mxu0
      %v4318 = vadd.f32 0.0, %v4317
      %v4319 = vpop.f32.mrb[0].mxu0
      %4320 = vmatprep.mubr.bf16.mxu0 0
      %4321 = vmatmul.mubr.bf16.gmra.mrb[0].mxu0 %v4225
      %v4322 = vpop.f32.mrb[0].mxu0
      %v4323 = vadd.f32 0.0, %v4322
      %v4324 = vpop.f32.mrb[0].mxu0
      %v4325 = vpop.f32.mrb[0].mxu0
      %v4326 = vadd.f32 0.0, %v4325
      %v4327 = vpop.f32.mrb[0].mxu0
      %4328 = vmatprep.mubr.bf16.mxu0 0
      %4329 = vmatmul.mubr.bf16.gmra.mrb[0].mxu0 %v4226
      %v4330 = vpop.f32.mrb[0].mxu0
      %v4331 = vadd.f32 0.0, %v4330
      %v4332 = vpop.f32.mrb[0].mxu0
      %v4333 = vpop.f32.mrb[0].mxu0
      %v4334 = vadd.f32 0.0, %v4333
      %v4335 = vpop.f32.mrb[0].mxu0
      %4336 = vmatprep.mubr.bf16.mxu0 0
      %4337 = vmatmul.mubr.bf16.gmra.mrb[0].mxu0 %v4227
      %v4338 = vpop.f32.mrb[0].mxu0
      %v4339 = vadd.f32 0.0, %v4338
      %v4340 = vpop.f32.mrb[0].mxu0
      %v4341 = vpop.f32.mrb[0].mxu0
      %v4342 = vadd.f32 0.0, %v4341
      %v4343 = vpop.f32.mrb[0].mxu0
      %4344 = vdwg.mxu0
      %v4345 = vadd.f32 %v4136, %v4315
      %v4346 = vadd.f32 %v4137, %v4318
      %v4347 = vadd.f32 %v4138, %v4323
      %v4348 = vadd.f32 %v4139, %v4326
      %v4349 = vadd.f32 %v4140, %v4331
      %v4350 = vadd.f32 %v4141, %v4334
      %v4351 = vadd.f32 %v4142, %v4339
      %v4352 = vadd.f32 %v4143, %v4342
      %v4353 = vld [vmem:[%s384] sm:$0xf]
      %v4354 = vld [vmem:[%s384 + $0x8] sm:$0xf]
      %v4355 = vld [vmem:[%s384 + $0x10] sm:$0xf]
      %v4356 = vld [vmem:[%s384 + $0x18] sm:$0xf]
      %v4357 = vld [vmem:[%s384 + $0x20] sm:$0xf]
      %v4358 = vld [vmem:[%s384 + $0x28] sm:$0xf]
      %v4359 = vld [vmem:[%s384 + $0x30] sm:$0xf]
      %v4360 = vld [vmem:[%s384 + $0x38] sm:$0xf]
      %v4361 = vld [vmem:[%s3 + $0x480] sm:$0xf]
      %v4362 = vld [vmem:[%s3 + $0x484] sm:$0xf]
      %v4363 = vld [vmem:[%s3 + $0x488] sm:$0xf]
      %v4364 = vld [vmem:[%s3 + $0x48c] sm:$0xf]
      %v4365 = vld [vmem:[%s3 + $0x490] sm:$0xf]
      %v4366 = vld [vmem:[%s3 + $0x494] sm:$0xf]
      %v4367 = vld [vmem:[%s3 + $0x498] sm:$0xf]
      %v4368 = vld [vmem:[%s3 + $0x49c] sm:$0xf]
      %v4369 = vld [vmem:[%s3 + $0x4a0] sm:$0xf]
      %v4370 = vld [vmem:[%s3 + $0x4a4] sm:$0xf]
      %v4371 = vld [vmem:[%s3 + $0x4a8] sm:$0xf]
      %v4372 = vld [vmem:[%s3 + $0x4ac] sm:$0xf]
      %v4373 = vld [vmem:[%s3 + $0x4b0] sm:$0xf]
      %v4374 = vld [vmem:[%s3 + $0x4b4] sm:$0xf]
      %v4375 = vld [vmem:[%s3 + $0x4b8] sm:$0xf]
      %v4376 = vld [vmem:[%s3 + $0x4bc] sm:$0xf]
      %v4385 = vunpack.c.l.b16 %v4353
      %v4386 = vunpack.c.l.b16 %v4354
      %v4387 = vunpack.c.l.b16 %v4355
      %v4388 = vunpack.c.l.b16 %v4356
      %v4389 = vunpack.c.l.b16 %v4357
      %v4390 = vunpack.c.l.b16 %v4358
      %v4391 = vunpack.c.l.b16 %v4359
      %v4392 = vunpack.c.l.b16 %v4360
      %v4393 = vpack.c.b16 %v4386, %v4385
      %v4394 = vpack.c.b16 %v4388, %v4387
      %v4395 = vpack.c.b16 %v4390, %v4389
      %v4396 = vpack.c.b16 %v4392, %v4391
      %v4417 = vunpack.c.l.b16 %v4361
      %v4418 = vunpack.c.l.b16 %v4362
      %v4419 = vunpack.c.l.b16 %v4363
      %v4420 = vunpack.c.l.b16 %v4364
      %v4421 = vunpack.c.l.b16 %v4365
      %v4422 = vunpack.c.l.b16 %v4366
      %v4423 = vunpack.c.l.b16 %v4367
      %v4424 = vunpack.c.l.b16 %v4368
      %v4425 = vunpack.c.l.b16 %v4369
      %v4426 = vunpack.c.l.b16 %v4370
      %v4427 = vunpack.c.l.b16 %v4371
      %v4428 = vunpack.c.l.b16 %v4372
      %v4429 = vunpack.c.l.b16 %v4373
      %v4430 = vunpack.c.l.b16 %v4374
      %v4431 = vunpack.c.l.b16 %v4375
      %v4432 = vunpack.c.l.b16 %v4376
      %v4433 = vpack.c.b16 %v4418, %v4417
      %v4434 = vpack.c.b16 %v4420, %v4419
      %v4435 = vpack.c.b16 %v4422, %v4421
      %v4436 = vpack.c.b16 %v4424, %v4423
      %v4437 = vpack.c.b16 %v4426, %v4425
      %v4438 = vpack.c.b16 %v4428, %v4427
      %v4439 = vpack.c.b16 %v4430, %v4429
      %v4440 = vpack.c.b16 %v4432, %v4431
      %4449 = vmatprep.subr.bf16.mxu0 0
      %4450 = vmatpush1.bf16.msra.mxu0 %v4433
      %4451 = vmatprep.subr.bf16.mxu0 0
      %4452 = vmatpush1.bf16.msra.mxu0 %v4434
      %4453 = vmatprep.subr.bf16.mxu0 0
      %4454 = vmatpush1.bf16.msra.mxu0 %v4435
      %4455 = vmatprep.subr.bf16.mxu0 0
      %4456 = vmatpush1.bf16.msra.mxu0 %v4436
      %4457 = vmatprep.subr.bf16.mxu0 0
      %4458 = vmatpush1.bf16.msra.mxu0 %v4437
      %4459 = vmatprep.subr.bf16.mxu0 0
      %4460 = vmatpush1.bf16.msra.mxu0 %v4438
      %4461 = vmatprep.subr.bf16.mxu0 0
      %4462 = vmatpush1.bf16.msra.mxu0 %v4439
      %4463 = vmatprep.subr.bf16.mxu0 0
      %4464 = vmatpush1.bf16.msra.mxu0 %v4440
      %4465 = vmatprep.subr.bf16.mxu0 0
      %4466 = vmatpush1.bf16.msra.mxu0 0
      %4467 = vmatprep.subr.bf16.mxu0 0
      %4468 = vmatpush1.bf16.msra.mxu0 0
      %4469 = vmatprep.subr.bf16.mxu0 0
      %4470 = vmatpush1.bf16.msra.mxu0 0
      %4471 = vmatprep.subr.bf16.mxu0 0
      %4472 = vmatpush1.bf16.msra.mxu0 0
      %4473 = vmatprep.subr.bf16.mxu0 0
      %4474 = vmatpush1.bf16.msra.mxu0 0
      %4475 = vmatprep.subr.bf16.mxu0 0
      %4476 = vmatpush1.bf16.msra.mxu0 0
      %4477 = vmatprep.subr.bf16.mxu0 0
      %4478 = vmatpush1.bf16.msra.mxu0 0
      %4479 = vmatprep.subr.bf16.mxu0 0
      %4480 = vmatpush1.bf16.msra.mxu0 0
      %4481 = vmatprep.mubr.bf16.mxu0 0
      %4482 = vmatmul.mubr.bf16.gmra.mrb[0].mxu0 %v4393
      %v4483 = vpop.f32.mrb[0].mxu0
      %v4484 = vadd.f32 0.0, %v4483
      %v4485 = vpop.f32.mrb[0].mxu0
      %v4486 = vpop.f32.mrb[0].mxu0
      %v4487 = vadd.f32 0.0, %v4486
      %v4488 = vpop.f32.mrb[0].mxu0
      %4489 = vmatprep.mubr.bf16.mxu0 0
      %4490 = vmatmul.mubr.bf16.gmra.mrb[0].mxu0 %v4394
      %v4491 = vpop.f32.mrb[0].mxu0
      %v4492 = vadd.f32 0.0, %v4491
      %v4493 = vpop.f32.mrb[0].mxu0
      %v4494 = vpop.f32.mrb[0].mxu0
      %v4495 = vadd.f32 0.0, %v4494
      %v4496 = vpop.f32.mrb[0].mxu0
      %4497 = vmatprep.mubr.bf16.mxu0 0
      %4498 = vmatmul.mubr.bf16.gmra.mrb[0].mxu0 %v4395
      %v4499 = vpop.f32.mrb[0].mxu0
      %v4500 = vadd.f32 0.0, %v4499
      %v4501 = vpop.f32.mrb[0].mxu0
      %v4502 = vpop.f32.mrb[0].mxu0
      %v4503 = vadd.f32 0.0, %v4502
      %v4504 = vpop.f32.mrb[0].mxu0
      %4505 = vmatprep.mubr.bf16.mxu0 0
      %4506 = vmatmul.mubr.bf16.gmra.mrb[0].mxu0 %v4396
      %v4507 = vpop.f32.mrb[0].mxu0
      %v4508 = vadd.f32 0.0, %v4507
      %v4509 = vpop.f32.mrb[0].mxu0
      %v4510 = vpop.f32.mrb[0].mxu0
      %v4511 = vadd.f32 0.0, %v4510
      %v4512 = vpop.f32.mrb[0].mxu0
      %4513 = vdwg.mxu0
      %v4514 = vadd.f32 %v4345, %v4484
      %v4515 = vadd.f32 %v4346, %v4487
      %v4516 = vadd.f32 %v4347, %v4492
      %v4517 = vadd.f32 %v4348, %v4495
      %v4518 = vadd.f32 %v4349, %v4500
      %v4519 = vadd.f32 %v4350, %v4503
      %v4520 = vadd.f32 %v4351, %v4508
      %v4521 = vadd.f32 %v4352, %v4511
      %v4522 = vld [vmem:[%s384] sm:$0xf]
      %v4523 = vld [vmem:[%s384 + $0x4] sm:$0x1]
      %v4524 = vld [vmem:[%s384 + $0x8] sm:$0xf]
      %v4525 = vld [vmem:[%s384 + $0xc] sm:$0x1]
      %v4526 = vld [vmem:[%s384 + $0x10] sm:$0xf]
      %v4527 = vld [vmem:[%s384 + $0x14] sm:$0x1]
      %v4528 = vld [vmem:[%s384 + $0x18] sm:$0xf]
      %v4529 = vld [vmem:[%s384 + $0x1c] sm:$0x1]
      %v4530 = vld [vmem:[%s384 + $0x20] sm:$0xf]
      %v4531 = vld [vmem:[%s384 + $0x24] sm:$0x1]
      %v4532 = vld [vmem:[%s384 + $0x28] sm:$0xf]
      %v4533 = vld [vmem:[%s384 + $0x2c] sm:$0x1]
      %v4534 = vld [vmem:[%s384 + $0x30] sm:$0xf]
      %v4535 = vld [vmem:[%s384 + $0x34] sm:$0x1]
      %v4536 = vld [vmem:[%s384 + $0x38] sm:$0xf]
      %v4537 = vld [vmem:[%s384 + $0x3c] sm:$0x1]
      %v4539 = vshrl.u32 %v4522, 16
      %v4541 = vrot.slane %v4539, 4
      %v4542 = vshll.u32 %v4522, 16
      %v4544 = vrot.slane %v4542, 5
      %v4545 = vor.u32 %v4541, %v4544
      %v4546 = vrot.slane %v4545, 4
      %v4548 = vshll.u32 %v4523, 16
      %v4550 = vrot.slane %v4548, 5
      %v4551 = vsel %vm447, %v4546, %v4550
      %v4553 = vshrl.u32 %v4524, 16
      %v4555 = vrot.slane %v4553, 4
      %v4556 = vshll.u32 %v4524, 16
      %v4558 = vrot.slane %v4556, 5
      %v4559 = vor.u32 %v4555, %v4558
      %v4560 = vrot.slane %v4559, 4
      %v4562 = vshll.u32 %v4525, 16
      %v4564 = vrot.slane %v4562, 5
      %v4565 = vsel %vm447, %v4560, %v4564
      %v4567 = vshrl.u32 %v4526, 16
      %v4569 = vrot.slane %v4567, 4
      %v4570 = vshll.u32 %v4526, 16
      %v4572 = vrot.slane %v4570, 5
      %v4573 = vor.u32 %v4569, %v4572
      %v4574 = vrot.slane %v4573, 4
      %v4576 = vshll.u32 %v4527, 16
      %v4578 = vrot.slane %v4576, 5
      %v4579 = vsel %vm447, %v4574, %v4578
      %v4581 = vshrl.u32 %v4528, 16
      %v4583 = vrot.slane %v4581, 4
      %v4584 = vshll.u32 %v4528, 16
      %v4586 = vrot.slane %v4584, 5
      %v4587 = vor.u32 %v4583, %v4586
      %v4588 = vrot.slane %v4587, 4
      %v4590 = vshll.u32 %v4529, 16
      %v4592 = vrot.slane %v4590, 5
      %v4593 = vsel %vm447, %v4588, %v4592
      %v4595 = vshrl.u32 %v4530, 16
      %v4597 = vrot.slane %v4595, 4
      %v4598 = vshll.u32 %v4530, 16
      %v4600 = vrot.slane %v4598, 5
      %v4601 = vor.u32 %v4597, %v4600
      %v4602 = vrot.slane %v4601, 4
      %v4604 = vshll.u32 %v4531, 16
      %v4606 = vrot.slane %v4604, 5
      %v4607 = vsel %vm447, %v4602, %v4606
      %v4609 = vshrl.u32 %v4532, 16
      %v4611 = vrot.slane %v4609, 4
      %v4612 = vshll.u32 %v4532, 16
      %v4614 = vrot.slane %v4612, 5
      %v4615 = vor.u32 %v4611, %v4614
      %v4616 = vrot.slane %v4615, 4
      %v4618 = vshll.u32 %v4533, 16
      %v4620 = vrot.slane %v4618, 5
      %v4621 = vsel %vm447, %v4616, %v4620
      %v4623 = vshrl.u32 %v4534, 16
      %v4625 = vrot.slane %v4623, 4
      %v4626 = vshll.u32 %v4534, 16
      %v4628 = vrot.slane %v4626, 5
      %v4629 = vor.u32 %v4625, %v4628
      %v4630 = vrot.slane %v4629, 4
      %v4632 = vshll.u32 %v4535, 16
      %v4634 = vrot.slane %v4632, 5
      %v4635 = vsel %vm447, %v4630, %v4634
      %v4637 = vshrl.u32 %v4536, 16
      %v4639 = vrot.slane %v4637, 4
      %v4640 = vshll.u32 %v4536, 16
      %v4642 = vrot.slane %v4640, 5
      %v4643 = vor.u32 %v4639, %v4642
      %v4644 = vrot.slane %v4643, 4
      %v4646 = vshll.u32 %v4537, 16
      %v4648 = vrot.slane %v4646, 5
      %v4649 = vsel %vm447, %v4644, %v4648
      %v4650 = vld [vmem:[%s3 + $0x4c0] sm:$0xf]
      %v4651 = vld [vmem:[%s3 + $0x4c4] sm:$0xf]
      %v4652 = vld [vmem:[%s3 + $0x4c8] sm:$0xf]
      %v4653 = vld [vmem:[%s3 + $0x4cc] sm:$0xf]
      %v4654 = vld [vmem:[%s3 + $0x4d0] sm:$0xf]
      %v4655 = vld [vmem:[%s3 + $0x4d4] sm:$0xf]
      %v4656 = vld [vmem:[%s3 + $0x4d8] sm:$0xf]
      %v4657 = vld [vmem:[%s3 + $0x4dc] sm:$0xf]
      %v4658 = vld [vmem:[%s3 + $0x4e0] sm:$0xf]
      %v4659 = vld [vmem:[%s3 + $0x4e4] sm:$0xf]
      %v4660 = vld [vmem:[%s3 + $0x4e8] sm:$0xf]
      %v4661 = vld [vmem:[%s3 + $0x4ec] sm:$0xf]
      %v4662 = vld [vmem:[%s3 + $0x4f0] sm:$0xf]
      %v4663 = vld [vmem:[%s3 + $0x4f4] sm:$0xf]
      %v4664 = vld [vmem:[%s3 + $0x4f8] sm:$0xf]
      %v4665 = vld [vmem:[%s3 + $0x4fc] sm:$0xf]
      %v4666 = vunpack.c.l.b16 %v4551
      %v4667 = vunpack.c.l.b16 %v4565
      %v4668 = vunpack.c.l.b16 %v4579
      %v4669 = vunpack.c.l.b16 %v4593
      %v4670 = vunpack.c.l.b16 %v4607
      %v4671 = vunpack.c.l.b16 %v4621
      %v4672 = vunpack.c.l.b16 %v4635
      %v4673 = vunpack.c.l.b16 %v4649
      %v4674 = vpack.c.b16 %v4667, %v4666
      %v4675 = vpack.c.b16 %v4669, %v4668
      %v4676 = vpack.c.b16 %v4671, %v4670
      %v4677 = vpack.c.b16 %v4673, %v4672
      %v4698 = vunpack.c.l.b16 %v4650
      %v4699 = vunpack.c.l.b16 %v4651
      %v4700 = vunpack.c.l.b16 %v4652
      %v4701 = vunpack.c.l.b16 %v4653
      %v4702 = vunpack.c.l.b16 %v4654
      %v4703 = vunpack.c.l.b16 %v4655
      %v4704 = vunpack.c.l.b16 %v4656
      %v4705 = vunpack.c.l.b16 %v4657
      %v4706 = vunpack.c.l.b16 %v4658
      %v4707 = vunpack.c.l.b16 %v4659
      %v4708 = vunpack.c.l.b16 %v4660
      %v4709 = vunpack.c.l.b16 %v4661
      %v4710 = vunpack.c.l.b16 %v4662
      %v4711 = vunpack.c.l.b16 %v4663
      %v4712 = vunpack.c.l.b16 %v4664
      %v4713 = vunpack.c.l.b16 %v4665
      %v4714 = vpack.c.b16 %v4699, %v4698
      %v4715 = vpack.c.b16 %v4701, %v4700
      %v4716 = vpack.c.b16 %v4703, %v4702
      %v4717 = vpack.c.b16 %v4705, %v4704
      %v4718 = vpack.c.b16 %v4707, %v4706
      %v4719 = vpack.c.b16 %v4709, %v4708
      %v4720 = vpack.c.b16 %v4711, %v4710
      %v4721 = vpack.c.b16 %v4713, %v4712
      %4730 = vmatprep.subr.bf16.mxu0 0
      %4731 = vmatpush1.bf16.msra.mxu0 %v4714
      %4732 = vmatprep.subr.bf16.mxu0 0
      %4733 = vmatpush1.bf16.msra.mxu0 %v4715
      %4734 = vmatprep.subr.bf16.mxu0 0
      %4735 = vmatpush1.bf16.msra.mxu0 %v4716
      %4736 = vmatprep.subr.bf16.mxu0 0
      %4737 = vmatpush1.bf16.msra.mxu0 %v4717
      %4738 = vmatprep.subr.bf16.mxu0 0
      %4739 = vmatpush1.bf16.msra.mxu0 %v4718
      %4740 = vmatprep.subr.bf16.mxu0 0
      %4741 = vmatpush1.bf16.msra.mxu0 %v4719
      %4742 = vmatprep.subr.bf16.mxu0 0
      %4743 = vmatpush1.bf16.msra.mxu0 %v4720
      %4744 = vmatprep.subr.bf16.mxu0 0
      %4745 = vmatpush1.bf16.msra.mxu0 %v4721
      %4746 = vmatprep.subr.bf16.mxu0 0
      %4747 = vmatpush1.bf16.msra.mxu0 0
      %4748 = vmatprep.subr.bf16.mxu0 0
      %4749 = vmatpush1.bf16.msra.mxu0 0
      %4750 = vmatprep.subr.bf16.mxu0 0
      %4751 = vmatpush1.bf16.msra.mxu0 0
      %4752 = vmatprep.subr.bf16.mxu0 0
      %4753 = vmatpush1.bf16.msra.mxu0 0
      %4754 = vmatprep.subr.bf16.mxu0 0
      %4755 = vmatpush1.bf16.msra.mxu0 0
      %4756 = vmatprep.subr.bf16.mxu0 0
      %4757 = vmatpush1.bf16.msra.mxu0 0
      %4758 = vmatprep.subr.bf16.mxu0 0
      %4759 = vmatpush1.bf16.msra.mxu0 0
      %4760 = vmatprep.subr.bf16.mxu0 0
      %4761 = vmatpush1.bf16.msra.mxu0 0
      %4762 = vmatprep.mubr.bf16.mxu0 0
      %4763 = vmatmul.mubr.bf16.gmra.mrb[0].mxu0 %v4674
      %v4764 = vpop.f32.mrb[0].mxu0
      %v4765 = vadd.f32 0.0, %v4764
      %v4766 = vpop.f32.mrb[0].mxu0
      %v4767 = vpop.f32.mrb[0].mxu0
      %v4768 = vadd.f32 0.0, %v4767
      %v4769 = vpop.f32.mrb[0].mxu0
      %4770 = vmatprep.mubr.bf16.mxu0 0
      %4771 = vmatmul.mubr.bf16.gmra.mrb[0].mxu0 %v4675
      %v4772 = vpop.f32.mrb[0].mxu0
      %v4773 = vadd.f32 0.0, %v4772
      %v4774 = vpop.f32.mrb[0].mxu0
      %v4775 = vpop.f32.mrb[0].mxu0
      %v4776 = vadd.f32 0.0, %v4775
      %v4777 = vpop.f32.mrb[0].mxu0
      %4778 = vmatprep.mubr.bf16.mxu0 0
      %4779 = vmatmul.mubr.bf16.gmra.mrb[0].mxu0 %v4676
      %v4780 = vpop.f32.mrb[0].mxu0
      %v4781 = vadd.f32 0.0, %v4780
      %v4782 = vpop.f32.mrb[0].mxu0
      %v4783 = vpop.f32.mrb[0].mxu0
      %v4784 = vadd.f32 0.0, %v4783
      %v4785 = vpop.f32.mrb[0].mxu0
      %4786 = vmatprep.mubr.bf16.mxu0 0
      %4787 = vmatmul.mubr.bf16.gmra.mrb[0].mxu0 %v4677
      %v4788 = vpop.f32.mrb[0].mxu0
      %v4789 = vadd.f32 0.0, %v4788
      %v4790 = vpop.f32.mrb[0].mxu0
      %v4791 = vpop.f32.mrb[0].mxu0
      %v4792 = vadd.f32 0.0, %v4791
      %v4793 = vpop.f32.mrb[0].mxu0
      %4794 = vdwg.mxu0
      %v4795 = vadd.f32 %v4514, %v4765
      %v4796 = vadd.f32 %v4515, %v4768
      %v4797 = vadd.f32 %v4516, %v4773
      %v4798 = vadd.f32 %v4517, %v4776
      %v4799 = vadd.f32 %v4518, %v4781
      %v4800 = vadd.f32 %v4519, %v4784
      %v4801 = vadd.f32 %v4520, %v4789
      %v4802 = vadd.f32 %v4521, %v4792
      %v4803 = vld [vmem:[%s384] sm:$0xe]
      %v4804 = vld [vmem:[%s384 + $0x8] sm:$0xe]
      %v4805 = vld [vmem:[%s384 + $0x10] sm:$0xe]
      %v4806 = vld [vmem:[%s384 + $0x18] sm:$0xe]
      %v4807 = vld [vmem:[%s384 + $0x20] sm:$0xe]
      %v4808 = vld [vmem:[%s384 + $0x28] sm:$0xe]
      %v4809 = vld [vmem:[%s384 + $0x30] sm:$0xe]
      %v4810 = vld [vmem:[%s384 + $0x38] sm:$0xe]
      %v4827 = vrot.slane %v4803, 5
      %v4828 = vrot.slane %v4827, 4
      %v4829 = vrot.slane %v4523, 5
      %v4830 = vsel %vm868, %v4828, %v4829
      %v4831 = vrot.slane %v4804, 5
      %v4832 = vrot.slane %v4831, 4
      %v4833 = vrot.slane %v4525, 5
      %v4834 = vsel %vm868, %v4832, %v4833
      %v4835 = vrot.slane %v4805, 5
      %v4836 = vrot.slane %v4835, 4
      %v4837 = vrot.slane %v4527, 5
      %v4838 = vsel %vm868, %v4836, %v4837
      %v4839 = vrot.slane %v4806, 5
      %v4840 = vrot.slane %v4839, 4
      %v4841 = vrot.slane %v4529, 5
      %v4842 = vsel %vm868, %v4840, %v4841
      %v4843 = vrot.slane %v4807, 5
      %v4844 = vrot.slane %v4843, 4
      %v4845 = vrot.slane %v4531, 5
      %v4846 = vsel %vm868, %v4844, %v4845
      %v4847 = vrot.slane %v4808, 5
      %v4848 = vrot.slane %v4847, 4
      %v4849 = vrot.slane %v4533, 5
      %v4850 = vsel %vm868, %v4848, %v4849
      %v4851 = vrot.slane %v4809, 5
      %v4852 = vrot.slane %v4851, 4
      %v4853 = vrot.slane %v4535, 5
      %v4854 = vsel %vm868, %v4852, %v4853
      %v4855 = vrot.slane %v4810, 5
      %v4856 = vrot.slane %v4855, 4
      %v4857 = vrot.slane %v4537, 5
      %v4858 = vsel %vm868, %v4856, %v4857
      %v4859 = vld [vmem:[%s3 + $0x500] sm:$0xf]
      %v4860 = vld [vmem:[%s3 + $0x504] sm:$0xf]
      %v4861 = vld [vmem:[%s3 + $0x508] sm:$0xf]
      %v4862 = vld [vmem:[%s3 + $0x50c] sm:$0xf]
      %v4863 = vld [vmem:[%s3 + $0x510] sm:$0xf]
      %v4864 = vld [vmem:[%s3 + $0x514] sm:$0xf]
      %v4865 = vld [vmem:[%s3 + $0x518] sm:$0xf]
      %v4866 = vld [vmem:[%s3 + $0x51c] sm:$0xf]
      %v4867 = vld [vmem:[%s3 + $0x520] sm:$0xf]
      %v4868 = vld [vmem:[%s3 + $0x524] sm:$0xf]
      %v4869 = vld [vmem:[%s3 + $0x528] sm:$0xf]
      %v4870 = vld [vmem:[%s3 + $0x52c] sm:$0xf]
      %v4871 = vld [vmem:[%s3 + $0x530] sm:$0xf]
      %v4872 = vld [vmem:[%s3 + $0x534] sm:$0xf]
      %v4873 = vld [vmem:[%s3 + $0x538] sm:$0xf]
      %v4874 = vld [vmem:[%s3 + $0x53c] sm:$0xf]
      %v4875 = vunpack.c.l.b16 %v4830
      %v4876 = vunpack.c.l.b16 %v4834
      %v4877 = vunpack.c.l.b16 %v4838
      %v4878 = vunpack.c.l.b16 %v4842
      %v4879 = vunpack.c.l.b16 %v4846
      %v4880 = vunpack.c.l.b16 %v4850
      %v4881 = vunpack.c.l.b16 %v4854
      %v4882 = vunpack.c.l.b16 %v4858
      %v4883 = vpack.c.b16 %v4876, %v4875
      %v4884 = vpack.c.b16 %v4878, %v4877
      %v4885 = vpack.c.b16 %v4880, %v4879
      %v4886 = vpack.c.b16 %v4882, %v4881
      %v4907 = vunpack.c.l.b16 %v4859
      %v4908 = vunpack.c.l.b16 %v4860
      %v4909 = vunpack.c.l.b16 %v4861
      %v4910 = vunpack.c.l.b16 %v4862
      %v4911 = vunpack.c.l.b16 %v4863
      %v4912 = vunpack.c.l.b16 %v4864
      %v4913 = vunpack.c.l.b16 %v4865
      %v4914 = vunpack.c.l.b16 %v4866
      %v4915 = vunpack.c.l.b16 %v4867
      %v4916 = vunpack.c.l.b16 %v4868
      %v4917 = vunpack.c.l.b16 %v4869
      %v4918 = vunpack.c.l.b16 %v4870
      %v4919 = vunpack.c.l.b16 %v4871
      %v4920 = vunpack.c.l.b16 %v4872
      %v4921 = vunpack.c.l.b16 %v4873
      %v4922 = vunpack.c.l.b16 %v4874
      %v4923 = vpack.c.b16 %v4908, %v4907
      %v4924 = vpack.c.b16 %v4910, %v4909
      %v4925 = vpack.c.b16 %v4912, %v4911
      %v4926 = vpack.c.b16 %v4914, %v4913
      %v4927 = vpack.c.b16 %v4916, %v4915
      %v4928 = vpack.c.b16 %v4918, %v4917
      %v4929 = vpack.c.b16 %v4920, %v4919
      %v4930 = vpack.c.b16 %v4922, %v4921
      %4939 = vmatprep.subr.bf16.mxu0 0
      %4940 = vmatpush1.bf16.msra.mxu0 %v4923
      %4941 = vmatprep.subr.bf16.mxu0 0
      %4942 = vmatpush1.bf16.msra.mxu0 %v4924
      %4943 = vmatprep.subr.bf16.mxu0 0
      %4944 = vmatpush1.bf16.msra.mxu0 %v4925
      %4945 = vmatprep.subr.bf16.mxu0 0
      %4946 = vmatpush1.bf16.msra.mxu0 %v4926
      %4947 = vmatprep.subr.bf16.mxu0 0
      %4948 = vmatpush1.bf16.msra.mxu0 %v4927
      %4949 = vmatprep.subr.bf16.mxu0 0
      %4950 = vmatpush1.bf16.msra.mxu0 %v4928
      %4951 = vmatprep.subr.bf16.mxu0 0
      %4952 = vmatpush1.bf16.msra.mxu0 %v4929
      %4953 = vmatprep.subr.bf16.mxu0 0
      %4954 = vmatpush1.bf16.msra.mxu0 %v4930
      %4955 = vmatprep.subr.bf16.mxu0 0
      %4956 = vmatpush1.bf16.msra.mxu0 0
      %4957 = vmatprep.subr.bf16.mxu0 0
      %4958 = vmatpush1.bf16.msra.mxu0 0
      %4959 = vmatprep.subr.bf16.mxu0 0
      %4960 = vmatpush1.bf16.msra.mxu0 0
      %4961 = vmatprep.subr.bf16.mxu0 0
      %4962 = vmatpush1.bf16.msra.mxu0 0
      %4963 = vmatprep.subr.bf16.mxu0 0
      %4964 = vmatpush1.bf16.msra.mxu0 0
      %4965 = vmatprep.subr.bf16.mxu0 0
      %4966 = vmatpush1.bf16.msra.mxu0 0
      %4967 = vmatprep.subr.bf16.mxu0 0
      %4968 = vmatpush1.bf16.msra.mxu0 0
      %4969 = vmatprep.subr.bf16.mxu0 0
      %4970 = vmatpush1.bf16.msra.mxu0 0
      %4971 = vmatprep.mubr.bf16.mxu0 0
      %4972 = vmatmul.mubr.bf16.gmra.mrb[0].mxu0 %v4883
      %v4973 = vpop.f32.mrb[0].mxu0
      %v4974 = vadd.f32 0.0, %v4973
      %v4975 = vpop.f32.mrb[0].mxu0
      %v4976 = vpop.f32.mrb[0].mxu0
      %v4977 = vadd.f32 0.0, %v4976
      %v4978 = vpop.f32.mrb[0].mxu0
      %4979 = vmatprep.mubr.bf16.mxu0 0
      %4980 = vmatmul.mubr.bf16.gmra.mrb[0].mxu0 %v4884
      %v4981 = vpop.f32.mrb[0].mxu0
      %v4982 = vadd.f32 0.0, %v4981
      %v4983 = vpop.f32.mrb[0].mxu0
      %v4984 = vpop.f32.mrb[0].mxu0
      %v4985 = vadd.f32 0.0, %v4984
      %v4986 = vpop.f32.mrb[0].mxu0
      %4987 = vmatprep.mubr.bf16.mxu0 0
      %4988 = vmatmul.mubr.bf16.gmra.mrb[0].mxu0 %v4885
      %v4989 = vpop.f32.mrb[0].mxu0
      %v4990 = vadd.f32 0.0, %v4989
      %v4991 = vpop.f32.mrb[0].mxu0
      %v4992 = vpop.f32.mrb[0].mxu0
      %v4993 = vadd.f32 0.0, %v4992
      %v4994 = vpop.f32.mrb[0].mxu0
      %4995 = vmatprep.mubr.bf16.mxu0 0
      %4996 = vmatmul.mubr.bf16.gmra.mrb[0].mxu0 %v4886
      %v4997 = vpop.f32.mrb[0].mxu0
      %v4998 = vadd.f32 0.0, %v4997
      %v4999 = vpop.f32.mrb[0].mxu0
      %v5000 = vpop.f32.mrb[0].mxu0
      %v5001 = vadd.f32 0.0, %v5000
      %v5002 = vpop.f32.mrb[0].mxu0
      %5003 = vdwg.mxu0
      %v5004 = vadd.f32 %v4795, %v4974
      %v5005 = vadd.f32 %v4796, %v4977
      %v5006 = vadd.f32 %v4797, %v4982
      %v5007 = vadd.f32 %v4798, %v4985
      %v5008 = vadd.f32 %v4799, %v4990
      %v5009 = vadd.f32 %v4800, %v4993
      %v5010 = vadd.f32 %v4801, %v4998
      %v5011 = vadd.f32 %v4802, %v5001
      %s5012 = scalar_lea.vmem %s384, 8
      %v5013 = vld [vmem:[%s5012] sm:$0xf]
      %v5014 = vld [vmem:[%s5012 + $0x8] sm:$0xf]
      %v5015 = vld [vmem:[%s5012 + $0x10] sm:$0xf]
      %v5016 = vld [vmem:[%s5012 + $0x18] sm:$0xf]
      %v5017 = vld [vmem:[%s5012 + $0x20] sm:$0xf]
      %v5018 = vld [vmem:[%s5012 + $0x28] sm:$0xf]
      %v5019 = vld [vmem:[%s5012 + $0x30] sm:$0xf]
      %v5020 = vld [vmem:[%s5012 + $0x38] sm:$0xf]
      %v5021 = vld [vmem:[%s3 + $0x540] sm:$0xf]
      %v5022 = vld [vmem:[%s3 + $0x544] sm:$0xf]
      %v5023 = vld [vmem:[%s3 + $0x548] sm:$0xf]
      %v5024 = vld [vmem:[%s3 + $0x54c] sm:$0xf]
      %v5025 = vld [vmem:[%s3 + $0x550] sm:$0xf]
      %v5026 = vld [vmem:[%s3 + $0x554] sm:$0xf]
      %v5027 = vld [vmem:[%s3 + $0x558] sm:$0xf]
      %v5028 = vld [vmem:[%s3 + $0x55c] sm:$0xf]
      %v5029 = vld [vmem:[%s3 + $0x560] sm:$0xf]
      %v5030 = vld [vmem:[%s3 + $0x564] sm:$0xf]
      %v5031 = vld [vmem:[%s3 + $0x568] sm:$0xf]
      %v5032 = vld [vmem:[%s3 + $0x56c] sm:$0xf]
      %v5033 = vld [vmem:[%s3 + $0x570] sm:$0xf]
      %v5034 = vld [vmem:[%s3 + $0x574] sm:$0xf]
      %v5035 = vld [vmem:[%s3 + $0x578] sm:$0xf]
      %v5036 = vld [vmem:[%s3 + $0x57c] sm:$0xf]
      %v5045 = vunpack.c.l.b16 %v5013
      %v5046 = vunpack.c.l.b16 %v5014
      %v5047 = vunpack.c.l.b16 %v5015
      %v5048 = vunpack.c.l.b16 %v5016
      %v5049 = vunpack.c.l.b16 %v5017
      %v5050 = vunpack.c.l.b16 %v5018
      %v5051 = vunpack.c.l.b16 %v5019
      %v5052 = vunpack.c.l.b16 %v5020
      %v5053 = vpack.c.b16 %v5046, %v5045
      %v5054 = vpack.c.b16 %v5048, %v5047
      %v5055 = vpack.c.b16 %v5050, %v5049
      %v5056 = vpack.c.b16 %v5052, %v5051
      %v5077 = vunpack.c.l.b16 %v5021
      %v5078 = vunpack.c.l.b16 %v5022
      %v5079 = vunpack.c.l.b16 %v5023
      %v5080 = vunpack.c.l.b16 %v5024
      %v5081 = vunpack.c.l.b16 %v5025
      %v5082 = vunpack.c.l.b16 %v5026
      %v5083 = vunpack.c.l.b16 %v5027
      %v5084 = vunpack.c.l.b16 %v5028
      %v5085 = vunpack.c.l.b16 %v5029
      %v5086 = vunpack.c.l.b16 %v5030
      %v5087 = vunpack.c.l.b16 %v5031
      %v5088 = vunpack.c.l.b16 %v5032
      %v5089 = vunpack.c.l.b16 %v5033
      %v5090 = vunpack.c.l.b16 %v5034
      %v5091 = vunpack.c.l.b16 %v5035
      %v5092 = vunpack.c.l.b16 %v5036
      %v5093 = vpack.c.b16 %v5078, %v5077
      %v5094 = vpack.c.b16 %v5080, %v5079
      %v5095 = vpack.c.b16 %v5082, %v5081
      %v5096 = vpack.c.b16 %v5084, %v5083
      %v5097 = vpack.c.b16 %v5086, %v5085
      %v5098 = vpack.c.b16 %v5088, %v5087
      %v5099 = vpack.c.b16 %v5090, %v5089
      %v5100 = vpack.c.b16 %v5092, %v5091
      %5109 = vmatprep.subr.bf16.mxu0 0
      %5110 = vmatpush1.bf16.msra.mxu0 %v5093
      %5111 = vmatprep.subr.bf16.mxu0 0
      %5112 = vmatpush1.bf16.msra.mxu0 %v5094
      %5113 = vmatprep.subr.bf16.mxu0 0
      %5114 = vmatpush1.bf16.msra.mxu0 %v5095
      %5115 = vmatprep.subr.bf16.mxu0 0
      %5116 = vmatpush1.bf16.msra.mxu0 %v5096
      %5117 = vmatprep.subr.bf16.mxu0 0
      %5118 = vmatpush1.bf16.msra.mxu0 %v5097
      %5119 = vmatprep.subr.bf16.mxu0 0
      %5120 = vmatpush1.bf16.msra.mxu0 %v5098
      %5121 = vmatprep.subr.bf16.mxu0 0
      %5122 = vmatpush1.bf16.msra.mxu0 %v5099
      %5123 = vmatprep.subr.bf16.mxu0 0
      %5124 = vmatpush1.bf16.msra.mxu0 %v5100
      %5125 = vmatprep.subr.bf16.mxu0 0
      %5126 = vmatpush1.bf16.msra.mxu0 0
      %5127 = vmatprep.subr.bf16.mxu0 0
      %5128 = vmatpush1.bf16.msra.mxu0 0
      %5129 = vmatprep.subr.bf16.mxu0 0
      %5130 = vmatpush1.bf16.msra.mxu0 0
      %5131 = vmatprep.subr.bf16.mxu0 0
      %5132 = vmatpush1.bf16.msra.mxu0 0
      %5133 = vmatprep.subr.bf16.mxu0 0
      %5134 = vmatpush1.bf16.msra.mxu0 0
      %5135 = vmatprep.subr.bf16.mxu0 0
      %5136 = vmatpush1.bf16.msra.mxu0 0
      %5137 = vmatprep.subr.bf16.mxu0 0
      %5138 = vmatpush1.bf16.msra.mxu0 0
      %5139 = vmatprep.subr.bf16.mxu0 0
      %5140 = vmatpush1.bf16.msra.mxu0 0
      %5141 = vmatprep.mubr.bf16.mxu0 0
      %5142 = vmatmul.mubr.bf16.gmra.mrb[0].mxu0 %v5053
      %v5143 = vpop.f32.mrb[0].mxu0
      %v5144 = vadd.f32 0.0, %v5143
      %v5145 = vpop.f32.mrb[0].mxu0
      %v5146 = vpop.f32.mrb[0].mxu0
      %v5147 = vadd.f32 0.0, %v5146
      %v5148 = vpop.f32.mrb[0].mxu0
      %5149 = vmatprep.mubr.bf16.mxu0 0
      %5150 = vmatmul.mubr.bf16.gmra.mrb[0].mxu0 %v5054
      %v5151 = vpop.f32.mrb[0].mxu0
      %v5152 = vadd.f32 0.0, %v5151
      %v5153 = vpop.f32.mrb[0].mxu0
      %v5154 = vpop.f32.mrb[0].mxu0
      %v5155 = vadd.f32 0.0, %v5154
      %v5156 = vpop.f32.mrb[0].mxu0
      %5157 = vmatprep.mubr.bf16.mxu0 0
      %5158 = vmatmul.mubr.bf16.gmra.mrb[0].mxu0 %v5055
      %v5159 = vpop.f32.mrb[0].mxu0
      %v5160 = vadd.f32 0.0, %v5159
      %v5161 = vpop.f32.mrb[0].mxu0
      %v5162 = vpop.f32.mrb[0].mxu0
      %v5163 = vadd.f32 0.0, %v5162
      %v5164 = vpop.f32.mrb[0].mxu0
      %5165 = vmatprep.mubr.bf16.mxu0 0
      %5166 = vmatmul.mubr.bf16.gmra.mrb[0].mxu0 %v5056
      %v5167 = vpop.f32.mrb[0].mxu0
      %v5168 = vadd.f32 0.0, %v5167
      %v5169 = vpop.f32.mrb[0].mxu0
      %v5170 = vpop.f32.mrb[0].mxu0
      %v5171 = vadd.f32 0.0, %v5170
      %v5172 = vpop.f32.mrb[0].mxu0
      %5173 = vdwg.mxu0
      %v5174 = vadd.f32 %v5004, %v5144
      %v5175 = vadd.f32 %v5005, %v5147
      %v5176 = vadd.f32 %v5006, %v5152
      %v5177 = vadd.f32 %v5007, %v5155
      %v5178 = vadd.f32 %v5008, %v5160
      %v5179 = vadd.f32 %v5009, %v5163
      %v5180 = vadd.f32 %v5010, %v5168
      %v5181 = vadd.f32 %v5011, %v5171
      %v5182 = vld [vmem:[%s5012] sm:$0xf]
      %v5183 = vld [vmem:[%s5012 + $0x4] sm:$0x1]
      %v5184 = vld [vmem:[%s5012 + $0x8] sm:$0xf]
      %v5185 = vld [vmem:[%s5012 + $0xc] sm:$0x1]
      %v5186 = vld [vmem:[%s5012 + $0x10] sm:$0xf]
      %v5187 = vld [vmem:[%s5012 + $0x14] sm:$0x1]
      %v5188 = vld [vmem:[%s5012 + $0x18] sm:$0xf]
      %v5189 = vld [vmem:[%s5012 + $0x1c] sm:$0x1]
      %v5190 = vld [vmem:[%s5012 + $0x20] sm:$0xf]
      %v5191 = vld [vmem:[%s5012 + $0x24] sm:$0x1]
      %v5192 = vld [vmem:[%s5012 + $0x28] sm:$0xf]
      %v5193 = vld [vmem:[%s5012 + $0x2c] sm:$0x1]
      %v5194 = vld [vmem:[%s5012 + $0x30] sm:$0xf]
      %v5195 = vld [vmem:[%s5012 + $0x34] sm:$0x1]
      %v5196 = vld [vmem:[%s5012 + $0x38] sm:$0xf]
      %v5197 = vld [vmem:[%s5012 + $0x3c] sm:$0x1]
      %v5199 = vshrl.u32 %v5182, 16
      %v5201 = vrot.slane %v5199, 4
      %v5202 = vshll.u32 %v5182, 16
      %v5204 = vrot.slane %v5202, 5
      %v5205 = vor.u32 %v5201, %v5204
      %v5206 = vrot.slane %v5205, 4
      %v5208 = vshll.u32 %v5183, 16
      %v5210 = vrot.slane %v5208, 5
      %v5211 = vsel %vm447, %v5206, %v5210
      %v5213 = vshrl.u32 %v5184, 16
      %v5215 = vrot.slane %v5213, 4
      %v5216 = vshll.u32 %v5184, 16
      %v5218 = vrot.slane %v5216, 5
      %v5219 = vor.u32 %v5215, %v5218
      %v5220 = vrot.slane %v5219, 4
      %v5222 = vshll.u32 %v5185, 16
      %v5224 = vrot.slane %v5222, 5
      %v5225 = vsel %vm447, %v5220, %v5224
      %v5227 = vshrl.u32 %v5186, 16
      %v5229 = vrot.slane %v5227, 4
      %v5230 = vshll.u32 %v5186, 16
      %v5232 = vrot.slane %v5230, 5
      %v5233 = vor.u32 %v5229, %v5232
      %v5234 = vrot.slane %v5233, 4
      %v5236 = vshll.u32 %v5187, 16
      %v5238 = vrot.slane %v5236, 5
      %v5239 = vsel %vm447, %v5234, %v5238
      %v5241 = vshrl.u32 %v5188, 16
      %v5243 = vrot.slane %v5241, 4
      %v5244 = vshll.u32 %v5188, 16
      %v5246 = vrot.slane %v5244, 5
      %v5247 = vor.u32 %v5243, %v5246
      %v5248 = vrot.slane %v5247, 4
      %v5250 = vshll.u32 %v5189, 16
      %v5252 = vrot.slane %v5250, 5
      %v5253 = vsel %vm447, %v5248, %v5252
      %v5255 = vshrl.u32 %v5190, 16
      %v5257 = vrot.slane %v5255, 4
      %v5258 = vshll.u32 %v5190, 16
      %v5260 = vrot.slane %v5258, 5
      %v5261 = vor.u32 %v5257, %v5260
      %v5262 = vrot.slane %v5261, 4
      %v5264 = vshll.u32 %v5191, 16
      %v5266 = vrot.slane %v5264, 5
      %v5267 = vsel %vm447, %v5262, %v5266
      %v5269 = vshrl.u32 %v5192, 16
      %v5271 = vrot.slane %v5269, 4
      %v5272 = vshll.u32 %v5192, 16
      %v5274 = vrot.slane %v5272, 5
      %v5275 = vor.u32 %v5271, %v5274
      %v5276 = vrot.slane %v5275, 4
      %v5278 = vshll.u32 %v5193, 16
      %v5280 = vrot.slane %v5278, 5
      %v5281 = vsel %vm447, %v5276, %v5280
      %v5283 = vshrl.u32 %v5194, 16
      %v5285 = vrot.slane %v5283, 4
      %v5286 = vshll.u32 %v5194, 16
      %v5288 = vrot.slane %v5286, 5
      %v5289 = vor.u32 %v5285, %v5288
      %v5290 = vrot.slane %v5289, 4
      %v5292 = vshll.u32 %v5195, 16
      %v5294 = vrot.slane %v5292, 5
      %v5295 = vsel %vm447, %v5290, %v5294
      %v5297 = vshrl.u32 %v5196, 16
      %v5299 = vrot.slane %v5297, 4
      %v5300 = vshll.u32 %v5196, 16
      %v5302 = vrot.slane %v5300, 5
      %v5303 = vor.u32 %v5299, %v5302
      %v5304 = vrot.slane %v5303, 4
      %v5306 = vshll.u32 %v5197, 16
      %v5308 = vrot.slane %v5306, 5
      %v5309 = vsel %vm447, %v5304, %v5308
      %v5310 = vld [vmem:[%s3 + $0x580] sm:$0xf]
      %v5311 = vld [vmem:[%s3 + $0x584] sm:$0xf]
      %v5312 = vld [vmem:[%s3 + $0x588] sm:$0xf]
      %v5313 = vld [vmem:[%s3 + $0x58c] sm:$0xf]
      %v5314 = vld [vmem:[%s3 + $0x590] sm:$0xf]
      %v5315 = vld [vmem:[%s3 + $0x594] sm:$0xf]
      %v5316 = vld [vmem:[%s3 + $0x598] sm:$0xf]
      %v5317 = vld [vmem:[%s3 + $0x59c] sm:$0xf]
      %v5318 = vld [vmem:[%s3 + $0x5a0] sm:$0xf]
      %v5319 = vld [vmem:[%s3 + $0x5a4] sm:$0xf]
      %v5320 = vld [vmem:[%s3 + $0x5a8] sm:$0xf]
      %v5321 = vld [vmem:[%s3 + $0x5ac] sm:$0xf]
      %v5322 = vld [vmem:[%s3 + $0x5b0] sm:$0xf]
      %v5323 = vld [vmem:[%s3 + $0x5b4] sm:$0xf]
      %v5324 = vld [vmem:[%s3 + $0x5b8] sm:$0xf]
      %v5325 = vld [vmem:[%s3 + $0x5bc] sm:$0xf]
      %v5326 = vunpack.c.l.b16 %v5211
      %v5327 = vunpack.c.l.b16 %v5225
      %v5328 = vunpack.c.l.b16 %v5239
      %v5329 = vunpack.c.l.b16 %v5253
      %v5330 = vunpack.c.l.b16 %v5267
      %v5331 = vunpack.c.l.b16 %v5281
      %v5332 = vunpack.c.l.b16 %v5295
      %v5333 = vunpack.c.l.b16 %v5309
      %v5334 = vpack.c.b16 %v5327, %v5326
      %v5335 = vpack.c.b16 %v5329, %v5328
      %v5336 = vpack.c.b16 %v5331, %v5330
      %v5337 = vpack.c.b16 %v5333, %v5332
      %v5358 = vunpack.c.l.b16 %v5310
      %v5359 = vunpack.c.l.b16 %v5311
      %v5360 = vunpack.c.l.b16 %v5312
      %v5361 = vunpack.c.l.b16 %v5313
      %v5362 = vunpack.c.l.b16 %v5314
      %v5363 = vunpack.c.l.b16 %v5315
      %v5364 = vunpack.c.l.b16 %v5316
      %v5365 = vunpack.c.l.b16 %v5317
      %v5366 = vunpack.c.l.b16 %v5318
      %v5367 = vunpack.c.l.b16 %v5319
      %v5368 = vunpack.c.l.b16 %v5320
      %v5369 = vunpack.c.l.b16 %v5321
      %v5370 = vunpack.c.l.b16 %v5322
      %v5371 = vunpack.c.l.b16 %v5323
      %v5372 = vunpack.c.l.b16 %v5324
      %v5373 = vunpack.c.l.b16 %v5325
      %v5374 = vpack.c.b16 %v5359, %v5358
      %v5375 = vpack.c.b16 %v5361, %v5360
      %v5376 = vpack.c.b16 %v5363, %v5362
      %v5377 = vpack.c.b16 %v5365, %v5364
      %v5378 = vpack.c.b16 %v5367, %v5366
      %v5379 = vpack.c.b16 %v5369, %v5368
      %v5380 = vpack.c.b16 %v5371, %v5370
      %v5381 = vpack.c.b16 %v5373, %v5372
      %5390 = vmatprep.subr.bf16.mxu0 0
      %5391 = vmatpush1.bf16.msra.mxu0 %v5374
      %5392 = vmatprep.subr.bf16.mxu0 0
      %5393 = vmatpush1.bf16.msra.mxu0 %v5375
      %5394 = vmatprep.subr.bf16.mxu0 0
      %5395 = vmatpush1.bf16.msra.mxu0 %v5376
      %5396 = vmatprep.subr.bf16.mxu0 0
      %5397 = vmatpush1.bf16.msra.mxu0 %v5377
      %5398 = vmatprep.subr.bf16.mxu0 0
      %5399 = vmatpush1.bf16.msra.mxu0 %v5378
      %5400 = vmatprep.subr.bf16.mxu0 0
      %5401 = vmatpush1.bf16.msra.mxu0 %v5379
      %5402 = vmatprep.subr.bf16.mxu0 0
      %5403 = vmatpush1.bf16.msra.mxu0 %v5380
      %5404 = vmatprep.subr.bf16.mxu0 0
      %5405 = vmatpush1.bf16.msra.mxu0 %v5381
      %5406 = vmatprep.subr.bf16.mxu0 0
      %5407 = vmatpush1.bf16.msra.mxu0 0
      %5408 = vmatprep.subr.bf16.mxu0 0
      %5409 = vmatpush1.bf16.msra.mxu0 0
      %5410 = vmatprep.subr.bf16.mxu0 0
      %5411 = vmatpush1.bf16.msra.mxu0 0
      %5412 = vmatprep.subr.bf16.mxu0 0
      %5413 = vmatpush1.bf16.msra.mxu0 0
      %5414 = vmatprep.subr.bf16.mxu0 0
      %5415 = vmatpush1.bf16.msra.mxu0 0
      %5416 = vmatprep.subr.bf16.mxu0 0
      %5417 = vmatpush1.bf16.msra.mxu0 0
      %5418 = vmatprep.subr.bf16.mxu0 0
      %5419 = vmatpush1.bf16.msra.mxu0 0
      %5420 = vmatprep.subr.bf16.mxu0 0
      %5421 = vmatpush1.bf16.msra.mxu0 0
      %5422 = vmatprep.mubr.bf16.mxu0 0
      %5423 = vmatmul.mubr.bf16.gmra.mrb[0].mxu0 %v5334
      %v5424 = vpop.f32.mrb[0].mxu0
      %v5425 = vadd.f32 0.0, %v5424
      %v5426 = vpop.f32.mrb[0].mxu0
      %v5427 = vpop.f32.mrb[0].mxu0
      %v5428 = vadd.f32 0.0, %v5427
      %v5429 = vpop.f32.mrb[0].mxu0
      %5430 = vmatprep.mubr.bf16.mxu0 0
      %5431 = vmatmul.mubr.bf16.gmra.mrb[0].mxu0 %v5335
      %v5432 = vpop.f32.mrb[0].mxu0
      %v5433 = vadd.f32 0.0, %v5432
      %v5434 = vpop.f32.mrb[0].mxu0
      %v5435 = vpop.f32.mrb[0].mxu0
      %v5436 = vadd.f32 0.0, %v5435
      %v5437 = vpop.f32.mrb[0].mxu0
      %5438 = vmatprep.mubr.bf16.mxu0 0
      %5439 = vmatmul.mubr.bf16.gmra.mrb[0].mxu0 %v5336
      %v5440 = vpop.f32.mrb[0].mxu0
      %v5441 = vadd.f32 0.0, %v5440
      %v5442 = vpop.f32.mrb[0].mxu0
      %v5443 = vpop.f32.mrb[0].mxu0
      %v5444 = vadd.f32 0.0, %v5443
      %v5445 = vpop.f32.mrb[0].mxu0
      %5446 = vmatprep.mubr.bf16.mxu0 0
      %5447 = vmatmul.mubr.bf16.gmra.mrb[0].mxu0 %v5337
      %v5448 = vpop.f32.mrb[0].mxu0
      %v5449 = vadd.f32 0.0, %v5448
      %v5450 = vpop.f32.mrb[0].mxu0
      %v5451 = vpop.f32.mrb[0].mxu0
      %v5452 = vadd.f32 0.0, %v5451
      %v5453 = vpop.f32.mrb[0].mxu0
      %5454 = vdwg.mxu0
      %v5455 = vadd.f32 %v5174, %v5425
      %v5456 = vadd.f32 %v5175, %v5428
      %v5457 = vadd.f32 %v5176, %v5433
      %v5458 = vadd.f32 %v5177, %v5436
      %v5459 = vadd.f32 %v5178, %v5441
      %v5460 = vadd.f32 %v5179, %v5444
      %v5461 = vadd.f32 %v5180, %v5449
      %v5462 = vadd.f32 %v5181, %v5452
      %v5463 = vld [vmem:[%s5012] sm:$0xe]
      %v5464 = vld [vmem:[%s5012 + $0x8] sm:$0xe]
      %v5465 = vld [vmem:[%s5012 + $0x10] sm:$0xe]
      %v5466 = vld [vmem:[%s5012 + $0x18] sm:$0xe]
      %v5467 = vld [vmem:[%s5012 + $0x20] sm:$0xe]
      %v5468 = vld [vmem:[%s5012 + $0x28] sm:$0xe]
      %v5469 = vld [vmem:[%s5012 + $0x30] sm:$0xe]
      %v5470 = vld [vmem:[%s5012 + $0x38] sm:$0xe]
      %v5487 = vrot.slane %v5463, 5
      %v5488 = vrot.slane %v5487, 4
      %v5489 = vrot.slane %v5183, 5
      %v5490 = vsel %vm868, %v5488, %v5489
      %v5491 = vrot.slane %v5464, 5
      %v5492 = vrot.slane %v5491, 4
      %v5493 = vrot.slane %v5185, 5
      %v5494 = vsel %vm868, %v5492, %v5493
      %v5495 = vrot.slane %v5465, 5
      %v5496 = vrot.slane %v5495, 4
      %v5497 = vrot.slane %v5187, 5
      %v5498 = vsel %vm868, %v5496, %v5497
      %v5499 = vrot.slane %v5466, 5
      %v5500 = vrot.slane %v5499, 4
      %v5501 = vrot.slane %v5189, 5
      %v5502 = vsel %vm868, %v5500, %v5501
      %v5503 = vrot.slane %v5467, 5
      %v5504 = vrot.slane %v5503, 4
      %v5505 = vrot.slane %v5191, 5
      %v5506 = vsel %vm868, %v5504, %v5505
      %v5507 = vrot.slane %v5468, 5
      %v5508 = vrot.slane %v5507, 4
      %v5509 = vrot.slane %v5193, 5
      %v5510 = vsel %vm868, %v5508, %v5509
      %v5511 = vrot.slane %v5469, 5
      %v5512 = vrot.slane %v5511, 4
      %v5513 = vrot.slane %v5195, 5
      %v5514 = vsel %vm868, %v5512, %v5513
      %v5515 = vrot.slane %v5470, 5
      %v5516 = vrot.slane %v5515, 4
      %v5517 = vrot.slane %v5197, 5
      %v5518 = vsel %vm868, %v5516, %v5517
      %v5519 = vld [vmem:[%s3 + $0x5c0] sm:$0xf]
      %v5520 = vld [vmem:[%s3 + $0x5c4] sm:$0xf]
      %v5521 = vld [vmem:[%s3 + $0x5c8] sm:$0xf]
      %v5522 = vld [vmem:[%s3 + $0x5cc] sm:$0xf]
      %v5523 = vld [vmem:[%s3 + $0x5d0] sm:$0xf]
      %v5524 = vld [vmem:[%s3 + $0x5d4] sm:$0xf]
      %v5525 = vld [vmem:[%s3 + $0x5d8] sm:$0xf]
      %v5526 = vld [vmem:[%s3 + $0x5dc] sm:$0xf]
      %v5527 = vld [vmem:[%s3 + $0x5e0] sm:$0xf]
      %v5528 = vld [vmem:[%s3 + $0x5e4] sm:$0xf]
      %v5529 = vld [vmem:[%s3 + $0x5e8] sm:$0xf]
      %v5530 = vld [vmem:[%s3 + $0x5ec] sm:$0xf]
      %v5531 = vld [vmem:[%s3 + $0x5f0] sm:$0xf]
      %v5532 = vld [vmem:[%s3 + $0x5f4] sm:$0xf]
      %v5533 = vld [vmem:[%s3 + $0x5f8] sm:$0xf]
      %v5534 = vld [vmem:[%s3 + $0x5fc] sm:$0xf]
      %v5535 = vunpack.c.l.b16 %v5490
      %v5536 = vunpack.c.l.b16 %v5494
      %v5537 = vunpack.c.l.b16 %v5498
      %v5538 = vunpack.c.l.b16 %v5502
      %v5539 = vunpack.c.l.b16 %v5506
      %v5540 = vunpack.c.l.b16 %v5510
      %v5541 = vunpack.c.l.b16 %v5514
      %v5542 = vunpack.c.l.b16 %v5518
      %v5543 = vpack.c.b16 %v5536, %v5535
      %v5544 = vpack.c.b16 %v5538, %v5537
      %v5545 = vpack.c.b16 %v5540, %v5539
      %v5546 = vpack.c.b16 %v5542, %v5541
      %v5567 = vunpack.c.l.b16 %v5519
      %v5568 = vunpack.c.l.b16 %v5520
      %v5569 = vunpack.c.l.b16 %v5521
      %v5570 = vunpack.c.l.b16 %v5522
      %v5571 = vunpack.c.l.b16 %v5523
      %v5572 = vunpack.c.l.b16 %v5524
      %v5573 = vunpack.c.l.b16 %v5525
      %v5574 = vunpack.c.l.b16 %v5526
      %v5575 = vunpack.c.l.b16 %v5527
      %v5576 = vunpack.c.l.b16 %v5528
      %v5577 = vunpack.c.l.b16 %v5529
      %v5578 = vunpack.c.l.b16 %v5530
      %v5579 = vunpack.c.l.b16 %v5531
      %v5580 = vunpack.c.l.b16 %v5532
      %v5581 = vunpack.c.l.b16 %v5533
      %v5582 = vunpack.c.l.b16 %v5534
      %v5583 = vpack.c.b16 %v5568, %v5567
      %v5584 = vpack.c.b16 %v5570, %v5569
      %v5585 = vpack.c.b16 %v5572, %v5571
      %v5586 = vpack.c.b16 %v5574, %v5573
      %v5587 = vpack.c.b16 %v5576, %v5575
      %v5588 = vpack.c.b16 %v5578, %v5577
      %v5589 = vpack.c.b16 %v5580, %v5579
      %v5590 = vpack.c.b16 %v5582, %v5581
      %5599 = vmatprep.subr.bf16.mxu0 0
      %5600 = vmatpush1.bf16.msra.mxu0 %v5583
      %5601 = vmatprep.subr.bf16.mxu0 0
      %5602 = vmatpush1.bf16.msra.mxu0 %v5584
      %5603 = vmatprep.subr.bf16.mxu0 0
      %5604 = vmatpush1.bf16.msra.mxu0 %v5585
      %5605 = vmatprep.subr.bf16.mxu0 0
      %5606 = vmatpush1.bf16.msra.mxu0 %v5586
      %5607 = vmatprep.subr.bf16.mxu0 0
      %5608 = vmatpush1.bf16.msra.mxu0 %v5587
      %5609 = vmatprep.subr.bf16.mxu0 0
      %5610 = vmatpush1.bf16.msra.mxu0 %v5588
      %5611 = vmatprep.subr.bf16.mxu0 0
      %5612 = vmatpush1.bf16.msra.mxu0 %v5589
      %5613 = vmatprep.subr.bf16.mxu0 0
      %5614 = vmatpush1.bf16.msra.mxu0 %v5590
      %5615 = vmatprep.subr.bf16.mxu0 0
      %5616 = vmatpush1.bf16.msra.mxu0 0
      %5617 = vmatprep.subr.bf16.mxu0 0
      %5618 = vmatpush1.bf16.msra.mxu0 0
      %5619 = vmatprep.subr.bf16.mxu0 0
      %5620 = vmatpush1.bf16.msra.mxu0 0
      %5621 = vmatprep.subr.bf16.mxu0 0
      %5622 = vmatpush1.bf16.msra.mxu0 0
      %5623 = vmatprep.subr.bf16.mxu0 0
      %5624 = vmatpush1.bf16.msra.mxu0 0
      %5625 = vmatprep.subr.bf16.mxu0 0
      %5626 = vmatpush1.bf16.msra.mxu0 0
      %5627 = vmatprep.subr.bf16.mxu0 0
      %5628 = vmatpush1.bf16.msra.mxu0 0
      %5629 = vmatprep.subr.bf16.mxu0 0
      %5630 = vmatpush1.bf16.msra.mxu0 0
      %5631 = vmatprep.mubr.bf16.mxu0 0
      %5632 = vmatmul.mubr.bf16.gmra.mrb[0].mxu0 %v5543
      %v5633 = vpop.f32.mrb[0].mxu0
      %v5634 = vadd.f32 0.0, %v5633
      %v5635 = vpop.f32.mrb[0].mxu0
      %v5636 = vpop.f32.mrb[0].mxu0
      %v5637 = vadd.f32 0.0, %v5636
      %v5638 = vpop.f32.mrb[0].mxu0
      %5639 = vmatprep.mubr.bf16.mxu0 0
      %5640 = vmatmul.mubr.bf16.gmra.mrb[0].mxu0 %v5544
      %v5641 = vpop.f32.mrb[0].mxu0
      %v5642 = vadd.f32 0.0, %v5641
      %v5643 = vpop.f32.mrb[0].mxu0
      %v5644 = vpop.f32.mrb[0].mxu0
      %v5645 = vadd.f32 0.0, %v5644
      %v5646 = vpop.f32.mrb[0].mxu0
      %5647 = vmatprep.mubr.bf16.mxu0 0
      %5648 = vmatmul.mubr.bf16.gmra.mrb[0].mxu0 %v5545
      %v5649 = vpop.f32.mrb[0].mxu0
      %v5650 = vadd.f32 0.0, %v5649
      %v5651 = vpop.f32.mrb[0].mxu0
      %v5652 = vpop.f32.mrb[0].mxu0
      %v5653 = vadd.f32 0.0, %v5652
      %v5654 = vpop.f32.mrb[0].mxu0
      %5655 = vmatprep.mubr.bf16.mxu0 0
      %5656 = vmatmul.mubr.bf16.gmra.mrb[0].mxu0 %v5546
      %v5657 = vpop.f32.mrb[0].mxu0
      %v5658 = vadd.f32 0.0, %v5657
      %v5659 = vpop.f32.mrb[0].mxu0
      %v5660 = vpop.f32.mrb[0].mxu0
      %v5661 = vadd.f32 0.0, %v5660
      %v5662 = vpop.f32.mrb[0].mxu0
      %5663 = vdwg.mxu0
      %v5664 = vadd.f32 %v5455, %v5634
      %v5665 = vadd.f32 %v5456, %v5637
      %v5666 = vadd.f32 %v5457, %v5642
      %v5667 = vadd.f32 %v5458, %v5645
      %v5668 = vadd.f32 %v5459, %v5650
      %v5669 = vadd.f32 %v5460, %v5653
      %v5670 = vadd.f32 %v5461, %v5658
      %v5671 = vadd.f32 %v5462, %v5661
      %s5672 = scalar_lea.vmem %s384, 16
      %v5673 = vld [vmem:[%s5672] sm:$0xf]
      %v5674 = vld [vmem:[%s5672 + $0x8] sm:$0xf]
      %v5675 = vld [vmem:[%s5672 + $0x10] sm:$0xf]
      %v5676 = vld [vmem:[%s5672 + $0x18] sm:$0xf]
      %v5677 = vld [vmem:[%s5672 + $0x20] sm:$0xf]
      %v5678 = vld [vmem:[%s5672 + $0x28] sm:$0xf]
      %v5679 = vld [vmem:[%s5672 + $0x30] sm:$0xf]
      %v5680 = vld [vmem:[%s5672 + $0x38] sm:$0xf]
      %v5681 = vld [vmem:[%s3 + $0x600] sm:$0xf]
      %v5682 = vld [vmem:[%s3 + $0x604] sm:$0xf]
      %v5683 = vld [vmem:[%s3 + $0x608] sm:$0xf]
      %v5684 = vld [vmem:[%s3 + $0x60c] sm:$0xf]
      %v5685 = vld [vmem:[%s3 + $0x610] sm:$0xf]
      %v5686 = vld [vmem:[%s3 + $0x614] sm:$0xf]
      %v5687 = vld [vmem:[%s3 + $0x618] sm:$0xf]
      %v5688 = vld [vmem:[%s3 + $0x61c] sm:$0xf]
      %v5689 = vld [vmem:[%s3 + $0x620] sm:$0xf]
      %v5690 = vld [vmem:[%s3 + $0x624] sm:$0xf]
      %v5691 = vld [vmem:[%s3 + $0x628] sm:$0xf]
      %v5692 = vld [vmem:[%s3 + $0x62c] sm:$0xf]
      %v5693 = vld [vmem:[%s3 + $0x630] sm:$0xf]
      %v5694 = vld [vmem:[%s3 + $0x634] sm:$0xf]
      %v5695 = vld [vmem:[%s3 + $0x638] sm:$0xf]
      %v5696 = vld [vmem:[%s3 + $0x63c] sm:$0xf]
      %v5705 = vunpack.c.l.b16 %v5673
      %v5706 = vunpack.c.l.b16 %v5674
      %v5707 = vunpack.c.l.b16 %v5675
      %v5708 = vunpack.c.l.b16 %v5676
      %v5709 = vunpack.c.l.b16 %v5677
      %v5710 = vunpack.c.l.b16 %v5678
      %v5711 = vunpack.c.l.b16 %v5679
      %v5712 = vunpack.c.l.b16 %v5680
      %v5713 = vpack.c.b16 %v5706, %v5705
      %v5714 = vpack.c.b16 %v5708, %v5707
      %v5715 = vpack.c.b16 %v5710, %v5709
      %v5716 = vpack.c.b16 %v5712, %v5711
      %v5737 = vunpack.c.l.b16 %v5681
      %v5738 = vunpack.c.l.b16 %v5682
      %v5739 = vunpack.c.l.b16 %v5683
      %v5740 = vunpack.c.l.b16 %v5684
      %v5741 = vunpack.c.l.b16 %v5685
      %v5742 = vunpack.c.l.b16 %v5686
      %v5743 = vunpack.c.l.b16 %v5687
      %v5744 = vunpack.c.l.b16 %v5688
      %v5745 = vunpack.c.l.b16 %v5689
      %v5746 = vunpack.c.l.b16 %v5690
      %v5747 = vunpack.c.l.b16 %v5691
      %v5748 = vunpack.c.l.b16 %v5692
      %v5749 = vunpack.c.l.b16 %v5693
      %v5750 = vunpack.c.l.b16 %v5694
      %v5751 = vunpack.c.l.b16 %v5695
      %v5752 = vunpack.c.l.b16 %v5696
      %v5753 = vpack.c.b16 %v5738, %v5737
      %v5754 = vpack.c.b16 %v5740, %v5739
      %v5755 = vpack.c.b16 %v5742, %v5741
      %v5756 = vpack.c.b16 %v5744, %v5743
      %v5757 = vpack.c.b16 %v5746, %v5745
      %v5758 = vpack.c.b16 %v5748, %v5747
      %v5759 = vpack.c.b16 %v5750, %v5749
      %v5760 = vpack.c.b16 %v5752, %v5751
      %5769 = vmatprep.subr.bf16.mxu0 0
      %5770 = vmatpush1.bf16.msra.mxu0 %v5753
      %5771 = vmatprep.subr.bf16.mxu0 0
      %5772 = vmatpush1.bf16.msra.mxu0 %v5754
      %5773 = vmatprep.subr.bf16.mxu0 0
      %5774 = vmatpush1.bf16.msra.mxu0 %v5755
      %5775 = vmatprep.subr.bf16.mxu0 0
      %5776 = vmatpush1.bf16.msra.mxu0 %v5756
      %5777 = vmatprep.subr.bf16.mxu0 0
      %5778 = vmatpush1.bf16.msra.mxu0 %v5757
      %5779 = vmatprep.subr.bf16.mxu0 0
      %5780 = vmatpush1.bf16.msra.mxu0 %v5758
      %5781 = vmatprep.subr.bf16.mxu0 0
      %5782 = vmatpush1.bf16.msra.mxu0 %v5759
      %5783 = vmatprep.subr.bf16.mxu0 0
      %5784 = vmatpush1.bf16.msra.mxu0 %v5760
      %5785 = vmatprep.subr.bf16.mxu0 0
      %5786 = vmatpush1.bf16.msra.mxu0 0
      %5787 = vmatprep.subr.bf16.mxu0 0
      %5788 = vmatpush1.bf16.msra.mxu0 0
      %5789 = vmatprep.subr.bf16.mxu0 0
      %5790 = vmatpush1.bf16.msra.mxu0 0
      %5791 = vmatprep.subr.bf16.mxu0 0
      %5792 = vmatpush1.bf16.msra.mxu0 0
      %5793 = vmatprep.subr.bf16.mxu0 0
      %5794 = vmatpush1.bf16.msra.mxu0 0
      %5795 = vmatprep.subr.bf16.mxu0 0
      %5796 = vmatpush1.bf16.msra.mxu0 0
      %5797 = vmatprep.subr.bf16.mxu0 0
      %5798 = vmatpush1.bf16.msra.mxu0 0
      %5799 = vmatprep.subr.bf16.mxu0 0
      %5800 = vmatpush1.bf16.msra.mxu0 0
      %5801 = vmatprep.mubr.bf16.mxu0 0
      %5802 = vmatmul.mubr.bf16.gmra.mrb[0].mxu0 %v5713
      %v5803 = vpop.f32.mrb[0].mxu0
      %v5804 = vadd.f32 0.0, %v5803
      %v5805 = vpop.f32.mrb[0].mxu0
      %v5806 = vpop.f32.mrb[0].mxu0
      %v5807 = vadd.f32 0.0, %v5806
      %v5808 = vpop.f32.mrb[0].mxu0
      %5809 = vmatprep.mubr.bf16.mxu0 0
      %5810 = vmatmul.mubr.bf16.gmra.mrb[0].mxu0 %v5714
      %v5811 = vpop.f32.mrb[0].mxu0
      %v5812 = vadd.f32 0.0, %v5811
      %v5813 = vpop.f32.mrb[0].mxu0
      %v5814 = vpop.f32.mrb[0].mxu0
      %v5815 = vadd.f32 0.0, %v5814
      %v5816 = vpop.f32.mrb[0].mxu0
      %5817 = vmatprep.mubr.bf16.mxu0 0
      %5818 = vmatmul.mubr.bf16.gmra.mrb[0].mxu0 %v5715
      %v5819 = vpop.f32.mrb[0].mxu0
      %v5820 = vadd.f32 0.0, %v5819
      %v5821 = vpop.f32.mrb[0].mxu0
      %v5822 = vpop.f32.mrb[0].mxu0
      %v5823 = vadd.f32 0.0, %v5822
      %v5824 = vpop.f32.mrb[0].mxu0
      %5825 = vmatprep.mubr.bf16.mxu0 0
      %5826 = vmatmul.mubr.bf16.gmra.mrb[0].mxu0 %v5716
      %v5827 = vpop.f32.mrb[0].mxu0
      %v5828 = vadd.f32 0.0, %v5827
      %v5829 = vpop.f32.mrb[0].mxu0
      %v5830 = vpop.f32.mrb[0].mxu0
      %v5831 = vadd.f32 0.0, %v5830
      %v5832 = vpop.f32.mrb[0].mxu0
      %5833 = vdwg.mxu0
      %v5834 = vadd.f32 %v5664, %v5804
      %v5835 = vadd.f32 %v5665, %v5807
      %v5836 = vadd.f32 %v5666, %v5812
      %v5837 = vadd.f32 %v5667, %v5815
      %v5838 = vadd.f32 %v5668, %v5820
      %v5839 = vadd.f32 %v5669, %v5823
      %v5840 = vadd.f32 %v5670, %v5828
      %v5841 = vadd.f32 %v5671, %v5831
      %v5842 = vld [vmem:[%s5672] sm:$0xf]
      %v5843 = vld [vmem:[%s5672 + $0x4] sm:$0x1]
      %v5844 = vld [vmem:[%s5672 + $0x8] sm:$0xf]
      %v5845 = vld [vmem:[%s5672 + $0xc] sm:$0x1]
      %v5846 = vld [vmem:[%s5672 + $0x10] sm:$0xf]
      %v5847 = vld [vmem:[%s5672 + $0x14] sm:$0x1]
      %v5848 = vld [vmem:[%s5672 + $0x18] sm:$0xf]
      %v5849 = vld [vmem:[%s5672 + $0x1c] sm:$0x1]
      %v5850 = vld [vmem:[%s5672 + $0x20] sm:$0xf]
      %v5851 = vld [vmem:[%s5672 + $0x24] sm:$0x1]
      %v5852 = vld [vmem:[%s5672 + $0x28] sm:$0xf]
      %v5853 = vld [vmem:[%s5672 + $0x2c] sm:$0x1]
      %v5854 = vld [vmem:[%s5672 + $0x30] sm:$0xf]
      %v5855 = vld [vmem:[%s5672 + $0x34] sm:$0x1]
      %v5856 = vld [vmem:[%s5672 + $0x38] sm:$0xf]
      %v5857 = vld [vmem:[%s5672 + $0x3c] sm:$0x1]
      %v5859 = vshrl.u32 %v5842, 16
      %v5861 = vrot.slane %v5859, 4
      %v5862 = vshll.u32 %v5842, 16
      %v5864 = vrot.slane %v5862, 5
      %v5865 = vor.u32 %v5861, %v5864
      %v5866 = vrot.slane %v5865, 4
      %v5868 = vshll.u32 %v5843, 16
      %v5870 = vrot.slane %v5868, 5
      %v5871 = vsel %vm447, %v5866, %v5870
      %v5873 = vshrl.u32 %v5844, 16
      %v5875 = vrot.slane %v5873, 4
      %v5876 = vshll.u32 %v5844, 16
      %v5878 = vrot.slane %v5876, 5
      %v5879 = vor.u32 %v5875, %v5878
      %v5880 = vrot.slane %v5879, 4
      %v5882 = vshll.u32 %v5845, 16
      %v5884 = vrot.slane %v5882, 5
      %v5885 = vsel %vm447, %v5880, %v5884
      %v5887 = vshrl.u32 %v5846, 16
      %v5889 = vrot.slane %v5887, 4
      %v5890 = vshll.u32 %v5846, 16
      %v5892 = vrot.slane %v5890, 5
      %v5893 = vor.u32 %v5889, %v5892
      %v5894 = vrot.slane %v5893, 4
      %v5896 = vshll.u32 %v5847, 16
      %v5898 = vrot.slane %v5896, 5
      %v5899 = vsel %vm447, %v5894, %v5898
      %v5901 = vshrl.u32 %v5848, 16
      %v5903 = vrot.slane %v5901, 4
      %v5904 = vshll.u32 %v5848, 16
      %v5906 = vrot.slane %v5904, 5
      %v5907 = vor.u32 %v5903, %v5906
      %v5908 = vrot.slane %v5907, 4
      %v5910 = vshll.u32 %v5849, 16
      %v5912 = vrot.slane %v5910, 5
      %v5913 = vsel %vm447, %v5908, %v5912
      %v5915 = vshrl.u32 %v5850, 16
      %v5917 = vrot.slane %v5915, 4
      %v5918 = vshll.u32 %v5850, 16
      %v5920 = vrot.slane %v5918, 5
      %v5921 = vor.u32 %v5917, %v5920
      %v5922 = vrot.slane %v5921, 4
      %v5924 = vshll.u32 %v5851, 16
      %v5926 = vrot.slane %v5924, 5
      %v5927 = vsel %vm447, %v5922, %v5926
      %v5929 = vshrl.u32 %v5852, 16
      %v5931 = vrot.slane %v5929, 4
      %v5932 = vshll.u32 %v5852, 16
      %v5934 = vrot.slane %v5932, 5
      %v5935 = vor.u32 %v5931, %v5934
      %v5936 = vrot.slane %v5935, 4
      %v5938 = vshll.u32 %v5853, 16
      %v5940 = vrot.slane %v5938, 5
      %v5941 = vsel %vm447, %v5936, %v5940
      %v5943 = vshrl.u32 %v5854, 16
      %v5945 = vrot.slane %v5943, 4
      %v5946 = vshll.u32 %v5854, 16
      %v5948 = vrot.slane %v5946, 5
      %v5949 = vor.u32 %v5945, %v5948
      %v5950 = vrot.slane %v5949, 4
      %v5952 = vshll.u32 %v5855, 16
      %v5954 = vrot.slane %v5952, 5
      %v5955 = vsel %vm447, %v5950, %v5954
      %v5957 = vshrl.u32 %v5856, 16
      %v5959 = vrot.slane %v5957, 4
      %v5960 = vshll.u32 %v5856, 16
      %v5962 = vrot.slane %v5960, 5
      %v5963 = vor.u32 %v5959, %v5962
      %v5964 = vrot.slane %v5963, 4
      %v5966 = vshll.u32 %v5857, 16
      %v5968 = vrot.slane %v5966, 5
      %v5969 = vsel %vm447, %v5964, %v5968
      %v5970 = vld [vmem:[%s3 + $0x640] sm:$0xf]
      %v5971 = vld [vmem:[%s3 + $0x644] sm:$0xf]
      %v5972 = vld [vmem:[%s3 + $0x648] sm:$0xf]
      %v5973 = vld [vmem:[%s3 + $0x64c] sm:$0xf]
      %v5974 = vld [vmem:[%s3 + $0x650] sm:$0xf]
      %v5975 = vld [vmem:[%s3 + $0x654] sm:$0xf]
      %v5976 = vld [vmem:[%s3 + $0x658] sm:$0xf]
      %v5977 = vld [vmem:[%s3 + $0x65c] sm:$0xf]
      %v5978 = vld [vmem:[%s3 + $0x660] sm:$0xf]
      %v5979 = vld [vmem:[%s3 + $0x664] sm:$0xf]
      %v5980 = vld [vmem:[%s3 + $0x668] sm:$0xf]
      %v5981 = vld [vmem:[%s3 + $0x66c] sm:$0xf]
      %v5982 = vld [vmem:[%s3 + $0x670] sm:$0xf]
      %v5983 = vld [vmem:[%s3 + $0x674] sm:$0xf]
      %v5984 = vld [vmem:[%s3 + $0x678] sm:$0xf]
      %v5985 = vld [vmem:[%s3 + $0x67c] sm:$0xf]
      %v5986 = vunpack.c.l.b16 %v5871
      %v5987 = vunpack.c.l.b16 %v5885
      %v5988 = vunpack.c.l.b16 %v5899
      %v5989 = vunpack.c.l.b16 %v5913
      %v5990 = vunpack.c.l.b16 %v5927
      %v5991 = vunpack.c.l.b16 %v5941
      %v5992 = vunpack.c.l.b16 %v5955
      %v5993 = vunpack.c.l.b16 %v5969
      %v5994 = vpack.c.b16 %v5987, %v5986
      %v5995 = vpack.c.b16 %v5989, %v5988
      %v5996 = vpack.c.b16 %v5991, %v5990
      %v5997 = vpack.c.b16 %v5993, %v5992
      %v6018 = vunpack.c.l.b16 %v5970
      %v6019 = vunpack.c.l.b16 %v5971
      %v6020 = vunpack.c.l.b16 %v5972
      %v6021 = vunpack.c.l.b16 %v5973
      %v6022 = vunpack.c.l.b16 %v5974
      %v6023 = vunpack.c.l.b16 %v5975
      %v6024 = vunpack.c.l.b16 %v5976
      %v6025 = vunpack.c.l.b16 %v5977
      %v6026 = vunpack.c.l.b16 %v5978
      %v6027 = vunpack.c.l.b16 %v5979
      %v6028 = vunpack.c.l.b16 %v5980
      %v6029 = vunpack.c.l.b16 %v5981
      %v6030 = vunpack.c.l.b16 %v5982
      %v6031 = vunpack.c.l.b16 %v5983
      %v6032 = vunpack.c.l.b16 %v5984
      %v6033 = vunpack.c.l.b16 %v5985
      %v6034 = vpack.c.b16 %v6019, %v6018
      %v6035 = vpack.c.b16 %v6021, %v6020
      %v6036 = vpack.c.b16 %v6023, %v6022
      %v6037 = vpack.c.b16 %v6025, %v6024
      %v6038 = vpack.c.b16 %v6027, %v6026
      %v6039 = vpack.c.b16 %v6029, %v6028
      %v6040 = vpack.c.b16 %v6031, %v6030
      %v6041 = vpack.c.b16 %v6033, %v6032
      %6050 = vmatprep.subr.bf16.mxu0 0
      %6051 = vmatpush1.bf16.msra.mxu0 %v6034
      %6052 = vmatprep.subr.bf16.mxu0 0
      %6053 = vmatpush1.bf16.msra.mxu0 %v6035
      %6054 = vmatprep.subr.bf16.mxu0 0
      %6055 = vmatpush1.bf16.msra.mxu0 %v6036
      %6056 = vmatprep.subr.bf16.mxu0 0
      %6057 = vmatpush1.bf16.msra.mxu0 %v6037
      %6058 = vmatprep.subr.bf16.mxu0 0
      %6059 = vmatpush1.bf16.msra.mxu0 %v6038
      %6060 = vmatprep.subr.bf16.mxu0 0
      %6061 = vmatpush1.bf16.msra.mxu0 %v6039
      %6062 = vmatprep.subr.bf16.mxu0 0
      %6063 = vmatpush1.bf16.msra.mxu0 %v6040
      %6064 = vmatprep.subr.bf16.mxu0 0
      %6065 = vmatpush1.bf16.msra.mxu0 %v6041
      %6066 = vmatprep.subr.bf16.mxu0 0
      %6067 = vmatpush1.bf16.msra.mxu0 0
      %6068 = vmatprep.subr.bf16.mxu0 0
      %6069 = vmatpush1.bf16.msra.mxu0 0
      %6070 = vmatprep.subr.bf16.mxu0 0
      %6071 = vmatpush1.bf16.msra.mxu0 0
      %6072 = vmatprep.subr.bf16.mxu0 0
      %6073 = vmatpush1.bf16.msra.mxu0 0
      %6074 = vmatprep.subr.bf16.mxu0 0
      %6075 = vmatpush1.bf16.msra.mxu0 0
      %6076 = vmatprep.subr.bf16.mxu0 0
      %6077 = vmatpush1.bf16.msra.mxu0 0
      %6078 = vmatprep.subr.bf16.mxu0 0
      %6079 = vmatpush1.bf16.msra.mxu0 0
      %6080 = vmatprep.subr.bf16.mxu0 0
      %6081 = vmatpush1.bf16.msra.mxu0 0
      %6082 = vmatprep.mubr.bf16.mxu0 0
      %6083 = vmatmul.mubr.bf16.gmra.mrb[0].mxu0 %v5994
      %v6084 = vpop.f32.mrb[0].mxu0
      %v6085 = vadd.f32 0.0, %v6084
      %v6086 = vpop.f32.mrb[0].mxu0
      %v6087 = vpop.f32.mrb[0].mxu0
      %v6088 = vadd.f32 0.0, %v6087
      %v6089 = vpop.f32.mrb[0].mxu0
      %6090 = vmatprep.mubr.bf16.mxu0 0
      %6091 = vmatmul.mubr.bf16.gmra.mrb[0].mxu0 %v5995
      %v6092 = vpop.f32.mrb[0].mxu0
      %v6093 = vadd.f32 0.0, %v6092
      %v6094 = vpop.f32.mrb[0].mxu0
      %v6095 = vpop.f32.mrb[0].mxu0
      %v6096 = vadd.f32 0.0, %v6095
      %v6097 = vpop.f32.mrb[0].mxu0
      %6098 = vmatprep.mubr.bf16.mxu0 0
      %6099 = vmatmul.mubr.bf16.gmra.mrb[0].mxu0 %v5996
      %v6100 = vpop.f32.mrb[0].mxu0
      %v6101 = vadd.f32 0.0, %v6100
      %v6102 = vpop.f32.mrb[0].mxu0
      %v6103 = vpop.f32.mrb[0].mxu0
      %v6104 = vadd.f32 0.0, %v6103
      %v6105 = vpop.f32.mrb[0].mxu0
      %6106 = vmatprep.mubr.bf16.mxu0 0
      %6107 = vmatmul.mubr.bf16.gmra.mrb[0].mxu0 %v5997
      %v6108 = vpop.f32.mrb[0].mxu0
      %v6109 = vadd.f32 0.0, %v6108
      %v6110 = vpop.f32.mrb[0].mxu0
      %v6111 = vpop.f32.mrb[0].mxu0
      %v6112 = vadd.f32 0.0, %v6111
      %v6113 = vpop.f32.mrb[0].mxu0
      %6114 = vdwg.mxu0
      %v6115 = vadd.f32 %v5834, %v6085
      %v6116 = vadd.f32 %v5835, %v6088
      %v6117 = vadd.f32 %v5836, %v6093
      %v6118 = vadd.f32 %v5837, %v6096
      %v6119 = vadd.f32 %v5838, %v6101
      %v6120 = vadd.f32 %v5839, %v6104
      %v6121 = vadd.f32 %v5840, %v6109
      %v6122 = vadd.f32 %v5841, %v6112
      %v6123 = vld [vmem:[%s5672] sm:$0xe]
      %v6124 = vld [vmem:[%s5672 + $0x8] sm:$0xe]
      %v6125 = vld [vmem:[%s5672 + $0x10] sm:$0xe]
      %v6126 = vld [vmem:[%s5672 + $0x18] sm:$0xe]
      %v6127 = vld [vmem:[%s5672 + $0x20] sm:$0xe]
      %v6128 = vld [vmem:[%s5672 + $0x28] sm:$0xe]
      %v6129 = vld [vmem:[%s5672 + $0x30] sm:$0xe]
      %v6130 = vld [vmem:[%s5672 + $0x38] sm:$0xe]
      %v6147 = vrot.slane %v6123, 5
      %v6148 = vrot.slane %v6147, 4
      %v6149 = vrot.slane %v5843, 5
      %v6150 = vsel %vm868, %v6148, %v6149
      %v6151 = vrot.slane %v6124, 5
      %v6152 = vrot.slane %v6151, 4
      %v6153 = vrot.slane %v5845, 5
      %v6154 = vsel %vm868, %v6152, %v6153
      %v6155 = vrot.slane %v6125, 5
      %v6156 = vrot.slane %v6155, 4
      %v6157 = vrot.slane %v5847, 5
      %v6158 = vsel %vm868, %v6156, %v6157
      %v6159 = vrot.slane %v6126, 5
      %v6160 = vrot.slane %v6159, 4
      %v6161 = vrot.slane %v5849, 5
      %v6162 = vsel %vm868, %v6160, %v6161
      %v6163 = vrot.slane %v6127, 5
      %v6164 = vrot.slane %v6163, 4
      %v6165 = vrot.slane %v5851, 5
      %v6166 = vsel %vm868, %v6164, %v6165
      %v6167 = vrot.slane %v6128, 5
      %v6168 = vrot.slane %v6167, 4
      %v6169 = vrot.slane %v5853, 5
      %v6170 = vsel %vm868, %v6168, %v6169
      %v6171 = vrot.slane %v6129, 5
      %v6172 = vrot.slane %v6171, 4
      %v6173 = vrot.slane %v5855, 5
      %v6174 = vsel %vm868, %v6172, %v6173
      %v6175 = vrot.slane %v6130, 5
      %v6176 = vrot.slane %v6175, 4
      %v6177 = vrot.slane %v5857, 5
      %v6178 = vsel %vm868, %v6176, %v6177
      %v6179 = vld [vmem:[%s3 + $0x680] sm:$0xf]
      %v6180 = vld [vmem:[%s3 + $0x684] sm:$0xf]
      %v6181 = vld [vmem:[%s3 + $0x688] sm:$0xf]
      %v6182 = vld [vmem:[%s3 + $0x68c] sm:$0xf]
      %v6183 = vld [vmem:[%s3 + $0x690] sm:$0xf]
      %v6184 = vld [vmem:[%s3 + $0x694] sm:$0xf]
      %v6185 = vld [vmem:[%s3 + $0x698] sm:$0xf]
      %v6186 = vld [vmem:[%s3 + $0x69c] sm:$0xf]
      %v6187 = vld [vmem:[%s3 + $0x6a0] sm:$0xf]
      %v6188 = vld [vmem:[%s3 + $0x6a4] sm:$0xf]
      %v6189 = vld [vmem:[%s3 + $0x6a8] sm:$0xf]
      %v6190 = vld [vmem:[%s3 + $0x6ac] sm:$0xf]
      %v6191 = vld [vmem:[%s3 + $0x6b0] sm:$0xf]
      %v6192 = vld [vmem:[%s3 + $0x6b4] sm:$0xf]
      %v6193 = vld [vmem:[%s3 + $0x6b8] sm:$0xf]
      %v6194 = vld [vmem:[%s3 + $0x6bc] sm:$0xf]
      %v6195 = vunpack.c.l.b16 %v6150
      %v6196 = vunpack.c.l.b16 %v6154
      %v6197 = vunpack.c.l.b16 %v6158
      %v6198 = vunpack.c.l.b16 %v6162
      %v6199 = vunpack.c.l.b16 %v6166
      %v6200 = vunpack.c.l.b16 %v6170
      %v6201 = vunpack.c.l.b16 %v6174
      %v6202 = vunpack.c.l.b16 %v6178
      %v6203 = vpack.c.b16 %v6196, %v6195
      %v6204 = vpack.c.b16 %v6198, %v6197
      %v6205 = vpack.c.b16 %v6200, %v6199
      %v6206 = vpack.c.b16 %v6202, %v6201
      %v6227 = vunpack.c.l.b16 %v6179
      %v6228 = vunpack.c.l.b16 %v6180
      %v6229 = vunpack.c.l.b16 %v6181
      %v6230 = vunpack.c.l.b16 %v6182
      %v6231 = vunpack.c.l.b16 %v6183
      %v6232 = vunpack.c.l.b16 %v6184
      %v6233 = vunpack.c.l.b16 %v6185
      %v6234 = vunpack.c.l.b16 %v6186
      %v6235 = vunpack.c.l.b16 %v6187
      %v6236 = vunpack.c.l.b16 %v6188
      %v6237 = vunpack.c.l.b16 %v6189
      %v6238 = vunpack.c.l.b16 %v6190
      %v6239 = vunpack.c.l.b16 %v6191
      %v6240 = vunpack.c.l.b16 %v6192
      %v6241 = vunpack.c.l.b16 %v6193
      %v6242 = vunpack.c.l.b16 %v6194
      %v6243 = vpack.c.b16 %v6228, %v6227
      %v6244 = vpack.c.b16 %v6230, %v6229
      %v6245 = vpack.c.b16 %v6232, %v6231
      %v6246 = vpack.c.b16 %v6234, %v6233
      %v6247 = vpack.c.b16 %v6236, %v6235
      %v6248 = vpack.c.b16 %v6238, %v6237
      %v6249 = vpack.c.b16 %v6240, %v6239
      %v6250 = vpack.c.b16 %v6242, %v6241
      %6259 = vmatprep.subr.bf16.mxu0 0
      %6260 = vmatpush1.bf16.msra.mxu0 %v6243
      %6261 = vmatprep.subr.bf16.mxu0 0
      %6262 = vmatpush1.bf16.msra.mxu0 %v6244
      %6263 = vmatprep.subr.bf16.mxu0 0
      %6264 = vmatpush1.bf16.msra.mxu0 %v6245
      %6265 = vmatprep.subr.bf16.mxu0 0
      %6266 = vmatpush1.bf16.msra.mxu0 %v6246
      %6267 = vmatprep.subr.bf16.mxu0 0
      %6268 = vmatpush1.bf16.msra.mxu0 %v6247
      %6269 = vmatprep.subr.bf16.mxu0 0
      %6270 = vmatpush1.bf16.msra.mxu0 %v6248
      %6271 = vmatprep.subr.bf16.mxu0 0
      %6272 = vmatpush1.bf16.msra.mxu0 %v6249
      %6273 = vmatprep.subr.bf16.mxu0 0
      %6274 = vmatpush1.bf16.msra.mxu0 %v6250
      %6275 = vmatprep.subr.bf16.mxu0 0
      %6276 = vmatpush1.bf16.msra.mxu0 0
      %6277 = vmatprep.subr.bf16.mxu0 0
      %6278 = vmatpush1.bf16.msra.mxu0 0
      %6279 = vmatprep.subr.bf16.mxu0 0
      %6280 = vmatpush1.bf16.msra.mxu0 0
      %6281 = vmatprep.subr.bf16.mxu0 0
      %6282 = vmatpush1.bf16.msra.mxu0 0
      %6283 = vmatprep.subr.bf16.mxu0 0
      %6284 = vmatpush1.bf16.msra.mxu0 0
      %6285 = vmatprep.subr.bf16.mxu0 0
      %6286 = vmatpush1.bf16.msra.mxu0 0
      %6287 = vmatprep.subr.bf16.mxu0 0
      %6288 = vmatpush1.bf16.msra.mxu0 0
      %6289 = vmatprep.subr.bf16.mxu0 0
      %6290 = vmatpush1.bf16.msra.mxu0 0
      %6291 = vmatprep.mubr.bf16.mxu0 0
      %6292 = vmatmul.mubr.bf16.gmra.mrb[0].mxu0 %v6203
      %v6293 = vpop.f32.mrb[0].mxu0
      %v6294 = vadd.f32 0.0, %v6293
      %v6295 = vpop.f32.mrb[0].mxu0
      %v6296 = vpop.f32.mrb[0].mxu0
      %v6297 = vadd.f32 0.0, %v6296
      %v6298 = vpop.f32.mrb[0].mxu0
      %6299 = vmatprep.mubr.bf16.mxu0 0
      %6300 = vmatmul.mubr.bf16.gmra.mrb[0].mxu0 %v6204
      %v6301 = vpop.f32.mrb[0].mxu0
      %v6302 = vadd.f32 0.0, %v6301
      %v6303 = vpop.f32.mrb[0].mxu0
      %v6304 = vpop.f32.mrb[0].mxu0
      %v6305 = vadd.f32 0.0, %v6304
      %v6306 = vpop.f32.mrb[0].mxu0
      %6307 = vmatprep.mubr.bf16.mxu0 0
      %6308 = vmatmul.mubr.bf16.gmra.mrb[0].mxu0 %v6205
      %v6309 = vpop.f32.mrb[0].mxu0
      %v6310 = vadd.f32 0.0, %v6309
      %v6311 = vpop.f32.mrb[0].mxu0
      %v6312 = vpop.f32.mrb[0].mxu0
      %v6313 = vadd.f32 0.0, %v6312
      %v6314 = vpop.f32.mrb[0].mxu0
      %6315 = vmatprep.mubr.bf16.mxu0 0
      %6316 = vmatmul.mubr.bf16.gmra.mrb[0].mxu0 %v6206
      %v6317 = vpop.f32.mrb[0].mxu0
      %v6318 = vadd.f32 0.0, %v6317
      %v6319 = vpop.f32.mrb[0].mxu0
      %v6320 = vpop.f32.mrb[0].mxu0
      %v6321 = vadd.f32 0.0, %v6320
      %v6322 = vpop.f32.mrb[0].mxu0
      %6323 = vdwg.mxu0
      %v6324 = vadd.f32 %v6115, %v6294
      %v6325 = vadd.f32 %v6116, %v6297
      %v6326 = vadd.f32 %v6117, %v6302
      %v6327 = vadd.f32 %v6118, %v6305
      %v6328 = vadd.f32 %v6119, %v6310
      %v6329 = vadd.f32 %v6120, %v6313
      %v6330 = vadd.f32 %v6121, %v6318
      %v6331 = vadd.f32 %v6122, %v6321
      %6332 = vst [vmem:[%s392] sm:$0xff] %v6324
      %6333 = vst [vmem:[%s392 + $0x8] sm:$0xff] %v6325
      %6334 = vst [vmem:[%s392 + $0x10] sm:$0xff] %v6326
      %6335 = vst [vmem:[%s392 + $0x18] sm:$0xff] %v6327
      %6336 = vst [vmem:[%s392 + $0x20] sm:$0xff] %v6328
      %6337 = vst [vmem:[%s392 + $0x28] sm:$0xff] %v6329
      %6338 = vst [vmem:[%s392 + $0x30] sm:$0xff] %v6330
      %6339 = vst [vmem:[%s392 + $0x38] sm:$0xff] %v6331
      %v6340 = vadd.f32 %v6324, %v6325
      %v6341 = vadd.f32 %v6340, %v6326
      %v6342 = vadd.f32 %v6341, %v6327
      %v6343 = vadd.f32 %v6342, %v6328
      %v6344 = vadd.f32 %v6343, %v6329
      %v6345 = vadd.f32 %v6344, %v6330
      %v6346 = vadd.f32 %v6345, %v6331
      %v6347 = vrot.slane %v6346, 4
      %v6348 = vadd.f32 %v6346, %v6347
      %v6349 = vrot.slane %v6348, 2
      %v6350 = vadd.f32 %v6348, %v6349
      %v6351 = vrot.slane %v6350, 1
      %v6352 = vadd.f32 %v6350, %v6351
      %6353 = vst [vmem:[%s401] sm:$0xff] %v6352
      %v6354 = vmul.f32 %v6324, %v6324
      %v6355 = vmul.f32 %v6325, %v6325
      %v6356 = vmul.f32 %v6326, %v6326
      %v6357 = vmul.f32 %v6327, %v6327
      %v6358 = vmul.f32 %v6328, %v6328
      %v6359 = vmul.f32 %v6329, %v6329
      %v6360 = vmul.f32 %v6330, %v6330
      %v6361 = vmul.f32 %v6331, %v6331
      %v6362 = vadd.f32 %v6354, %v6355
      %v6363 = vadd.f32 %v6362, %v6356
      %v6364 = vadd.f32 %v6363, %v6357
      %v6365 = vadd.f32 %v6364, %v6358
      %v6366 = vadd.f32 %v6365, %v6359
      %v6367 = vadd.f32 %v6366, %v6360
      %v6368 = vadd.f32 %v6367, %v6361
      %v6369 = vrot.slane %v6368, 4
      %v6370 = vadd.f32 %v6368, %v6369
      %v6371 = vrot.slane %v6370, 2
      %v6372 = vadd.f32 %v6370, %v6371
      %v6373 = vrot.slane %v6372, 1
      %v6374 = vadd.f32 %v6372, %v6373
      %6375 = vst [vmem:[%s409] sm:$0xff] %v6374
      %s6376 = smul.u32 %s22, 8
      %s6377 = sadd.s32 %s6376, %s23
      %s6378 = smul.u32 8, %s6377
      %p6379 = scmp.lt.s32.totalorder %s6378, 127
      %s6380 = scalar_select %p6379, %s6378, 127
      %s6381 = smul.addr %s6380, 8
      %s6382 = scalar_lea.vmem %s4, %s6381
      %s6383 = smul.u32 %s22, 8
      %s6384 = sadd.s32 %s6383, %s23
      %p6385 = scmp.lt.s32.totalorder %s6384, 15
      %s6386 = scalar_select %p6385, %s6384, 15
      %s6387 = smul.addr %s6386, 8
      %s6388 = scalar_lea.vmem %s5, %s6387
      %s6389 = smul.u32 %s22, 8
      %s6390 = sadd.s32 %s6389, %s23
      %p6391 = scmp.lt.s32.totalorder %s6390, 15
      %s6392 = scalar_select %p6391, %s6390, 15
      %s6393 = smul.addr %s6392, 8
      %s6394 = scalar_lea.vmem %s6, %s6393
      // Predicated region
      $region37: #{basic_block_forward.4} parent=35 // pred_check
        %p6395 = pneg %p161
      $region38: #{basic_block_forward.4} parent=35 // pred_check_branch
        %6397 = sbr.rel (%p6395) target = $region40
      $region39: #{basic_block_forward.4} parent=35 // pred_region
        %s6398 = smul.u32 %s22, 8
        %s6399 = sadd.s32 %s6398, %s23
        %s6400 = smul.u32 8, %s6399
      $region40: #{basic_block_forward.4} parent=35 // pred_fallthru
        _
      // Predicated region
      $region41: #{basic_block_forward.4} parent=35 // pred_check
        %p6401 = pneg %p191
      $region42: #{basic_block_forward.4} parent=35 // pred_check_branch
        %6403 = sbr.rel (%p6401) target = $region44
      $region43: #{basic_block_forward.4} parent=35 // pred_region
        %s6404 = smul.u32 %s22, 8
        %s6405 = sadd.s32 %s6404, %s23
      $region44: #{basic_block_forward.4} parent=35 // pred_fallthru
        _
      // Predicated region
      $region45: #{basic_block_forward.4} parent=35 // pred_check
        %p6406 = pneg %p221
      $region46: #{basic_block_forward.4} parent=35 // pred_check_branch
        %6408 = sbr.rel (%p6406) target = $region48
      $region47: #{basic_block_forward.4} parent=35 // pred_region
        %s6409 = smul.u32 %s22, 8
        %s6410 = sadd.s32 %s6409, %s23
      $region48: #{basic_block_forward.4} parent=35 // pred_fallthru
        _
    $region36: #{basic_block_forward.4} parent=5 // pred_fallthru
      _
    %p6411 = scmp.le.s32.totalorder 2, %s13
    // Predicated region
    $region49: #{basic_block_forward.4} parent=5 // pred_check
      %p6412 = pneg %p6411
    $region50: #{basic_block_forward.4} parent=5 // pred_check_branch
      %6414 = sbr.rel (%p6412) target = $region52
    $region51: #{basic_block_forward.4} parent=5 // pred_region
      %s6415 = ssub.s32 %s13, 2
      // Predicated region
      $region53: #{basic_block_forward.4} parent=51 // pred_check
        %p6416 = pneg %p167
      $region54: #{basic_block_forward.4} parent=51 // pred_check_branch
        %6418 = sbr.rel (%p6416) target = $region56
      $region55: #{basic_block_forward.4} parent=51 // pred_region
        %s6419 = smul.u32 %s24, 8
        %s6420 = sadd.s32 %s6419, %s25
        %s6421 = smul.u32 8, %s6420
        %p6422 = scmp.lt.s32.totalorder %s6421, 127
        %s6423 = scalar_select %p6422, %s6421, 127
        %s6424 = smul.addr %s6423, 8
        %s6425 = scalar_lea.vmem %s4, %s6424
      $region56: #{basic_block_forward.4} parent=51 // pred_fallthru
        _
      // Predicated region
      $region57: #{basic_block_forward.4} parent=51 // pred_check
        %p6426 = pneg %p197
      $region58: #{basic_block_forward.4} parent=51 // pred_check_branch
        %6428 = sbr.rel (%p6426) target = $region60
      $region59: #{basic_block_forward.4} parent=51 // pred_region
        %s6429 = smul.u32 %s24, 8
        %s6430 = sadd.s32 %s6429, %s25
        %p6431 = scmp.lt.s32.totalorder %s6430, 15
        %s6432 = scalar_select %p6431, %s6430, 15
        %s6433 = smul.addr %s6432, 8
        %s6434 = scalar_lea.vmem %s5, %s6433
      $region60: #{basic_block_forward.4} parent=51 // pred_fallthru
        _
      // Predicated region
      $region61: #{basic_block_forward.4} parent=51 // pred_check
        %p6435 = pneg %p227
      $region62: #{basic_block_forward.4} parent=51 // pred_check_branch
        %6437 = sbr.rel (%p6435) target = $region64
      $region63: #{basic_block_forward.4} parent=51 // pred_region
        %s6438 = smul.u32 %s24, 8
        %s6439 = sadd.s32 %s6438, %s25
        %p6440 = scmp.lt.s32.totalorder %s6439, 15
        %s6441 = scalar_select %p6440, %s6439, 15
        %s6442 = smul.addr %s6441, 8
        %s6443 = scalar_lea.vmem %s6, %s6442
      $region64: #{basic_block_forward.4} parent=51 // pred_fallthru
        _
    $region52: #{basic_block_forward.4} parent=5 // pred_fallthru
      _
  $region6: #{basic_block_forward.4} parent=0 // loop_footer
    %s17 = sadd.s32 1, %s13
  $region7: #{basic_block_forward.4} parent=0 // loop_footer_branch
    %12 = sbr.rel target = $region3
  $region8: #{basic_block_forward.4} parent=0 // loop_exit
    _

</llo_original>
